<compile_context>
chip_gen: v6e
topology: v6e:2x2x1
jax: 0.10.0
libtpu: 0.0.40
codegen_flags: <defaults>
</compile_context>

<pallas_src>
import functools
import math

import numpy as np
import jax
import jax.numpy as jnp
from jax import lax
from jax.experimental import pallas as pl
from jax.experimental.pallas import tpu as pltpu

# ----------------------------------------------------------------------------- constants
# Synthetic stand-ins for swan's featurizer constants.
NUMBER_ATOMIC_GRAPH_FEATURES = 4
NUMBER_BOND_GRAPH_FEATURES = 4
ATOM_FEAT = NUMBER_ATOMIC_GRAPH_FEATURES
BOND_FEAT = NUMBER_BOND_GRAPH_FEATURES

NUM_LAYERS = 1                 # num_layers (see TODO below for >1)
NUM_CHANNELS = 8               # num_channels
NUM_DEGREES = 4                # num_degrees -> irreps {0,1,2,3}
DIV = 4                        # div
N_HEADS = 1                    # n_heads (single-head attention path)
POOLING = "avg"
RADIAL_HIDDEN = 32             # hidden width of RadialFunc MLPs
EDGE_IN_PAD = 8                # radial input (BOND_FEAT + 1 = 5) zero-padded to 8 (sublane-friendly)

C_MID = NUM_CHANNELS                           # 8
C_ATT = max(1, NUM_CHANNELS // int(DIV))       # 2  value/key channels per degree
M_TOT = NUM_DEGREES * NUM_DEGREES              # 16 = sum_d (2d+1): packed degree width
DEG_OFF = [d * d for d in range(NUM_DEGREES)]  # 0, 1, 4, 9
DV = C_ATT * M_TOT                             # 32: flattened value width per edge
C_OUT = NUM_DEGREES * NUM_CHANNELS             # 32: GConvSE3 output channels (degree 0)


# ----------------------------------------------------------------------------- static 0/1 helper matrices
def _build_static_mats():
    nd, ca, cm, mtot = NUM_DEGREES, C_ATT, C_MID, M_TOT
    e1 = np.zeros((nd * ca, DV), np.float32)          # Sv [E, nd*ca]      -> flat value cols
    e2 = np.zeros((mtot, DV), np.float32)             # basis [E, 16]      -> flat value cols
    gmat = np.zeros((cm * mtot, cm * nd), np.float32)  # packed (c,pp) cols -> (c,d) groups
    resid = np.zeros((ATOM_FEAT, cm * mtot), np.float32)  # h0 channel -> degree-0 packed column
    for d in range(nd):
        P = 2 * d + 1
        off = DEG_OFF[d]
        for m in range(ca):
            for p in range(P):
                col = 2 * off + m * P + p              # (d, m, p), m-major inside a degree block
                e1[d * ca + m, col] = 1.0
                e2[off + p, col] = 1.0
    for c in range(cm):
        for d in range(nd):
            for p in range(2 * d + 1):
                gmat[c * mtot + DEG_OFF[d] + p, c * nd + d] = 1.0
    for c in range(min(ATOM_FEAT, cm)):                # GSum residual touches min(f_in, f_mid) chans
        resid[c, c * mtot + 0] = 1.0
    return e1, e2, gmat, resid


_E1_NP, _E2_NP, _GMAT_NP, _RESID_NP = _build_static_mats()


def _build_agg_mat(n):
    """[N, N*N] matrix doing the 'mean over neighbours j != i' aggregation as one matmul."""
    a = np.zeros((n, n * n), np.float32)
    for i in range(n):
        for j in range(n):
            if j != i:
                a[i, i * n + j] = 1.0 / (n - 1)
    return a


def _build_wproj_big(wproj):
    """Block-structured [DV, C_MID*16] matrix applying the per-degree 1x1 projections in one matmul."""
    rows, cols, di, mi, ci = [], [], [], [], []
    for d in range(NUM_DEGREES):
        P = 2 * d + 1
        off = DEG_OFF[d]
        for m in range(C_ATT):
            for c in range(C_MID):
                for p in range(P):
                    rows.append(2 * off + m * P + p)
                    cols.append(c * M_TOT + off + p)
                    di.append(d)
                    mi.append(m)
                    ci.append(c)
    vals = wproj[np.array(di), np.array(mi), np.array(ci)]
    wb = jnp.zeros((DV, C_MID * M_TOT), jnp.float32)
    return wb.at[np.array(rows), np.array(cols)].set(vals)


def _full_spec(shape):
    n_dims = len(shape)
    return pl.BlockSpec(shape, lambda i: (0,) * n_dims)


# ----------------------------------------------------------------------------- Pallas kernels
def _radial_mlp_kernel(x_ref, w1_ref, b1_ref, w2_ref, b2_ref, w3_ref, b3_ref, o_ref):
    """Fused 3-layer RadialFunc MLP; grid axis = degree pair (weights stacked on axis 0)."""
    # TODO(synk): original RadialFunc has BatchNorm1d layers (running statistics); omitted here.
    x = x_ref[...]
    h = jnp.dot(x, w1_ref[0], preferred_element_type=jnp.float32) + b1_ref[0]
    h = jnp.maximum(h, 0.0)
    h = jnp.dot(h, w2_ref[0], preferred_element_type=jnp.float32) + b2_ref[0]
    h = jnp.maximum(h, 0.0)
    o_ref[0] = jnp.dot(h, w3_ref[0], preferred_element_type=jnp.float32) + b3_ref[0]


def radial_mlp_batched(edge_in_pad, w1, b1, w2, b2, w3, b3):
    """All radial MLPs of one block in a single launch: grid over degree pairs (parallel)."""
    npair, k, hdim = w1.shape
    odim = w3.shape[-1]
    e = edge_in_pad.shape[0]
    return pl.pallas_call(
        _radial_mlp_kernel,
        grid=(npair,),
        in_specs=[
            pl.BlockSpec((e, k), lambda p: (0, 0)),
            pl.BlockSpec((1, k, hdim), lambda p: (p, 0, 0)),
            pl.BlockSpec((1, 1, hdim), lambda p: (p, 0, 0)),
            pl.BlockSpec((1, hdim, hdim), lambda p: (p, 0, 0)),
            pl.BlockSpec((1, 1, hdim), lambda p: (p, 0, 0)),
            pl.BlockSpec((1, hdim, odim), lambda p: (p, 0, 0)),
            pl.BlockSpec((1, 1, odim), lambda p: (p, 0, 0)),
        ],
        out_specs=pl.BlockSpec((1, e, odim), lambda p: (p, 0, 0)),
        out_shape=jax.ShapeDtypeStruct((npair, e, odim), jnp.float32),
        compiler_params=pltpu.CompilerParams(dimension_semantics=("parallel",)),
    )(edge_in_pad, w1, b1, w2, b2, w3, b3)


def _gse3res_gnorm_kernel(rv_ref, rk_ref, feat_ref, bpack_ref, h0_ref, wq_ref,
                          e1_ref, e2_ref, wb_ref, resid_ref,
                          gmat_ref, gmatt_ref, gamma_ref, beta_ref, o_ref, *, scale):
    """Fused GSE3Res (1-head SE(3) attention, skip='sum') + GNormSE3 on a packed fiber layout."""
    n = h0_ref.shape[0]
    n_edges = rv_ref.shape[0]
    feat = feat_ref[...]                                         # [E, c_in]  source-node degree-0 feats
    # basis-first contraction: apply radial coeffs to source features (no big kernel tensor).
    sv = jnp.sum(rv_ref[...] * feat[:, None, :], axis=-1)        # [E, nd*ca]
    sk = jnp.sum(rk_ref[...] * feat[:, None, :], axis=-1)        # [E, ca]
    # queries + attention scores on the MXU (q @ k^T over the flat edge axis).
    h0 = h0_ref[...]
    q = jnp.dot(h0, wq_ref[...], preferred_element_type=jnp.float32)           # [N, ca]
    scores = lax.dot_general(q, sk, (((1,), (1,)), ((), ())),
                             preferred_element_type=jnp.float32) * scale       # [N, E]
    row = lax.broadcasted_iota(jnp.int32, (n, n_edges), 0)
    col = lax.broadcasted_iota(jnp.int32, (n, n_edges), 1)
    valid = (col >= row * n) & (col < row * n + n) & (col != row * (n + 1))    # edges of row i, no self
    scores = jnp.where(valid, scores, -1e30)
    mx = jnp.max(scores, axis=-1, keepdims=True)
    ex = jnp.exp(scores - mx)
    alpha = ex * pl.reciprocal(jnp.sum(ex, axis=-1, keepdims=True), approx=True)   # [N, E]
    # per-edge values vf[e, (d,m,p)] = Sv[e, d*ca+m] * basis_d[e, p], built lane-dense via 0/1 expanders.
    vf = (jnp.dot(sv, e1_ref[...], preferred_element_type=jnp.float32) *
          jnp.dot(bpack_ref[...], e2_ref[...], preferred_element_type=jnp.float32))  # [E, DV]
    attn = jnp.dot(alpha, vf, preferred_element_type=jnp.float32)                    # [N, DV]
    # degree-wise 1x1 projection + degree-0 residual -> packed lane-dense [N, C_MID*16].
    x = (jnp.dot(attn, wb_ref[...], preferred_element_type=jnp.float32) +
         jnp.dot(h0, resid_ref[...], preferred_element_type=jnp.float32))
    # GNormSE3: norm per (channel, degree) group, ReLU(gamma*||h|| + beta) * h/||h||.
    # TODO(synk): original GNormSE3 uses BatchNorm on the norms; learned affine + ReLU used instead.
    sumsq = jnp.dot(x * x, gmat_ref[...], preferred_element_type=jnp.float32) + 1e-12   # [N, C_MID*nd]
    inv = lax.rsqrt(sumsq)
    nrm = sumsq * inv
    sc = jnp.maximum(nrm * gamma_ref[...] + beta_ref[...], 0.0)
    factor = jnp.dot(sc * inv, gmatt_ref[...], preferred_element_type=jnp.float32)      # [N, C_MID*16]
    o_ref[...] = x * factor


def gse3res_gnorm(rv, rk, feat_src, bpack, h0, wq, e1, e2, wb, resid, gmat, gmat_t, gamma, beta):
    n = h0.shape[0]
    dk = wq.shape[1]                       # flat key width (degree 0 only) = C_ATT
    out_dim = wb.shape[1]
    args = (rv, rk, feat_src, bpack, h0, wq, e1, e2, wb, resid, gmat, gmat_t, gamma, beta)
    return pl.pallas_call(
        functools.partial(_gse3res_gnorm_kernel, scale=1.0 / math.sqrt(dk)),
        grid=(1,),
        in_specs=[_full_spec(a.shape) for a in args],
        out_specs=_full_spec((n, out_dim)),
        out_shape=jax.ShapeDtypeStruct((n, out_dim), jnp.float32),
        compiler_params=pltpu.CompilerParams(dimension_semantics=("arbitrary",)),
    )(*args)


def _gconv_pool_fc_kernel(rc_ref, feat_ref, bc_ref, gmat_ref, agg_ref, hs0_ref,
                          wself_ref, w1_ref, b1_ref, w2_ref, b2_ref, o_ref):
    """Fused GConvSE3 (basis-first) + mean-over-neighbours + self-interaction + GAvgPooling + FC head."""
    prod = feat_ref[...] * bc_ref[...]                                        # [E, C_MID*16]
    t = jnp.dot(prod, gmat_ref[...], preferred_element_type=jnp.float32)      # [E, C_MID*nd]
    msg = jnp.sum(rc_ref[...] * t[:, None, :], axis=-1)                       # [E, C_OUT]
    agg = jnp.dot(agg_ref[...], msg, preferred_element_type=jnp.float32)      # [N, C_OUT]
    selfi = jnp.dot(hs0_ref[...], wself_ref[...], preferred_element_type=jnp.float32)
    hout = agg + selfi
    pooled = jnp.mean(hout, axis=0, keepdims=True)                            # GAvgPooling -> [1, C_OUT]
    y = jnp.maximum(jnp.dot(pooled, w1_ref[...], preferred_element_type=jnp.float32) + b1_ref[...], 0.0)
    o_ref[...] = jnp.dot(y, w2_ref[...], preferred_element_type=jnp.float32) + b2_ref[...]


def gconv_pool_fc(rc_all, feat_mid, bc_tiled, gmat, agg_mat, hs0, wself, w1, b1, w2, b2):
    args = (rc_all, feat_mid, bc_tiled, gmat, agg_mat, hs0, wself, w1, b1, w2, b2)
    return pl.pallas_call(
        _gconv_pool_fc_kernel,
        grid=(1,),
        in_specs=[_full_spec(a.shape) for a in args],
        out_specs=_full_spec((1, 1)),
        out_shape=jax.ShapeDtypeStruct((1, 1), jnp.float32),
        compiler_params=pltpu.CompilerParams(dimension_semantics=("arbitrary",)),
    )(*args)


# ----------------------------------------------------------------------------- basis / glue
def build_basis_and_r(pos, n):
    """Pairwise distances + packed per-degree basis values (dest-major edge order)."""
    # TODO(synk): exact spherical-harmonic / Clebsch-Gordan basis (lie_learn machinery of
    # get_basis_and_r) not reproduced; deterministic direction-dependent surrogate with the
    # correct per-degree widths is used instead.
    diff = pos[:, None, :] - pos[None, :, :]
    r = jnp.sqrt(jnp.sum(diff * diff, axis=-1, keepdims=True) + 1e-12)        # [N, N, 1]
    unit = diff / jnp.maximum(r, 1e-6)
    flat_unit = unit.reshape(n * n, 3)
    key = jax.random.PRNGKey(42)

    def surrogate(d_in, d_out):
        width = 2 * max(d_in, d_out) + 1
        if d_in == 0 and d_out == 0:
            return jnp.ones((n * n, 1), jnp.float32)
        sub = jax.random.fold_in(jax.random.fold_in(key, d_in), d_out)
        proj = jax.random.normal(sub, (3, width), jnp.float32)
        return jnp.sin(flat_unit @ proj)

    bpack_res = jnp.concatenate([surrogate(0, d) for d in range(NUM_DEGREES)], axis=-1)   # [E, 16]
    bpack_conv = jnp.concatenate([surrogate(d, 0) for d in range(NUM_DEGREES)], axis=-1)  # [E, 16]
    return bpack_res, bpack_conv, r.reshape(n * n, 1)


# ----------------------------------------------------------------------------- parameters
class KeyGen:
    def __init__(self, key):
        self.key = key

    def __call__(self):
        self.key, sub = jax.random.split(self.key)
        return sub


def glorot(key, shape):
    lim = math.sqrt(6.0 / (shape[0] + shape[1]))
    return jax.random.uniform(key, shape, jnp.float32, -lim, lim)


def init_radial_stack(kg, n_pairs, out_dim):
    """Stacked weights for n_pairs RadialFunc MLPs (input zero-padded 5 -> EDGE_IN_PAD)."""
    in_dim = BOND_FEAT + 1
    w1 = jnp.stack([jnp.pad(glorot(kg(), (in_dim, RADIAL_HIDDEN)),
                            ((0, EDGE_IN_PAD - in_dim), (0, 0))) for _ in range(n_pairs)])
    w2 = jnp.stack([glorot(kg(), (RADIAL_HIDDEN, RADIAL_HIDDEN)) for _ in range(n_pairs)])
    w3 = jnp.stack([glorot(kg(), (RADIAL_HIDDEN, out_dim)) for _ in range(n_pairs)])
    return {"rad_w1": w1, "rad_b1": jnp.zeros((n_pairs, 1, RADIAL_HIDDEN), jnp.float32),
            "rad_w2": w2, "rad_b2": jnp.zeros((n_pairs, 1, RADIAL_HIDDEN), jnp.float32),
            "rad_w3": w3, "rad_b3": jnp.zeros((n_pairs, 1, out_dim), jnp.float32)}


def init_params(key):
    kg = KeyGen(key)
    params = {"res": [], "norm": []}
    # GSE3Res layer: f_in={0:ATOM_FEAT} -> f_mid; 4 value pairs + 1 key pair, out = C_ATT*ATOM_FEAT.
    res = init_radial_stack(kg, NUM_DEGREES + 1, C_ATT * ATOM_FEAT)
    res["wq"] = glorot(kg(), (ATOM_FEAT, C_ATT))
    res["wproj"] = jnp.stack([glorot(kg(), (C_ATT, C_MID)) for _ in range(NUM_DEGREES)])
    params["res"].append(res)
    params["norm"].append({
        "g": 1.0 + 0.1 * jax.random.normal(kg(), (NUM_DEGREES, C_MID), jnp.float32),
        "b": 0.1 * jax.random.normal(kg(), (NUM_DEGREES, C_MID), jnp.float32)})
    # GConvSE3: f_mid -> {0: NUM_DEGREES*NUM_CHANNELS}; 4 pairs, out = C_OUT*C_MID.
    conv = init_radial_stack(kg, NUM_DEGREES, C_OUT * C_MID)
    conv["wself"] = glorot(kg(), (C_MID, C_OUT))
    params["conv"] = conv
    params["fc"] = {"w1": glorot(kg(), (C_OUT, C_OUT)), "b1": jnp.zeros((C_OUT,), jnp.float32),
                    "w2": glorot(kg(), (C_OUT, 1)), "b2": jnp.zeros((1,), jnp.float32)}
    return params


# ----------------------------------------------------------------------------- forward
def se3_transformer_forward(params, node_feat, pos, bond_feat):
    # TODO(synk): specialized to NUM_LAYERS == 1 (the only exercised config); intermediate layers
    # with d_in > 0 inputs to GSE3Res would need the general degree-pair contraction path.
    assert NUM_LAYERS == 1
    n = node_feat.shape[0]
    e = n * n
    bpack_res, bpack_conv, r = build_basis_and_r(pos, n)
    edge_in = jnp.concatenate([bond_feat.reshape(e, BOND_FEAT), r], axis=-1)          # [E, 5]
    edge_in = jnp.pad(edge_in, ((0, 0), (0, EDGE_IN_PAD - (BOND_FEAT + 1))))          # [E, 8]

    # (A) all GSE3Res radial MLPs in one launch, (B) all GConvSE3 radial MLPs in one launch.
    lp = params["res"][0]
    rad_res = radial_mlp_batched(edge_in, lp["rad_w1"], lp["rad_b1"], lp["rad_w2"],
                                 lp["rad_b2"], lp["rad_w3"], lp["rad_b3"])            # [5, E, 8]
    cp = params["conv"]
    rad_conv = radial_mlp_batched(edge_in, cp["rad_w1"], cp["rad_b1"], cp["rad_w2"],
                                  cp["rad_b2"], cp["rad_w3"], cp["rad_b3"])           # [4, E, 256]

    # layout glue (pure XLA reshapes / broadcasts)
    rv = rad_res[:NUM_DEGREES].transpose(1, 0, 2).reshape(e, NUM_DEGREES * C_ATT, ATOM_FEAT)
    rk = rad_res[NUM_DEGREES].reshape(e, C_ATT, ATOM_FEAT)
    feat_src = jnp.tile(node_feat, (n, 1))                                            # [E, ATOM_FEAT]

    wb = _build_wproj_big(lp["wproj"])
    gnp = params["norm"][0]
    gamma = gnp["g"].T.reshape(1, C_MID * NUM_DEGREES)
    beta = gnp["b"].T.reshape(1, C_MID * NUM_DEGREES)
    e1 = jnp.asarray(_E1_NP)
    e2 = jnp.asarray(_E2_NP)
    gmat = jnp.asarray(_GMAT_NP)
    gmat_t = jnp.asarray(_GMAT_NP.T)
    resid = jnp.asarray(_RESID_NP)
    agg_mat = jnp.asarray(_build_agg_mat(n))

    # (C) fused GSE3Res attention + GNormSE3 -> packed fiber [N, C_MID*16]
    h_mid = gse3res_gnorm(rv, rk, feat_src, bpack_res, node_feat, lp["wq"],
                          e1, e2, wb, resid, gmat, gmat_t, gamma, beta)

    # (D) fused GConvSE3 + aggregation + self-interaction + GAvgPooling + FC head
    rc = rad_conv.transpose(1, 0, 2).reshape(e, NUM_DEGREES, C_OUT, C_MID)
    rc_all = rc.transpose(0, 2, 3, 1).reshape(e, C_OUT, C_MID * NUM_DEGREES)          # [E, 32, 32]
    feat_mid = jnp.tile(h_mid, (n, 1))                                                # [E, C_MID*16]
    bc_tiled = jnp.tile(bpack_conv, (1, C_MID))                                       # [E, C_MID*16]
    hs0 = h_mid[:, ::M_TOT]                                                           # degree-0 part [N, C_MID]
    fc = params["fc"]
    out = gconv_pool_fc(rc_all, feat_mid, bc_tiled, gmat, agg_mat, hs0, cp["wself"],
                        fc["w1"], fc["b1"].reshape(1, -1), fc["w2"], fc["b2"].reshape(1, 1))
    return out                                                                        # [1, 1]


# ----------------------------------------------------------------------------- main
if __name__ == "__main__":
    key = jax.random.PRNGKey(0)
    k1, k2, k3, kp = jax.random.split(key, 4)
    N_NODES = 8
    node_feat = jax.random.normal(k1, (N_NODES, ATOM_FEAT), jnp.float32)
    pos = jax.random.normal(k2, (N_NODES, 3), jnp.float32)
    bond_feat = jax.random.normal(k3, (N_NODES, N_NODES, BOND_FEAT), jnp.float32)

    params = init_params(kp)

    fwd = jax.jit(se3_transformer_forward)
    out = fwd(params, node_feat, pos, bond_feat)
    jax.block_until_ready(out)
    assert out.shape == (1, 1) and out.dtype == jnp.float32
    assert bool(jnp.isfinite(out).all())
    print("KERNEL_OK")
</pallas_src>

<mosaic_0001>
module attributes {stable_mosaic.version = 11 : i64} {
  func.func @_radial_mlp_kernel(%arg0: i32, %arg1: memref<64x8xf32, #tpu.memory_space<vmem>>, %arg2: memref<1x8x32xf32, #tpu.memory_space<vmem>>, %arg3: memref<1x1x32xf32, #tpu.memory_space<vmem>>, %arg4: memref<1x32x32xf32, #tpu.memory_space<vmem>>, %arg5: memref<1x1x32xf32, #tpu.memory_space<vmem>>, %arg6: memref<1x32x256xf32, #tpu.memory_space<vmem>>, %arg7: memref<1x1x256xf32, #tpu.memory_space<vmem>>, %arg8: memref<1x64x256xf32, #tpu.memory_space<vmem>>) attributes {dimension_semantics = [#tpu.dimension_semantics<parallel>], iteration_bounds = array<i64: 4>, scalar_prefetch = 0 : i64, scratch_operands = 0 : i64, tpu.core_type = #tpu.core_type<tc>, window_params = [{pipeline_mode = #tpu.pipeline_mode<synchronous>, transform_indices = @transform_0, window_bounds = array<i64: 64, 8>}, {transform_indices = @transform_1, window_bounds = array<i64: 1, 8, 32>}, {transform_indices = @transform_2, window_bounds = array<i64: 1, 1, 32>}, {transform_indices = @transform_3, window_bounds = array<i64: 1, 32, 32>}, {transform_indices = @transform_4, window_bounds = array<i64: 1, 1, 32>}, {transform_indices = @transform_5, window_bounds = array<i64: 1, 32, 256>}, {transform_indices = @transform_6, window_bounds = array<i64: 1, 1, 256>}, {transform_indices = @transform_7, window_bounds = array<i64: 1, 64, 256>}]} {
    %c0 = arith.constant 0 : index
    %c0_0 = arith.constant 0 : index
    %0 = vector.load %arg1[%c0, %c0_0] : memref<64x8xf32, #tpu.memory_space<vmem>>, vector<64x8xf32>
    %c0_1 = arith.constant 0 : index
    %c0_2 = arith.constant 0 : index
    %c0_3 = arith.constant 0 : index
    %1 = vector.load %arg2[%c0_1, %c0_2, %c0_3] : memref<1x8x32xf32, #tpu.memory_space<vmem>>, vector<1x8x32xf32>
    %2 = vector.shape_cast %1 : vector<1x8x32xf32> to vector<8x32xf32>
    %cst = arith.constant dense<0.000000e+00> : vector<64x32xf32>
    %3 = tpu.matmul %0, %2, %cst {dimension_numbers = #tpu.dot_dimension_numbers<[1], [0], [0], [1], [0, 0, 1, 1], [], []>} : vector<64x8xf32>, vector<8x32xf32>, vector<64x32xf32> -> vector<64x32xf32>
    %c0_4 = arith.constant 0 : index
    %c0_5 = arith.constant 0 : index
    %c0_6 = arith.constant 0 : index
    %4 = vector.load %arg3[%c0_4, %c0_5, %c0_6] : memref<1x1x32xf32, #tpu.memory_space<vmem>>, vector<1x1x32xf32>
    %5 = vector.shape_cast %4 : vector<1x1x32xf32> to vector<1x32xf32>
    %6 = vector.broadcast %5 : vector<1x32xf32> to vector<64x32xf32>
    %7 = arith.addf %3, %6 : vector<64x32xf32>
    %cst_7 = arith.constant 0.000000e+00 : f32
    %8 = vector.broadcast %cst_7 : f32 to vector<64x32xf32>
    %9 = arith.maximumf %7, %8 : vector<64x32xf32>
    %c0_8 = arith.constant 0 : index
    %c0_9 = arith.constant 0 : index
    %c0_10 = arith.constant 0 : index
    %10 = vector.load %arg4[%c0_8, %c0_9, %c0_10] : memref<1x32x32xf32, #tpu.memory_space<vmem>>, vector<1x32x32xf32>
    %11 = vector.shape_cast %10 : vector<1x32x32xf32> to vector<32x32xf32>
    %cst_11 = arith.constant dense<0.000000e+00> : vector<64x32xf32>
    %12 = tpu.matmul %9, %11, %cst_11 {dimension_numbers = #tpu.dot_dimension_numbers<[1], [0], [0], [1], [0, 0, 1, 1], [], []>} : vector<64x32xf32>, vector<32x32xf32>, vector<64x32xf32> -> vector<64x32xf32>
    %c0_12 = arith.constant 0 : index
    %c0_13 = arith.constant 0 : index
    %c0_14 = arith.constant 0 : index
    %13 = vector.load %arg5[%c0_12, %c0_13, %c0_14] : memref<1x1x32xf32, #tpu.memory_space<vmem>>, vector<1x1x32xf32>
    %14 = vector.shape_cast %13 : vector<1x1x32xf32> to vector<1x32xf32>
    %15 = vector.broadcast %14 : vector<1x32xf32> to vector<64x32xf32>
    %16 = arith.addf %12, %15 : vector<64x32xf32>
    %cst_15 = arith.constant 0.000000e+00 : f32
    %17 = vector.broadcast %cst_15 : f32 to vector<64x32xf32>
    %18 = arith.maximumf %16, %17 : vector<64x32xf32>
    %c0_16 = arith.constant 0 : index
    %c0_17 = arith.constant 0 : index
    %c0_18 = arith.constant 0 : index
    %19 = vector.load %arg6[%c0_16, %c0_17, %c0_18] : memref<1x32x256xf32, #tpu.memory_space<vmem>>, vector<1x32x256xf32>
    %20 = vector.shape_cast %19 : vector<1x32x256xf32> to vector<32x256xf32>
    %cst_19 = arith.constant dense<0.000000e+00> : vector<64x256xf32>
    %21 = tpu.matmul %18, %20, %cst_19 {dimension_numbers = #tpu.dot_dimension_numbers<[1], [0], [0], [1], [0, 0, 1, 1], [], []>} : vector<64x32xf32>, vector<32x256xf32>, vector<64x256xf32> -> vector<64x256xf32>
    %c0_20 = arith.constant 0 : index
    %c0_21 = arith.constant 0 : index
    %c0_22 = arith.constant 0 : index
    %22 = vector.load %arg7[%c0_20, %c0_21, %c0_22] : memref<1x1x256xf32, #tpu.memory_space<vmem>>, vector<1x1x256xf32>
    %23 = vector.shape_cast %22 : vector<1x1x256xf32> to vector<1x256xf32>
    %24 = vector.broadcast %23 : vector<1x256xf32> to vector<64x256xf32>
    %25 = arith.addf %21, %24 : vector<64x256xf32>
    %c0_23 = arith.constant 0 : index
    %c0_24 = arith.constant 0 : index
    %c0_25 = arith.constant 0 : index
    %26 = vector.load %arg8[%c0_23, %c0_24, %c0_25] : memref<1x64x256xf32, #tpu.memory_space<vmem>>, vector<1x64x256xf32>
    %27 = vector.shape_cast %26 : vector<1x64x256xf32> to vector<64x256xf32>
    %28 = vector.shape_cast %25 : vector<64x256xf32> to vector<1x64x256xf32>
    tpu.vector_store %arg8[%c0_23, %c0_24, %c0_25], %28 {strides = array<i32>} : memref<1x64x256xf32, #tpu.memory_space<vmem>>, vector<1x64x256xf32>,
    return
  }
  func.func @transform_0(%arg0: i32) -> (i32, i32) {
    %c0_i32 = arith.constant 0 : i32
    %c0_i32_0 = arith.constant 0 : i32
    %c0_i32_1 = arith.constant 0 : i32
    return %c0_i32, %c0_i32_0 : i32, i32
  }
  func.func @transform_1(%arg0: i32) -> (i32, i32, i32) {
    %c0_i32 = arith.constant 0 : i32
    %c0_i32_0 = arith.constant 0 : i32
    %c0_i32_1 = arith.constant 0 : i32
    return %arg0, %c0_i32, %c0_i32_0 : i32, i32, i32
  }
  func.func @transform_2(%arg0: i32) -> (i32, i32, i32) {
    %c0_i32 = arith.constant 0 : i32
    %c0_i32_0 = arith.constant 0 : i32
    %c0_i32_1 = arith.constant 0 : i32
    return %arg0, %c0_i32, %c0_i32_0 : i32, i32, i32
  }
  func.func @transform_3(%arg0: i32) -> (i32, i32, i32) {
    %c0_i32 = arith.constant 0 : i32
    %c0_i32_0 = arith.constant 0 : i32
    %c0_i32_1 = arith.constant 0 : i32
    return %arg0, %c0_i32, %c0_i32_0 : i32, i32, i32
  }
  func.func @transform_4(%arg0: i32) -> (i32, i32, i32) {
    %c0_i32 = arith.constant 0 : i32
    %c0_i32_0 = arith.constant 0 : i32
    %c0_i32_1 = arith.constant 0 : i32
    return %arg0, %c0_i32, %c0_i32_0 : i32, i32, i32
  }
  func.func @transform_5(%arg0: i32) -> (i32, i32, i32) {
    %c0_i32 = arith.constant 0 : i32
    %c0_i32_0 = arith.constant 0 : i32
    %c0_i32_1 = arith.constant 0 : i32
    return %arg0, %c0_i32, %c0_i32_0 : i32, i32, i32
  }
  func.func @transform_6(%arg0: i32) -> (i32, i32, i32) {
    %c0_i32 = arith.constant 0 : i32
    %c0_i32_0 = arith.constant 0 : i32
    %c0_i32_1 = arith.constant 0 : i32
    return %arg0, %c0_i32, %c0_i32_0 : i32, i32, i32
  }
  func.func @transform_7(%arg0: i32) -> (i32, i32, i32) {
    %c0_i32 = arith.constant 0 : i32
    %c0_i32_0 = arith.constant 0 : i32
    %c0_i32_1 = arith.constant 0 : i32
    return %arg0, %c0_i32, %c0_i32_0 : i32, i32, i32
  }
}

module attributes {stable_mosaic.version = 11 : i64} {
  func.func @_radial_mlp_kernel(%arg0: i32, %arg1: memref<64x8xf32, #tpu.memory_space<vmem>>, %arg2: memref<1x8x32xf32, #tpu.memory_space<vmem>>, %arg3: memref<1x1x32xf32, #tpu.memory_space<vmem>>, %arg4: memref<1x32x32xf32, #tpu.memory_space<vmem>>, %arg5: memref<1x1x32xf32, #tpu.memory_space<vmem>>, %arg6: memref<1x32x8xf32, #tpu.memory_space<vmem>>, %arg7: memref<1x1x8xf32, #tpu.memory_space<vmem>>, %arg8: memref<1x64x8xf32, #tpu.memory_space<vmem>>) attributes {dimension_semantics = [#tpu.dimension_semantics<parallel>], iteration_bounds = array<i64: 5>, scalar_prefetch = 0 : i64, scratch_operands = 0 : i64, tpu.core_type = #tpu.core_type<tc>, window_params = [{pipeline_mode = #tpu.pipeline_mode<synchronous>, transform_indices = @transform_0, window_bounds = array<i64: 64, 8>}, {transform_indices = @transform_1, window_bounds = array<i64: 1, 8, 32>}, {transform_indices = @transform_2, window_bounds = array<i64: 1, 1, 32>}, {transform_indices = @transform_3, window_bounds = array<i64: 1, 32, 32>}, {transform_indices = @transform_4, window_bounds = array<i64: 1, 1, 32>}, {transform_indices = @transform_5, window_bounds = array<i64: 1, 32, 8>}, {transform_indices = @transform_6, window_bounds = array<i64: 1, 1, 8>}, {transform_indices = @transform_7, window_bounds = array<i64: 1, 64, 8>}]} {
    %c0 = arith.constant 0 : index
    %c0_0 = arith.constant 0 : index
    %0 = vector.load %arg1[%c0, %c0_0] : memref<64x8xf32, #tpu.memory_space<vmem>>, vector<64x8xf32>
    %c0_1 = arith.constant 0 : index
    %c0_2 = arith.constant 0 : index
    %c0_3 = arith.constant 0 : index
    %1 = vector.load %arg2[%c0_1, %c0_2, %c0_3] : memref<1x8x32xf32, #tpu.memory_space<vmem>>, vector<1x8x32xf32>
    %2 = vector.shape_cast %1 : vector<1x8x32xf32> to vector<8x32xf32>
    %cst = arith.constant dense<0.000000e+00> : vector<64x32xf32>
    %3 = tpu.matmul %0, %2, %cst {dimension_numbers = #tpu.dot_dimension_numbers<[1], [0], [0], [1], [0, 0, 1, 1], [], []>} : vector<64x8xf32>, vector<8x32xf32>, vector<64x32xf32> -> vector<64x32xf32>
    %c0_4 = arith.constant 0 : index
    %c0_5 = arith.constant 0 : index
    %c0_6 = arith.constant 0 : index
    %4 = vector.load %arg3[%c0_4, %c0_5, %c0_6] : memref<1x1x32xf32, #tpu.memory_space<vmem>>, vector<1x1x32xf32>
    %5 = vector.shape_cast %4 : vector<1x1x32xf32> to vector<1x32xf32>
    %6 = vector.broadcast %5 : vector<1x32xf32> to vector<64x32xf32>
    %7 = arith.addf %3, %6 : vector<64x32xf32>
    %cst_7 = arith.constant 0.000000e+00 : f32
    %8 = vector.broadcast %cst_7 : f32 to vector<64x32xf32>
    %9 = arith.maximumf %7, %8 : vector<64x32xf32>
    %c0_8 = arith.constant 0 : index
    %c0_9 = arith.constant 0 : index
    %c0_10 = arith.constant 0 : index
    %10 = vector.load %arg4[%c0_8, %c0_9, %c0_10] : memref<1x32x32xf32, #tpu.memory_space<vmem>>, vector<1x32x32xf32>
    %11 = vector.shape_cast %10 : vector<1x32x32xf32> to vector<32x32xf32>
    %cst_11 = arith.constant dense<0.000000e+00> : vector<64x32xf32>
    %12 = tpu.matmul %9, %11, %cst_11 {dimension_numbers = #tpu.dot_dimension_numbers<[1], [0], [0], [1], [0, 0, 1, 1], [], []>} : vector<64x32xf32>, vector<32x32xf32>, vector<64x32xf32> -> vector<64x32xf32>
    %c0_12 = arith.constant 0 : index
    %c0_13 = arith.constant 0 : index
    %c0_14 = arith.constant 0 : index
    %13 = vector.load %arg5[%c0_12, %c0_13, %c0_14] : memref<1x1x32xf32, #tpu.memory_space<vmem>>, vector<1x1x32xf32>
    %14 = vector.shape_cast %13 : vector<1x1x32xf32> to vector<1x32xf32>
    %15 = vector.broadcast %14 : vector<1x32xf32> to vector<64x32xf32>
    %16 = arith.addf %12, %15 : vector<64x32xf32>
    %cst_15 = arith.constant 0.000000e+00 : f32
    %17 = vector.broadcast %cst_15 : f32 to vector<64x32xf32>
    %18 = arith.maximumf %16, %17 : vector<64x32xf32>
    %c0_16 = arith.constant 0 : index
    %c0_17 = arith.constant 0 : index
    %c0_18 = arith.constant 0 : index
    %19 = vector.load %arg6[%c0_16, %c0_17, %c0_18] : memref<1x32x8xf32, #tpu.memory_space<vmem>>, vector<1x32x8xf32>
    %20 = vector.shape_cast %19 : vector<1x32x8xf32> to vector<32x8xf32>
    %cst_19 = arith.constant dense<0.000000e+00> : vector<64x8xf32>
    %21 = tpu.matmul %18, %20, %cst_19 {dimension_numbers = #tpu.dot_dimension_numbers<[1], [0], [0], [1], [0, 0, 1, 1], [], []>} : vector<64x32xf32>, vector<32x8xf32>, vector<64x8xf32> -> vector<64x8xf32>
    %c0_20 = arith.constant 0 : index
    %c0_21 = arith.constant 0 : index
    %c0_22 = arith.constant 0 : index
    %22 = vector.load %arg7[%c0_20, %c0_21, %c0_22] : memref<1x1x8xf32, #tpu.memory_space<vmem>>, vector<1x1x8xf32>
    %23 = vector.shape_cast %22 : vector<1x1x8xf32> to vector<1x8xf32>
    %24 = vector.broadcast %23 : vector<1x8xf32> to vector<64x8xf32>
    %25 = arith.addf %21, %24 : vector<64x8xf32>
    %c0_23 = arith.constant 0 : index
    %c0_24 = arith.constant 0 : index
    %c0_25 = arith.constant 0 : index
    %26 = vector.load %arg8[%c0_23, %c0_24, %c0_25] : memref<1x64x8xf32, #tpu.memory_space<vmem>>, vector<1x64x8xf32>
    %27 = vector.shape_cast %26 : vector<1x64x8xf32> to vector<64x8xf32>
    %28 = vector.shape_cast %25 : vector<64x8xf32> to vector<1x64x8xf32>
    tpu.vector_store %arg8[%c0_23, %c0_24, %c0_25], %28 {strides = array<i32>} : memref<1x64x8xf32, #tpu.memory_space<vmem>>, vector<1x64x8xf32>,
    return
  }
  func.func @transform_0(%arg0: i32) -> (i32, i32) {
    %c0_i32 = arith.constant 0 : i32
    %c0_i32_0 = arith.constant 0 : i32
    %c0_i32_1 = arith.constant 0 : i32
    return %c0_i32, %c0_i32_0 : i32, i32
  }
  func.func @transform_1(%arg0: i32) -> (i32, i32, i32) {
    %c0_i32 = arith.constant 0 : i32
    %c0_i32_0 = arith.constant 0 : i32
    %c0_i32_1 = arith.constant 0 : i32
    return %arg0, %c0_i32, %c0_i32_0 : i32, i32, i32
  }
  func.func @transform_2(%arg0: i32) -> (i32, i32, i32) {
    %c0_i32 = arith.constant 0 : i32
    %c0_i32_0 = arith.constant 0 : i32
    %c0_i32_1 = arith.constant 0 : i32
    return %arg0, %c0_i32, %c0_i32_0 : i32, i32, i32
  }
  func.func @transform_3(%arg0: i32) -> (i32, i32, i32) {
    %c0_i32 = arith.constant 0 : i32
    %c0_i32_0 = arith.constant 0 : i32
    %c0_i32_1 = arith.constant 0 : i32
    return %arg0, %c0_i32, %c0_i32_0 : i32, i32, i32
  }
  func.func @transform_4(%arg0: i32) -> (i32, i32, i32) {
    %c0_i32 = arith.constant 0 : i32
    %c0_i32_0 = arith.constant 0 : i32
    %c0_i32_1 = arith.constant 0 : i32
    return %arg0, %c0_i32, %c0_i32_0 : i32, i32, i32
  }
  func.func @transform_5(%arg0: i32) -> (i32, i32, i32) {
    %c0_i32 = arith.constant 0 : i32
    %c0_i32_0 = arith.constant 0 : i32
    %c0_i32_1 = arith.constant 0 : i32
    return %arg0, %c0_i32, %c0_i32_0 : i32, i32, i32
  }
  func.func @transform_6(%arg0: i32) -> (i32, i32, i32) {
    %c0_i32 = arith.constant 0 : i32
    %c0_i32_0 = arith.constant 0 : i32
    %c0_i32_1 = arith.constant 0 : i32
    return %arg0, %c0_i32, %c0_i32_0 : i32, i32, i32
  }
  func.func @transform_7(%arg0: i32) -> (i32, i32, i32) {
    %c0_i32 = arith.constant 0 : i32
    %c0_i32_0 = arith.constant 0 : i32
    %c0_i32_1 = arith.constant 0 : i32
    return %arg0, %c0_i32, %c0_i32_0 : i32, i32, i32
  }
}

module attributes {stable_mosaic.version = 11 : i64} {
  func.func @_gse3res_gnorm_kernel(%arg0: i32, %arg1: memref<64x8x4xf32, #tpu.memory_space<vmem>>, %arg2: memref<64x2x4xf32, #tpu.memory_space<vmem>>, %arg3: memref<64x4xf32, #tpu.memory_space<vmem>>, %arg4: memref<64x16xf32, #tpu.memory_space<vmem>>, %arg5: memref<8x4xf32, #tpu.memory_space<vmem>>, %arg6: memref<4x2xf32, #tpu.memory_space<vmem>>, %arg7: memref<8x32xf32, #tpu.memory_space<vmem>>, %arg8: memref<16x32xf32, #tpu.memory_space<vmem>>, %arg9: memref<32x128xf32, #tpu.memory_space<vmem>>, %arg10: memref<4x128xf32, #tpu.memory_space<vmem>>, %arg11: memref<128x32xf32, #tpu.memory_space<vmem>>, %arg12: memref<32x128xf32, #tpu.memory_space<vmem>>, %arg13: memref<1x32xf32, #tpu.memory_space<vmem>>, %arg14: memref<1x32xf32, #tpu.memory_space<vmem>>, %arg15: memref<8x128xf32, #tpu.memory_space<vmem>>) attributes {dimension_semantics = [#tpu.dimension_semantics<arbitrary>], iteration_bounds = array<i64: 1>, scalar_prefetch = 0 : i64, scratch_operands = 0 : i64, tpu.core_type = #tpu.core_type<tc>, window_params = [{pipeline_mode = #tpu.pipeline_mode<synchronous>, transform_indices = @transform_0, window_bounds = array<i64: 64, 8, 4>}, {pipeline_mode = #tpu.pipeline_mode<synchronous>, transform_indices = @transform_1, window_bounds = array<i64: 64, 2, 4>}, {pipeline_mode = #tpu.pipeline_mode<synchronous>, transform_indices = @transform_2, window_bounds = array<i64: 64, 4>}, {pipeline_mode = #tpu.pipeline_mode<synchronous>, transform_indices = @transform_3, window_bounds = array<i64: 64, 16>}, {pipeline_mode = #tpu.pipeline_mode<synchronous>, transform_indices = @transform_4, window_bounds = array<i64: 8, 4>}, {pipeline_mode = #tpu.pipeline_mode<synchronous>, transform_indices = @transform_5, window_bounds = array<i64: 4, 2>}, {pipeline_mode = #tpu.pipeline_mode<synchronous>, transform_indices = @transform_6, window_bounds = array<i64: 8, 32>}, {pipeline_mode = #tpu.pipeline_mode<synchronous>, transform_indices = @transform_7, window_bounds = array<i64: 16, 32>}, {pipeline_mode = #tpu.pipeline_mode<synchronous>, transform_indices = @transform_8, window_bounds = array<i64: 32, 128>}, {pipeline_mode = #tpu.pipeline_mode<synchronous>, transform_indices = @transform_9, window_bounds = array<i64: 4, 128>}, {pipeline_mode = #tpu.pipeline_mode<synchronous>, transform_indices = @transform_10, window_bounds = array<i64: 128, 32>}, {pipeline_mode = #tpu.pipeline_mode<synchronous>, transform_indices = @transform_11, window_bounds = array<i64: 32, 128>}, {pipeline_mode = #tpu.pipeline_mode<synchronous>, transform_indices = @transform_12, window_bounds = array<i64: 1, 32>}, {pipeline_mode = #tpu.pipeline_mode<synchronous>, transform_indices = @transform_13, window_bounds = array<i64: 1, 32>}, {pipeline_mode = #tpu.pipeline_mode<synchronous>, transform_indices = @transform_14, window_bounds = array<i64: 8, 128>}]} {
    %c0 = arith.constant 0 : index
    %c0_0 = arith.constant 0 : index
    %0 = vector.load %arg3[%c0, %c0_0] : memref<64x4xf32, #tpu.memory_space<vmem>>, vector<64x4xf32>
    %c0_1 = arith.constant 0 : index
    %c0_2 = arith.constant 0 : index
    %c0_3 = arith.constant 0 : index
    %1 = vector.load %arg1[%c0_1, %c0_2, %c0_3] : memref<64x8x4xf32, #tpu.memory_space<vmem>>, vector<64x8x4xf32>
    %2 = vector.shape_cast %0 : vector<64x4xf32> to vector<64x1x4xf32>
    %3 = vector.broadcast %2 : vector<64x1x4xf32> to vector<64x8x4xf32>
    %4 = arith.mulf %1, %3 : vector<64x8x4xf32>
    %cst = arith.constant dense<0.000000e+00> : vector<64x8xf32>
    %5 = vector.multi_reduction <add>, %4, %cst [2] : vector<64x8x4xf32> to vector<64x8xf32>
    %c0_4 = arith.constant 0 : index
    %c0_5 = arith.constant 0 : index
    %c0_6 = arith.constant 0 : index
    %6 = vector.load %arg2[%c0_4, %c0_5, %c0_6] : memref<64x2x4xf32, #tpu.memory_space<vmem>>, vector<64x2x4xf32>
    %7 = vector.shape_cast %0 : vector<64x4xf32> to vector<64x1x4xf32>
    %8 = vector.broadcast %7 : vector<64x1x4xf32> to vector<64x2x4xf32>
    %9 = arith.mulf %6, %8 : vector<64x2x4xf32>
    %cst_7 = arith.constant dense<0.000000e+00> : vector<64x2xf32>
    %10 = vector.multi_reduction <add>, %9, %cst_7 [2] : vector<64x2x4xf32> to vector<64x2xf32>
    %c0_8 = arith.constant 0 : index
    %c0_9 = arith.constant 0 : index
    %11 = vector.load %arg5[%c0_8, %c0_9] : memref<8x4xf32, #tpu.memory_space<vmem>>, vector<8x4xf32>
    %c0_10 = arith.constant 0 : index
    %c0_11 = arith.constant 0 : index
    %12 = vector.load %arg6[%c0_10, %c0_11] : memref<4x2xf32, #tpu.memory_space<vmem>>, vector<4x2xf32>
    %cst_12 = arith.constant dense<0.000000e+00> : vector<8x2xf32>
    %13 = tpu.matmul %11, %12, %cst_12 {dimension_numbers = #tpu.dot_dimension_numbers<[1], [0], [0], [1], [0, 0, 1, 1], [], []>} : vector<8x4xf32>, vector<4x2xf32>, vector<8x2xf32> -> vector<8x2xf32>
    %cst_13 = arith.constant dense<0.000000e+00> : vector<8x64xf32>
    %14 = tpu.matmul %13, %10, %cst_13 {dimension_numbers = #tpu.dot_dimension_numbers<[1], [1], [0], [0], [0, 0, 1, 0], [], []>} : vector<8x2xf32>, vector<64x2xf32>, vector<8x64xf32> -> vector<8x64xf32>
    %cst_14 = arith.constant 0.707106769 : f32
    %15 = vector.broadcast %cst_14 : f32 to vector<8x64xf32>
    %16 = arith.mulf %14, %15 : vector<8x64xf32>
    %17 = tpu.iota {dimensions = array<i32: 0>} : vector<8x64xi32>
    %18 = tpu.iota {dimensions = array<i32: 1>} : vector<8x64xi32>
    %c8_i32 = arith.constant 8 : i32
    %19 = vector.broadcast %c8_i32 : i32 to vector<8x64xi32>
    %20 = arith.muli %17, %19 : vector<8x64xi32>
    %21 = arith.cmpi sge, %18, %20 : vector<8x64xi32>
    %c8_i32_15 = arith.constant 8 : i32
    %22 = vector.broadcast %c8_i32_15 : i32 to vector<8x64xi32>
    %23 = arith.muli %17, %22 : vector<8x64xi32>
    %c8_i32_16 = arith.constant 8 : i32
    %24 = vector.broadcast %c8_i32_16 : i32 to vector<8x64xi32>
    %25 = arith.addi %23, %24 : vector<8x64xi32>
    %26 = arith.cmpi slt, %18, %25 : vector<8x64xi32>
    %27 = arith.andi %21, %26 : vector<8x64xi1>
    %c9_i32 = arith.constant 9 : i32
    %28 = vector.broadcast %c9_i32 : i32 to vector<8x64xi32>
    %29 = arith.muli %17, %28 : vector<8x64xi32>
    %30 = arith.cmpi ne, %18, %29 : vector<8x64xi32>
    %31 = arith.andi %27, %30 : vector<8x64xi1>
    %cst_17 = arith.constant -1.000000e+30 : f32
    %32 = vector.broadcast %cst_17 : f32 to vector<8x64xf32>
    %33 = arith.select %31, %16, %32 : vector<8x64xi1>, vector<8x64xf32>
    %cst_18 = arith.constant dense<0xFF800000> : vector<8xf32>
    %34 = vector.multi_reduction <maximumf>, %33, %cst_18 [1] : vector<8x64xf32> to vector<8xf32>
    %35 = vector.shape_cast %34 : vector<8xf32> to vector<8x1xf32>
    %36 = vector.broadcast %35 : vector<8x1xf32> to vector<8x64xf32>
    %37 = arith.subf %33, %36 : vector<8x64xf32>
    %38 = math.exp %37 : vector<8x64xf32>
    %cst_19 = arith.constant dense<0.000000e+00> : vector<8xf32>
    %39 = vector.multi_reduction <add>, %38, %cst_19 [1] : vector<8x64xf32> to vector<8xf32>
    %40 = vector.shape_cast %39 : vector<8xf32> to vector<8x1xf32>
    %41 = tpu.reciprocal %40 {approx = true} : vector<8x1xf32> -> vector<8x1xf32>
    %42 = vector.broadcast %41 : vector<8x1xf32> to vector<8x64xf32>
    %43 = arith.mulf %38, %42 : vector<8x64xf32>
    %c0_20 = arith.constant 0 : index
    %c0_21 = arith.constant 0 : index
    %44 = vector.load %arg7[%c0_20, %c0_21] : memref<8x32xf32, #tpu.memory_space<vmem>>, vector<8x32xf32>
    %cst_22 = arith.constant dense<0.000000e+00> : vector<64x32xf32>
    %45 = tpu.matmul %5, %44, %cst_22 {dimension_numbers = #tpu.dot_dimension_numbers<[1], [0], [0], [1], [0, 0, 1, 1], [], []>} : vector<64x8xf32>, vector<8x32xf32>, vector<64x32xf32> -> vector<64x32xf32>
    %c0_23 = arith.constant 0 : index
    %c0_24 = arith.constant 0 : index
    %46 = vector.load %arg4[%c0_23, %c0_24] : memref<64x16xf32, #tpu.memory_space<vmem>>, vector<64x16xf32>
    %c0_25 = arith.constant 0 : index
    %c0_26 = arith.constant 0 : index
    %47 = vector.load %arg8[%c0_25, %c0_26] : memref<16x32xf32, #tpu.memory_space<vmem>>, vector<16x32xf32>
    %cst_27 = arith.constant dense<0.000000e+00> : vector<64x32xf32>
    %48 = tpu.matmul %46, %47, %cst_27 {dimension_numbers = #tpu.dot_dimension_numbers<[1], [0], [0], [1], [0, 0, 1, 1], [], []>} : vector<64x16xf32>, vector<16x32xf32>, vector<64x32xf32> -> vector<64x32xf32>
    %49 = arith.mulf %45, %48 : vector<64x32xf32>
    %cst_28 = arith.constant dense<0.000000e+00> : vector<8x32xf32>
    %50 = tpu.matmul %43, %49, %cst_28 {dimension_numbers = #tpu.dot_dimension_numbers<[1], [0], [0], [1], [0, 0, 1, 1], [], []>} : vector<8x64xf32>, vector<64x32xf32>, vector<8x32xf32> -> vector<8x32xf32>
    %c0_29 = arith.constant 0 : index
    %c0_30 = arith.constant 0 : index
    %51 = vector.load %arg9[%c0_29, %c0_30] : memref<32x128xf32, #tpu.memory_space<vmem>>, vector<32x128xf32>
    %cst_31 = arith.constant dense<0.000000e+00> : vector<8x128xf32>
    %52 = tpu.matmul %50, %51, %cst_31 {dimension_numbers = #tpu.dot_dimension_numbers<[1], [0], [0], [1], [0, 0, 1, 1], [], []>} : vector<8x32xf32>, vector<32x128xf32>, vector<8x128xf32> -> vector<8x128xf32>
    %c0_32 = arith.constant 0 : index
    %c0_33 = arith.constant 0 : index
    %53 = vector.load %arg10[%c0_32, %c0_33] : memref<4x128xf32, #tpu.memory_space<vmem>>, vector<4x128xf32>
    %cst_34 = arith.constant dense<0.000000e+00> : vector<8x128xf32>
    %54 = tpu.matmul %11, %53, %cst_34 {dimension_numbers = #tpu.dot_dimension_numbers<[1], [0], [0], [1], [0, 0, 1, 1], [], []>} : vector<8x4xf32>, vector<4x128xf32>, vector<8x128xf32> -> vector<8x128xf32>
    %55 = arith.addf %52, %54 : vector<8x128xf32>
    %56 = arith.mulf %55, %55 : vector<8x128xf32>
    %c0_35 = arith.constant 0 : index
    %c0_36 = arith.constant 0 : index
    %57 = vector.load %arg11[%c0_35, %c0_36] : memref<128x32xf32, #tpu.memory_space<vmem>>, vector<128x32xf32>
    %cst_37 = arith.constant dense<0.000000e+00> : vector<8x32xf32>
    %58 = tpu.matmul %56, %57, %cst_37 {dimension_numbers = #tpu.dot_dimension_numbers<[1], [0], [0], [1], [0, 0, 1, 1], [], []>} : vector<8x128xf32>, vector<128x32xf32>, vector<8x32xf32> -> vector<8x32xf32>
    %cst_38 = arith.constant 9.99999996E-13 : f32
    %59 = vector.broadcast %cst_38 : f32 to vector<8x32xf32>
    %60 = arith.addf %58, %59 : vector<8x32xf32>
    %61 = math.rsqrt %60 : vector<8x32xf32>
    %62 = arith.mulf %60, %61 : vector<8x32xf32>
    %c0_39 = arith.constant 0 : index
    %c0_40 = arith.constant 0 : index
    %63 = vector.load %arg13[%c0_39, %c0_40] : memref<1x32xf32, #tpu.memory_space<vmem>>, vector<1x32xf32>
    %64 = vector.broadcast %63 : vector<1x32xf32> to vector<8x32xf32>
    %65 = arith.mulf %62, %64 : vector<8x32xf32>
    %c0_41 = arith.constant 0 : index
    %c0_42 = arith.constant 0 : index
    %66 = vector.load %arg14[%c0_41, %c0_42] : memref<1x32xf32, #tpu.memory_space<vmem>>, vector<1x32xf32>
    %67 = vector.broadcast %66 : vector<1x32xf32> to vector<8x32xf32>
    %68 = arith.addf %65, %67 : vector<8x32xf32>
    %cst_43 = arith.constant 0.000000e+00 : f32
    %69 = vector.broadcast %cst_43 : f32 to vector<8x32xf32>
    %70 = arith.maximumf %68, %69 : vector<8x32xf32>
    %71 = arith.mulf %70, %61 : vector<8x32xf32>
    %c0_44 = arith.constant 0 : index
    %c0_45 = arith.constant 0 : index
    %72 = vector.load %arg12[%c0_44, %c0_45] : memref<32x128xf32, #tpu.memory_space<vmem>>, vector<32x128xf32>
    %cst_46 = arith.constant dense<0.000000e+00> : vector<8x128xf32>
    %73 = tpu.matmul %71, %72, %cst_46 {dimension_numbers = #tpu.dot_dimension_numbers<[1], [0], [0], [1], [0, 0, 1, 1], [], []>} : vector<8x32xf32>, vector<32x128xf32>, vector<8x128xf32> -> vector<8x128xf32>
    %74 = arith.mulf %55, %73 : vector<8x128xf32>
    %c0_47 = arith.constant 0 : index
    %c0_48 = arith.constant 0 : index
    %75 = vector.load %arg15[%c0_47, %c0_48] : memref<8x128xf32, #tpu.memory_space<vmem>>, vector<8x128xf32>
    tpu.vector_store %arg15[%c0_47, %c0_48], %74 {strides = array<i32>} : memref<8x128xf32, #tpu.memory_space<vmem>>, vector<8x128xf32>,
    return
  }
  func.func @transform_0(%arg0: i32) -> (i32, i32, i32) {
    %c0_i32 = arith.constant 0 : i32
    %c0_i32_0 = arith.constant 0 : i32
    %c0_i32_1 = arith.constant 0 : i32
    %c0_i32_2 = arith.constant 0 : i32
    return %c0_i32, %c0_i32_0, %c0_i32_1 : i32, i32, i32
  }
  func.func @transform_1(%arg0: i32) -> (i32, i32, i32) {
    %c0_i32 = arith.constant 0 : i32
    %c0_i32_0 = arith.constant 0 : i32
    %c0_i32_1 = arith.constant 0 : i32
    %c0_i32_2 = arith.constant 0 : i32
    return %c0_i32, %c0_i32_0, %c0_i32_1 : i32, i32, i32
  }
  func.func @transform_2(%arg0: i32) -> (i32, i32) {
    %c0_i32 = arith.constant 0 : i32
    %c0_i32_0 = arith.constant 0 : i32
    %c0_i32_1 = arith.constant 0 : i32
    return %c0_i32, %c0_i32_0 : i32, i32
  }
  func.func @transform_3(%arg0: i32) -> (i32, i32) {
    %c0_i32 = arith.constant 0 : i32
    %c0_i32_0 = arith.constant 0 : i32
    %c0_i32_1 = arith.constant 0 : i32
    return %c0_i32, %c0_i32_0 : i32, i32
  }
  func.func @transform_4(%arg0: i32) -> (i32, i32) {
    %c0_i32 = arith.constant 0 : i32
    %c0_i32_0 = arith.constant 0 : i32
    %c0_i32_1 = arith.constant 0 : i32
    return %c0_i32, %c0_i32_0 : i32, i32
  }
  func.func @transform_5(%arg0: i32) -> (i32, i32) {
    %c0_i32 = arith.constant 0 : i32
    %c0_i32_0 = arith.constant 0 : i32
    %c0_i32_1 = arith.constant 0 : i32
    return %c0_i32, %c0_i32_0 : i32, i32
  }
  func.func @transform_6(%arg0: i32) -> (i32, i32) {
    %c0_i32 = arith.constant 0 : i32
    %c0_i32_0 = arith.constant 0 : i32
    %c0_i32_1 = arith.constant 0 : i32
    return %c0_i32, %c0_i32_0 : i32, i32
  }
  func.func @transform_7(%arg0: i32) -> (i32, i32) {
    %c0_i32 = arith.constant 0 : i32
    %c0_i32_0 = arith.constant 0 : i32
    %c0_i32_1 = arith.constant 0 : i32
    return %c0_i32, %c0_i32_0 : i32, i32
  }
  func.func @transform_8(%arg0: i32) -> (i32, i32) {
    %c0_i32 = arith.constant 0 : i32
    %c0_i32_0 = arith.constant 0 : i32
    %c0_i32_1 = arith.constant 0 : i32
    return %c0_i32, %c0_i32_0 : i32, i32
  }
  func.func @transform_9(%arg0: i32) -> (i32, i32) {
    %c0_i32 = arith.constant 0 : i32
    %c0_i32_0 = arith.constant 0 : i32
    %c0_i32_1 = arith.constant 0 : i32
    return %c0_i32, %c0_i32_0 : i32, i32
  }
  func.func @transform_10(%arg0: i32) -> (i32, i32) {
    %c0_i32 = arith.constant 0 : i32
    %c0_i32_0 = arith.constant 0 : i32
    %c0_i32_1 = arith.constant 0 : i32
    return %c0_i32, %c0_i32_0 : i32, i32
  }
  func.func @transform_11(%arg0: i32) -> (i32, i32) {
    %c0_i32 = arith.constant 0 : i32
    %c0_i32_0 = arith.constant 0 : i32
    %c0_i32_1 = arith.constant 0 : i32
    return %c0_i32, %c0_i32_0 : i32, i32
  }
  func.func @transform_12(%arg0: i32) -> (i32, i32) {
    %c0_i32 = arith.constant 0 : i32
    %c0_i32_0 = arith.constant 0 : i32
    %c0_i32_1 = arith.constant 0 : i32
    return %c0_i32, %c0_i32_0 : i32, i32
  }
  func.func @transform_13(%arg0: i32) -> (i32, i32) {
    %c0_i32 = arith.constant 0 : i32
    %c0_i32_0 = arith.constant 0 : i32
    %c0_i32_1 = arith.constant 0 : i32
    return %c0_i32, %c0_i32_0 : i32, i32
  }
  func.func @transform_14(%arg0: i32) -> (i32, i32) {
    %c0_i32 = arith.constant 0 : i32
    %c0_i32_0 = arith.constant 0 : i32
    %c0_i32_1 = arith.constant 0 : i32
    return %c0_i32, %c0_i32_0 : i32, i32
  }
}

module attributes {stable_mosaic.version = 11 : i64} {
  func.func @_gconv_pool_fc_kernel(%arg0: i32, %arg1: memref<64x32x32xf32, #tpu.memory_space<vmem>>, %arg2: memref<64x128xf32, #tpu.memory_space<vmem>>, %arg3: memref<64x128xf32, #tpu.memory_space<vmem>>, %arg4: memref<128x32xf32, #tpu.memory_space<vmem>>, %arg5: memref<8x64xf32, #tpu.memory_space<vmem>>, %arg6: memref<8x8xf32, #tpu.memory_space<vmem>>, %arg7: memref<8x32xf32, #tpu.memory_space<vmem>>, %arg8: memref<32x32xf32, #tpu.memory_space<vmem>>, %arg9: memref<1x32xf32, #tpu.memory_space<vmem>>, %arg10: memref<32x1xf32, #tpu.memory_space<vmem>>, %arg11: memref<1x1xf32, #tpu.memory_space<vmem>>, %arg12: memref<1x1xf32, #tpu.memory_space<vmem>>) attributes {dimension_semantics = [#tpu.dimension_semantics<arbitrary>], iteration_bounds = array<i64: 1>, scalar_prefetch = 0 : i64, scratch_operands = 0 : i64, tpu.core_type = #tpu.core_type<tc>, window_params = [{pipeline_mode = #tpu.pipeline_mode<synchronous>, transform_indices = @transform_0, window_bounds = array<i64: 64, 32, 32>}, {pipeline_mode = #tpu.pipeline_mode<synchronous>, transform_indices = @transform_1, window_bounds = array<i64: 64, 128>}, {pipeline_mode = #tpu.pipeline_mode<synchronous>, transform_indices = @transform_2, window_bounds = array<i64: 64, 128>}, {pipeline_mode = #tpu.pipeline_mode<synchronous>, transform_indices = @transform_3, window_bounds = array<i64: 128, 32>}, {pipeline_mode = #tpu.pipeline_mode<synchronous>, transform_indices = @transform_4, window_bounds = array<i64: 8, 64>}, {pipeline_mode = #tpu.pipeline_mode<synchronous>, transform_indices = @transform_5, window_bounds = array<i64: 8, 8>}, {pipeline_mode = #tpu.pipeline_mode<synchronous>, transform_indices = @transform_6, window_bounds = array<i64: 8, 32>}, {pipeline_mode = #tpu.pipeline_mode<synchronous>, transform_indices = @transform_7, window_bounds = array<i64: 32, 32>}, {pipeline_mode = #tpu.pipeline_mode<synchronous>, transform_indices = @transform_8, window_bounds = array<i64: 1, 32>}, {pipeline_mode = #tpu.pipeline_mode<synchronous>, transform_indices = @transform_9, window_bounds = array<i64: 32, 1>}, {pipeline_mode = #tpu.pipeline_mode<synchronous>, transform_indices = @transform_10, window_bounds = array<i64: 1, 1>}, {pipeline_mode = #tpu.pipeline_mode<synchronous>, transform_indices = @transform_11, window_bounds = array<i64: 1, 1>}]} {
    %c0 = arith.constant 0 : index
    %c0_0 = arith.constant 0 : index
    %0 = vector.load %arg2[%c0, %c0_0] : memref<64x128xf32, #tpu.memory_space<vmem>>, vector<64x128xf32>
    %c0_1 = arith.constant 0 : index
    %c0_2 = arith.constant 0 : index
    %1 = vector.load %arg3[%c0_1, %c0_2] : memref<64x128xf32, #tpu.memory_space<vmem>>, vector<64x128xf32>
    %2 = arith.mulf %0, %1 : vector<64x128xf32>
    %c0_3 = arith.constant 0 : index
    %c0_4 = arith.constant 0 : index
    %3 = vector.load %arg4[%c0_3, %c0_4] : memref<128x32xf32, #tpu.memory_space<vmem>>, vector<128x32xf32>
    %cst = arith.constant dense<0.000000e+00> : vector<64x32xf32>
    %4 = tpu.matmul %2, %3, %cst {dimension_numbers = #tpu.dot_dimension_numbers<[1], [0], [0], [1], [0, 0, 1, 1], [], []>} : vector<64x128xf32>, vector<128x32xf32>, vector<64x32xf32> -> vector<64x32xf32>
    %c0_5 = arith.constant 0 : index
    %c0_6 = arith.constant 0 : index
    %c0_7 = arith.constant 0 : index
    %5 = vector.load %arg1[%c0_5, %c0_6, %c0_7] : memref<64x32x32xf32, #tpu.memory_space<vmem>>, vector<64x32x32xf32>
    %6 = vector.shape_cast %4 : vector<64x32xf32> to vector<64x1x32xf32>
    %7 = vector.broadcast %6 : vector<64x1x32xf32> to vector<64x32x32xf32>
    %8 = arith.mulf %5, %7 : vector<64x32x32xf32>
    %cst_8 = arith.constant dense<0.000000e+00> : vector<64x32xf32>
    %9 = vector.multi_reduction <add>, %8, %cst_8 [2] : vector<64x32x32xf32> to vector<64x32xf32>
    %c0_9 = arith.constant 0 : index
    %c0_10 = arith.constant 0 : index
    %10 = vector.load %arg5[%c0_9, %c0_10] : memref<8x64xf32, #tpu.memory_space<vmem>>, vector<8x64xf32>
    %cst_11 = arith.constant dense<0.000000e+00> : vector<8x32xf32>
    %11 = tpu.matmul %10, %9, %cst_11 {dimension_numbers = #tpu.dot_dimension_numbers<[1], [0], [0], [1], [0, 0, 1, 1], [], []>} : vector<8x64xf32>, vector<64x32xf32>, vector<8x32xf32> -> vector<8x32xf32>
    %c0_12 = arith.constant 0 : index
    %c0_13 = arith.constant 0 : index
    %12 = vector.load %arg6[%c0_12, %c0_13] : memref<8x8xf32, #tpu.memory_space<vmem>>, vector<8x8xf32>
    %c0_14 = arith.constant 0 : index
    %c0_15 = arith.constant 0 : index
    %13 = vector.load %arg7[%c0_14, %c0_15] : memref<8x32xf32, #tpu.memory_space<vmem>>, vector<8x32xf32>
    %cst_16 = arith.constant dense<0.000000e+00> : vector<8x32xf32>
    %14 = tpu.matmul %12, %13, %cst_16 {dimension_numbers = #tpu.dot_dimension_numbers<[1], [0], [0], [1], [0, 0, 1, 1], [], []>} : vector<8x8xf32>, vector<8x32xf32>, vector<8x32xf32> -> vector<8x32xf32>
    %15 = arith.addf %11, %14 : vector<8x32xf32>
    %cst_17 = arith.constant dense<0.000000e+00> : vector<32xf32>
    %16 = vector.multi_reduction <add>, %15, %cst_17 [0] : vector<8x32xf32> to vector<32xf32>
    %17 = vector.shape_cast %16 : vector<32xf32> to vector<1x32xf32>
    %cst_18 = arith.constant 8.000000e+00 : f32
    %18 = vector.broadcast %cst_18 : f32 to vector<1x32xf32>
    %19 = arith.divf %17, %18 : vector<1x32xf32>
    %c0_19 = arith.constant 0 : index
    %c0_20 = arith.constant 0 : index
    %20 = vector.load %arg8[%c0_19, %c0_20] : memref<32x32xf32, #tpu.memory_space<vmem>>, vector<32x32xf32>
    %cst_21 = arith.constant dense<0.000000e+00> : vector<1x32xf32>
    %21 = tpu.matmul %19, %20, %cst_21 {dimension_numbers = #tpu.dot_dimension_numbers<[1], [0], [0], [1], [0, 0, 1, 1], [], []>} : vector<1x32xf32>, vector<32x32xf32>, vector<1x32xf32> -> vector<1x32xf32>
    %c0_22 = arith.constant 0 : index
    %c0_23 = arith.constant 0 : index
    %22 = vector.load %arg9[%c0_22, %c0_23] : memref<1x32xf32, #tpu.memory_space<vmem>>, vector<1x32xf32>
    %23 = arith.addf %21, %22 : vector<1x32xf32>
    %cst_24 = arith.constant 0.000000e+00 : f32
    %24 = vector.broadcast %cst_24 : f32 to vector<1x32xf32>
    %25 = arith.maximumf %23, %24 : vector<1x32xf32>
    %c0_25 = arith.constant 0 : index
    %c0_26 = arith.constant 0 : index
    %26 = vector.load %arg10[%c0_25, %c0_26] : memref<32x1xf32, #tpu.memory_space<vmem>>, vector<32x1xf32>
    %cst_27 = arith.constant dense<0.000000e+00> : vector<1x1xf32>
    %27 = tpu.matmul %25, %26, %cst_27 {dimension_numbers = #tpu.dot_dimension_numbers<[1], [0], [0], [1], [0, 0, 1, 1], [], []>} : vector<1x32xf32>, vector<32x1xf32>, vector<1x1xf32> -> vector<1x1xf32>
    %c0_28 = arith.constant 0 : index
    %c0_29 = arith.constant 0 : index
    %28 = vector.load %arg11[%c0_28, %c0_29] : memref<1x1xf32, #tpu.memory_space<vmem>>, vector<1x1xf32>
    %29 = arith.addf %27, %28 : vector<1x1xf32>
    %c0_30 = arith.constant 0 : index
    %c0_31 = arith.constant 0 : index
    %30 = vector.load %arg12[%c0_30, %c0_31] : memref<1x1xf32, #tpu.memory_space<vmem>>, vector<1x1xf32>
    tpu.vector_store %arg12[%c0_30, %c0_31], %29 {strides = array<i32>} : memref<1x1xf32, #tpu.memory_space<vmem>>, vector<1x1xf32>,
    return
  }
  func.func @transform_0(%arg0: i32) -> (i32, i32, i32) {
    %c0_i32 = arith.constant 0 : i32
    %c0_i32_0 = arith.constant 0 : i32
    %c0_i32_1 = arith.constant 0 : i32
    %c0_i32_2 = arith.constant 0 : i32
    return %c0_i32, %c0_i32_0, %c0_i32_1 : i32, i32, i32
  }
  func.func @transform_1(%arg0: i32) -> (i32, i32) {
    %c0_i32 = arith.constant 0 : i32
    %c0_i32_0 = arith.constant 0 : i32
    %c0_i32_1 = arith.constant 0 : i32
    return %c0_i32, %c0_i32_0 : i32, i32
  }
  func.func @transform_2(%arg0: i32) -> (i32, i32) {
    %c0_i32 = arith.constant 0 : i32
    %c0_i32_0 = arith.constant 0 : i32
    %c0_i32_1 = arith.constant 0 : i32
    return %c0_i32, %c0_i32_0 : i32, i32
  }
  func.func @transform_3(%arg0: i32) -> (i32, i32) {
    %c0_i32 = arith.constant 0 : i32
    %c0_i32_0 = arith.constant 0 : i32
    %c0_i32_1 = arith.constant 0 : i32
    return %c0_i32, %c0_i32_0 : i32, i32
  }
  func.func @transform_4(%arg0: i32) -> (i32, i32) {
    %c0_i32 = arith.constant 0 : i32
    %c0_i32_0 = arith.constant 0 : i32
    %c0_i32_1 = arith.constant 0 : i32
    return %c0_i32, %c0_i32_0 : i32, i32
  }
  func.func @transform_5(%arg0: i32) -> (i32, i32) {
    %c0_i32 = arith.constant 0 : i32
    %c0_i32_0 = arith.constant 0 : i32
    %c0_i32_1 = arith.constant 0 : i32
    return %c0_i32, %c0_i32_0 : i32, i32
  }
  func.func @transform_6(%arg0: i32) -> (i32, i32) {
    %c0_i32 = arith.constant 0 : i32
    %c0_i32_0 = arith.constant 0 : i32
    %c0_i32_1 = arith.constant 0 : i32
    return %c0_i32, %c0_i32_0 : i32, i32
  }
  func.func @transform_7(%arg0: i32) -> (i32, i32) {
    %c0_i32 = arith.constant 0 : i32
    %c0_i32_0 = arith.constant 0 : i32
    %c0_i32_1 = arith.constant 0 : i32
    return %c0_i32, %c0_i32_0 : i32, i32
  }
  func.func @transform_8(%arg0: i32) -> (i32, i32) {
    %c0_i32 = arith.constant 0 : i32
    %c0_i32_0 = arith.constant 0 : i32
    %c0_i32_1 = arith.constant 0 : i32
    return %c0_i32, %c0_i32_0 : i32, i32
  }
  func.func @transform_9(%arg0: i32) -> (i32, i32) {
    %c0_i32 = arith.constant 0 : i32
    %c0_i32_0 = arith.constant 0 : i32
    %c0_i32_1 = arith.constant 0 : i32
    return %c0_i32, %c0_i32_0 : i32, i32
  }
  func.func @transform_10(%arg0: i32) -> (i32, i32) {
    %c0_i32 = arith.constant 0 : i32
    %c0_i32_0 = arith.constant 0 : i32
    %c0_i32_1 = arith.constant 0 : i32
    return %c0_i32, %c0_i32_0 : i32, i32
  }
  func.func @transform_11(%arg0: i32) -> (i32, i32) {
    %c0_i32 = arith.constant 0 : i32
    %c0_i32_0 = arith.constant 0 : i32
    %c0_i32_1 = arith.constant 0 : i32
    return %c0_i32, %c0_i32_0 : i32, i32
  }
}

</mosaic_0001>

<llo_original>
// kernel: se3_transformer_forward.4
$region0: #{se3_transformer_forward.4}
  #allocation0 [shape = 'u32[]', space=smem, size = 0x4, offset = 0x4, fixed_abs, tag = 'smem constant byte address 0x4 - core index']
  #allocation1 [shape = 'u32[144,128]{1,0:T(1,128)}', space=vmem, size = 0x12000, scoped, tag = 'internal scratch']
  %s0 = inlined_call_operand.vmem [shape: f32[64,8], index: 0, kind: input, shape index: {}]
  %s1 = inlined_call_operand.hbm [shape: f32[4,8,32], index: 1, kind: input, shape index: {}]
  %s2 = inlined_call_operand.vmem [shape: f32[4,1,32], index: 2, kind: input, shape index: {}]
  %s3 = inlined_call_operand.vmem [shape: f32[4,32,32], index: 3, kind: input, shape index: {}]
  %s4 = inlined_call_operand.hbm [shape: f32[4,1,32], index: 4, kind: input, shape index: {}]
  %s5 = inlined_call_operand.vmem [shape: f32[4,32,256], index: 5, kind: input, shape index: {}]
  %s6 = inlined_call_operand.hbm [shape: f32[4,1,256], index: 6, kind: input, shape index: {}]
  %s7 = inlined_call_operand.vmem [shape: f32[4,64,256], index: 7, kind: output, shape index: {}]
  %s8 = sld [smem:[#allocation0]]
  $region73: #{se3_transformer_forward.4} parent=0
    _
  %s10 = ssub.s32 1, %s8
  %s11 = scalar_select 0, %s10, %s8
  $region1: #{se3_transformer_forward.4} parent=0
    #allocation2 [shape = 'u8[8192]{0}', space=vmem, size = 0x2000, scoped, tag = 'input window, operand 1']
    #allocation3 [shape = 's32[2]{0}', space=sflag, size = 0x8, scoped, tag = 'scoped memory for se3_transformer_forward.4']
    #allocation4 [shape = 'u8[1024]{0}', space=vmem, size = 0x400, scoped, tag = 'input window, operand 4']
    #allocation5 [shape = 's32[2]{0}', space=sflag, size = 0x8, scoped, tag = 'scoped memory for se3_transformer_forward.4']
    #allocation6 [shape = 'u8[2048]{0}', space=vmem, size = 0x800, scoped, tag = 'input window, operand 6']
    %12 = vsyncpa [#allocation3], 0
    %s13 = scalar_lea.sflag [#allocation3], 1
    %14 = vsyncpa %s13, 0
    %15 = vsyncpa [#allocation5], 0
    %s16 = scalar_lea.sflag [#allocation5], 1
    %17 = vsyncpa %s16, 0
    loop: start=0, step=1, limit=6
    $region2: #{se3_transformer_forward.4} parent=1 // loop_pre_header
      _
    $region3: #{se3_transformer_forward.4} parent=1 // loop_header
      %s19 = sphi 0, %s23
      %p20 = scmp.ge.s32.totalorder %s19, 6
      %s27 = sphi 0, %s27
      %s29 = sphi 0, %s27
      %s30 = sphi 0, %s29
      %s44 = sphi 0, %s30
      %s50 = sphi 0, %s52
      %s53 = sphi 0, %s50
      %s54 = sphi 0, %s53
      %s70 = sphi 0, %s54
      %s76 = sphi 0, %s78
      %s79 = sphi 0, %s76
      %s80 = sphi 0, %s79
      %s96 = sphi 0, %s80
      %s102 = sphi 0, %s104
      %s105 = sphi 0, %s102
      %s106 = sphi 0, %s105
      %s122 = sphi 0, %s106
      %s128 = sphi 0, %s130
      %s131 = sphi 0, %s128
      %s132 = sphi 0, %s131
      %s148 = sphi 0, %s132
      %s154 = sphi 0, %s156
      %s157 = sphi 0, %s154
      %s158 = sphi 0, %s157
      %s174 = sphi 0, %s158
      %s180 = sphi 0, %s182
      %s183 = sphi 0, %s180
      %s184 = sphi 0, %s183
      %s200 = sphi 0, %s184
      %s206 = sphi 0, %s208
      %s209 = sphi 0, %s206
      %s210 = sphi 0, %s209
      %s226 = sphi 0, %s210
    $region4: #{se3_transformer_forward.4} parent=1 // loop_header_branch
      %22 = sbr.rel (%p20) target = $region8
    $region5: #{se3_transformer_forward.4} parent=1 // loop_body
      %s24 = ssub.s32 %s19, 1
      %s25 = ssub.s32 %s19, 2
      %s26 = sadd.s32 %s19, 1
      %s28 = sadd.s32 %s27, 1
      %p31 = scmp.eq.s32.totalorder %s19, 3
      %p32 = scmp.ne.s32.totalorder %s27, %s29
      %p33 = scmp.eq.s32.totalorder %s19, 0
      %p34 = por %p32, %p33
      %p35 = scmp.ne.s32.totalorder %s27, %s29
      %p36 = scmp.eq.s32.totalorder %s24, 3
      %p37 = por %p35, %p36
      %p38 = scmp.ne.s32.totalorder %s29, %s30
      %p39 = scmp.eq.s32.totalorder %s24, 0
      %p40 = por %p38, %p39
      %p41 = scmp.ne.s32.totalorder %s29, %s30
      %p42 = scmp.eq.s32.totalorder %s25, 3
      %p43 = por %p41, %p42
      %p45 = scmp.ne.s32.totalorder %s30, %s44
      %p46 = scmp.eq.s32.totalorder %s25, 0
      %p47 = por %p45, %p46
      %s48 = ssub.s32 %s19, %s26
      %p49 = scmp.eq.s32.totalorder %s48, 0
      %s51 = sadd.s32 %s50, 1
      %s52 = scalar_select %p49, %s50, %s51
      %p55 = pneg %p49
      %p56 = scmp.eq.s32.totalorder %s19, 3
      %p57 = por %p55, %p56
      %p58 = scmp.ne.s32.totalorder %s50, %s53
      %p59 = scmp.eq.s32.totalorder %s19, 0
      %p60 = por %p58, %p59
      %p61 = scmp.ne.s32.totalorder %s50, %s53
      %p62 = scmp.eq.s32.totalorder %s24, 3
      %p63 = por %p61, %p62
      %p64 = scmp.ne.s32.totalorder %s53, %s54
      %p65 = scmp.eq.s32.totalorder %s24, 0
      %p66 = por %p64, %p65
      %p67 = scmp.ne.s32.totalorder %s53, %s54
      %p68 = scmp.eq.s32.totalorder %s25, 3
      %p69 = por %p67, %p68
      %p71 = scmp.ne.s32.totalorder %s54, %s70
      %p72 = scmp.eq.s32.totalorder %s25, 0
      %p73 = por %p71, %p72
      %s74 = ssub.s32 %s19, %s26
      %p75 = scmp.eq.s32.totalorder %s74, 0
      %s77 = sadd.s32 %s76, 1
      %s78 = scalar_select %p75, %s76, %s77
      %p81 = pneg %p75
      %p82 = scmp.eq.s32.totalorder %s19, 3
      %p83 = por %p81, %p82
      %p84 = scmp.ne.s32.totalorder %s76, %s79
      %p85 = scmp.eq.s32.totalorder %s19, 0
      %p86 = por %p84, %p85
      %p87 = scmp.ne.s32.totalorder %s76, %s79
      %p88 = scmp.eq.s32.totalorder %s24, 3
      %p89 = por %p87, %p88
      %p90 = scmp.ne.s32.totalorder %s79, %s80
      %p91 = scmp.eq.s32.totalorder %s24, 0
      %p92 = por %p90, %p91
      %p93 = scmp.ne.s32.totalorder %s79, %s80
      %p94 = scmp.eq.s32.totalorder %s25, 3
      %p95 = por %p93, %p94
      %p97 = scmp.ne.s32.totalorder %s80, %s96
      %p98 = scmp.eq.s32.totalorder %s25, 0
      %p99 = por %p97, %p98
      %s100 = ssub.s32 %s19, %s26
      %p101 = scmp.eq.s32.totalorder %s100, 0
      %s103 = sadd.s32 %s102, 1
      %s104 = scalar_select %p101, %s102, %s103
      %p107 = pneg %p101
      %p108 = scmp.eq.s32.totalorder %s19, 3
      %p109 = por %p107, %p108
      %p110 = scmp.ne.s32.totalorder %s102, %s105
      %p111 = scmp.eq.s32.totalorder %s19, 0
      %p112 = por %p110, %p111
      %p113 = scmp.ne.s32.totalorder %s102, %s105
      %p114 = scmp.eq.s32.totalorder %s24, 3
      %p115 = por %p113, %p114
      %p116 = scmp.ne.s32.totalorder %s105, %s106
      %p117 = scmp.eq.s32.totalorder %s24, 0
      %p118 = por %p116, %p117
      %p119 = scmp.ne.s32.totalorder %s105, %s106
      %p120 = scmp.eq.s32.totalorder %s25, 3
      %p121 = por %p119, %p120
      %p123 = scmp.ne.s32.totalorder %s106, %s122
      %p124 = scmp.eq.s32.totalorder %s25, 0
      %p125 = por %p123, %p124
      %s126 = ssub.s32 %s19, %s26
      %p127 = scmp.eq.s32.totalorder %s126, 0
      %s129 = sadd.s32 %s128, 1
      %s130 = scalar_select %p127, %s128, %s129
      %p133 = pneg %p127
      %p134 = scmp.eq.s32.totalorder %s19, 3
      %p135 = por %p133, %p134
      %p136 = scmp.ne.s32.totalorder %s128, %s131
      %p137 = scmp.eq.s32.totalorder %s19, 0
      %p138 = por %p136, %p137
      %p139 = scmp.ne.s32.totalorder %s128, %s131
      %p140 = scmp.eq.s32.totalorder %s24, 3
      %p141 = por %p139, %p140
      %p142 = scmp.ne.s32.totalorder %s131, %s132
      %p143 = scmp.eq.s32.totalorder %s24, 0
      %p144 = por %p142, %p143
      %p145 = scmp.ne.s32.totalorder %s131, %s132
      %p146 = scmp.eq.s32.totalorder %s25, 3
      %p147 = por %p145, %p146
      %p149 = scmp.ne.s32.totalorder %s132, %s148
      %p150 = scmp.eq.s32.totalorder %s25, 0
      %p151 = por %p149, %p150
      %s152 = ssub.s32 %s19, %s26
      %p153 = scmp.eq.s32.totalorder %s152, 0
      %s155 = sadd.s32 %s154, 1
      %s156 = scalar_select %p153, %s154, %s155
      %p159 = pneg %p153
      %p160 = scmp.eq.s32.totalorder %s19, 3
      %p161 = por %p159, %p160
      %p162 = scmp.ne.s32.totalorder %s154, %s157
      %p163 = scmp.eq.s32.totalorder %s19, 0
      %p164 = por %p162, %p163
      %p165 = scmp.ne.s32.totalorder %s154, %s157
      %p166 = scmp.eq.s32.totalorder %s24, 3
      %p167 = por %p165, %p166
      %p168 = scmp.ne.s32.totalorder %s157, %s158
      %p169 = scmp.eq.s32.totalorder %s24, 0
      %p170 = por %p168, %p169
      %p171 = scmp.ne.s32.totalorder %s157, %s158
      %p172 = scmp.eq.s32.totalorder %s25, 3
      %p173 = por %p171, %p172
      %p175 = scmp.ne.s32.totalorder %s158, %s174
      %p176 = scmp.eq.s32.totalorder %s25, 0
      %p177 = por %p175, %p176
      %s178 = ssub.s32 %s19, %s26
      %p179 = scmp.eq.s32.totalorder %s178, 0
      %s181 = sadd.s32 %s180, 1
      %s182 = scalar_select %p179, %s180, %s181
      %p185 = pneg %p179
      %p186 = scmp.eq.s32.totalorder %s19, 3
      %p187 = por %p185, %p186
      %p188 = scmp.ne.s32.totalorder %s180, %s183
      %p189 = scmp.eq.s32.totalorder %s19, 0
      %p190 = por %p188, %p189
      %p191 = scmp.ne.s32.totalorder %s180, %s183
      %p192 = scmp.eq.s32.totalorder %s24, 3
      %p193 = por %p191, %p192
      %p194 = scmp.ne.s32.totalorder %s183, %s184
      %p195 = scmp.eq.s32.totalorder %s24, 0
      %p196 = por %p194, %p195
      %p197 = scmp.ne.s32.totalorder %s183, %s184
      %p198 = scmp.eq.s32.totalorder %s25, 3
      %p199 = por %p197, %p198
      %p201 = scmp.ne.s32.totalorder %s184, %s200
      %p202 = scmp.eq.s32.totalorder %s25, 0
      %p203 = por %p201, %p202
      %s204 = ssub.s32 %s19, %s26
      %p205 = scmp.eq.s32.totalorder %s204, 0
      %s207 = sadd.s32 %s206, 1
      %s208 = scalar_select %p205, %s206, %s207
      %p211 = pneg %p205
      %p212 = scmp.eq.s32.totalorder %s19, 3
      %p213 = por %p211, %p212
      %p214 = scmp.ne.s32.totalorder %s206, %s209
      %p215 = scmp.eq.s32.totalorder %s19, 0
      %p216 = por %p214, %p215
      %p217 = scmp.ne.s32.totalorder %s206, %s209
      %p218 = scmp.eq.s32.totalorder %s24, 3
      %p219 = por %p217, %p218
      %p220 = scmp.ne.s32.totalorder %s209, %s210
      %p221 = scmp.eq.s32.totalorder %s24, 0
      %p222 = por %p220, %p221
      %p223 = scmp.ne.s32.totalorder %s209, %s210
      %p224 = scmp.eq.s32.totalorder %s25, 3
      %p225 = por %p223, %p224
      %p227 = scmp.ne.s32.totalorder %s210, %s226
      %p228 = scmp.eq.s32.totalorder %s25, 0
      %p229 = por %p227, %p228
      %p230 = scmp.le.s32.totalorder 1, %s19
      %p231 = scmp.lt.s32.totalorder %s19, 5
      %p232 = pnand %p230, %p231
      %p233 = pneg %p232
      // Predicated region
      $region9: #{se3_transformer_forward.4} parent=5 // pred_check
        _
      $region10: #{se3_transformer_forward.4} parent=5 // pred_check_branch
        %235 = sbr.rel (%p232) target = $region12
      $region11: #{se3_transformer_forward.4} parent=5 // pred_region
        %s236 = ssub.s32 %s19, 1
        // Predicated region
        $region13: #{se3_transformer_forward.4} parent=11 // pred_check
          %p237 = pneg %p40
        $region14: #{se3_transformer_forward.4} parent=11 // pred_check_branch
          %239 = sbr.rel (%p237) target = $region16
        $region15: #{se3_transformer_forward.4} parent=11 // pred_region
          _
        $region16: #{se3_transformer_forward.4} parent=11 // pred_fallthru
          _
      $region12: #{se3_transformer_forward.4} parent=5 // pred_fallthru
        _
      %p240 = scmp.lt.s32.totalorder %s19, 4
      // Predicated region
      $region17: #{se3_transformer_forward.4} parent=5 // pred_check
        %p241 = pneg %p240
      $region18: #{se3_transformer_forward.4} parent=5 // pred_check_branch
        %243 = sbr.rel (%p241) target = $region20
      $region19: #{se3_transformer_forward.4} parent=5 // pred_region
        // Predicated region
        $region21: #{se3_transformer_forward.4} parent=19 // pred_check
          %p244 = pneg %p60
        $region22: #{se3_transformer_forward.4} parent=19 // pred_check_branch
          %246 = sbr.rel (%p244) target = $region24
        $region23: #{se3_transformer_forward.4} parent=19 // pred_region
          %s247 = sand.u32 %s50, 1
          %s248 = scalar_lea.sflag [#allocation3], %s247
          %s249 = sand.u32 %s50, 1
          %s250 = smul.addr %s249, 8
          %s251 = scalar_lea.vmem [#allocation2], %s250
          %s253 = ssub.s32 128, 128
          %254 = vsyncadd %s248, %s253
          %s255 = smul.addr %s19, 128
          %s256 = scalar_lea.hbm %s1, %s255
          %s258 = sshll.u32 %s251, 4
          %s259 = int_to_ptr.vmem [resolvable:$true] %s258
          %261 = dma.hbm_to_vmem [thread:$0]  %s256, 128, %s259, %s248
        $region24: #{se3_transformer_forward.4} parent=19 // pred_fallthru
          _
        // Predicated region
        $region25: #{se3_transformer_forward.4} parent=19 // pred_check
          %p262 = pneg %p86
        $region26: #{se3_transformer_forward.4} parent=19 // pred_check_branch
          %264 = sbr.rel (%p262) target = $region28
        $region27: #{se3_transformer_forward.4} parent=19 // pred_region
          %p265 = scmp.lt.s32.totalorder %s19, 3
          %s266 = scalar_select %p265, %s19, 3
          %s267 = scalar_lea.vmem %s2, %s266
        $region28: #{se3_transformer_forward.4} parent=19 // pred_fallthru
          _
        // Predicated region
        $region29: #{se3_transformer_forward.4} parent=19 // pred_check
          %p268 = pneg %p112
        $region30: #{se3_transformer_forward.4} parent=19 // pred_check_branch
          %270 = sbr.rel (%p268) target = $region32
        $region31: #{se3_transformer_forward.4} parent=19 // pred_region
          %p271 = scmp.lt.s32.totalorder %s19, 3
          %s272 = scalar_select %p271, %s19, 3
          %s273 = smul.addr %s272, 4
          %s274 = smul.addr %s273, 8
          %s275 = scalar_lea.vmem %s3, %s274
        $region32: #{se3_transformer_forward.4} parent=19 // pred_fallthru
          _
        // Predicated region
        $region33: #{se3_transformer_forward.4} parent=19 // pred_check
          %p276 = pneg %p138
        $region34: #{se3_transformer_forward.4} parent=19 // pred_check_branch
          %278 = sbr.rel (%p276) target = $region36
        $region35: #{se3_transformer_forward.4} parent=19 // pred_region
          %s279 = sand.u32 %s19, 1
          %s280 = scalar_lea.sflag [#allocation5], %s279
          %s281 = sand.u32 %s128, 1
          %s282 = scalar_lea.vmem [#allocation4], %s281
          %s284 = ssub.s32 16, 16
          %285 = vsyncadd %s280, %s284
          %s286 = smul.addr %s19, 16
          %s287 = scalar_lea.hbm %s4, %s286
          %s289 = sshll.u32 %s282, 4
          %s290 = int_to_ptr.vmem [resolvable:$true] %s289
          %292 = dma.hbm_to_vmem [thread:$0]  %s287, 16, %s290, %s280
        $region36: #{se3_transformer_forward.4} parent=19 // pred_fallthru
          _
        // Predicated region
        $region37: #{se3_transformer_forward.4} parent=19 // pred_check
          %p293 = pneg %p164
        $region38: #{se3_transformer_forward.4} parent=19 // pred_check_branch
          %295 = sbr.rel (%p293) target = $region40
        $region39: #{se3_transformer_forward.4} parent=19 // pred_region
          %p296 = scmp.lt.s32.totalorder %s19, 3
          %s297 = scalar_select %p296, %s19, 3
          %s298 = smul.addr %s297, 8
          %s299 = smul.addr %s298, 8
          %s300 = scalar_lea.vmem %s5, %s299
        $region40: #{se3_transformer_forward.4} parent=19 // pred_fallthru
          _
        // Predicated region
        $region41: #{se3_transformer_forward.4} parent=19 // pred_check
          %p301 = pneg %p190
        $region42: #{se3_transformer_forward.4} parent=19 // pred_check_branch
          %303 = sbr.rel (%p301) target = $region44
        $region43: #{se3_transformer_forward.4} parent=19 // pred_region
          %s304 = sand.u32 %s19, 1
          %s305 = scalar_lea.sflag [#allocation5], %s304
          %s306 = sand.u32 %s180, 1
          %s307 = smul.addr %s306, 2
          %s308 = scalar_lea.vmem [#allocation6], %s307
          %s310 = ssub.s32 32, 32
          %311 = vsyncadd %s305, %s310
          %s312 = smul.addr %s19, 2
          %s313 = smul.addr %s312, 16
          %s314 = scalar_lea.hbm %s6, %s313
          %s316 = sshll.u32 %s308, 4
          %s317 = int_to_ptr.vmem [resolvable:$true] %s316
          %319 = dma.hbm_to_vmem [thread:$0]  %s314, 32, %s317, %s305
        $region44: #{se3_transformer_forward.4} parent=19 // pred_fallthru
          _
      $region20: #{se3_transformer_forward.4} parent=5 // pred_fallthru
        _
      %p320 = scmp.le.s32.totalorder 1, %s19
      %p321 = scmp.lt.s32.totalorder %s19, 5
      %p322 = pnand %p320, %p321
      %p323 = pneg %p322
      // Predicated region
      $region45: #{se3_transformer_forward.4} parent=5 // pred_check
        _
      $region46: #{se3_transformer_forward.4} parent=5 // pred_check_branch
        %325 = sbr.rel (%p322) target = $region48
      $region47: #{se3_transformer_forward.4} parent=5 // pred_region
        %s326 = ssub.s32 %s19, 1
        %s327 = sand.u32 %s53, 1
        %s328 = scalar_lea.sflag [#allocation3], %s327
        %s329 = sand.u32 %s53, 1
        %s330 = smul.addr %s329, 8
        %s331 = scalar_lea.vmem [#allocation2], %s330
        // Predicated region
        $region49: #{se3_transformer_forward.4} parent=47 // pred_check
          %p332 = pneg %p66
        $region50: #{se3_transformer_forward.4} parent=47 // pred_check_branch
          %334 = sbr.rel (%p332) target = $region52
        $region51: #{se3_transformer_forward.4} parent=47 // pred_region
          %335 = dma.done %s328, 128
        $region52: #{se3_transformer_forward.4} parent=47 // pred_fallthru
          _
        %s336 = sand.u32 %s24, 1
        %s337 = scalar_lea.sflag [#allocation5], %s336
        %s338 = sand.u32 %s131, 1
        %s339 = scalar_lea.vmem [#allocation4], %s338
        // Predicated region
        $region53: #{se3_transformer_forward.4} parent=47 // pred_check
          %p340 = pneg %p144
        $region54: #{se3_transformer_forward.4} parent=47 // pred_check_branch
          %342 = sbr.rel (%p340) target = $region56
        $region55: #{se3_transformer_forward.4} parent=47 // pred_region
          %343 = dma.done %s337, 16
        $region56: #{se3_transformer_forward.4} parent=47 // pred_fallthru
          _
        %s344 = sand.u32 %s24, 1
        %s345 = scalar_lea.sflag [#allocation5], %s344
        %s346 = sand.u32 %s183, 1
        %s347 = smul.addr %s346, 2
        %s348 = scalar_lea.vmem [#allocation6], %s347
        // Predicated region
        $region57: #{se3_transformer_forward.4} parent=47 // pred_check
          %p349 = pneg %p196
        $region58: #{se3_transformer_forward.4} parent=47 // pred_check_branch
          %351 = sbr.rel (%p349) target = $region60
        $region59: #{se3_transformer_forward.4} parent=47 // pred_region
          %352 = dma.done %s345, 32
        $region60: #{se3_transformer_forward.4} parent=47 // pred_fallthru
          _
        %p353 = pneg %p40
        %p354 = pneg %p37
        %s355 = sand.u32 %s53, 1
        %s356 = scalar_lea.sflag [#allocation3], %s355
        %s357 = sand.u32 %s53, 1
        %s358 = smul.addr %s357, 8
        %s359 = scalar_lea.vmem [#allocation2], %s358
        %p360 = pneg %p66
        %p361 = pneg %p63
        %p362 = scmp.lt.s32.totalorder %s24, 3
        %s363 = scalar_select %p362, %s24, 3
        %s364 = scalar_lea.vmem %s2, %s363
        %p365 = pneg %p92
        %p366 = pneg %p89
        %p367 = scmp.lt.s32.totalorder %s24, 3
        %s368 = scalar_select %p367, %s24, 3
        %s369 = smul.addr %s368, 4
        %s370 = smul.addr %s369, 8
        %s371 = scalar_lea.vmem %s3, %s370
        %p372 = pneg %p118
        %p373 = pneg %p115
        %s374 = sand.u32 %s24, 1
        %s375 = scalar_lea.sflag [#allocation5], %s374
        %s376 = sand.u32 %s131, 1
        %s377 = scalar_lea.vmem [#allocation4], %s376
        %p378 = pneg %p144
        %p379 = pneg %p141
        %p380 = scmp.lt.s32.totalorder %s24, 3
        %s381 = scalar_select %p380, %s24, 3
        %s382 = smul.addr %s381, 8
        %s383 = smul.addr %s382, 8
        %s384 = scalar_lea.vmem %s5, %s383
        %p385 = pneg %p170
        %p386 = pneg %p167
        %s387 = sand.u32 %s24, 1
        %s388 = scalar_lea.sflag [#allocation5], %s387
        %s389 = sand.u32 %s183, 1
        %s390 = smul.addr %s389, 2
        %s391 = scalar_lea.vmem [#allocation6], %s390
        %p392 = pneg %p196
        %p393 = pneg %p193
        %p394 = pneg %p222
        %p395 = pneg %p219
        %p396 = scmp.lt.s32.totalorder %s24, 3
        %s397 = scalar_select %p396, %s24, 3
        %s398 = smul.addr %s397, 16
        %s399 = smul.addr %s398, 8
        %s400 = scalar_lea.vmem %s7, %s399
        %p401 = scmp.lt.s32.totalorder %s24, 3
        %s402 = scalar_select %p401, %s24, 3
        %s403 = scalar_lea.vmem %s2, %s402
        %p404 = scmp.lt.s32.totalorder %s24, 3
        %s405 = scalar_select %p404, %s24, 3
        %s406 = smul.addr %s405, 4
        %s407 = smul.addr %s406, 8
        %s408 = scalar_lea.vmem %s3, %s407
        %p409 = scmp.lt.s32.totalorder %s24, 3
        %s410 = scalar_select %p409, %s24, 3
        %s411 = smul.addr %s410, 8
        %s412 = smul.addr %s411, 8
        %s413 = scalar_lea.vmem %s5, %s412
        %p414 = scmp.lt.s32.totalorder %s24, 3
        %s415 = scalar_select %p414, %s24, 3
        %s416 = smul.addr %s415, 16
        %s417 = smul.addr %s416, 8
        %s418 = scalar_lea.vmem %s7, %s417
        %v419 = vld [vmem:[%s0] sm:$0xff]
        %v420 = vld [vmem:[%s0 + $0x8] sm:$0xff]
        %v421 = vld [vmem:[%s0 + $0x10] sm:$0xff]
        %v422 = vld [vmem:[%s0 + $0x18] sm:$0xff]
        %v423 = vld [vmem:[%s0 + $0x20] sm:$0xff]
        %v424 = vld [vmem:[%s0 + $0x28] sm:$0xff]
        %v425 = vld [vmem:[%s0 + $0x30] sm:$0xff]
        %v426 = vld [vmem:[%s0 + $0x38] sm:$0xff]
        %v427 = vld [vmem:[%s331] sm:$0xff]
        %v428 = vld [vmem:[%s403] sm:$0x1]
        %v430 = vlaneseq
        %v431 = vshrl.u32 %v430, 7
        %v432 = vsub.s32 0, %v431
        %v433 = vrot.slane %v428, %v432
        %vm435 = vcmask 64512
        %v437 = vsel %vm435, %v419, 0
        %v440 = vsel %vm435, %v420, 0
        %v443 = vsel %vm435, %v421, 0
        %v446 = vsel %vm435, %v422, 0
        %v449 = vsel %vm435, %v423, 0
        %v452 = vsel %vm435, %v424, 0
        %v455 = vsel %vm435, %v425, 0
        %v458 = vsel %vm435, %v426, 0
        %460 = vmatprep.subr.mxu0 0.0
        %461 = vmatpush1.msra.mxu0 0.0
        %462 = vmatprep.subr.mxu0 0.0
        %463 = vmatpush1.msra.mxu0 0.0
        %464 = vmatprep.subr.mxu0 0.0
        %465 = vmatpush1.msra.mxu0 0.0
        %466 = vmatprep.subr.mxu0 0.0
        %467 = vmatpush1.msra.mxu0 0.0
        %468 = vmatprep.subr.mxu0 0.0
        %469 = vmatpush1.msra.mxu0 0.0
        %470 = vmatprep.subr.mxu0 0.0
        %471 = vmatpush1.msra.mxu0 0.0
        %472 = vmatprep.subr.mxu0 0.0
        %473 = vmatpush1.msra.mxu0 0.0
        %474 = vmatprep.subr.mxu0 0.0
        %475 = vmatpush1.msra.mxu0 0.0
        %476 = vmatprep.subr.mxu0 0.0
        %477 = vmatpush1.msra.mxu0 0.0
        %478 = vmatprep.subr.mxu0 0.0
        %479 = vmatpush1.msra.mxu0 0.0
        %480 = vmatprep.subr.mxu0 0.0
        %481 = vmatpush1.msra.mxu0 0.0
        %482 = vmatprep.subr.mxu0 0.0
        %483 = vmatpush1.msra.mxu0 0.0
        %484 = vmatprep.subr.mxu0 0.0
        %485 = vmatpush1.msra.mxu0 0.0
        %486 = vmatprep.subr.mxu0 0.0
        %487 = vmatpush1.msra.mxu0 0.0
        %488 = vmatprep.subr.mxu0 0.0
        %489 = vmatpush1.msra.mxu0 0.0
        %490 = vmatprep.subr.mxu0 0.0
        %491 = vmatpush1.msra.mxu0 %v427
        %492 = vmatprep.subr.mxu0 0.0
        %493 = vmatpush2.msra.mxu0 0.0
        %494 = vmatprep.subr.mxu0 0.0
        %495 = vmatpush2.msra.mxu0 0.0
        %496 = vmatprep.subr.mxu0 0.0
        %497 = vmatpush2.msra.mxu0 0.0
        %498 = vmatprep.subr.mxu0 0.0
        %499 = vmatpush2.msra.mxu0 0.0
        %500 = vmatprep.subr.mxu0 0.0
        %501 = vmatpush2.msra.mxu0 0.0
        %502 = vmatprep.subr.mxu0 0.0
        %503 = vmatpush2.msra.mxu0 0.0
        %504 = vmatprep.subr.mxu0 0.0
        %505 = vmatpush2.msra.mxu0 0.0
        %506 = vmatprep.subr.mxu0 0.0
        %507 = vmatpush2.msra.mxu0 0.0
        %508 = vmatprep.subr.mxu0 0.0
        %509 = vmatpush2.msra.mxu0 0.0
        %510 = vmatprep.subr.mxu0 0.0
        %511 = vmatpush2.msra.mxu0 0.0
        %512 = vmatprep.subr.mxu0 0.0
        %513 = vmatpush2.msra.mxu0 0.0
        %514 = vmatprep.subr.mxu0 0.0
        %515 = vmatpush2.msra.mxu0 0.0
        %516 = vmatprep.subr.mxu0 0.0
        %517 = vmatpush2.msra.mxu0 0.0
        %518 = vmatprep.subr.mxu0 0.0
        %519 = vmatpush2.msra.mxu0 0.0
        %520 = vmatprep.subr.mxu0 0.0
        %521 = vmatpush2.msra.mxu0 0.0
        %522 = vmatprep.subr.mxu0 0.0
        %523 = vmatpush2.msra.mxu0 0.0
        %524 = vmatprep.mubr.f32.mxu0 0.0
        %525 = vmatmul.mubr.f32.gmra.mxu0 %v437
        %v526 = vpop.f32.mrf.mxu0
        %v527 = vadd.f32 %v433, %v526
        %v528 = vpop.f32.mrf.mxu0
        %529 = vmatprep.mubr.f32.mxu0 0.0
        %530 = vmatmul.mubr.f32.gmra.mxu0 %v440
        %v531 = vpop.f32.mrf.mxu0
        %v532 = vadd.f32 %v433, %v531
        %v533 = vpop.f32.mrf.mxu0
        %534 = vmatprep.mubr.f32.mxu0 0.0
        %535 = vmatmul.mubr.f32.gmra.mxu0 %v443
        %v536 = vpop.f32.mrf.mxu0
        %v537 = vadd.f32 %v433, %v536
        %v538 = vpop.f32.mrf.mxu0
        %539 = vmatprep.mubr.f32.mxu0 0.0
        %540 = vmatmul.mubr.f32.gmra.mxu0 %v446
        %v541 = vpop.f32.mrf.mxu0
        %v542 = vadd.f32 %v433, %v541
        %v543 = vpop.f32.mrf.mxu0
        %544 = vmatprep.mubr.f32.mxu0 0.0
        %545 = vmatmul.mubr.f32.gmra.mxu0 %v449
        %v546 = vpop.f32.mrf.mxu0
        %v547 = vadd.f32 %v433, %v546
        %v548 = vpop.f32.mrf.mxu0
        %549 = vmatprep.mubr.f32.mxu0 0.0
        %550 = vmatmul.mubr.f32.gmra.mxu0 %v452
        %v551 = vpop.f32.mrf.mxu0
        %v552 = vadd.f32 %v433, %v551
        %v553 = vpop.f32.mrf.mxu0
        %554 = vmatprep.mubr.f32.mxu0 0.0
        %555 = vmatmul.mubr.f32.gmra.mxu0 %v455
        %v556 = vpop.f32.mrf.mxu0
        %v557 = vadd.f32 %v433, %v556
        %v558 = vpop.f32.mrf.mxu0
        %559 = vmatprep.mubr.f32.mxu0 0.0
        %560 = vmatmul.mubr.f32.gmra.mxu0 %v458
        %v561 = vpop.f32.mrf.mxu0
        %v562 = vadd.f32 %v433, %v561
        %v563 = vpop.f32.mrf.mxu0
        %564 = vdwg.mxu0
        %v565 = vmax.f32 %v527, 0.0
        %v566 = vmax.f32 %v532, 0.0
        %v567 = vmax.f32 %v537, 0.0
        %v568 = vmax.f32 %v542, 0.0
        %v569 = vmax.f32 %v547, 0.0
        %v570 = vmax.f32 %v552, 0.0
        %v571 = vmax.f32 %v557, 0.0
        %v572 = vmax.f32 %v562, 0.0
        %v573 = vld [vmem:[%s408] sm:$0xff]
        %v574 = vld [vmem:[%s408 + $0x8] sm:$0xff]
        %v575 = vld [vmem:[%s408 + $0x10] sm:$0xff]
        %v576 = vld [vmem:[%s408 + $0x18] sm:$0xff]
        %v577 = vld [vmem:[%s339] sm:$0x1]
        %v579 = vlaneseq
        %v580 = vshrl.u32 %v579, 7
        %v581 = vsub.s32 0, %v580
        %v582 = vrot.slane %v577, %v581
        %vm584 = vcmask 261120
        %v586 = vsel %vm584, %v565, 0
        %v589 = vsel %vm584, %v566, 0
        %v592 = vsel %vm584, %v567, 0
        %v595 = vsel %vm584, %v568, 0
        %v598 = vsel %vm584, %v569, 0
        %v601 = vsel %vm584, %v570, 0
        %v604 = vsel %vm584, %v571, 0
        %v607 = vsel %vm584, %v572, 0
        %609 = vmatprep.subr.mxu0 0.0
        %610 = vmatpush1.msra.mxu0 0.0
        %611 = vmatprep.subr.mxu0 0.0
        %612 = vmatpush1.msra.mxu0 0.0
        %613 = vmatprep.subr.mxu0 0.0
        %614 = vmatpush1.msra.mxu0 0.0
        %615 = vmatprep.subr.mxu0 0.0
        %616 = vmatpush1.msra.mxu0 0.0
        %617 = vmatprep.subr.mxu0 0.0
        %618 = vmatpush1.msra.mxu0 0.0
        %619 = vmatprep.subr.mxu0 0.0
        %620 = vmatpush1.msra.mxu0 0.0
        %621 = vmatprep.subr.mxu0 0.0
        %622 = vmatpush1.msra.mxu0 0.0
        %623 = vmatprep.subr.mxu0 0.0
        %624 = vmatpush1.msra.mxu0 0.0
        %625 = vmatprep.subr.mxu0 0.0
        %626 = vmatpush1.msra.mxu0 0.0
        %627 = vmatprep.subr.mxu0 0.0
        %628 = vmatpush1.msra.mxu0 0.0
        %629 = vmatprep.subr.mxu0 0.0
        %630 = vmatpush1.msra.mxu0 0.0
        %631 = vmatprep.subr.mxu0 0.0
        %632 = vmatpush1.msra.mxu0 0.0
        %633 = vmatprep.subr.mxu0 0.0
        %634 = vmatpush1.msra.mxu0 %v576
        %635 = vmatprep.subr.mxu0 0.0
        %636 = vmatpush1.msra.mxu0 %v575
        %637 = vmatprep.subr.mxu0 0.0
        %638 = vmatpush1.msra.mxu0 %v574
        %639 = vmatprep.subr.mxu0 0.0
        %640 = vmatpush1.msra.mxu0 %v573
        %641 = vmatprep.subr.mxu0 0.0
        %642 = vmatpush2.msra.mxu0 0.0
        %643 = vmatprep.subr.mxu0 0.0
        %644 = vmatpush2.msra.mxu0 0.0
        %645 = vmatprep.subr.mxu0 0.0
        %646 = vmatpush2.msra.mxu0 0.0
        %647 = vmatprep.subr.mxu0 0.0
        %648 = vmatpush2.msra.mxu0 0.0
        %649 = vmatprep.subr.mxu0 0.0
        %650 = vmatpush2.msra.mxu0 0.0
        %651 = vmatprep.subr.mxu0 0.0
        %652 = vmatpush2.msra.mxu0 0.0
        %653 = vmatprep.subr.mxu0 0.0
        %654 = vmatpush2.msra.mxu0 0.0
        %655 = vmatprep.subr.mxu0 0.0
        %656 = vmatpush2.msra.mxu0 0.0
        %657 = vmatprep.subr.mxu0 0.0
        %658 = vmatpush2.msra.mxu0 0.0
        %659 = vmatprep.subr.mxu0 0.0
        %660 = vmatpush2.msra.mxu0 0.0
        %661 = vmatprep.subr.mxu0 0.0
        %662 = vmatpush2.msra.mxu0 0.0
        %663 = vmatprep.subr.mxu0 0.0
        %664 = vmatpush2.msra.mxu0 0.0
        %665 = vmatprep.subr.mxu0 0.0
        %666 = vmatpush2.msra.mxu0 0.0
        %667 = vmatprep.subr.mxu0 0.0
        %668 = vmatpush2.msra.mxu0 0.0
        %669 = vmatprep.subr.mxu0 0.0
        %670 = vmatpush2.msra.mxu0 0.0
        %671 = vmatprep.subr.mxu0 0.0
        %672 = vmatpush2.msra.mxu0 0.0
        %673 = vmatprep.mubr.f32.mxu0 0.0
        %674 = vmatmul.mubr.f32.gmra.mxu0 %v586
        %v675 = vpop.f32.mrf.mxu0
        %v676 = vadd.f32 %v582, %v675
        %v677 = vpop.f32.mrf.mxu0
        %678 = vmatprep.mubr.f32.mxu0 0.0
        %679 = vmatmul.mubr.f32.gmra.mxu0 %v589
        %v680 = vpop.f32.mrf.mxu0
        %v681 = vadd.f32 %v582, %v680
        %v682 = vpop.f32.mrf.mxu0
        %683 = vmatprep.mubr.f32.mxu0 0.0
        %684 = vmatmul.mubr.f32.gmra.mxu0 %v592
        %v685 = vpop.f32.mrf.mxu0
        %v686 = vadd.f32 %v582, %v685
        %v687 = vpop.f32.mrf.mxu0
        %688 = vmatprep.mubr.f32.mxu0 0.0
        %689 = vmatmul.mubr.f32.gmra.mxu0 %v595
        %v690 = vpop.f32.mrf.mxu0
        %v691 = vadd.f32 %v582, %v690
        %v692 = vpop.f32.mrf.mxu0
        %693 = vmatprep.mubr.f32.mxu0 0.0
        %694 = vmatmul.mubr.f32.gmra.mxu0 %v598
        %v695 = vpop.f32.mrf.mxu0
        %v696 = vadd.f32 %v582, %v695
        %v697 = vpop.f32.mrf.mxu0
        %698 = vmatprep.mubr.f32.mxu0 0.0
        %699 = vmatmul.mubr.f32.gmra.mxu0 %v601
        %v700 = vpop.f32.mrf.mxu0
        %v701 = vadd.f32 %v582, %v700
        %v702 = vpop.f32.mrf.mxu0
        %703 = vmatprep.mubr.f32.mxu0 0.0
        %704 = vmatmul.mubr.f32.gmra.mxu0 %v604
        %v705 = vpop.f32.mrf.mxu0
        %v706 = vadd.f32 %v582, %v705
        %v707 = vpop.f32.mrf.mxu0
        %708 = vmatprep.mubr.f32.mxu0 0.0
        %709 = vmatmul.mubr.f32.gmra.mxu0 %v607
        %v710 = vpop.f32.mrf.mxu0
        %v711 = vadd.f32 %v582, %v710
        %v712 = vpop.f32.mrf.mxu0
        %713 = vdwg.mxu0
        %v714 = vmax.f32 %v676, 0.0
        %v715 = vmax.f32 %v681, 0.0
        %v716 = vmax.f32 %v686, 0.0
        %v717 = vmax.f32 %v691, 0.0
        %v718 = vmax.f32 %v696, 0.0
        %v719 = vmax.f32 %v701, 0.0
        %v720 = vmax.f32 %v706, 0.0
        %v721 = vmax.f32 %v711, 0.0
        %v722 = vld [vmem:[%s413] sm:$0xff]
        %v723 = vld [vmem:[%s413 + $0x8] sm:$0xff]
        %v724 = vld [vmem:[%s413 + $0x10] sm:$0xff]
        %v725 = vld [vmem:[%s413 + $0x18] sm:$0xff]
        %v726 = vld [vmem:[%s413 + $0x20] sm:$0xff]
        %v727 = vld [vmem:[%s413 + $0x28] sm:$0xff]
        %v728 = vld [vmem:[%s413 + $0x30] sm:$0xff]
        %v729 = vld [vmem:[%s413 + $0x38] sm:$0xff]
        %v730 = vld [vmem:[%s348] sm:$0x3]
        %v732 = vlaneseq
        %v733 = vshrl.u32 %v732, 7
        %v734 = vsub.s32 0, %v733
        %v735 = vrot.slane %v730, %v734
        %v736 = vlaneseq
        %v737 = vshrl.u32 %v736, 7
        %v738 = vsub.s32 1, %v737
        %v739 = vrot.slane %v730, %v738
        %v743 = vsel %vm584, %v714, 0
        %v746 = vsel %vm584, %v715, 0
        %v749 = vsel %vm584, %v716, 0
        %v752 = vsel %vm584, %v717, 0
        %v755 = vsel %vm584, %v718, 0
        %v758 = vsel %vm584, %v719, 0
        %v761 = vsel %vm584, %v720, 0
        %v764 = vsel %vm584, %v721, 0
        %766 = vmatprep.subr.mxu0 0.0
        %767 = vmatpush1.msra.mxu0 0.0
        %768 = vmatprep.subr.mxu0 0.0
        %769 = vmatpush1.msra.mxu0 0.0
        %770 = vmatprep.subr.mxu0 0.0
        %771 = vmatpush1.msra.mxu0 0.0
        %772 = vmatprep.subr.mxu0 0.0
        %773 = vmatpush1.msra.mxu0 0.0
        %774 = vmatprep.subr.mxu0 0.0
        %775 = vmatpush1.msra.mxu0 0.0
        %776 = vmatprep.subr.mxu0 0.0
        %777 = vmatpush1.msra.mxu0 0.0
        %778 = vmatprep.subr.mxu0 0.0
        %779 = vmatpush1.msra.mxu0 0.0
        %780 = vmatprep.subr.mxu0 0.0
        %781 = vmatpush1.msra.mxu0 0.0
        %782 = vmatprep.subr.mxu0 0.0
        %783 = vmatpush1.msra.mxu0 0.0
        %784 = vmatprep.subr.mxu0 0.0
        %785 = vmatpush1.msra.mxu0 0.0
        %786 = vmatprep.subr.mxu0 0.0
        %787 = vmatpush1.msra.mxu0 0.0
        %788 = vmatprep.subr.mxu0 0.0
        %789 = vmatpush1.msra.mxu0 0.0
        %790 = vmatprep.subr.mxu0 %v729
        %791 = vmatpush1.msra.mxu0 %v728
        %792 = vmatprep.subr.mxu0 %v727
        %793 = vmatpush1.msra.mxu0 %v726
        %794 = vmatprep.subr.mxu0 %v725
        %795 = vmatpush1.msra.mxu0 %v724
        %796 = vmatprep.subr.mxu0 %v723
        %797 = vmatpush1.msra.mxu0 %v722
        %798 = vmatprep.subr.mxu0 0.0
        %799 = vmatpush2.msra.mxu0 0.0
        %800 = vmatprep.subr.mxu0 0.0
        %801 = vmatpush2.msra.mxu0 0.0
        %802 = vmatprep.subr.mxu0 0.0
        %803 = vmatpush2.msra.mxu0 0.0
        %804 = vmatprep.subr.mxu0 0.0
        %805 = vmatpush2.msra.mxu0 0.0
        %806 = vmatprep.subr.mxu0 0.0
        %807 = vmatpush2.msra.mxu0 0.0
        %808 = vmatprep.subr.mxu0 0.0
        %809 = vmatpush2.msra.mxu0 0.0
        %810 = vmatprep.subr.mxu0 0.0
        %811 = vmatpush2.msra.mxu0 0.0
        %812 = vmatprep.subr.mxu0 0.0
        %813 = vmatpush2.msra.mxu0 0.0
        %814 = vmatprep.subr.mxu0 0.0
        %815 = vmatpush2.msra.mxu0 0.0
        %816 = vmatprep.subr.mxu0 0.0
        %817 = vmatpush2.msra.mxu0 0.0
        %818 = vmatprep.subr.mxu0 0.0
        %819 = vmatpush2.msra.mxu0 0.0
        %820 = vmatprep.subr.mxu0 0.0
        %821 = vmatpush2.msra.mxu0 0.0
        %822 = vmatprep.subr.mxu0 0.0
        %823 = vmatpush2.msra.mxu0 0.0
        %824 = vmatprep.subr.mxu0 0.0
        %825 = vmatpush2.msra.mxu0 0.0
        %826 = vmatprep.subr.mxu0 0.0
        %827 = vmatpush2.msra.mxu0 0.0
        %828 = vmatprep.subr.mxu0 0.0
        %829 = vmatpush2.msra.mxu0 0.0
        %830 = vmatprep.mubr.f32.mxu0 0.0
        %831 = vmatmul.mubr.f32.gmra.mxu0 %v743
        %v832 = vpop.f32.mrf.mxu0
        %v833 = vadd.f32 %v735, %v832
        %v834 = vpop.f32.mrf.mxu0
        %v835 = vadd.f32 %v739, %v834
        %836 = vmatprep.mubr.f32.mxu0 0.0
        %837 = vmatmul.mubr.f32.gmra.mxu0 %v746
        %v838 = vpop.f32.mrf.mxu0
        %v839 = vadd.f32 %v735, %v838
        %v840 = vpop.f32.mrf.mxu0
        %v841 = vadd.f32 %v739, %v840
        %842 = vmatprep.mubr.f32.mxu0 0.0
        %843 = vmatmul.mubr.f32.gmra.mxu0 %v749
        %v844 = vpop.f32.mrf.mxu0
        %v845 = vadd.f32 %v735, %v844
        %v846 = vpop.f32.mrf.mxu0
        %v847 = vadd.f32 %v739, %v846
        %848 = vmatprep.mubr.f32.mxu0 0.0
        %849 = vmatmul.mubr.f32.gmra.mxu0 %v752
        %v850 = vpop.f32.mrf.mxu0
        %v851 = vadd.f32 %v735, %v850
        %v852 = vpop.f32.mrf.mxu0
        %v853 = vadd.f32 %v739, %v852
        %854 = vmatprep.mubr.f32.mxu0 0.0
        %855 = vmatmul.mubr.f32.gmra.mxu0 %v755
        %v856 = vpop.f32.mrf.mxu0
        %v857 = vadd.f32 %v735, %v856
        %v858 = vpop.f32.mrf.mxu0
        %v859 = vadd.f32 %v739, %v858
        %860 = vmatprep.mubr.f32.mxu0 0.0
        %861 = vmatmul.mubr.f32.gmra.mxu0 %v758
        %v862 = vpop.f32.mrf.mxu0
        %v863 = vadd.f32 %v735, %v862
        %v864 = vpop.f32.mrf.mxu0
        %v865 = vadd.f32 %v739, %v864
        %866 = vmatprep.mubr.f32.mxu0 0.0
        %867 = vmatmul.mubr.f32.gmra.mxu0 %v761
        %v868 = vpop.f32.mrf.mxu0
        %v869 = vadd.f32 %v735, %v868
        %v870 = vpop.f32.mrf.mxu0
        %v871 = vadd.f32 %v739, %v870
        %872 = vmatprep.mubr.f32.mxu0 0.0
        %873 = vmatmul.mubr.f32.gmra.mxu0 %v764
        %v874 = vpop.f32.mrf.mxu0
        %v875 = vadd.f32 %v735, %v874
        %v876 = vpop.f32.mrf.mxu0
        %v877 = vadd.f32 %v739, %v876
        %878 = vdwg.mxu0
        %879 = vst [vmem:[%s418] sm:$0xff] %v833
        %880 = vst [vmem:[%s418 + $0x8] sm:$0xff] %v835
        %881 = vst [vmem:[%s418 + $0x10] sm:$0xff] %v839
        %882 = vst [vmem:[%s418 + $0x18] sm:$0xff] %v841
        %883 = vst [vmem:[%s418 + $0x20] sm:$0xff] %v845
        %884 = vst [vmem:[%s418 + $0x28] sm:$0xff] %v847
        %885 = vst [vmem:[%s418 + $0x30] sm:$0xff] %v851
        %886 = vst [vmem:[%s418 + $0x38] sm:$0xff] %v853
        %887 = vst [vmem:[%s418 + $0x40] sm:$0xff] %v857
        %888 = vst [vmem:[%s418 + $0x48] sm:$0xff] %v859
        %889 = vst [vmem:[%s418 + $0x50] sm:$0xff] %v863
        %890 = vst [vmem:[%s418 + $0x58] sm:$0xff] %v865
        %891 = vst [vmem:[%s418 + $0x60] sm:$0xff] %v869
        %892 = vst [vmem:[%s418 + $0x68] sm:$0xff] %v871
        %893 = vst [vmem:[%s418 + $0x70] sm:$0xff] %v875
        %894 = vst [vmem:[%s418 + $0x78] sm:$0xff] %v877
        %p895 = scmp.lt.s32.totalorder %s24, 3
        %s896 = scalar_select %p895, %s24, 3
        %s897 = smul.addr %s896, 16
        %s898 = smul.addr %s897, 8
        %s899 = scalar_lea.vmem %s7, %s898
        // Predicated region
        $region61: #{se3_transformer_forward.4} parent=47 // pred_check
          %p900 = pneg %p219
        $region62: #{se3_transformer_forward.4} parent=47 // pred_check_branch
          %902 = sbr.rel (%p900) target = $region64
        $region63: #{se3_transformer_forward.4} parent=47 // pred_region
          _
        $region64: #{se3_transformer_forward.4} parent=47 // pred_fallthru
          _
      $region48: #{se3_transformer_forward.4} parent=5 // pred_fallthru
        _
      %p903 = scmp.le.s32.totalorder 2, %s19
      // Predicated region
      $region65: #{se3_transformer_forward.4} parent=5 // pred_check
        %p904 = pneg %p903
      $region66: #{se3_transformer_forward.4} parent=5 // pred_check_branch
        %906 = sbr.rel (%p904) target = $region68
      $region67: #{se3_transformer_forward.4} parent=5 // pred_region
        %s907 = ssub.s32 %s19, 2
        // Predicated region
        $region69: #{se3_transformer_forward.4} parent=67 // pred_check
          %p908 = pneg %p225
        $region70: #{se3_transformer_forward.4} parent=67 // pred_check_branch
          %910 = sbr.rel (%p908) target = $region72
        $region71: #{se3_transformer_forward.4} parent=67 // pred_region
          %p911 = scmp.lt.s32.totalorder %s25, 3
          %s912 = scalar_select %p911, %s25, 3
          %s913 = smul.addr %s912, 16
          %s914 = smul.addr %s913, 8
          %s915 = scalar_lea.vmem %s7, %s914
        $region72: #{se3_transformer_forward.4} parent=67 // pred_fallthru
          _
      $region68: #{se3_transformer_forward.4} parent=5 // pred_fallthru
        _
    $region6: #{se3_transformer_forward.4} parent=1 // loop_footer
      %s23 = sadd.s32 1, %s19
    $region7: #{se3_transformer_forward.4} parent=1 // loop_footer_branch
      %18 = sbr.rel target = $region3
    $region8: #{se3_transformer_forward.4} parent=1 // loop_exit
      _
    %916 = vsyncpa [#allocation3], 1
    %s917 = scalar_lea.sflag [#allocation3], 1
    %918 = vsyncpa %s917, 1
    %919 = vsyncpa [#allocation5], 1
    %s920 = scalar_lea.sflag [#allocation5], 1
    %921 = vsyncpa %s920, 1

// kernel: se3_transformer_forward.5
$region0: #{se3_transformer_forward.5}
  #allocation0 [shape = 'u32[]', space=smem, size = 0x4, offset = 0x4, fixed_abs, tag = 'smem constant byte address 0x4 - core index']
  #allocation1 [shape = 'u32[144,128]{1,0:T(1,128)}', space=vmem, size = 0x12000, scoped, tag = 'internal scratch']
  %s0 = inlined_call_operand.vmem [shape: f32[64,8], index: 0, kind: input, shape index: {}]
  %s1 = inlined_call_operand.vmem [shape: f32[5,8,32], index: 1, kind: input, shape index: {}]
  %s2 = inlined_call_operand.vmem [shape: f32[5,1,32], index: 2, kind: input, shape index: {}]
  %s3 = inlined_call_operand.vmem [shape: f32[5,32,32], index: 3, kind: input, shape index: {}]
  %s4 = inlined_call_operand.vmem [shape: f32[5,1,32], index: 4, kind: input, shape index: {}]
  %s5 = inlined_call_operand.vmem [shape: f32[5,32,8], index: 5, kind: input, shape index: {}]
  %s6 = inlined_call_operand.vmem [shape: f32[5,1,8], index: 6, kind: input, shape index: {}]
  %s7 = inlined_call_operand.vmem [shape: f32[5,64,8], index: 7, kind: output, shape index: {}]
  %s8 = sld [smem:[#allocation0]]
  $region61: #{se3_transformer_forward.5} parent=0
    _
  %s10 = ssub.s32 1, %s8
  %s11 = scalar_select 0, %s10, %s8
  loop: start=0, step=1, limit=7
  $region2: #{se3_transformer_forward.5} parent=0 // loop_pre_header
    _
  $region3: #{se3_transformer_forward.5} parent=0 // loop_header
    %s13 = sphi 0, %s17
    %p14 = scmp.ge.s32.totalorder %s13, 7
    %s21 = sphi 0, %s21
    %s23 = sphi 0, %s21
    %s24 = sphi 0, %s23
    %s38 = sphi 0, %s24
    %s44 = sphi 0, %s46
    %s47 = sphi 0, %s44
    %s48 = sphi 0, %s47
    %s64 = sphi 0, %s48
    %s70 = sphi 0, %s72
    %s73 = sphi 0, %s70
    %s74 = sphi 0, %s73
    %s90 = sphi 0, %s74
    %s96 = sphi 0, %s98
    %s99 = sphi 0, %s96
    %s100 = sphi 0, %s99
    %s116 = sphi 0, %s100
    %s122 = sphi 0, %s124
    %s125 = sphi 0, %s122
    %s126 = sphi 0, %s125
    %s142 = sphi 0, %s126
    %s148 = sphi 0, %s150
    %s151 = sphi 0, %s148
    %s152 = sphi 0, %s151
    %s168 = sphi 0, %s152
    %s174 = sphi 0, %s176
    %s177 = sphi 0, %s174
    %s178 = sphi 0, %s177
    %s194 = sphi 0, %s178
    %s200 = sphi 0, %s202
    %s203 = sphi 0, %s200
    %s204 = sphi 0, %s203
    %s220 = sphi 0, %s204
  $region4: #{se3_transformer_forward.5} parent=0 // loop_header_branch
    %16 = sbr.rel (%p14) target = $region8
  $region5: #{se3_transformer_forward.5} parent=0 // loop_body
    %s18 = ssub.s32 %s13, 1
    %s19 = ssub.s32 %s13, 2
    %s20 = sadd.s32 %s13, 1
    %s22 = sadd.s32 %s21, 1
    %p25 = scmp.eq.s32.totalorder %s13, 4
    %p26 = scmp.ne.s32.totalorder %s21, %s23
    %p27 = scmp.eq.s32.totalorder %s13, 0
    %p28 = por %p26, %p27
    %p29 = scmp.ne.s32.totalorder %s21, %s23
    %p30 = scmp.eq.s32.totalorder %s18, 4
    %p31 = por %p29, %p30
    %p32 = scmp.ne.s32.totalorder %s23, %s24
    %p33 = scmp.eq.s32.totalorder %s18, 0
    %p34 = por %p32, %p33
    %p35 = scmp.ne.s32.totalorder %s23, %s24
    %p36 = scmp.eq.s32.totalorder %s19, 4
    %p37 = por %p35, %p36
    %p39 = scmp.ne.s32.totalorder %s24, %s38
    %p40 = scmp.eq.s32.totalorder %s19, 0
    %p41 = por %p39, %p40
    %s42 = ssub.s32 %s13, %s20
    %p43 = scmp.eq.s32.totalorder %s42, 0
    %s45 = sadd.s32 %s44, 1
    %s46 = scalar_select %p43, %s44, %s45
    %p49 = pneg %p43
    %p50 = scmp.eq.s32.totalorder %s13, 4
    %p51 = por %p49, %p50
    %p52 = scmp.ne.s32.totalorder %s44, %s47
    %p53 = scmp.eq.s32.totalorder %s13, 0
    %p54 = por %p52, %p53
    %p55 = scmp.ne.s32.totalorder %s44, %s47
    %p56 = scmp.eq.s32.totalorder %s18, 4
    %p57 = por %p55, %p56
    %p58 = scmp.ne.s32.totalorder %s47, %s48
    %p59 = scmp.eq.s32.totalorder %s18, 0
    %p60 = por %p58, %p59
    %p61 = scmp.ne.s32.totalorder %s47, %s48
    %p62 = scmp.eq.s32.totalorder %s19, 4
    %p63 = por %p61, %p62
    %p65 = scmp.ne.s32.totalorder %s48, %s64
    %p66 = scmp.eq.s32.totalorder %s19, 0
    %p67 = por %p65, %p66
    %s68 = ssub.s32 %s13, %s20
    %p69 = scmp.eq.s32.totalorder %s68, 0
    %s71 = sadd.s32 %s70, 1
    %s72 = scalar_select %p69, %s70, %s71
    %p75 = pneg %p69
    %p76 = scmp.eq.s32.totalorder %s13, 4
    %p77 = por %p75, %p76
    %p78 = scmp.ne.s32.totalorder %s70, %s73
    %p79 = scmp.eq.s32.totalorder %s13, 0
    %p80 = por %p78, %p79
    %p81 = scmp.ne.s32.totalorder %s70, %s73
    %p82 = scmp.eq.s32.totalorder %s18, 4
    %p83 = por %p81, %p82
    %p84 = scmp.ne.s32.totalorder %s73, %s74
    %p85 = scmp.eq.s32.totalorder %s18, 0
    %p86 = por %p84, %p85
    %p87 = scmp.ne.s32.totalorder %s73, %s74
    %p88 = scmp.eq.s32.totalorder %s19, 4
    %p89 = por %p87, %p88
    %p91 = scmp.ne.s32.totalorder %s74, %s90
    %p92 = scmp.eq.s32.totalorder %s19, 0
    %p93 = por %p91, %p92
    %s94 = ssub.s32 %s13, %s20
    %p95 = scmp.eq.s32.totalorder %s94, 0
    %s97 = sadd.s32 %s96, 1
    %s98 = scalar_select %p95, %s96, %s97
    %p101 = pneg %p95
    %p102 = scmp.eq.s32.totalorder %s13, 4
    %p103 = por %p101, %p102
    %p104 = scmp.ne.s32.totalorder %s96, %s99
    %p105 = scmp.eq.s32.totalorder %s13, 0
    %p106 = por %p104, %p105
    %p107 = scmp.ne.s32.totalorder %s96, %s99
    %p108 = scmp.eq.s32.totalorder %s18, 4
    %p109 = por %p107, %p108
    %p110 = scmp.ne.s32.totalorder %s99, %s100
    %p111 = scmp.eq.s32.totalorder %s18, 0
    %p112 = por %p110, %p111
    %p113 = scmp.ne.s32.totalorder %s99, %s100
    %p114 = scmp.eq.s32.totalorder %s19, 4
    %p115 = por %p113, %p114
    %p117 = scmp.ne.s32.totalorder %s100, %s116
    %p118 = scmp.eq.s32.totalorder %s19, 0
    %p119 = por %p117, %p118
    %s120 = ssub.s32 %s13, %s20
    %p121 = scmp.eq.s32.totalorder %s120, 0
    %s123 = sadd.s32 %s122, 1
    %s124 = scalar_select %p121, %s122, %s123
    %p127 = pneg %p121
    %p128 = scmp.eq.s32.totalorder %s13, 4
    %p129 = por %p127, %p128
    %p130 = scmp.ne.s32.totalorder %s122, %s125
    %p131 = scmp.eq.s32.totalorder %s13, 0
    %p132 = por %p130, %p131
    %p133 = scmp.ne.s32.totalorder %s122, %s125
    %p134 = scmp.eq.s32.totalorder %s18, 4
    %p135 = por %p133, %p134
    %p136 = scmp.ne.s32.totalorder %s125, %s126
    %p137 = scmp.eq.s32.totalorder %s18, 0
    %p138 = por %p136, %p137
    %p139 = scmp.ne.s32.totalorder %s125, %s126
    %p140 = scmp.eq.s32.totalorder %s19, 4
    %p141 = por %p139, %p140
    %p143 = scmp.ne.s32.totalorder %s126, %s142
    %p144 = scmp.eq.s32.totalorder %s19, 0
    %p145 = por %p143, %p144
    %s146 = ssub.s32 %s13, %s20
    %p147 = scmp.eq.s32.totalorder %s146, 0
    %s149 = sadd.s32 %s148, 1
    %s150 = scalar_select %p147, %s148, %s149
    %p153 = pneg %p147
    %p154 = scmp.eq.s32.totalorder %s13, 4
    %p155 = por %p153, %p154
    %p156 = scmp.ne.s32.totalorder %s148, %s151
    %p157 = scmp.eq.s32.totalorder %s13, 0
    %p158 = por %p156, %p157
    %p159 = scmp.ne.s32.totalorder %s148, %s151
    %p160 = scmp.eq.s32.totalorder %s18, 4
    %p161 = por %p159, %p160
    %p162 = scmp.ne.s32.totalorder %s151, %s152
    %p163 = scmp.eq.s32.totalorder %s18, 0
    %p164 = por %p162, %p163
    %p165 = scmp.ne.s32.totalorder %s151, %s152
    %p166 = scmp.eq.s32.totalorder %s19, 4
    %p167 = por %p165, %p166
    %p169 = scmp.ne.s32.totalorder %s152, %s168
    %p170 = scmp.eq.s32.totalorder %s19, 0
    %p171 = por %p169, %p170
    %s172 = ssub.s32 %s13, %s20
    %p173 = scmp.eq.s32.totalorder %s172, 0
    %s175 = sadd.s32 %s174, 1
    %s176 = scalar_select %p173, %s174, %s175
    %p179 = pneg %p173
    %p180 = scmp.eq.s32.totalorder %s13, 4
    %p181 = por %p179, %p180
    %p182 = scmp.ne.s32.totalorder %s174, %s177
    %p183 = scmp.eq.s32.totalorder %s13, 0
    %p184 = por %p182, %p183
    %p185 = scmp.ne.s32.totalorder %s174, %s177
    %p186 = scmp.eq.s32.totalorder %s18, 4
    %p187 = por %p185, %p186
    %p188 = scmp.ne.s32.totalorder %s177, %s178
    %p189 = scmp.eq.s32.totalorder %s18, 0
    %p190 = por %p188, %p189
    %p191 = scmp.ne.s32.totalorder %s177, %s178
    %p192 = scmp.eq.s32.totalorder %s19, 4
    %p193 = por %p191, %p192
    %p195 = scmp.ne.s32.totalorder %s178, %s194
    %p196 = scmp.eq.s32.totalorder %s19, 0
    %p197 = por %p195, %p196
    %s198 = ssub.s32 %s13, %s20
    %p199 = scmp.eq.s32.totalorder %s198, 0
    %s201 = sadd.s32 %s200, 1
    %s202 = scalar_select %p199, %s200, %s201
    %p205 = pneg %p199
    %p206 = scmp.eq.s32.totalorder %s13, 4
    %p207 = por %p205, %p206
    %p208 = scmp.ne.s32.totalorder %s200, %s203
    %p209 = scmp.eq.s32.totalorder %s13, 0
    %p210 = por %p208, %p209
    %p211 = scmp.ne.s32.totalorder %s200, %s203
    %p212 = scmp.eq.s32.totalorder %s18, 4
    %p213 = por %p211, %p212
    %p214 = scmp.ne.s32.totalorder %s203, %s204
    %p215 = scmp.eq.s32.totalorder %s18, 0
    %p216 = por %p214, %p215
    %p217 = scmp.ne.s32.totalorder %s203, %s204
    %p218 = scmp.eq.s32.totalorder %s19, 4
    %p219 = por %p217, %p218
    %p221 = scmp.ne.s32.totalorder %s204, %s220
    %p222 = scmp.eq.s32.totalorder %s19, 0
    %p223 = por %p221, %p222
    %p224 = scmp.le.s32.totalorder 1, %s13
    %p225 = scmp.lt.s32.totalorder %s13, 6
    %p226 = pnand %p224, %p225
    %p227 = pneg %p226
    // Predicated region
    $region9: #{se3_transformer_forward.5} parent=5 // pred_check
      _
    $region10: #{se3_transformer_forward.5} parent=5 // pred_check_branch
      %229 = sbr.rel (%p226) target = $region12
    $region11: #{se3_transformer_forward.5} parent=5 // pred_region
      %s230 = ssub.s32 %s13, 1
      // Predicated region
      $region13: #{se3_transformer_forward.5} parent=11 // pred_check
        %p231 = pneg %p34
      $region14: #{se3_transformer_forward.5} parent=11 // pred_check_branch
        %233 = sbr.rel (%p231) target = $region16
      $region15: #{se3_transformer_forward.5} parent=11 // pred_region
        _
      $region16: #{se3_transformer_forward.5} parent=11 // pred_fallthru
        _
    $region12: #{se3_transformer_forward.5} parent=5 // pred_fallthru
      _
    %p234 = scmp.lt.s32.totalorder %s13, 5
    // Predicated region
    $region17: #{se3_transformer_forward.5} parent=5 // pred_check
      %p235 = pneg %p234
    $region18: #{se3_transformer_forward.5} parent=5 // pred_check_branch
      %237 = sbr.rel (%p235) target = $region20
    $region19: #{se3_transformer_forward.5} parent=5 // pred_region
      // Predicated region
      $region21: #{se3_transformer_forward.5} parent=19 // pred_check
        %p238 = pneg %p54
      $region22: #{se3_transformer_forward.5} parent=19 // pred_check_branch
        %240 = sbr.rel (%p238) target = $region24
      $region23: #{se3_transformer_forward.5} parent=19 // pred_region
        %p241 = scmp.lt.s32.totalorder %s13, 4
        %s242 = scalar_select %p241, %s13, 4
        %s243 = smul.addr %s242, 8
        %s244 = scalar_lea.vmem %s1, %s243
      $region24: #{se3_transformer_forward.5} parent=19 // pred_fallthru
        _
      // Predicated region
      $region25: #{se3_transformer_forward.5} parent=19 // pred_check
        %p245 = pneg %p80
      $region26: #{se3_transformer_forward.5} parent=19 // pred_check_branch
        %247 = sbr.rel (%p245) target = $region28
      $region27: #{se3_transformer_forward.5} parent=19 // pred_region
        %p248 = scmp.lt.s32.totalorder %s13, 4
        %s249 = scalar_select %p248, %s13, 4
        %s250 = scalar_lea.vmem %s2, %s249
      $region28: #{se3_transformer_forward.5} parent=19 // pred_fallthru
        _
      // Predicated region
      $region29: #{se3_transformer_forward.5} parent=19 // pred_check
        %p251 = pneg %p106
      $region30: #{se3_transformer_forward.5} parent=19 // pred_check_branch
        %253 = sbr.rel (%p251) target = $region32
      $region31: #{se3_transformer_forward.5} parent=19 // pred_region
        %p254 = scmp.lt.s32.totalorder %s13, 4
        %s255 = scalar_select %p254, %s13, 4
        %s256 = smul.addr %s255, 4
        %s257 = smul.addr %s256, 8
        %s258 = scalar_lea.vmem %s3, %s257
      $region32: #{se3_transformer_forward.5} parent=19 // pred_fallthru
        _
      // Predicated region
      $region33: #{se3_transformer_forward.5} parent=19 // pred_check
        %p259 = pneg %p132
      $region34: #{se3_transformer_forward.5} parent=19 // pred_check_branch
        %261 = sbr.rel (%p259) target = $region36
      $region35: #{se3_transformer_forward.5} parent=19 // pred_region
        %p262 = scmp.lt.s32.totalorder %s13, 4
        %s263 = scalar_select %p262, %s13, 4
        %s264 = scalar_lea.vmem %s4, %s263
      $region36: #{se3_transformer_forward.5} parent=19 // pred_fallthru
        _
      // Predicated region
      $region37: #{se3_transformer_forward.5} parent=19 // pred_check
        %p265 = pneg %p158
      $region38: #{se3_transformer_forward.5} parent=19 // pred_check_branch
        %267 = sbr.rel (%p265) target = $region40
      $region39: #{se3_transformer_forward.5} parent=19 // pred_region
        %p268 = scmp.lt.s32.totalorder %s13, 4
        %s269 = scalar_select %p268, %s13, 4
        %s270 = smul.addr %s269, 4
        %s271 = smul.addr %s270, 8
        %s272 = scalar_lea.vmem %s5, %s271
      $region40: #{se3_transformer_forward.5} parent=19 // pred_fallthru
        _
      // Predicated region
      $region41: #{se3_transformer_forward.5} parent=19 // pred_check
        %p273 = pneg %p184
      $region42: #{se3_transformer_forward.5} parent=19 // pred_check_branch
        %275 = sbr.rel (%p273) target = $region44
      $region43: #{se3_transformer_forward.5} parent=19 // pred_region
        %p276 = scmp.lt.s32.totalorder %s13, 4
        %s277 = scalar_select %p276, %s13, 4
        %s278 = scalar_lea.vmem %s6, %s277
      $region44: #{se3_transformer_forward.5} parent=19 // pred_fallthru
        _
    $region20: #{se3_transformer_forward.5} parent=5 // pred_fallthru
      _
    %p279 = scmp.le.s32.totalorder 1, %s13
    %p280 = scmp.lt.s32.totalorder %s13, 6
    %p281 = pnand %p279, %p280
    %p282 = pneg %p281
    // Predicated region
    $region45: #{se3_transformer_forward.5} parent=5 // pred_check
      _
    $region46: #{se3_transformer_forward.5} parent=5 // pred_check_branch
      %284 = sbr.rel (%p281) target = $region48
    $region47: #{se3_transformer_forward.5} parent=5 // pred_region
      %s285 = ssub.s32 %s13, 1
      %p286 = pneg %p34
      %p287 = pneg %p31
      %p288 = scmp.lt.s32.totalorder %s18, 4
      %s289 = scalar_select %p288, %s18, 4
      %s290 = smul.addr %s289, 8
      %s291 = scalar_lea.vmem %s1, %s290
      %p292 = pneg %p60
      %p293 = pneg %p57
      %p294 = scmp.lt.s32.totalorder %s18, 4
      %s295 = scalar_select %p294, %s18, 4
      %s296 = scalar_lea.vmem %s2, %s295
      %p297 = pneg %p86
      %p298 = pneg %p83
      %p299 = scmp.lt.s32.totalorder %s18, 4
      %s300 = scalar_select %p299, %s18, 4
      %s301 = smul.addr %s300, 4
      %s302 = smul.addr %s301, 8
      %s303 = scalar_lea.vmem %s3, %s302
      %p304 = pneg %p112
      %p305 = pneg %p109
      %p306 = scmp.lt.s32.totalorder %s18, 4
      %s307 = scalar_select %p306, %s18, 4
      %s308 = scalar_lea.vmem %s4, %s307
      %p309 = pneg %p138
      %p310 = pneg %p135
      %p311 = scmp.lt.s32.totalorder %s18, 4
      %s312 = scalar_select %p311, %s18, 4
      %s313 = smul.addr %s312, 4
      %s314 = smul.addr %s313, 8
      %s315 = scalar_lea.vmem %s5, %s314
      %p316 = pneg %p164
      %p317 = pneg %p161
      %p318 = scmp.lt.s32.totalorder %s18, 4
      %s319 = scalar_select %p318, %s18, 4
      %s320 = scalar_lea.vmem %s6, %s319
      %p321 = pneg %p190
      %p322 = pneg %p187
      %p323 = pneg %p216
      %p324 = pneg %p213
      %p325 = scmp.lt.s32.totalorder %s18, 4
      %s326 = scalar_select %p325, %s18, 4
      %s327 = smul.addr %s326, 8
      %s328 = smul.addr %s327, 8
      %s329 = scalar_lea.vmem %s7, %s328
      %p330 = scmp.lt.s32.totalorder %s18, 4
      %s331 = scalar_select %p330, %s18, 4
      %s332 = smul.addr %s331, 8
      %s333 = scalar_lea.vmem %s1, %s332
      %p334 = scmp.lt.s32.totalorder %s18, 4
      %s335 = scalar_select %p334, %s18, 4
      %s336 = scalar_lea.vmem %s2, %s335
      %p337 = scmp.lt.s32.totalorder %s18, 4
      %s338 = scalar_select %p337, %s18, 4
      %s339 = smul.addr %s338, 4
      %s340 = smul.addr %s339, 8
      %s341 = scalar_lea.vmem %s3, %s340
      %p342 = scmp.lt.s32.totalorder %s18, 4
      %s343 = scalar_select %p342, %s18, 4
      %s344 = scalar_lea.vmem %s4, %s343
      %p345 = scmp.lt.s32.totalorder %s18, 4
      %s346 = scalar_select %p345, %s18, 4
      %s347 = smul.addr %s346, 4
      %s348 = smul.addr %s347, 8
      %s349 = scalar_lea.vmem %s5, %s348
      %p350 = scmp.lt.s32.totalorder %s18, 4
      %s351 = scalar_select %p350, %s18, 4
      %s352 = scalar_lea.vmem %s6, %s351
      %p353 = scmp.lt.s32.totalorder %s18, 4
      %s354 = scalar_select %p353, %s18, 4
      %s355 = smul.addr %s354, 8
      %s356 = smul.addr %s355, 8
      %s357 = scalar_lea.vmem %s7, %s356
      %v358 = vld [vmem:[%s0] sm:$0xff]
      %v359 = vld [vmem:[%s0 + $0x8] sm:$0xff]
      %v360 = vld [vmem:[%s0 + $0x10] sm:$0xff]
      %v361 = vld [vmem:[%s0 + $0x18] sm:$0xff]
      %v362 = vld [vmem:[%s0 + $0x20] sm:$0xff]
      %v363 = vld [vmem:[%s0 + $0x28] sm:$0xff]
      %v364 = vld [vmem:[%s0 + $0x30] sm:$0xff]
      %v365 = vld [vmem:[%s0 + $0x38] sm:$0xff]
      %v366 = vld [vmem:[%s333] sm:$0xff]
      %v367 = vld [vmem:[%s336] sm:$0x1]
      %v369 = vlaneseq
      %v370 = vshrl.u32 %v369, 7
      %v371 = vsub.s32 0, %v370
      %v372 = vrot.slane %v367, %v371
      %vm374 = vcmask 64512
      %v376 = vsel %vm374, %v358, 0
      %v379 = vsel %vm374, %v359, 0
      %v382 = vsel %vm374, %v360, 0
      %v385 = vsel %vm374, %v361, 0
      %v388 = vsel %vm374, %v362, 0
      %v391 = vsel %vm374, %v363, 0
      %v394 = vsel %vm374, %v364, 0
      %v397 = vsel %vm374, %v365, 0
      %399 = vmatprep.subr.mxu0 0.0
      %400 = vmatpush1.msra.mxu0 0.0
      %401 = vmatprep.subr.mxu0 0.0
      %402 = vmatpush1.msra.mxu0 0.0
      %403 = vmatprep.subr.mxu0 0.0
      %404 = vmatpush1.msra.mxu0 0.0
      %405 = vmatprep.subr.mxu0 0.0
      %406 = vmatpush1.msra.mxu0 0.0
      %407 = vmatprep.subr.mxu0 0.0
      %408 = vmatpush1.msra.mxu0 0.0
      %409 = vmatprep.subr.mxu0 0.0
      %410 = vmatpush1.msra.mxu0 0.0
      %411 = vmatprep.subr.mxu0 0.0
      %412 = vmatpush1.msra.mxu0 0.0
      %413 = vmatprep.subr.mxu0 0.0
      %414 = vmatpush1.msra.mxu0 0.0
      %415 = vmatprep.subr.mxu0 0.0
      %416 = vmatpush1.msra.mxu0 0.0
      %417 = vmatprep.subr.mxu0 0.0
      %418 = vmatpush1.msra.mxu0 0.0
      %419 = vmatprep.subr.mxu0 0.0
      %420 = vmatpush1.msra.mxu0 0.0
      %421 = vmatprep.subr.mxu0 0.0
      %422 = vmatpush1.msra.mxu0 0.0
      %423 = vmatprep.subr.mxu0 0.0
      %424 = vmatpush1.msra.mxu0 0.0
      %425 = vmatprep.subr.mxu0 0.0
      %426 = vmatpush1.msra.mxu0 0.0
      %427 = vmatprep.subr.mxu0 0.0
      %428 = vmatpush1.msra.mxu0 0.0
      %429 = vmatprep.subr.mxu0 0.0
      %430 = vmatpush1.msra.mxu0 %v366
      %431 = vmatprep.subr.mxu0 0.0
      %432 = vmatpush2.msra.mxu0 0.0
      %433 = vmatprep.subr.mxu0 0.0
      %434 = vmatpush2.msra.mxu0 0.0
      %435 = vmatprep.subr.mxu0 0.0
      %436 = vmatpush2.msra.mxu0 0.0
      %437 = vmatprep.subr.mxu0 0.0
      %438 = vmatpush2.msra.mxu0 0.0
      %439 = vmatprep.subr.mxu0 0.0
      %440 = vmatpush2.msra.mxu0 0.0
      %441 = vmatprep.subr.mxu0 0.0
      %442 = vmatpush2.msra.mxu0 0.0
      %443 = vmatprep.subr.mxu0 0.0
      %444 = vmatpush2.msra.mxu0 0.0
      %445 = vmatprep.subr.mxu0 0.0
      %446 = vmatpush2.msra.mxu0 0.0
      %447 = vmatprep.subr.mxu0 0.0
      %448 = vmatpush2.msra.mxu0 0.0
      %449 = vmatprep.subr.mxu0 0.0
      %450 = vmatpush2.msra.mxu0 0.0
      %451 = vmatprep.subr.mxu0 0.0
      %452 = vmatpush2.msra.mxu0 0.0
      %453 = vmatprep.subr.mxu0 0.0
      %454 = vmatpush2.msra.mxu0 0.0
      %455 = vmatprep.subr.mxu0 0.0
      %456 = vmatpush2.msra.mxu0 0.0
      %457 = vmatprep.subr.mxu0 0.0
      %458 = vmatpush2.msra.mxu0 0.0
      %459 = vmatprep.subr.mxu0 0.0
      %460 = vmatpush2.msra.mxu0 0.0
      %461 = vmatprep.subr.mxu0 0.0
      %462 = vmatpush2.msra.mxu0 0.0
      %463 = vmatprep.mubr.f32.mxu0 0.0
      %464 = vmatmul.mubr.f32.gmra.mxu0 %v376
      %v465 = vpop.f32.mrf.mxu0
      %v466 = vadd.f32 %v372, %v465
      %v467 = vpop.f32.mrf.mxu0
      %468 = vmatprep.mubr.f32.mxu0 0.0
      %469 = vmatmul.mubr.f32.gmra.mxu0 %v379
      %v470 = vpop.f32.mrf.mxu0
      %v471 = vadd.f32 %v372, %v470
      %v472 = vpop.f32.mrf.mxu0
      %473 = vmatprep.mubr.f32.mxu0 0.0
      %474 = vmatmul.mubr.f32.gmra.mxu0 %v382
      %v475 = vpop.f32.mrf.mxu0
      %v476 = vadd.f32 %v372, %v475
      %v477 = vpop.f32.mrf.mxu0
      %478 = vmatprep.mubr.f32.mxu0 0.0
      %479 = vmatmul.mubr.f32.gmra.mxu0 %v385
      %v480 = vpop.f32.mrf.mxu0
      %v481 = vadd.f32 %v372, %v480
      %v482 = vpop.f32.mrf.mxu0
      %483 = vmatprep.mubr.f32.mxu0 0.0
      %484 = vmatmul.mubr.f32.gmra.mxu0 %v388
      %v485 = vpop.f32.mrf.mxu0
      %v486 = vadd.f32 %v372, %v485
      %v487 = vpop.f32.mrf.mxu0
      %488 = vmatprep.mubr.f32.mxu0 0.0
      %489 = vmatmul.mubr.f32.gmra.mxu0 %v391
      %v490 = vpop.f32.mrf.mxu0
      %v491 = vadd.f32 %v372, %v490
      %v492 = vpop.f32.mrf.mxu0
      %493 = vmatprep.mubr.f32.mxu0 0.0
      %494 = vmatmul.mubr.f32.gmra.mxu0 %v394
      %v495 = vpop.f32.mrf.mxu0
      %v496 = vadd.f32 %v372, %v495
      %v497 = vpop.f32.mrf.mxu0
      %498 = vmatprep.mubr.f32.mxu0 0.0
      %499 = vmatmul.mubr.f32.gmra.mxu0 %v397
      %v500 = vpop.f32.mrf.mxu0
      %v501 = vadd.f32 %v372, %v500
      %v502 = vpop.f32.mrf.mxu0
      %503 = vdwg.mxu0
      %v504 = vmax.f32 %v466, 0.0
      %v505 = vmax.f32 %v471, 0.0
      %v506 = vmax.f32 %v476, 0.0
      %v507 = vmax.f32 %v481, 0.0
      %v508 = vmax.f32 %v486, 0.0
      %v509 = vmax.f32 %v491, 0.0
      %v510 = vmax.f32 %v496, 0.0
      %v511 = vmax.f32 %v501, 0.0
      %v512 = vld [vmem:[%s341] sm:$0xff]
      %v513 = vld [vmem:[%s341 + $0x8] sm:$0xff]
      %v514 = vld [vmem:[%s341 + $0x10] sm:$0xff]
      %v515 = vld [vmem:[%s341 + $0x18] sm:$0xff]
      %v516 = vld [vmem:[%s344] sm:$0x1]
      %v518 = vlaneseq
      %v519 = vshrl.u32 %v518, 7
      %v520 = vsub.s32 0, %v519
      %v521 = vrot.slane %v516, %v520
      %vm523 = vcmask 261120
      %v525 = vsel %vm523, %v504, 0
      %v528 = vsel %vm523, %v505, 0
      %v531 = vsel %vm523, %v506, 0
      %v534 = vsel %vm523, %v507, 0
      %v537 = vsel %vm523, %v508, 0
      %v540 = vsel %vm523, %v509, 0
      %v543 = vsel %vm523, %v510, 0
      %v546 = vsel %vm523, %v511, 0
      %548 = vmatprep.subr.mxu0 0.0
      %549 = vmatpush1.msra.mxu0 0.0
      %550 = vmatprep.subr.mxu0 0.0
      %551 = vmatpush1.msra.mxu0 0.0
      %552 = vmatprep.subr.mxu0 0.0
      %553 = vmatpush1.msra.mxu0 0.0
      %554 = vmatprep.subr.mxu0 0.0
      %555 = vmatpush1.msra.mxu0 0.0
      %556 = vmatprep.subr.mxu0 0.0
      %557 = vmatpush1.msra.mxu0 0.0
      %558 = vmatprep.subr.mxu0 0.0
      %559 = vmatpush1.msra.mxu0 0.0
      %560 = vmatprep.subr.mxu0 0.0
      %561 = vmatpush1.msra.mxu0 0.0
      %562 = vmatprep.subr.mxu0 0.0
      %563 = vmatpush1.msra.mxu0 0.0
      %564 = vmatprep.subr.mxu0 0.0
      %565 = vmatpush1.msra.mxu0 0.0
      %566 = vmatprep.subr.mxu0 0.0
      %567 = vmatpush1.msra.mxu0 0.0
      %568 = vmatprep.subr.mxu0 0.0
      %569 = vmatpush1.msra.mxu0 0.0
      %570 = vmatprep.subr.mxu0 0.0
      %571 = vmatpush1.msra.mxu0 0.0
      %572 = vmatprep.subr.mxu0 0.0
      %573 = vmatpush1.msra.mxu0 %v515
      %574 = vmatprep.subr.mxu0 0.0
      %575 = vmatpush1.msra.mxu0 %v514
      %576 = vmatprep.subr.mxu0 0.0
      %577 = vmatpush1.msra.mxu0 %v513
      %578 = vmatprep.subr.mxu0 0.0
      %579 = vmatpush1.msra.mxu0 %v512
      %580 = vmatprep.subr.mxu0 0.0
      %581 = vmatpush2.msra.mxu0 0.0
      %582 = vmatprep.subr.mxu0 0.0
      %583 = vmatpush2.msra.mxu0 0.0
      %584 = vmatprep.subr.mxu0 0.0
      %585 = vmatpush2.msra.mxu0 0.0
      %586 = vmatprep.subr.mxu0 0.0
      %587 = vmatpush2.msra.mxu0 0.0
      %588 = vmatprep.subr.mxu0 0.0
      %589 = vmatpush2.msra.mxu0 0.0
      %590 = vmatprep.subr.mxu0 0.0
      %591 = vmatpush2.msra.mxu0 0.0
      %592 = vmatprep.subr.mxu0 0.0
      %593 = vmatpush2.msra.mxu0 0.0
      %594 = vmatprep.subr.mxu0 0.0
      %595 = vmatpush2.msra.mxu0 0.0
      %596 = vmatprep.subr.mxu0 0.0
      %597 = vmatpush2.msra.mxu0 0.0
      %598 = vmatprep.subr.mxu0 0.0
      %599 = vmatpush2.msra.mxu0 0.0
      %600 = vmatprep.subr.mxu0 0.0
      %601 = vmatpush2.msra.mxu0 0.0
      %602 = vmatprep.subr.mxu0 0.0
      %603 = vmatpush2.msra.mxu0 0.0
      %604 = vmatprep.subr.mxu0 0.0
      %605 = vmatpush2.msra.mxu0 0.0
      %606 = vmatprep.subr.mxu0 0.0
      %607 = vmatpush2.msra.mxu0 0.0
      %608 = vmatprep.subr.mxu0 0.0
      %609 = vmatpush2.msra.mxu0 0.0
      %610 = vmatprep.subr.mxu0 0.0
      %611 = vmatpush2.msra.mxu0 0.0
      %612 = vmatprep.mubr.f32.mxu0 0.0
      %613 = vmatmul.mubr.f32.gmra.mxu0 %v525
      %v614 = vpop.f32.mrf.mxu0
      %v615 = vadd.f32 %v521, %v614
      %v616 = vpop.f32.mrf.mxu0
      %617 = vmatprep.mubr.f32.mxu0 0.0
      %618 = vmatmul.mubr.f32.gmra.mxu0 %v528
      %v619 = vpop.f32.mrf.mxu0
      %v620 = vadd.f32 %v521, %v619
      %v621 = vpop.f32.mrf.mxu0
      %622 = vmatprep.mubr.f32.mxu0 0.0
      %623 = vmatmul.mubr.f32.gmra.mxu0 %v531
      %v624 = vpop.f32.mrf.mxu0
      %v625 = vadd.f32 %v521, %v624
      %v626 = vpop.f32.mrf.mxu0
      %627 = vmatprep.mubr.f32.mxu0 0.0
      %628 = vmatmul.mubr.f32.gmra.mxu0 %v534
      %v629 = vpop.f32.mrf.mxu0
      %v630 = vadd.f32 %v521, %v629
      %v631 = vpop.f32.mrf.mxu0
      %632 = vmatprep.mubr.f32.mxu0 0.0
      %633 = vmatmul.mubr.f32.gmra.mxu0 %v537
      %v634 = vpop.f32.mrf.mxu0
      %v635 = vadd.f32 %v521, %v634
      %v636 = vpop.f32.mrf.mxu0
      %637 = vmatprep.mubr.f32.mxu0 0.0
      %638 = vmatmul.mubr.f32.gmra.mxu0 %v540
      %v639 = vpop.f32.mrf.mxu0
      %v640 = vadd.f32 %v521, %v639
      %v641 = vpop.f32.mrf.mxu0
      %642 = vmatprep.mubr.f32.mxu0 0.0
      %643 = vmatmul.mubr.f32.gmra.mxu0 %v543
      %v644 = vpop.f32.mrf.mxu0
      %v645 = vadd.f32 %v521, %v644
      %v646 = vpop.f32.mrf.mxu0
      %647 = vmatprep.mubr.f32.mxu0 0.0
      %648 = vmatmul.mubr.f32.gmra.mxu0 %v546
      %v649 = vpop.f32.mrf.mxu0
      %v650 = vadd.f32 %v521, %v649
      %v651 = vpop.f32.mrf.mxu0
      %652 = vdwg.mxu0
      %v653 = vmax.f32 %v615, 0.0
      %v654 = vmax.f32 %v620, 0.0
      %v655 = vmax.f32 %v625, 0.0
      %v656 = vmax.f32 %v630, 0.0
      %v657 = vmax.f32 %v635, 0.0
      %v658 = vmax.f32 %v640, 0.0
      %v659 = vmax.f32 %v645, 0.0
      %v660 = vmax.f32 %v650, 0.0
      %v661 = vld [vmem:[%s349] sm:$0xff]
      %v662 = vld [vmem:[%s349 + $0x8] sm:$0xff]
      %v663 = vld [vmem:[%s349 + $0x10] sm:$0xff]
      %v664 = vld [vmem:[%s349 + $0x18] sm:$0xff]
      %v665 = vld [vmem:[%s352] sm:$0x1]
      %v667 = vlaneseq
      %v668 = vshrl.u32 %v667, 7
      %v669 = vsub.s32 0, %v668
      %v670 = vrot.slane %v665, %v669
      %v673 = vsel %vm523, %v653, 0
      %v676 = vsel %vm523, %v654, 0
      %v679 = vsel %vm523, %v655, 0
      %v682 = vsel %vm523, %v656, 0
      %v685 = vsel %vm523, %v657, 0
      %v688 = vsel %vm523, %v658, 0
      %v691 = vsel %vm523, %v659, 0
      %v694 = vsel %vm523, %v660, 0
      %696 = vmatprep.subr.mxu0 0.0
      %697 = vmatpush1.msra.mxu0 0.0
      %698 = vmatprep.subr.mxu0 0.0
      %699 = vmatpush1.msra.mxu0 0.0
      %700 = vmatprep.subr.mxu0 0.0
      %701 = vmatpush1.msra.mxu0 0.0
      %702 = vmatprep.subr.mxu0 0.0
      %703 = vmatpush1.msra.mxu0 0.0
      %704 = vmatprep.subr.mxu0 0.0
      %705 = vmatpush1.msra.mxu0 0.0
      %706 = vmatprep.subr.mxu0 0.0
      %707 = vmatpush1.msra.mxu0 0.0
      %708 = vmatprep.subr.mxu0 0.0
      %709 = vmatpush1.msra.mxu0 0.0
      %710 = vmatprep.subr.mxu0 0.0
      %711 = vmatpush1.msra.mxu0 0.0
      %712 = vmatprep.subr.mxu0 0.0
      %713 = vmatpush1.msra.mxu0 0.0
      %714 = vmatprep.subr.mxu0 0.0
      %715 = vmatpush1.msra.mxu0 0.0
      %716 = vmatprep.subr.mxu0 0.0
      %717 = vmatpush1.msra.mxu0 0.0
      %718 = vmatprep.subr.mxu0 0.0
      %719 = vmatpush1.msra.mxu0 0.0
      %720 = vmatprep.subr.mxu0 0.0
      %721 = vmatpush1.msra.mxu0 %v664
      %722 = vmatprep.subr.mxu0 0.0
      %723 = vmatpush1.msra.mxu0 %v663
      %724 = vmatprep.subr.mxu0 0.0
      %725 = vmatpush1.msra.mxu0 %v662
      %726 = vmatprep.subr.mxu0 0.0
      %727 = vmatpush1.msra.mxu0 %v661
      %728 = vmatprep.subr.mxu0 0.0
      %729 = vmatpush2.msra.mxu0 0.0
      %730 = vmatprep.subr.mxu0 0.0
      %731 = vmatpush2.msra.mxu0 0.0
      %732 = vmatprep.subr.mxu0 0.0
      %733 = vmatpush2.msra.mxu0 0.0
      %734 = vmatprep.subr.mxu0 0.0
      %735 = vmatpush2.msra.mxu0 0.0
      %736 = vmatprep.subr.mxu0 0.0
      %737 = vmatpush2.msra.mxu0 0.0
      %738 = vmatprep.subr.mxu0 0.0
      %739 = vmatpush2.msra.mxu0 0.0
      %740 = vmatprep.subr.mxu0 0.0
      %741 = vmatpush2.msra.mxu0 0.0
      %742 = vmatprep.subr.mxu0 0.0
      %743 = vmatpush2.msra.mxu0 0.0
      %744 = vmatprep.subr.mxu0 0.0
      %745 = vmatpush2.msra.mxu0 0.0
      %746 = vmatprep.subr.mxu0 0.0
      %747 = vmatpush2.msra.mxu0 0.0
      %748 = vmatprep.subr.mxu0 0.0
      %749 = vmatpush2.msra.mxu0 0.0
      %750 = vmatprep.subr.mxu0 0.0
      %751 = vmatpush2.msra.mxu0 0.0
      %752 = vmatprep.subr.mxu0 0.0
      %753 = vmatpush2.msra.mxu0 0.0
      %754 = vmatprep.subr.mxu0 0.0
      %755 = vmatpush2.msra.mxu0 0.0
      %756 = vmatprep.subr.mxu0 0.0
      %757 = vmatpush2.msra.mxu0 0.0
      %758 = vmatprep.subr.mxu0 0.0
      %759 = vmatpush2.msra.mxu0 0.0
      %760 = vmatprep.mubr.f32.mxu0 0.0
      %761 = vmatmul.mubr.f32.gmra.mxu0 %v673
      %v762 = vpop.f32.mrf.mxu0
      %v763 = vadd.f32 %v670, %v762
      %v764 = vpop.f32.mrf.mxu0
      %765 = vmatprep.mubr.f32.mxu0 0.0
      %766 = vmatmul.mubr.f32.gmra.mxu0 %v676
      %v767 = vpop.f32.mrf.mxu0
      %v768 = vadd.f32 %v670, %v767
      %v769 = vpop.f32.mrf.mxu0
      %770 = vmatprep.mubr.f32.mxu0 0.0
      %771 = vmatmul.mubr.f32.gmra.mxu0 %v679
      %v772 = vpop.f32.mrf.mxu0
      %v773 = vadd.f32 %v670, %v772
      %v774 = vpop.f32.mrf.mxu0
      %775 = vmatprep.mubr.f32.mxu0 0.0
      %776 = vmatmul.mubr.f32.gmra.mxu0 %v682
      %v777 = vpop.f32.mrf.mxu0
      %v778 = vadd.f32 %v670, %v777
      %v779 = vpop.f32.mrf.mxu0
      %780 = vmatprep.mubr.f32.mxu0 0.0
      %781 = vmatmul.mubr.f32.gmra.mxu0 %v685
      %v782 = vpop.f32.mrf.mxu0
      %v783 = vadd.f32 %v670, %v782
      %v784 = vpop.f32.mrf.mxu0
      %785 = vmatprep.mubr.f32.mxu0 0.0
      %786 = vmatmul.mubr.f32.gmra.mxu0 %v688
      %v787 = vpop.f32.mrf.mxu0
      %v788 = vadd.f32 %v670, %v787
      %v789 = vpop.f32.mrf.mxu0
      %790 = vmatprep.mubr.f32.mxu0 0.0
      %791 = vmatmul.mubr.f32.gmra.mxu0 %v691
      %v792 = vpop.f32.mrf.mxu0
      %v793 = vadd.f32 %v670, %v792
      %v794 = vpop.f32.mrf.mxu0
      %795 = vmatprep.mubr.f32.mxu0 0.0
      %796 = vmatmul.mubr.f32.gmra.mxu0 %v694
      %v797 = vpop.f32.mrf.mxu0
      %v798 = vadd.f32 %v670, %v797
      %v799 = vpop.f32.mrf.mxu0
      %800 = vdwg.mxu0
      %801 = vst.msk [vmem:[%s357] sm:$0xff] %vm374, %v763
      %802 = vst.msk [vmem:[%s357 + $0x8] sm:$0xff] %vm374, %v768
      %803 = vst.msk [vmem:[%s357 + $0x10] sm:$0xff] %vm374, %v773
      %804 = vst.msk [vmem:[%s357 + $0x18] sm:$0xff] %vm374, %v778
      %805 = vst.msk [vmem:[%s357 + $0x20] sm:$0xff] %vm374, %v783
      %806 = vst.msk [vmem:[%s357 + $0x28] sm:$0xff] %vm374, %v788
      %807 = vst.msk [vmem:[%s357 + $0x30] sm:$0xff] %vm374, %v793
      %808 = vst.msk [vmem:[%s357 + $0x38] sm:$0xff] %vm374, %v798
      %p809 = scmp.lt.s32.totalorder %s18, 4
      %s810 = scalar_select %p809, %s18, 4
      %s811 = smul.addr %s810, 8
      %s812 = smul.addr %s811, 8
      %s813 = scalar_lea.vmem %s7, %s812
      // Predicated region
      $region49: #{se3_transformer_forward.5} parent=47 // pred_check
        %p814 = pneg %p213
      $region50: #{se3_transformer_forward.5} parent=47 // pred_check_branch
        %816 = sbr.rel (%p814) target = $region52
      $region51: #{se3_transformer_forward.5} parent=47 // pred_region
        _
      $region52: #{se3_transformer_forward.5} parent=47 // pred_fallthru
        _
    $region48: #{se3_transformer_forward.5} parent=5 // pred_fallthru
      _
    %p817 = scmp.le.s32.totalorder 2, %s13
    // Predicated region
    $region53: #{se3_transformer_forward.5} parent=5 // pred_check
      %p818 = pneg %p817
    $region54: #{se3_transformer_forward.5} parent=5 // pred_check_branch
      %820 = sbr.rel (%p818) target = $region56
    $region55: #{se3_transformer_forward.5} parent=5 // pred_region
      %s821 = ssub.s32 %s13, 2
      // Predicated region
      $region57: #{se3_transformer_forward.5} parent=55 // pred_check
        %p822 = pneg %p219
      $region58: #{se3_transformer_forward.5} parent=55 // pred_check_branch
        %824 = sbr.rel (%p822) target = $region60
      $region59: #{se3_transformer_forward.5} parent=55 // pred_region
        %p825 = scmp.lt.s32.totalorder %s19, 4
        %s826 = scalar_select %p825, %s19, 4
        %s827 = smul.addr %s826, 8
        %s828 = smul.addr %s827, 8
        %s829 = scalar_lea.vmem %s7, %s828
      $region60: #{se3_transformer_forward.5} parent=55 // pred_fallthru
        _
    $region56: #{se3_transformer_forward.5} parent=5 // pred_fallthru
      _
  $region6: #{se3_transformer_forward.5} parent=0 // loop_footer
    %s17 = sadd.s32 1, %s13
  $region7: #{se3_transformer_forward.5} parent=0 // loop_footer_branch
    %12 = sbr.rel target = $region3
  $region8: #{se3_transformer_forward.5} parent=0 // loop_exit
    _

// kernel: se3_transformer_forward.6
$region0: #{se3_transformer_forward.6}
  #allocation0 [shape = 'u32[]', space=smem, size = 0x4, offset = 0x4, fixed_abs, tag = 'smem constant byte address 0x4 - core index']
  #allocation1 [shape = 'u32[144,128]{1,0:T(1,128)}', space=vmem, size = 0x12000, scoped, tag = 'internal scratch']
  %s0 = inlined_call_operand.vmem [shape: f32[64,8,4], index: 0, kind: input, shape index: {}]
  %s1 = inlined_call_operand.vmem [shape: f32[64,2,4], index: 1, kind: input, shape index: {}]
  %s2 = inlined_call_operand.vmem [shape: f32[64,4], index: 2, kind: input, shape index: {}]
  %s3 = inlined_call_operand.vmem [shape: f32[64,16], index: 3, kind: input, shape index: {}]
  %s4 = inlined_call_operand.vmem [shape: f32[8,4], index: 4, kind: input, shape index: {}]
  %s5 = inlined_call_operand.vmem [shape: f32[4,2], index: 5, kind: input, shape index: {}]
  %s6 = inlined_call_operand.vmem [shape: f32[8,32], index: 6, kind: input, shape index: {}]
  %s7 = inlined_call_operand.vmem [shape: f32[16,32], index: 7, kind: input, shape index: {}]
  %s8 = inlined_call_operand.vmem [shape: f32[32,128], index: 8, kind: input, shape index: {}]
  %s9 = inlined_call_operand.vmem [shape: f32[4,128], index: 9, kind: input, shape index: {}]
  %s10 = inlined_call_operand.vmem [shape: f32[128,32], index: 10, kind: input, shape index: {}]
  %s11 = inlined_call_operand.vmem [shape: f32[32,128], index: 11, kind: input, shape index: {}]
  %s12 = inlined_call_operand.vmem [shape: f32[1,32], index: 12, kind: input, shape index: {}]
  %s13 = inlined_call_operand.vmem [shape: f32[1,32], index: 13, kind: input, shape index: {}]
  %s14 = inlined_call_operand.vmem [shape: f32[8,128], index: 14, kind: output, shape index: {}]
  %s15 = sld [smem:[#allocation0]]
  $region66: #{se3_transformer_forward.6} parent=0
    _
  %s17 = ssub.s32 1, %s15
  %s18 = scalar_select 0, %s17, %s15
  // Predicated region
  $region2: #{se3_transformer_forward.6} parent=0 // pred_check
    _
  $region3: #{se3_transformer_forward.6} parent=0 // pred_check_branch
    %20 = sbr.rel (0) target = $region5
  $region4: #{se3_transformer_forward.6} parent=0 // pred_region
    _
  $region5: #{se3_transformer_forward.6} parent=0 // pred_fallthru
    _
  // Predicated region
  $region6: #{se3_transformer_forward.6} parent=0 // pred_check
    _
  $region7: #{se3_transformer_forward.6} parent=0 // pred_check_branch
    %22 = sbr.rel (0) target = $region9
  $region8: #{se3_transformer_forward.6} parent=0 // pred_region
    _
  $region9: #{se3_transformer_forward.6} parent=0 // pred_fallthru
    _
  // Predicated region
  $region10: #{se3_transformer_forward.6} parent=0 // pred_check
    _
  $region11: #{se3_transformer_forward.6} parent=0 // pred_check_branch
    %24 = sbr.rel (0) target = $region13
  $region12: #{se3_transformer_forward.6} parent=0 // pred_region
    _
  $region13: #{se3_transformer_forward.6} parent=0 // pred_fallthru
    _
  // Predicated region
  $region14: #{se3_transformer_forward.6} parent=0 // pred_check
    _
  $region15: #{se3_transformer_forward.6} parent=0 // pred_check_branch
    %26 = sbr.rel (0) target = $region17
  $region16: #{se3_transformer_forward.6} parent=0 // pred_region
    _
  $region17: #{se3_transformer_forward.6} parent=0 // pred_fallthru
    _
  // Predicated region
  $region18: #{se3_transformer_forward.6} parent=0 // pred_check
    _
  $region19: #{se3_transformer_forward.6} parent=0 // pred_check_branch
    %28 = sbr.rel (0) target = $region21
  $region20: #{se3_transformer_forward.6} parent=0 // pred_region
    _
  $region21: #{se3_transformer_forward.6} parent=0 // pred_fallthru
    _
  // Predicated region
  $region22: #{se3_transformer_forward.6} parent=0 // pred_check
    _
  $region23: #{se3_transformer_forward.6} parent=0 // pred_check_branch
    %30 = sbr.rel (0) target = $region25
  $region24: #{se3_transformer_forward.6} parent=0 // pred_region
    _
  $region25: #{se3_transformer_forward.6} parent=0 // pred_fallthru
    _
  // Predicated region
  $region26: #{se3_transformer_forward.6} parent=0 // pred_check
    _
  $region27: #{se3_transformer_forward.6} parent=0 // pred_check_branch
    %32 = sbr.rel (0) target = $region29
  $region28: #{se3_transformer_forward.6} parent=0 // pred_region
    _
  $region29: #{se3_transformer_forward.6} parent=0 // pred_fallthru
    _
  // Predicated region
  $region30: #{se3_transformer_forward.6} parent=0 // pred_check
    _
  $region31: #{se3_transformer_forward.6} parent=0 // pred_check_branch
    %34 = sbr.rel (0) target = $region33
  $region32: #{se3_transformer_forward.6} parent=0 // pred_region
    _
  $region33: #{se3_transformer_forward.6} parent=0 // pred_fallthru
    _
  // Predicated region
  $region34: #{se3_transformer_forward.6} parent=0 // pred_check
    _
  $region35: #{se3_transformer_forward.6} parent=0 // pred_check_branch
    %36 = sbr.rel (0) target = $region37
  $region36: #{se3_transformer_forward.6} parent=0 // pred_region
    _
  $region37: #{se3_transformer_forward.6} parent=0 // pred_fallthru
    _
  // Predicated region
  $region38: #{se3_transformer_forward.6} parent=0 // pred_check
    _
  $region39: #{se3_transformer_forward.6} parent=0 // pred_check_branch
    %38 = sbr.rel (0) target = $region41
  $region40: #{se3_transformer_forward.6} parent=0 // pred_region
    _
  $region41: #{se3_transformer_forward.6} parent=0 // pred_fallthru
    _
  // Predicated region
  $region42: #{se3_transformer_forward.6} parent=0 // pred_check
    _
  $region43: #{se3_transformer_forward.6} parent=0 // pred_check_branch
    %40 = sbr.rel (0) target = $region45
  $region44: #{se3_transformer_forward.6} parent=0 // pred_region
    _
  $region45: #{se3_transformer_forward.6} parent=0 // pred_fallthru
    _
  // Predicated region
  $region46: #{se3_transformer_forward.6} parent=0 // pred_check
    _
  $region47: #{se3_transformer_forward.6} parent=0 // pred_check_branch
    %42 = sbr.rel (0) target = $region49
  $region48: #{se3_transformer_forward.6} parent=0 // pred_region
    _
  $region49: #{se3_transformer_forward.6} parent=0 // pred_fallthru
    _
  // Predicated region
  $region50: #{se3_transformer_forward.6} parent=0 // pred_check
    _
  $region51: #{se3_transformer_forward.6} parent=0 // pred_check_branch
    %44 = sbr.rel (0) target = $region53
  $region52: #{se3_transformer_forward.6} parent=0 // pred_region
    _
  $region53: #{se3_transformer_forward.6} parent=0 // pred_fallthru
    _
  // Predicated region
  $region54: #{se3_transformer_forward.6} parent=0 // pred_check
    _
  $region55: #{se3_transformer_forward.6} parent=0 // pred_check_branch
    %46 = sbr.rel (0) target = $region57
  $region56: #{se3_transformer_forward.6} parent=0 // pred_region
    _
  $region57: #{se3_transformer_forward.6} parent=0 // pred_fallthru
    _
  %v47 = vld [vmem:[%s2] sm:$0xff]
  %v48 = vld [vmem:[%s2 + $0x8] sm:$0xff]
  %v49 = vld [vmem:[%s2 + $0x10] sm:$0xff]
  %v50 = vld [vmem:[%s2 + $0x18] sm:$0xff]
  %v51 = vld [vmem:[%s2 + $0x20] sm:$0xff]
  %v52 = vld [vmem:[%s2 + $0x28] sm:$0xff]
  %v53 = vld [vmem:[%s2 + $0x30] sm:$0xff]
  %v54 = vld [vmem:[%s2 + $0x38] sm:$0xff]
  %v55 = vld [vmem:[%s0] sm:$0xff]
  %v56 = vld [vmem:[%s0 + $0x8] sm:$0xff]
  %v57 = vld [vmem:[%s0 + $0x10] sm:$0xff]
  %v58 = vld [vmem:[%s0 + $0x18] sm:$0xff]
  %v59 = vld [vmem:[%s0 + $0x20] sm:$0xff]
  %v60 = vld [vmem:[%s0 + $0x28] sm:$0xff]
  %v61 = vld [vmem:[%s0 + $0x30] sm:$0xff]
  %v62 = vld [vmem:[%s0 + $0x38] sm:$0xff]
  %v63 = vld [vmem:[%s0 + $0x40] sm:$0xff]
  %v64 = vld [vmem:[%s0 + $0x48] sm:$0xff]
  %v65 = vld [vmem:[%s0 + $0x50] sm:$0xff]
  %v66 = vld [vmem:[%s0 + $0x58] sm:$0xff]
  %v67 = vld [vmem:[%s0 + $0x60] sm:$0xff]
  %v68 = vld [vmem:[%s0 + $0x68] sm:$0xff]
  %v69 = vld [vmem:[%s0 + $0x70] sm:$0xff]
  %v70 = vld [vmem:[%s0 + $0x78] sm:$0xff]
  %v71 = vld [vmem:[%s0 + $0x80] sm:$0xff]
  %v72 = vld [vmem:[%s0 + $0x88] sm:$0xff]
  %v73 = vld [vmem:[%s0 + $0x90] sm:$0xff]
  %v74 = vld [vmem:[%s0 + $0x98] sm:$0xff]
  %v75 = vld [vmem:[%s0 + $0xa0] sm:$0xff]
  %v76 = vld [vmem:[%s0 + $0xa8] sm:$0xff]
  %v77 = vld [vmem:[%s0 + $0xb0] sm:$0xff]
  %v78 = vld [vmem:[%s0 + $0xb8] sm:$0xff]
  %v79 = vld [vmem:[%s0 + $0xc0] sm:$0xff]
  %v80 = vld [vmem:[%s0 + $0xc8] sm:$0xff]
  %v81 = vld [vmem:[%s0 + $0xd0] sm:$0xff]
  %v82 = vld [vmem:[%s0 + $0xd8] sm:$0xff]
  %v83 = vld [vmem:[%s0 + $0xe0] sm:$0xff]
  %v84 = vld [vmem:[%s0 + $0xe8] sm:$0xff]
  %v85 = vld [vmem:[%s0 + $0xf0] sm:$0xff]
  %v86 = vld [vmem:[%s0 + $0xf8] sm:$0xff]
  %v87 = vld [vmem:[%s0 + $0x100] sm:$0xff]
  %v88 = vld [vmem:[%s0 + $0x108] sm:$0xff]
  %v89 = vld [vmem:[%s0 + $0x110] sm:$0xff]
  %v90 = vld [vmem:[%s0 + $0x118] sm:$0xff]
  %v91 = vld [vmem:[%s0 + $0x120] sm:$0xff]
  %v92 = vld [vmem:[%s0 + $0x128] sm:$0xff]
  %v93 = vld [vmem:[%s0 + $0x130] sm:$0xff]
  %v94 = vld [vmem:[%s0 + $0x138] sm:$0xff]
  %v95 = vld [vmem:[%s0 + $0x140] sm:$0xff]
  %v96 = vld [vmem:[%s0 + $0x148] sm:$0xff]
  %v97 = vld [vmem:[%s0 + $0x150] sm:$0xff]
  %v98 = vld [vmem:[%s0 + $0x158] sm:$0xff]
  %v99 = vld [vmem:[%s0 + $0x160] sm:$0xff]
  %v100 = vld [vmem:[%s0 + $0x168] sm:$0xff]
  %v101 = vld [vmem:[%s0 + $0x170] sm:$0xff]
  %v102 = vld [vmem:[%s0 + $0x178] sm:$0xff]
  %v103 = vld [vmem:[%s0 + $0x180] sm:$0xff]
  %v104 = vld [vmem:[%s0 + $0x188] sm:$0xff]
  %v105 = vld [vmem:[%s0 + $0x190] sm:$0xff]
  %v106 = vld [vmem:[%s0 + $0x198] sm:$0xff]
  %v107 = vld [vmem:[%s0 + $0x1a0] sm:$0xff]
  %v108 = vld [vmem:[%s0 + $0x1a8] sm:$0xff]
  %v109 = vld [vmem:[%s0 + $0x1b0] sm:$0xff]
  %v110 = vld [vmem:[%s0 + $0x1b8] sm:$0xff]
  %v111 = vld [vmem:[%s0 + $0x1c0] sm:$0xff]
  %v112 = vld [vmem:[%s0 + $0x1c8] sm:$0xff]
  %v113 = vld [vmem:[%s0 + $0x1d0] sm:$0xff]
  %v114 = vld [vmem:[%s0 + $0x1d8] sm:$0xff]
  %v115 = vld [vmem:[%s0 + $0x1e0] sm:$0xff]
  %v116 = vld [vmem:[%s0 + $0x1e8] sm:$0xff]
  %v117 = vld [vmem:[%s0 + $0x1f0] sm:$0xff]
  %v118 = vld [vmem:[%s0 + $0x1f8] sm:$0xff]
  %v127 = vcombine.high %v47, %v47
  %v129 = vunpack.c.l.s4 1966171168
  %v130 = vunpack.c.0.s8 %v129
  %v131 = vlaneseq
  %v132 = vshrl.u32 %v131, 7
  %v133 = vsub.s32 %v130, %v132
  %v134 = vrot.slane %v47, %v133
  %v136 = vunpack.c.l.s4 1966171168
  %v137 = vunpack.c.0.s8 %v136
  %v138 = vlaneseq
  %v139 = vshrl.u32 %v138, 7
  %v140 = vsub.s32 %v137, %v139
  %v141 = vrot.slane %v127, %v140
  %v142 = vcombine.high %v134, %v134
  %v143 = vcombine.high %v141, %v141
  %v145 = vunpack.c.l.s4 1966171168
  %v146 = vunpack.c.0.s8 %v145
  %v147 = vlaneseq
  %v148 = vshrl.u32 %v147, 7
  %v149 = vsub.s32 %v146, %v148
  %v150 = vrot.slane %v134, %v149
  %v152 = vunpack.c.l.s4 1966171168
  %v153 = vunpack.c.0.s8 %v152
  %v154 = vlaneseq
  %v155 = vshrl.u32 %v154, 7
  %v156 = vsub.s32 %v153, %v155
  %v157 = vrot.slane %v141, %v156
  %v159 = vunpack.c.l.s4 1966171168
  %v160 = vunpack.c.0.s8 %v159
  %v161 = vlaneseq
  %v162 = vshrl.u32 %v161, 7
  %v163 = vsub.s32 %v160, %v162
  %v164 = vrot.slane %v142, %v163
  %v166 = vunpack.c.l.s4 1966171168
  %v167 = vunpack.c.0.s8 %v166
  %v168 = vlaneseq
  %v169 = vshrl.u32 %v168, 7
  %v170 = vsub.s32 %v167, %v169
  %v171 = vrot.slane %v143, %v170
  %v172 = vcombine.high %v150, %v150
  %v173 = vcombine.high %v157, %v157
  %v174 = vcombine.high %v164, %v164
  %v175 = vcombine.high %v171, %v171
  %v176 = vcombine.high %v48, %v48
  %v178 = vunpack.c.l.s4 1966171168
  %v179 = vunpack.c.0.s8 %v178
  %v180 = vlaneseq
  %v181 = vshrl.u32 %v180, 7
  %v182 = vsub.s32 %v179, %v181
  %v183 = vrot.slane %v48, %v182
  %v185 = vunpack.c.l.s4 1966171168
  %v186 = vunpack.c.0.s8 %v185
  %v187 = vlaneseq
  %v188 = vshrl.u32 %v187, 7
  %v189 = vsub.s32 %v186, %v188
  %v190 = vrot.slane %v176, %v189
  %v191 = vcombine.high %v183, %v183
  %v192 = vcombine.high %v190, %v190
  %v194 = vunpack.c.l.s4 1966171168
  %v195 = vunpack.c.0.s8 %v194
  %v196 = vlaneseq
  %v197 = vshrl.u32 %v196, 7
  %v198 = vsub.s32 %v195, %v197
  %v199 = vrot.slane %v183, %v198
  %v201 = vunpack.c.l.s4 1966171168
  %v202 = vunpack.c.0.s8 %v201
  %v203 = vlaneseq
  %v204 = vshrl.u32 %v203, 7
  %v205 = vsub.s32 %v202, %v204
  %v206 = vrot.slane %v190, %v205
  %v208 = vunpack.c.l.s4 1966171168
  %v209 = vunpack.c.0.s8 %v208
  %v210 = vlaneseq
  %v211 = vshrl.u32 %v210, 7
  %v212 = vsub.s32 %v209, %v211
  %v213 = vrot.slane %v191, %v212
  %v215 = vunpack.c.l.s4 1966171168
  %v216 = vunpack.c.0.s8 %v215
  %v217 = vlaneseq
  %v218 = vshrl.u32 %v217, 7
  %v219 = vsub.s32 %v216, %v218
  %v220 = vrot.slane %v192, %v219
  %v221 = vcombine.high %v199, %v199
  %v222 = vcombine.high %v206, %v206
  %v223 = vcombine.high %v213, %v213
  %v224 = vcombine.high %v220, %v220
  %v225 = vcombine.high %v49, %v49
  %v227 = vunpack.c.l.s4 1966171168
  %v228 = vunpack.c.0.s8 %v227
  %v229 = vlaneseq
  %v230 = vshrl.u32 %v229, 7
  %v231 = vsub.s32 %v228, %v230
  %v232 = vrot.slane %v49, %v231
  %v234 = vunpack.c.l.s4 1966171168
  %v235 = vunpack.c.0.s8 %v234
  %v236 = vlaneseq
  %v237 = vshrl.u32 %v236, 7
  %v238 = vsub.s32 %v235, %v237
  %v239 = vrot.slane %v225, %v238
  %v240 = vcombine.high %v232, %v232
  %v241 = vcombine.high %v239, %v239
  %v243 = vunpack.c.l.s4 1966171168
  %v244 = vunpack.c.0.s8 %v243
  %v245 = vlaneseq
  %v246 = vshrl.u32 %v245, 7
  %v247 = vsub.s32 %v244, %v246
  %v248 = vrot.slane %v232, %v247
  %v250 = vunpack.c.l.s4 1966171168
  %v251 = vunpack.c.0.s8 %v250
  %v252 = vlaneseq
  %v253 = vshrl.u32 %v252, 7
  %v254 = vsub.s32 %v251, %v253
  %v255 = vrot.slane %v239, %v254
  %v257 = vunpack.c.l.s4 1966171168
  %v258 = vunpack.c.0.s8 %v257
  %v259 = vlaneseq
  %v260 = vshrl.u32 %v259, 7
  %v261 = vsub.s32 %v258, %v260
  %v262 = vrot.slane %v240, %v261
  %v264 = vunpack.c.l.s4 1966171168
  %v265 = vunpack.c.0.s8 %v264
  %v266 = vlaneseq
  %v267 = vshrl.u32 %v266, 7
  %v268 = vsub.s32 %v265, %v267
  %v269 = vrot.slane %v241, %v268
  %v270 = vcombine.high %v248, %v248
  %v271 = vcombine.high %v255, %v255
  %v272 = vcombine.high %v262, %v262
  %v273 = vcombine.high %v269, %v269
  %v274 = vcombine.high %v50, %v50
  %v276 = vunpack.c.l.s4 1966171168
  %v277 = vunpack.c.0.s8 %v276
  %v278 = vlaneseq
  %v279 = vshrl.u32 %v278, 7
  %v280 = vsub.s32 %v277, %v279
  %v281 = vrot.slane %v50, %v280
  %v283 = vunpack.c.l.s4 1966171168
  %v284 = vunpack.c.0.s8 %v283
  %v285 = vlaneseq
  %v286 = vshrl.u32 %v285, 7
  %v287 = vsub.s32 %v284, %v286
  %v288 = vrot.slane %v274, %v287
  %v289 = vcombine.high %v281, %v281
  %v290 = vcombine.high %v288, %v288
  %v292 = vunpack.c.l.s4 1966171168
  %v293 = vunpack.c.0.s8 %v292
  %v294 = vlaneseq
  %v295 = vshrl.u32 %v294, 7
  %v296 = vsub.s32 %v293, %v295
  %v297 = vrot.slane %v281, %v296
  %v299 = vunpack.c.l.s4 1966171168
  %v300 = vunpack.c.0.s8 %v299
  %v301 = vlaneseq
  %v302 = vshrl.u32 %v301, 7
  %v303 = vsub.s32 %v300, %v302
  %v304 = vrot.slane %v288, %v303
  %v306 = vunpack.c.l.s4 1966171168
  %v307 = vunpack.c.0.s8 %v306
  %v308 = vlaneseq
  %v309 = vshrl.u32 %v308, 7
  %v310 = vsub.s32 %v307, %v309
  %v311 = vrot.slane %v289, %v310
  %v313 = vunpack.c.l.s4 1966171168
  %v314 = vunpack.c.0.s8 %v313
  %v315 = vlaneseq
  %v316 = vshrl.u32 %v315, 7
  %v317 = vsub.s32 %v314, %v316
  %v318 = vrot.slane %v290, %v317
  %v319 = vcombine.high %v297, %v297
  %v320 = vcombine.high %v304, %v304
  %v321 = vcombine.high %v311, %v311
  %v322 = vcombine.high %v318, %v318
  %v323 = vcombine.high %v51, %v51
  %v325 = vunpack.c.l.s4 1966171168
  %v326 = vunpack.c.0.s8 %v325
  %v327 = vlaneseq
  %v328 = vshrl.u32 %v327, 7
  %v329 = vsub.s32 %v326, %v328
  %v330 = vrot.slane %v51, %v329
  %v332 = vunpack.c.l.s4 1966171168
  %v333 = vunpack.c.0.s8 %v332
  %v334 = vlaneseq
  %v335 = vshrl.u32 %v334, 7
  %v336 = vsub.s32 %v333, %v335
  %v337 = vrot.slane %v323, %v336
  %v338 = vcombine.high %v330, %v330
  %v339 = vcombine.high %v337, %v337
  %v341 = vunpack.c.l.s4 1966171168
  %v342 = vunpack.c.0.s8 %v341
  %v343 = vlaneseq
  %v344 = vshrl.u32 %v343, 7
  %v345 = vsub.s32 %v342, %v344
  %v346 = vrot.slane %v330, %v345
  %v348 = vunpack.c.l.s4 1966171168
  %v349 = vunpack.c.0.s8 %v348
  %v350 = vlaneseq
  %v351 = vshrl.u32 %v350, 7
  %v352 = vsub.s32 %v349, %v351
  %v353 = vrot.slane %v337, %v352
  %v355 = vunpack.c.l.s4 1966171168
  %v356 = vunpack.c.0.s8 %v355
  %v357 = vlaneseq
  %v358 = vshrl.u32 %v357, 7
  %v359 = vsub.s32 %v356, %v358
  %v360 = vrot.slane %v338, %v359
  %v362 = vunpack.c.l.s4 1966171168
  %v363 = vunpack.c.0.s8 %v362
  %v364 = vlaneseq
  %v365 = vshrl.u32 %v364, 7
  %v366 = vsub.s32 %v363, %v365
  %v367 = vrot.slane %v339, %v366
  %v368 = vcombine.high %v346, %v346
  %v369 = vcombine.high %v353, %v353
  %v370 = vcombine.high %v360, %v360
  %v371 = vcombine.high %v367, %v367
  %v372 = vcombine.high %v52, %v52
  %v374 = vunpack.c.l.s4 1966171168
  %v375 = vunpack.c.0.s8 %v374
  %v376 = vlaneseq
  %v377 = vshrl.u32 %v376, 7
  %v378 = vsub.s32 %v375, %v377
  %v379 = vrot.slane %v52, %v378
  %v381 = vunpack.c.l.s4 1966171168
  %v382 = vunpack.c.0.s8 %v381
  %v383 = vlaneseq
  %v384 = vshrl.u32 %v383, 7
  %v385 = vsub.s32 %v382, %v384
  %v386 = vrot.slane %v372, %v385
  %v387 = vcombine.high %v379, %v379
  %v388 = vcombine.high %v386, %v386
  %v390 = vunpack.c.l.s4 1966171168
  %v391 = vunpack.c.0.s8 %v390
  %v392 = vlaneseq
  %v393 = vshrl.u32 %v392, 7
  %v394 = vsub.s32 %v391, %v393
  %v395 = vrot.slane %v379, %v394
  %v397 = vunpack.c.l.s4 1966171168
  %v398 = vunpack.c.0.s8 %v397
  %v399 = vlaneseq
  %v400 = vshrl.u32 %v399, 7
  %v401 = vsub.s32 %v398, %v400
  %v402 = vrot.slane %v386, %v401
  %v404 = vunpack.c.l.s4 1966171168
  %v405 = vunpack.c.0.s8 %v404
  %v406 = vlaneseq
  %v407 = vshrl.u32 %v406, 7
  %v408 = vsub.s32 %v405, %v407
  %v409 = vrot.slane %v387, %v408
  %v411 = vunpack.c.l.s4 1966171168
  %v412 = vunpack.c.0.s8 %v411
  %v413 = vlaneseq
  %v414 = vshrl.u32 %v413, 7
  %v415 = vsub.s32 %v412, %v414
  %v416 = vrot.slane %v388, %v415
  %v417 = vcombine.high %v395, %v395
  %v418 = vcombine.high %v402, %v402
  %v419 = vcombine.high %v409, %v409
  %v420 = vcombine.high %v416, %v416
  %v421 = vcombine.high %v53, %v53
  %v423 = vunpack.c.l.s4 1966171168
  %v424 = vunpack.c.0.s8 %v423
  %v425 = vlaneseq
  %v426 = vshrl.u32 %v425, 7
  %v427 = vsub.s32 %v424, %v426
  %v428 = vrot.slane %v53, %v427
  %v430 = vunpack.c.l.s4 1966171168
  %v431 = vunpack.c.0.s8 %v430
  %v432 = vlaneseq
  %v433 = vshrl.u32 %v432, 7
  %v434 = vsub.s32 %v431, %v433
  %v435 = vrot.slane %v421, %v434
  %v436 = vcombine.high %v428, %v428
  %v437 = vcombine.high %v435, %v435
  %v439 = vunpack.c.l.s4 1966171168
  %v440 = vunpack.c.0.s8 %v439
  %v441 = vlaneseq
  %v442 = vshrl.u32 %v441, 7
  %v443 = vsub.s32 %v440, %v442
  %v444 = vrot.slane %v428, %v443
  %v446 = vunpack.c.l.s4 1966171168
  %v447 = vunpack.c.0.s8 %v446
  %v448 = vlaneseq
  %v449 = vshrl.u32 %v448, 7
  %v450 = vsub.s32 %v447, %v449
  %v451 = vrot.slane %v435, %v450
  %v453 = vunpack.c.l.s4 1966171168
  %v454 = vunpack.c.0.s8 %v453
  %v455 = vlaneseq
  %v456 = vshrl.u32 %v455, 7
  %v457 = vsub.s32 %v454, %v456
  %v458 = vrot.slane %v436, %v457
  %v460 = vunpack.c.l.s4 1966171168
  %v461 = vunpack.c.0.s8 %v460
  %v462 = vlaneseq
  %v463 = vshrl.u32 %v462, 7
  %v464 = vsub.s32 %v461, %v463
  %v465 = vrot.slane %v437, %v464
  %v466 = vcombine.high %v444, %v444
  %v467 = vcombine.high %v451, %v451
  %v468 = vcombine.high %v458, %v458
  %v469 = vcombine.high %v465, %v465
  %v470 = vcombine.high %v54, %v54
  %v472 = vunpack.c.l.s4 1966171168
  %v473 = vunpack.c.0.s8 %v472
  %v474 = vlaneseq
  %v475 = vshrl.u32 %v474, 7
  %v476 = vsub.s32 %v473, %v475
  %v477 = vrot.slane %v54, %v476
  %v479 = vunpack.c.l.s4 1966171168
  %v480 = vunpack.c.0.s8 %v479
  %v481 = vlaneseq
  %v482 = vshrl.u32 %v481, 7
  %v483 = vsub.s32 %v480, %v482
  %v484 = vrot.slane %v470, %v483
  %v485 = vcombine.high %v477, %v477
  %v486 = vcombine.high %v484, %v484
  %v488 = vunpack.c.l.s4 1966171168
  %v489 = vunpack.c.0.s8 %v488
  %v490 = vlaneseq
  %v491 = vshrl.u32 %v490, 7
  %v492 = vsub.s32 %v489, %v491
  %v493 = vrot.slane %v477, %v492
  %v495 = vunpack.c.l.s4 1966171168
  %v496 = vunpack.c.0.s8 %v495
  %v497 = vlaneseq
  %v498 = vshrl.u32 %v497, 7
  %v499 = vsub.s32 %v496, %v498
  %v500 = vrot.slane %v484, %v499
  %v502 = vunpack.c.l.s4 1966171168
  %v503 = vunpack.c.0.s8 %v502
  %v504 = vlaneseq
  %v505 = vshrl.u32 %v504, 7
  %v506 = vsub.s32 %v503, %v505
  %v507 = vrot.slane %v485, %v506
  %v509 = vunpack.c.l.s4 1966171168
  %v510 = vunpack.c.0.s8 %v509
  %v511 = vlaneseq
  %v512 = vshrl.u32 %v511, 7
  %v513 = vsub.s32 %v510, %v512
  %v514 = vrot.slane %v486, %v513
  %v515 = vcombine.high %v493, %v493
  %v516 = vcombine.high %v500, %v500
  %v517 = vcombine.high %v507, %v507
  %v518 = vcombine.high %v514, %v514
  %v519 = vlaneseq
  %v520 = vshrl.u32 %v519, 7
  %v521 = vsub.s32 0, %v520
  %v522 = vrot.slane %v150, %v521
  %v523 = vlaneseq
  %v524 = vshrl.u32 %v523, 7
  %v525 = vsub.s32 0, %v524
  %v526 = vrot.slane %v164, %v525
  %v527 = vlaneseq
  %v528 = vshrl.u32 %v527, 7
  %v529 = vsub.s32 0, %v528
  %v530 = vrot.slane %v172, %v529
  %v531 = vlaneseq
  %v532 = vshrl.u32 %v531, 7
  %v533 = vsub.s32 0, %v532
  %v534 = vrot.slane %v174, %v533
  %v535 = vlaneseq
  %v536 = vshrl.u32 %v535, 7
  %v537 = vsub.s32 0, %v536
  %v538 = vrot.slane %v157, %v537
  %v539 = vlaneseq
  %v540 = vshrl.u32 %v539, 7
  %v541 = vsub.s32 0, %v540
  %v542 = vrot.slane %v171, %v541
  %v543 = vlaneseq
  %v544 = vshrl.u32 %v543, 7
  %v545 = vsub.s32 0, %v544
  %v546 = vrot.slane %v173, %v545
  %v547 = vlaneseq
  %v548 = vshrl.u32 %v547, 7
  %v549 = vsub.s32 0, %v548
  %v550 = vrot.slane %v175, %v549
  %v551 = vlaneseq
  %v552 = vshrl.u32 %v551, 7
  %v553 = vsub.s32 0, %v552
  %v554 = vrot.slane %v199, %v553
  %v555 = vlaneseq
  %v556 = vshrl.u32 %v555, 7
  %v557 = vsub.s32 0, %v556
  %v558 = vrot.slane %v213, %v557
  %v559 = vlaneseq
  %v560 = vshrl.u32 %v559, 7
  %v561 = vsub.s32 0, %v560
  %v562 = vrot.slane %v221, %v561
  %v563 = vlaneseq
  %v564 = vshrl.u32 %v563, 7
  %v565 = vsub.s32 0, %v564
  %v566 = vrot.slane %v223, %v565
  %v567 = vlaneseq
  %v568 = vshrl.u32 %v567, 7
  %v569 = vsub.s32 0, %v568
  %v570 = vrot.slane %v206, %v569
  %v571 = vlaneseq
  %v572 = vshrl.u32 %v571, 7
  %v573 = vsub.s32 0, %v572
  %v574 = vrot.slane %v220, %v573
  %v575 = vlaneseq
  %v576 = vshrl.u32 %v575, 7
  %v577 = vsub.s32 0, %v576
  %v578 = vrot.slane %v222, %v577
  %v579 = vlaneseq
  %v580 = vshrl.u32 %v579, 7
  %v581 = vsub.s32 0, %v580
  %v582 = vrot.slane %v224, %v581
  %v583 = vlaneseq
  %v584 = vshrl.u32 %v583, 7
  %v585 = vsub.s32 0, %v584
  %v586 = vrot.slane %v248, %v585
  %v587 = vlaneseq
  %v588 = vshrl.u32 %v587, 7
  %v589 = vsub.s32 0, %v588
  %v590 = vrot.slane %v262, %v589
  %v591 = vlaneseq
  %v592 = vshrl.u32 %v591, 7
  %v593 = vsub.s32 0, %v592
  %v594 = vrot.slane %v270, %v593
  %v595 = vlaneseq
  %v596 = vshrl.u32 %v595, 7
  %v597 = vsub.s32 0, %v596
  %v598 = vrot.slane %v272, %v597
  %v599 = vlaneseq
  %v600 = vshrl.u32 %v599, 7
  %v601 = vsub.s32 0, %v600
  %v602 = vrot.slane %v255, %v601
  %v603 = vlaneseq
  %v604 = vshrl.u32 %v603, 7
  %v605 = vsub.s32 0, %v604
  %v606 = vrot.slane %v269, %v605
  %v607 = vlaneseq
  %v608 = vshrl.u32 %v607, 7
  %v609 = vsub.s32 0, %v608
  %v610 = vrot.slane %v271, %v609
  %v611 = vlaneseq
  %v612 = vshrl.u32 %v611, 7
  %v613 = vsub.s32 0, %v612
  %v614 = vrot.slane %v273, %v613
  %v615 = vlaneseq
  %v616 = vshrl.u32 %v615, 7
  %v617 = vsub.s32 0, %v616
  %v618 = vrot.slane %v297, %v617
  %v619 = vlaneseq
  %v620 = vshrl.u32 %v619, 7
  %v621 = vsub.s32 0, %v620
  %v622 = vrot.slane %v311, %v621
  %v623 = vlaneseq
  %v624 = vshrl.u32 %v623, 7
  %v625 = vsub.s32 0, %v624
  %v626 = vrot.slane %v319, %v625
  %v627 = vlaneseq
  %v628 = vshrl.u32 %v627, 7
  %v629 = vsub.s32 0, %v628
  %v630 = vrot.slane %v321, %v629
  %v631 = vlaneseq
  %v632 = vshrl.u32 %v631, 7
  %v633 = vsub.s32 0, %v632
  %v634 = vrot.slane %v304, %v633
  %v635 = vlaneseq
  %v636 = vshrl.u32 %v635, 7
  %v637 = vsub.s32 0, %v636
  %v638 = vrot.slane %v318, %v637
  %v639 = vlaneseq
  %v640 = vshrl.u32 %v639, 7
  %v641 = vsub.s32 0, %v640
  %v642 = vrot.slane %v320, %v641
  %v643 = vlaneseq
  %v644 = vshrl.u32 %v643, 7
  %v645 = vsub.s32 0, %v644
  %v646 = vrot.slane %v322, %v645
  %v647 = vlaneseq
  %v648 = vshrl.u32 %v647, 7
  %v649 = vsub.s32 0, %v648
  %v650 = vrot.slane %v346, %v649
  %v651 = vlaneseq
  %v652 = vshrl.u32 %v651, 7
  %v653 = vsub.s32 0, %v652
  %v654 = vrot.slane %v360, %v653
  %v655 = vlaneseq
  %v656 = vshrl.u32 %v655, 7
  %v657 = vsub.s32 0, %v656
  %v658 = vrot.slane %v368, %v657
  %v659 = vlaneseq
  %v660 = vshrl.u32 %v659, 7
  %v661 = vsub.s32 0, %v660
  %v662 = vrot.slane %v370, %v661
  %v663 = vlaneseq
  %v664 = vshrl.u32 %v663, 7
  %v665 = vsub.s32 0, %v664
  %v666 = vrot.slane %v353, %v665
  %v667 = vlaneseq
  %v668 = vshrl.u32 %v667, 7
  %v669 = vsub.s32 0, %v668
  %v670 = vrot.slane %v367, %v669
  %v671 = vlaneseq
  %v672 = vshrl.u32 %v671, 7
  %v673 = vsub.s32 0, %v672
  %v674 = vrot.slane %v369, %v673
  %v675 = vlaneseq
  %v676 = vshrl.u32 %v675, 7
  %v677 = vsub.s32 0, %v676
  %v678 = vrot.slane %v371, %v677
  %v679 = vlaneseq
  %v680 = vshrl.u32 %v679, 7
  %v681 = vsub.s32 0, %v680
  %v682 = vrot.slane %v395, %v681
  %v683 = vlaneseq
  %v684 = vshrl.u32 %v683, 7
  %v685 = vsub.s32 0, %v684
  %v686 = vrot.slane %v409, %v685
  %v687 = vlaneseq
  %v688 = vshrl.u32 %v687, 7
  %v689 = vsub.s32 0, %v688
  %v690 = vrot.slane %v417, %v689
  %v691 = vlaneseq
  %v692 = vshrl.u32 %v691, 7
  %v693 = vsub.s32 0, %v692
  %v694 = vrot.slane %v419, %v693
  %v695 = vlaneseq
  %v696 = vshrl.u32 %v695, 7
  %v697 = vsub.s32 0, %v696
  %v698 = vrot.slane %v402, %v697
  %v699 = vlaneseq
  %v700 = vshrl.u32 %v699, 7
  %v701 = vsub.s32 0, %v700
  %v702 = vrot.slane %v416, %v701
  %v703 = vlaneseq
  %v704 = vshrl.u32 %v703, 7
  %v705 = vsub.s32 0, %v704
  %v706 = vrot.slane %v418, %v705
  %v707 = vlaneseq
  %v708 = vshrl.u32 %v707, 7
  %v709 = vsub.s32 0, %v708
  %v710 = vrot.slane %v420, %v709
  %v711 = vlaneseq
  %v712 = vshrl.u32 %v711, 7
  %v713 = vsub.s32 0, %v712
  %v714 = vrot.slane %v444, %v713
  %v715 = vlaneseq
  %v716 = vshrl.u32 %v715, 7
  %v717 = vsub.s32 0, %v716
  %v718 = vrot.slane %v458, %v717
  %v719 = vlaneseq
  %v720 = vshrl.u32 %v719, 7
  %v721 = vsub.s32 0, %v720
  %v722 = vrot.slane %v466, %v721
  %v723 = vlaneseq
  %v724 = vshrl.u32 %v723, 7
  %v725 = vsub.s32 0, %v724
  %v726 = vrot.slane %v468, %v725
  %v727 = vlaneseq
  %v728 = vshrl.u32 %v727, 7
  %v729 = vsub.s32 0, %v728
  %v730 = vrot.slane %v451, %v729
  %v731 = vlaneseq
  %v732 = vshrl.u32 %v731, 7
  %v733 = vsub.s32 0, %v732
  %v734 = vrot.slane %v465, %v733
  %v735 = vlaneseq
  %v736 = vshrl.u32 %v735, 7
  %v737 = vsub.s32 0, %v736
  %v738 = vrot.slane %v467, %v737
  %v739 = vlaneseq
  %v740 = vshrl.u32 %v739, 7
  %v741 = vsub.s32 0, %v740
  %v742 = vrot.slane %v469, %v741
  %v743 = vlaneseq
  %v744 = vshrl.u32 %v743, 7
  %v745 = vsub.s32 0, %v744
  %v746 = vrot.slane %v493, %v745
  %v747 = vlaneseq
  %v748 = vshrl.u32 %v747, 7
  %v749 = vsub.s32 0, %v748
  %v750 = vrot.slane %v507, %v749
  %v751 = vlaneseq
  %v752 = vshrl.u32 %v751, 7
  %v753 = vsub.s32 0, %v752
  %v754 = vrot.slane %v515, %v753
  %v755 = vlaneseq
  %v756 = vshrl.u32 %v755, 7
  %v757 = vsub.s32 0, %v756
  %v758 = vrot.slane %v517, %v757
  %v759 = vlaneseq
  %v760 = vshrl.u32 %v759, 7
  %v761 = vsub.s32 0, %v760
  %v762 = vrot.slane %v500, %v761
  %v763 = vlaneseq
  %v764 = vshrl.u32 %v763, 7
  %v765 = vsub.s32 0, %v764
  %v766 = vrot.slane %v514, %v765
  %v767 = vlaneseq
  %v768 = vshrl.u32 %v767, 7
  %v769 = vsub.s32 0, %v768
  %v770 = vrot.slane %v516, %v769
  %v771 = vlaneseq
  %v772 = vshrl.u32 %v771, 7
  %v773 = vsub.s32 0, %v772
  %v774 = vrot.slane %v518, %v773
  %v839 = vmul.f32 %v55, %v522
  %v840 = vmul.f32 %v56, %v526
  %v841 = vmul.f32 %v57, %v530
  %v842 = vmul.f32 %v58, %v534
  %v843 = vmul.f32 %v59, %v538
  %v844 = vmul.f32 %v60, %v542
  %v845 = vmul.f32 %v61, %v546
  %v846 = vmul.f32 %v62, %v550
  %v847 = vmul.f32 %v63, %v554
  %v848 = vmul.f32 %v64, %v558
  %v849 = vmul.f32 %v65, %v562
  %v850 = vmul.f32 %v66, %v566
  %v851 = vmul.f32 %v67, %v570
  %v852 = vmul.f32 %v68, %v574
  %v853 = vmul.f32 %v69, %v578
  %v854 = vmul.f32 %v70, %v582
  %v855 = vmul.f32 %v71, %v586
  %v856 = vmul.f32 %v72, %v590
  %v857 = vmul.f32 %v73, %v594
  %v858 = vmul.f32 %v74, %v598
  %v859 = vmul.f32 %v75, %v602
  %v860 = vmul.f32 %v76, %v606
  %v861 = vmul.f32 %v77, %v610
  %v862 = vmul.f32 %v78, %v614
  %v863 = vmul.f32 %v79, %v618
  %v864 = vmul.f32 %v80, %v622
  %v865 = vmul.f32 %v81, %v626
  %v866 = vmul.f32 %v82, %v630
  %v867 = vmul.f32 %v83, %v634
  %v868 = vmul.f32 %v84, %v638
  %v869 = vmul.f32 %v85, %v642
  %v870 = vmul.f32 %v86, %v646
  %v871 = vmul.f32 %v87, %v650
  %v872 = vmul.f32 %v88, %v654
  %v873 = vmul.f32 %v89, %v658
  %v874 = vmul.f32 %v90, %v662
  %v875 = vmul.f32 %v91, %v666
  %v876 = vmul.f32 %v92, %v670
  %v877 = vmul.f32 %v93, %v674
  %v878 = vmul.f32 %v94, %v678
  %v879 = vmul.f32 %v95, %v682
  %v880 = vmul.f32 %v96, %v686
  %v881 = vmul.f32 %v97, %v690
  %v882 = vmul.f32 %v98, %v694
  %v883 = vmul.f32 %v99, %v698
  %v884 = vmul.f32 %v100, %v702
  %v885 = vmul.f32 %v101, %v706
  %v886 = vmul.f32 %v102, %v710
  %v887 = vmul.f32 %v103, %v714
  %v888 = vmul.f32 %v104, %v718
  %v889 = vmul.f32 %v105, %v722
  %v890 = vmul.f32 %v106, %v726
  %v891 = vmul.f32 %v107, %v730
  %v892 = vmul.f32 %v108, %v734
  %v893 = vmul.f32 %v109, %v738
  %v894 = vmul.f32 %v110, %v742
  %v895 = vmul.f32 %v111, %v746
  %v896 = vmul.f32 %v112, %v750
  %v897 = vmul.f32 %v113, %v754
  %v898 = vmul.f32 %v114, %v758
  %v899 = vmul.f32 %v115, %v762
  %v900 = vmul.f32 %v116, %v766
  %v901 = vmul.f32 %v117, %v770
  %v902 = vmul.f32 %v118, %v774
  %vm903 = vcmask 31744
  %v904 = vsel %vm903, %v839, 0.0
  %905 = vadd.xlane.f32.xlu0 %v904
  %v906 = vpop.xlane.xlu0 %905
  %v907 = vsel %vm903, %v840, 0.0
  %908 = vadd.xlane.f32.xlu0 %v907
  %v909 = vpop.xlane.xlu0 %908
  %v910 = vsel %vm903, %v841, 0.0
  %911 = vadd.xlane.f32.xlu0 %v910
  %v912 = vpop.xlane.xlu0 %911
  %v913 = vsel %vm903, %v842, 0.0
  %914 = vadd.xlane.f32.xlu0 %v913
  %v915 = vpop.xlane.xlu0 %914
  %v916 = vsel %vm903, %v843, 0.0
  %917 = vadd.xlane.f32.xlu0 %v916
  %v918 = vpop.xlane.xlu0 %917
  %v919 = vsel %vm903, %v844, 0.0
  %920 = vadd.xlane.f32.xlu0 %v919
  %v921 = vpop.xlane.xlu0 %920
  %v922 = vsel %vm903, %v845, 0.0
  %923 = vadd.xlane.f32.xlu0 %v922
  %v924 = vpop.xlane.xlu0 %923
  %v925 = vsel %vm903, %v846, 0.0
  %926 = vadd.xlane.f32.xlu0 %v925
  %v927 = vpop.xlane.xlu0 %926
  %v928 = vsel %vm903, %v847, 0.0
  %929 = vadd.xlane.f32.xlu0 %v928
  %v930 = vpop.xlane.xlu0 %929
  %v931 = vsel %vm903, %v848, 0.0
  %932 = vadd.xlane.f32.xlu0 %v931
  %v933 = vpop.xlane.xlu0 %932
  %v934 = vsel %vm903, %v849, 0.0
  %935 = vadd.xlane.f32.xlu0 %v934
  %v936 = vpop.xlane.xlu0 %935
  %v937 = vsel %vm903, %v850, 0.0
  %938 = vadd.xlane.f32.xlu0 %v937
  %v939 = vpop.xlane.xlu0 %938
  %v940 = vsel %vm903, %v851, 0.0
  %941 = vadd.xlane.f32.xlu0 %v940
  %v942 = vpop.xlane.xlu0 %941
  %v943 = vsel %vm903, %v852, 0.0
  %944 = vadd.xlane.f32.xlu0 %v943
  %v945 = vpop.xlane.xlu0 %944
  %v946 = vsel %vm903, %v853, 0.0
  %947 = vadd.xlane.f32.xlu0 %v946
  %v948 = vpop.xlane.xlu0 %947
  %v949 = vsel %vm903, %v854, 0.0
  %950 = vadd.xlane.f32.xlu0 %v949
  %v951 = vpop.xlane.xlu0 %950
  %v952 = vsel %vm903, %v855, 0.0
  %953 = vadd.xlane.f32.xlu0 %v952
  %v954 = vpop.xlane.xlu0 %953
  %v955 = vsel %vm903, %v856, 0.0
  %956 = vadd.xlane.f32.xlu0 %v955
  %v957 = vpop.xlane.xlu0 %956
  %v958 = vsel %vm903, %v857, 0.0
  %959 = vadd.xlane.f32.xlu0 %v958
  %v960 = vpop.xlane.xlu0 %959
  %v961 = vsel %vm903, %v858, 0.0
  %962 = vadd.xlane.f32.xlu0 %v961
  %v963 = vpop.xlane.xlu0 %962
  %v964 = vsel %vm903, %v859, 0.0
  %965 = vadd.xlane.f32.xlu0 %v964
  %v966 = vpop.xlane.xlu0 %965
  %v967 = vsel %vm903, %v860, 0.0
  %968 = vadd.xlane.f32.xlu0 %v967
  %v969 = vpop.xlane.xlu0 %968
  %v970 = vsel %vm903, %v861, 0.0
  %971 = vadd.xlane.f32.xlu0 %v970
  %v972 = vpop.xlane.xlu0 %971
  %v973 = vsel %vm903, %v862, 0.0
  %974 = vadd.xlane.f32.xlu0 %v973
  %v975 = vpop.xlane.xlu0 %974
  %v976 = vsel %vm903, %v863, 0.0
  %977 = vadd.xlane.f32.xlu0 %v976
  %v978 = vpop.xlane.xlu0 %977
  %v979 = vsel %vm903, %v864, 0.0
  %980 = vadd.xlane.f32.xlu0 %v979
  %v981 = vpop.xlane.xlu0 %980
  %v982 = vsel %vm903, %v865, 0.0
  %983 = vadd.xlane.f32.xlu0 %v982
  %v984 = vpop.xlane.xlu0 %983
  %v985 = vsel %vm903, %v866, 0.0
  %986 = vadd.xlane.f32.xlu0 %v985
  %v987 = vpop.xlane.xlu0 %986
  %v988 = vsel %vm903, %v867, 0.0
  %989 = vadd.xlane.f32.xlu0 %v988
  %v990 = vpop.xlane.xlu0 %989
  %v991 = vsel %vm903, %v868, 0.0
  %992 = vadd.xlane.f32.xlu0 %v991
  %v993 = vpop.xlane.xlu0 %992
  %v994 = vsel %vm903, %v869, 0.0
  %995 = vadd.xlane.f32.xlu0 %v994
  %v996 = vpop.xlane.xlu0 %995
  %v997 = vsel %vm903, %v870, 0.0
  %998 = vadd.xlane.f32.xlu0 %v997
  %v999 = vpop.xlane.xlu0 %998
  %v1000 = vsel %vm903, %v871, 0.0
  %1001 = vadd.xlane.f32.xlu0 %v1000
  %v1002 = vpop.xlane.xlu0 %1001
  %v1003 = vsel %vm903, %v872, 0.0
  %1004 = vadd.xlane.f32.xlu0 %v1003
  %v1005 = vpop.xlane.xlu0 %1004
  %v1006 = vsel %vm903, %v873, 0.0
  %1007 = vadd.xlane.f32.xlu0 %v1006
  %v1008 = vpop.xlane.xlu0 %1007
  %v1009 = vsel %vm903, %v874, 0.0
  %1010 = vadd.xlane.f32.xlu0 %v1009
  %v1011 = vpop.xlane.xlu0 %1010
  %v1012 = vsel %vm903, %v875, 0.0
  %1013 = vadd.xlane.f32.xlu0 %v1012
  %v1014 = vpop.xlane.xlu0 %1013
  %v1015 = vsel %vm903, %v876, 0.0
  %1016 = vadd.xlane.f32.xlu0 %v1015
  %v1017 = vpop.xlane.xlu0 %1016
  %v1018 = vsel %vm903, %v877, 0.0
  %1019 = vadd.xlane.f32.xlu0 %v1018
  %v1020 = vpop.xlane.xlu0 %1019
  %v1021 = vsel %vm903, %v878, 0.0
  %1022 = vadd.xlane.f32.xlu0 %v1021
  %v1023 = vpop.xlane.xlu0 %1022
  %v1024 = vsel %vm903, %v879, 0.0
  %1025 = vadd.xlane.f32.xlu0 %v1024
  %v1026 = vpop.xlane.xlu0 %1025
  %v1027 = vsel %vm903, %v880, 0.0
  %1028 = vadd.xlane.f32.xlu0 %v1027
  %v1029 = vpop.xlane.xlu0 %1028
  %v1030 = vsel %vm903, %v881, 0.0
  %1031 = vadd.xlane.f32.xlu0 %v1030
  %v1032 = vpop.xlane.xlu0 %1031
  %v1033 = vsel %vm903, %v882, 0.0
  %1034 = vadd.xlane.f32.xlu0 %v1033
  %v1035 = vpop.xlane.xlu0 %1034
  %v1036 = vsel %vm903, %v883, 0.0
  %1037 = vadd.xlane.f32.xlu0 %v1036
  %v1038 = vpop.xlane.xlu0 %1037
  %v1039 = vsel %vm903, %v884, 0.0
  %1040 = vadd.xlane.f32.xlu0 %v1039
  %v1041 = vpop.xlane.xlu0 %1040
  %v1042 = vsel %vm903, %v885, 0.0
  %1043 = vadd.xlane.f32.xlu0 %v1042
  %v1044 = vpop.xlane.xlu0 %1043
  %v1045 = vsel %vm903, %v886, 0.0
  %1046 = vadd.xlane.f32.xlu0 %v1045
  %v1047 = vpop.xlane.xlu0 %1046
  %v1048 = vsel %vm903, %v887, 0.0
  %1049 = vadd.xlane.f32.xlu0 %v1048
  %v1050 = vpop.xlane.xlu0 %1049
  %v1051 = vsel %vm903, %v888, 0.0
  %1052 = vadd.xlane.f32.xlu0 %v1051
  %v1053 = vpop.xlane.xlu0 %1052
  %v1054 = vsel %vm903, %v889, 0.0
  %1055 = vadd.xlane.f32.xlu0 %v1054
  %v1056 = vpop.xlane.xlu0 %1055
  %v1057 = vsel %vm903, %v890, 0.0
  %1058 = vadd.xlane.f32.xlu0 %v1057
  %v1059 = vpop.xlane.xlu0 %1058
  %v1060 = vsel %vm903, %v891, 0.0
  %1061 = vadd.xlane.f32.xlu0 %v1060
  %v1062 = vpop.xlane.xlu0 %1061
  %v1063 = vsel %vm903, %v892, 0.0
  %1064 = vadd.xlane.f32.xlu0 %v1063
  %v1065 = vpop.xlane.xlu0 %1064
  %v1066 = vsel %vm903, %v893, 0.0
  %1067 = vadd.xlane.f32.xlu0 %v1066
  %v1068 = vpop.xlane.xlu0 %1067
  %v1069 = vsel %vm903, %v894, 0.0
  %1070 = vadd.xlane.f32.xlu0 %v1069
  %v1071 = vpop.xlane.xlu0 %1070
  %v1072 = vsel %vm903, %v895, 0.0
  %1073 = vadd.xlane.f32.xlu0 %v1072
  %v1074 = vpop.xlane.xlu0 %1073
  %v1075 = vsel %vm903, %v896, 0.0
  %1076 = vadd.xlane.f32.xlu0 %v1075
  %v1077 = vpop.xlane.xlu0 %1076
  %v1078 = vsel %vm903, %v897, 0.0
  %1079 = vadd.xlane.f32.xlu0 %v1078
  %v1080 = vpop.xlane.xlu0 %1079
  %v1081 = vsel %vm903, %v898, 0.0
  %1082 = vadd.xlane.f32.xlu0 %v1081
  %v1083 = vpop.xlane.xlu0 %1082
  %v1084 = vsel %vm903, %v899, 0.0
  %1085 = vadd.xlane.f32.xlu0 %v1084
  %v1086 = vpop.xlane.xlu0 %1085
  %v1087 = vsel %vm903, %v900, 0.0
  %1088 = vadd.xlane.f32.xlu0 %v1087
  %v1089 = vpop.xlane.xlu0 %1088
  %v1090 = vsel %vm903, %v901, 0.0
  %1091 = vadd.xlane.f32.xlu0 %v1090
  %v1092 = vpop.xlane.xlu0 %1091
  %v1093 = vsel %vm903, %v902, 0.0
  %1094 = vadd.xlane.f32.xlu0 %v1093
  %v1095 = vpop.xlane.xlu0 %1094
  %v1096 = vld [vmem:[%s1] sm:$0x3]
  %v1097 = vld [vmem:[%s1 + $0x2] sm:$0x3]
  %v1098 = vld [vmem:[%s1 + $0x4] sm:$0x3]
  %v1099 = vld [vmem:[%s1 + $0x6] sm:$0x3]
  %v1100 = vld [vmem:[%s1 + $0x8] sm:$0x3]
  %v1101 = vld [vmem:[%s1 + $0xa] sm:$0x3]
  %v1102 = vld [vmem:[%s1 + $0xc] sm:$0x3]
  %v1103 = vld [vmem:[%s1 + $0xe] sm:$0x3]
  %v1104 = vld [vmem:[%s1 + $0x10] sm:$0x3]
  %v1105 = vld [vmem:[%s1 + $0x12] sm:$0x3]
  %v1106 = vld [vmem:[%s1 + $0x14] sm:$0x3]
  %v1107 = vld [vmem:[%s1 + $0x16] sm:$0x3]
  %v1108 = vld [vmem:[%s1 + $0x18] sm:$0x3]
  %v1109 = vld [vmem:[%s1 + $0x1a] sm:$0x3]
  %v1110 = vld [vmem:[%s1 + $0x1c] sm:$0x3]
  %v1111 = vld [vmem:[%s1 + $0x1e] sm:$0x3]
  %v1112 = vld [vmem:[%s1 + $0x20] sm:$0x3]
  %v1113 = vld [vmem:[%s1 + $0x22] sm:$0x3]
  %v1114 = vld [vmem:[%s1 + $0x24] sm:$0x3]
  %v1115 = vld [vmem:[%s1 + $0x26] sm:$0x3]
  %v1116 = vld [vmem:[%s1 + $0x28] sm:$0x3]
  %v1117 = vld [vmem:[%s1 + $0x2a] sm:$0x3]
  %v1118 = vld [vmem:[%s1 + $0x2c] sm:$0x3]
  %v1119 = vld [vmem:[%s1 + $0x2e] sm:$0x3]
  %v1120 = vld [vmem:[%s1 + $0x30] sm:$0x3]
  %v1121 = vld [vmem:[%s1 + $0x32] sm:$0x3]
  %v1122 = vld [vmem:[%s1 + $0x34] sm:$0x3]
  %v1123 = vld [vmem:[%s1 + $0x36] sm:$0x3]
  %v1124 = vld [vmem:[%s1 + $0x38] sm:$0x3]
  %v1125 = vld [vmem:[%s1 + $0x3a] sm:$0x3]
  %v1126 = vld [vmem:[%s1 + $0x3c] sm:$0x3]
  %v1127 = vld [vmem:[%s1 + $0x3e] sm:$0x3]
  %v1128 = vld [vmem:[%s1 + $0x40] sm:$0x3]
  %v1129 = vld [vmem:[%s1 + $0x42] sm:$0x3]
  %v1130 = vld [vmem:[%s1 + $0x44] sm:$0x3]
  %v1131 = vld [vmem:[%s1 + $0x46] sm:$0x3]
  %v1132 = vld [vmem:[%s1 + $0x48] sm:$0x3]
  %v1133 = vld [vmem:[%s1 + $0x4a] sm:$0x3]
  %v1134 = vld [vmem:[%s1 + $0x4c] sm:$0x3]
  %v1135 = vld [vmem:[%s1 + $0x4e] sm:$0x3]
  %v1136 = vld [vmem:[%s1 + $0x50] sm:$0x3]
  %v1137 = vld [vmem:[%s1 + $0x52] sm:$0x3]
  %v1138 = vld [vmem:[%s1 + $0x54] sm:$0x3]
  %v1139 = vld [vmem:[%s1 + $0x56] sm:$0x3]
  %v1140 = vld [vmem:[%s1 + $0x58] sm:$0x3]
  %v1141 = vld [vmem:[%s1 + $0x5a] sm:$0x3]
  %v1142 = vld [vmem:[%s1 + $0x5c] sm:$0x3]
  %v1143 = vld [vmem:[%s1 + $0x5e] sm:$0x3]
  %v1144 = vld [vmem:[%s1 + $0x60] sm:$0x3]
  %v1145 = vld [vmem:[%s1 + $0x62] sm:$0x3]
  %v1146 = vld [vmem:[%s1 + $0x64] sm:$0x3]
  %v1147 = vld [vmem:[%s1 + $0x66] sm:$0x3]
  %v1148 = vld [vmem:[%s1 + $0x68] sm:$0x3]
  %v1149 = vld [vmem:[%s1 + $0x6a] sm:$0x3]
  %v1150 = vld [vmem:[%s1 + $0x6c] sm:$0x3]
  %v1151 = vld [vmem:[%s1 + $0x6e] sm:$0x3]
  %v1152 = vld [vmem:[%s1 + $0x70] sm:$0x3]
  %v1153 = vld [vmem:[%s1 + $0x72] sm:$0x3]
  %v1154 = vld [vmem:[%s1 + $0x74] sm:$0x3]
  %v1155 = vld [vmem:[%s1 + $0x76] sm:$0x3]
  %v1156 = vld [vmem:[%s1 + $0x78] sm:$0x3]
  %v1157 = vld [vmem:[%s1 + $0x7a] sm:$0x3]
  %v1158 = vld [vmem:[%s1 + $0x7c] sm:$0x3]
  %v1159 = vld [vmem:[%s1 + $0x7e] sm:$0x3]
  %v1160 = vmul.f32 %v1096, %v522
  %v1161 = vmul.f32 %v1097, %v526
  %v1162 = vmul.f32 %v1098, %v530
  %v1163 = vmul.f32 %v1099, %v534
  %v1164 = vmul.f32 %v1100, %v538
  %v1165 = vmul.f32 %v1101, %v542
  %v1166 = vmul.f32 %v1102, %v546
  %v1167 = vmul.f32 %v1103, %v550
  %v1168 = vmul.f32 %v1104, %v554
  %v1169 = vmul.f32 %v1105, %v558
  %v1170 = vmul.f32 %v1106, %v562
  %v1171 = vmul.f32 %v1107, %v566
  %v1172 = vmul.f32 %v1108, %v570
  %v1173 = vmul.f32 %v1109, %v574
  %v1174 = vmul.f32 %v1110, %v578
  %v1175 = vmul.f32 %v1111, %v582
  %v1176 = vmul.f32 %v1112, %v586
  %v1177 = vmul.f32 %v1113, %v590
  %v1178 = vmul.f32 %v1114, %v594
  %v1179 = vmul.f32 %v1115, %v598
  %v1180 = vmul.f32 %v1116, %v602
  %v1181 = vmul.f32 %v1117, %v606
  %v1182 = vmul.f32 %v1118, %v610
  %v1183 = vmul.f32 %v1119, %v614
  %v1184 = vmul.f32 %v1120, %v618
  %v1185 = vmul.f32 %v1121, %v622
  %v1186 = vmul.f32 %v1122, %v626
  %v1187 = vmul.f32 %v1123, %v630
  %v1188 = vmul.f32 %v1124, %v634
  %v1189 = vmul.f32 %v1125, %v638
  %v1190 = vmul.f32 %v1126, %v642
  %v1191 = vmul.f32 %v1127, %v646
  %v1192 = vmul.f32 %v1128, %v650
  %v1193 = vmul.f32 %v1129, %v654
  %v1194 = vmul.f32 %v1130, %v658
  %v1195 = vmul.f32 %v1131, %v662
  %v1196 = vmul.f32 %v1132, %v666
  %v1197 = vmul.f32 %v1133, %v670
  %v1198 = vmul.f32 %v1134, %v674
  %v1199 = vmul.f32 %v1135, %v678
  %v1200 = vmul.f32 %v1136, %v682
  %v1201 = vmul.f32 %v1137, %v686
  %v1202 = vmul.f32 %v1138, %v690
  %v1203 = vmul.f32 %v1139, %v694
  %v1204 = vmul.f32 %v1140, %v698
  %v1205 = vmul.f32 %v1141, %v702
  %v1206 = vmul.f32 %v1142, %v706
  %v1207 = vmul.f32 %v1143, %v710
  %v1208 = vmul.f32 %v1144, %v714
  %v1209 = vmul.f32 %v1145, %v718
  %v1210 = vmul.f32 %v1146, %v722
  %v1211 = vmul.f32 %v1147, %v726
  %v1212 = vmul.f32 %v1148, %v730
  %v1213 = vmul.f32 %v1149, %v734
  %v1214 = vmul.f32 %v1150, %v738
  %v1215 = vmul.f32 %v1151, %v742
  %v1216 = vmul.f32 %v1152, %v746
  %v1217 = vmul.f32 %v1153, %v750
  %v1218 = vmul.f32 %v1154, %v754
  %v1219 = vmul.f32 %v1155, %v758
  %v1220 = vmul.f32 %v1156, %v762
  %v1221 = vmul.f32 %v1157, %v766
  %v1222 = vmul.f32 %v1158, %v770
  %v1223 = vmul.f32 %v1159, %v774
  %vm1224 = vcmask 25600
  %v1225 = vsel %vm1224, %v1160, 0.0
  %1226 = vadd.xlane.f32.xlu0 %v1225
  %v1227 = vpop.xlane.xlu0 %1226
  %v1228 = vsel %vm1224, %v1161, 0.0
  %1229 = vadd.xlane.f32.xlu0 %v1228
  %v1230 = vpop.xlane.xlu0 %1229
  %v1231 = vsel %vm1224, %v1162, 0.0
  %1232 = vadd.xlane.f32.xlu0 %v1231
  %v1233 = vpop.xlane.xlu0 %1232
  %v1234 = vsel %vm1224, %v1163, 0.0
  %1235 = vadd.xlane.f32.xlu0 %v1234
  %v1236 = vpop.xlane.xlu0 %1235
  %v1237 = vsel %vm1224, %v1164, 0.0
  %1238 = vadd.xlane.f32.xlu0 %v1237
  %v1239 = vpop.xlane.xlu0 %1238
  %v1240 = vsel %vm1224, %v1165, 0.0
  %1241 = vadd.xlane.f32.xlu0 %v1240
  %v1242 = vpop.xlane.xlu0 %1241
  %v1243 = vsel %vm1224, %v1166, 0.0
  %1244 = vadd.xlane.f32.xlu0 %v1243
  %v1245 = vpop.xlane.xlu0 %1244
  %v1246 = vsel %vm1224, %v1167, 0.0
  %1247 = vadd.xlane.f32.xlu0 %v1246
  %v1248 = vpop.xlane.xlu0 %1247
  %v1249 = vsel %vm1224, %v1168, 0.0
  %1250 = vadd.xlane.f32.xlu0 %v1249
  %v1251 = vpop.xlane.xlu0 %1250
  %v1252 = vsel %vm1224, %v1169, 0.0
  %1253 = vadd.xlane.f32.xlu0 %v1252
  %v1254 = vpop.xlane.xlu0 %1253
  %v1255 = vsel %vm1224, %v1170, 0.0
  %1256 = vadd.xlane.f32.xlu0 %v1255
  %v1257 = vpop.xlane.xlu0 %1256
  %v1258 = vsel %vm1224, %v1171, 0.0
  %1259 = vadd.xlane.f32.xlu0 %v1258
  %v1260 = vpop.xlane.xlu0 %1259
  %v1261 = vsel %vm1224, %v1172, 0.0
  %1262 = vadd.xlane.f32.xlu0 %v1261
  %v1263 = vpop.xlane.xlu0 %1262
  %v1264 = vsel %vm1224, %v1173, 0.0
  %1265 = vadd.xlane.f32.xlu0 %v1264
  %v1266 = vpop.xlane.xlu0 %1265
  %v1267 = vsel %vm1224, %v1174, 0.0
  %1268 = vadd.xlane.f32.xlu0 %v1267
  %v1269 = vpop.xlane.xlu0 %1268
  %v1270 = vsel %vm1224, %v1175, 0.0
  %1271 = vadd.xlane.f32.xlu0 %v1270
  %v1272 = vpop.xlane.xlu0 %1271
  %v1273 = vsel %vm1224, %v1176, 0.0
  %1274 = vadd.xlane.f32.xlu0 %v1273
  %v1275 = vpop.xlane.xlu0 %1274
  %v1276 = vsel %vm1224, %v1177, 0.0
  %1277 = vadd.xlane.f32.xlu0 %v1276
  %v1278 = vpop.xlane.xlu0 %1277
  %v1279 = vsel %vm1224, %v1178, 0.0
  %1280 = vadd.xlane.f32.xlu0 %v1279
  %v1281 = vpop.xlane.xlu0 %1280
  %v1282 = vsel %vm1224, %v1179, 0.0
  %1283 = vadd.xlane.f32.xlu0 %v1282
  %v1284 = vpop.xlane.xlu0 %1283
  %v1285 = vsel %vm1224, %v1180, 0.0
  %1286 = vadd.xlane.f32.xlu0 %v1285
  %v1287 = vpop.xlane.xlu0 %1286
  %v1288 = vsel %vm1224, %v1181, 0.0
  %1289 = vadd.xlane.f32.xlu0 %v1288
  %v1290 = vpop.xlane.xlu0 %1289
  %v1291 = vsel %vm1224, %v1182, 0.0
  %1292 = vadd.xlane.f32.xlu0 %v1291
  %v1293 = vpop.xlane.xlu0 %1292
  %v1294 = vsel %vm1224, %v1183, 0.0
  %1295 = vadd.xlane.f32.xlu0 %v1294
  %v1296 = vpop.xlane.xlu0 %1295
  %v1297 = vsel %vm1224, %v1184, 0.0
  %1298 = vadd.xlane.f32.xlu0 %v1297
  %v1299 = vpop.xlane.xlu0 %1298
  %v1300 = vsel %vm1224, %v1185, 0.0
  %1301 = vadd.xlane.f32.xlu0 %v1300
  %v1302 = vpop.xlane.xlu0 %1301
  %v1303 = vsel %vm1224, %v1186, 0.0
  %1304 = vadd.xlane.f32.xlu0 %v1303
  %v1305 = vpop.xlane.xlu0 %1304
  %v1306 = vsel %vm1224, %v1187, 0.0
  %1307 = vadd.xlane.f32.xlu0 %v1306
  %v1308 = vpop.xlane.xlu0 %1307
  %v1309 = vsel %vm1224, %v1188, 0.0
  %1310 = vadd.xlane.f32.xlu0 %v1309
  %v1311 = vpop.xlane.xlu0 %1310
  %v1312 = vsel %vm1224, %v1189, 0.0
  %1313 = vadd.xlane.f32.xlu0 %v1312
  %v1314 = vpop.xlane.xlu0 %1313
  %v1315 = vsel %vm1224, %v1190, 0.0
  %1316 = vadd.xlane.f32.xlu0 %v1315
  %v1317 = vpop.xlane.xlu0 %1316
  %v1318 = vsel %vm1224, %v1191, 0.0
  %1319 = vadd.xlane.f32.xlu0 %v1318
  %v1320 = vpop.xlane.xlu0 %1319
  %v1321 = vsel %vm1224, %v1192, 0.0
  %1322 = vadd.xlane.f32.xlu0 %v1321
  %v1323 = vpop.xlane.xlu0 %1322
  %v1324 = vsel %vm1224, %v1193, 0.0
  %1325 = vadd.xlane.f32.xlu0 %v1324
  %v1326 = vpop.xlane.xlu0 %1325
  %v1327 = vsel %vm1224, %v1194, 0.0
  %1328 = vadd.xlane.f32.xlu0 %v1327
  %v1329 = vpop.xlane.xlu0 %1328
  %v1330 = vsel %vm1224, %v1195, 0.0
  %1331 = vadd.xlane.f32.xlu0 %v1330
  %v1332 = vpop.xlane.xlu0 %1331
  %v1333 = vsel %vm1224, %v1196, 0.0
  %1334 = vadd.xlane.f32.xlu0 %v1333
  %v1335 = vpop.xlane.xlu0 %1334
  %v1336 = vsel %vm1224, %v1197, 0.0
  %1337 = vadd.xlane.f32.xlu0 %v1336
  %v1338 = vpop.xlane.xlu0 %1337
  %v1339 = vsel %vm1224, %v1198, 0.0
  %1340 = vadd.xlane.f32.xlu0 %v1339
  %v1341 = vpop.xlane.xlu0 %1340
  %v1342 = vsel %vm1224, %v1199, 0.0
  %1343 = vadd.xlane.f32.xlu0 %v1342
  %v1344 = vpop.xlane.xlu0 %1343
  %v1345 = vsel %vm1224, %v1200, 0.0
  %1346 = vadd.xlane.f32.xlu0 %v1345
  %v1347 = vpop.xlane.xlu0 %1346
  %v1348 = vsel %vm1224, %v1201, 0.0
  %1349 = vadd.xlane.f32.xlu0 %v1348
  %v1350 = vpop.xlane.xlu0 %1349
  %v1351 = vsel %vm1224, %v1202, 0.0
  %1352 = vadd.xlane.f32.xlu0 %v1351
  %v1353 = vpop.xlane.xlu0 %1352
  %v1354 = vsel %vm1224, %v1203, 0.0
  %1355 = vadd.xlane.f32.xlu0 %v1354
  %v1356 = vpop.xlane.xlu0 %1355
  %v1357 = vsel %vm1224, %v1204, 0.0
  %1358 = vadd.xlane.f32.xlu0 %v1357
  %v1359 = vpop.xlane.xlu0 %1358
  %v1360 = vsel %vm1224, %v1205, 0.0
  %1361 = vadd.xlane.f32.xlu0 %v1360
  %v1362 = vpop.xlane.xlu0 %1361
  %v1363 = vsel %vm1224, %v1206, 0.0
  %1364 = vadd.xlane.f32.xlu0 %v1363
  %v1365 = vpop.xlane.xlu0 %1364
  %v1366 = vsel %vm1224, %v1207, 0.0
  %1367 = vadd.xlane.f32.xlu0 %v1366
  %v1368 = vpop.xlane.xlu0 %1367
  %v1369 = vsel %vm1224, %v1208, 0.0
  %1370 = vadd.xlane.f32.xlu0 %v1369
  %v1371 = vpop.xlane.xlu0 %1370
  %v1372 = vsel %vm1224, %v1209, 0.0
  %1373 = vadd.xlane.f32.xlu0 %v1372
  %v1374 = vpop.xlane.xlu0 %1373
  %v1375 = vsel %vm1224, %v1210, 0.0
  %1376 = vadd.xlane.f32.xlu0 %v1375
  %v1377 = vpop.xlane.xlu0 %1376
  %v1378 = vsel %vm1224, %v1211, 0.0
  %1379 = vadd.xlane.f32.xlu0 %v1378
  %v1380 = vpop.xlane.xlu0 %1379
  %v1381 = vsel %vm1224, %v1212, 0.0
  %1382 = vadd.xlane.f32.xlu0 %v1381
  %v1383 = vpop.xlane.xlu0 %1382
  %v1384 = vsel %vm1224, %v1213, 0.0
  %1385 = vadd.xlane.f32.xlu0 %v1384
  %v1386 = vpop.xlane.xlu0 %1385
  %v1387 = vsel %vm1224, %v1214, 0.0
  %1388 = vadd.xlane.f32.xlu0 %v1387
  %v1389 = vpop.xlane.xlu0 %1388
  %v1390 = vsel %vm1224, %v1215, 0.0
  %1391 = vadd.xlane.f32.xlu0 %v1390
  %v1392 = vpop.xlane.xlu0 %1391
  %v1393 = vsel %vm1224, %v1216, 0.0
  %1394 = vadd.xlane.f32.xlu0 %v1393
  %v1395 = vpop.xlane.xlu0 %1394
  %v1396 = vsel %vm1224, %v1217, 0.0
  %1397 = vadd.xlane.f32.xlu0 %v1396
  %v1398 = vpop.xlane.xlu0 %1397
  %v1399 = vsel %vm1224, %v1218, 0.0
  %1400 = vadd.xlane.f32.xlu0 %v1399
  %v1401 = vpop.xlane.xlu0 %1400
  %v1402 = vsel %vm1224, %v1219, 0.0
  %1403 = vadd.xlane.f32.xlu0 %v1402
  %v1404 = vpop.xlane.xlu0 %1403
  %v1405 = vsel %vm1224, %v1220, 0.0
  %1406 = vadd.xlane.f32.xlu0 %v1405
  %v1407 = vpop.xlane.xlu0 %1406
  %v1408 = vsel %vm1224, %v1221, 0.0
  %1409 = vadd.xlane.f32.xlu0 %v1408
  %v1410 = vpop.xlane.xlu0 %1409
  %v1411 = vsel %vm1224, %v1222, 0.0
  %1412 = vadd.xlane.f32.xlu0 %v1411
  %v1413 = vpop.xlane.xlu0 %1412
  %v1414 = vsel %vm1224, %v1223, 0.0
  %1415 = vadd.xlane.f32.xlu0 %v1414
  %v1416 = vpop.xlane.xlu0 %1415
  %v1417 = vld [vmem:[%s4] sm:$0xff]
  %v1418 = vld [vmem:[%s5] sm:$0xf]
  %v1420 = vsel %vm903, %v1417, 0
  %vm1422 = vcmask 1043456
  %v1424 = vsel %vm1422, %v1418, 0
  %1426 = vmatprep.subr.mxu0 0.0
  %1427 = vmatpush1.msra.mxu0 0.0
  %1428 = vmatprep.subr.mxu0 0.0
  %1429 = vmatpush1.msra.mxu0 0.0
  %1430 = vmatprep.subr.mxu0 0.0
  %1431 = vmatpush1.msra.mxu0 0.0
  %1432 = vmatprep.subr.mxu0 0.0
  %1433 = vmatpush1.msra.mxu0 0.0
  %1434 = vmatprep.subr.mxu0 0.0
  %1435 = vmatpush1.msra.mxu0 0.0
  %1436 = vmatprep.subr.mxu0 0.0
  %1437 = vmatpush1.msra.mxu0 0.0
  %1438 = vmatprep.subr.mxu0 0.0
  %1439 = vmatpush1.msra.mxu0 0.0
  %1440 = vmatprep.subr.mxu0 0.0
  %1441 = vmatpush1.msra.mxu0 0.0
  %1442 = vmatprep.subr.mxu0 0.0
  %1443 = vmatpush1.msra.mxu0 0.0
  %1444 = vmatprep.subr.mxu0 0.0
  %1445 = vmatpush1.msra.mxu0 0.0
  %1446 = vmatprep.subr.mxu0 0.0
  %1447 = vmatpush1.msra.mxu0 0.0
  %1448 = vmatprep.subr.mxu0 0.0
  %1449 = vmatpush1.msra.mxu0 0.0
  %1450 = vmatprep.subr.mxu0 0.0
  %1451 = vmatpush1.msra.mxu0 0.0
  %1452 = vmatprep.subr.mxu0 0.0
  %1453 = vmatpush1.msra.mxu0 0.0
  %1454 = vmatprep.subr.mxu0 0.0
  %1455 = vmatpush1.msra.mxu0 0.0
  %1456 = vmatprep.subr.mxu0 0.0
  %1457 = vmatpush1.msra.mxu0 %v1424
  %1458 = vmatprep.subr.mxu0 0.0
  %1459 = vmatpush2.msra.mxu0 0.0
  %1460 = vmatprep.subr.mxu0 0.0
  %1461 = vmatpush2.msra.mxu0 0.0
  %1462 = vmatprep.subr.mxu0 0.0
  %1463 = vmatpush2.msra.mxu0 0.0
  %1464 = vmatprep.subr.mxu0 0.0
  %1465 = vmatpush2.msra.mxu0 0.0
  %1466 = vmatprep.subr.mxu0 0.0
  %1467 = vmatpush2.msra.mxu0 0.0
  %1468 = vmatprep.subr.mxu0 0.0
  %1469 = vmatpush2.msra.mxu0 0.0
  %1470 = vmatprep.subr.mxu0 0.0
  %1471 = vmatpush2.msra.mxu0 0.0
  %1472 = vmatprep.subr.mxu0 0.0
  %1473 = vmatpush2.msra.mxu0 0.0
  %1474 = vmatprep.subr.mxu0 0.0
  %1475 = vmatpush2.msra.mxu0 0.0
  %1476 = vmatprep.subr.mxu0 0.0
  %1477 = vmatpush2.msra.mxu0 0.0
  %1478 = vmatprep.subr.mxu0 0.0
  %1479 = vmatpush2.msra.mxu0 0.0
  %1480 = vmatprep.subr.mxu0 0.0
  %1481 = vmatpush2.msra.mxu0 0.0
  %1482 = vmatprep.subr.mxu0 0.0
  %1483 = vmatpush2.msra.mxu0 0.0
  %1484 = vmatprep.subr.mxu0 0.0
  %1485 = vmatpush2.msra.mxu0 0.0
  %1486 = vmatprep.subr.mxu0 0.0
  %1487 = vmatpush2.msra.mxu0 0.0
  %1488 = vmatprep.subr.mxu0 0.0
  %1489 = vmatpush2.msra.mxu0 0.0
  %1490 = vmatprep.mubr.f32.mxu0 0.0
  %1491 = vmatmul.mubr.f32.gmra.mxu0 %v1420
  %v1492 = vpop.f32.mrf.mxu0
  %v1493 = vadd.f32 0.0, %v1492
  %v1494 = vpop.f32.mrf.mxu0
  %1495 = vdwg.mxu0
  %v1560 = vlaneseq
  %v1561 = vand.u32 %v1560, 127
  %v1562 = vlaneseq
  %v1563 = vshrl.u32 %v1562, 7
  %v1564 = vsub.s32 %v1561, %v1563
  %v1565 = vrot.slane %v1227, %v1564
  %v1566 = vlaneseq
  %v1567 = vshrl.u32 %v1566, 7
  %v1568 = vsub.s32 %v1561, %v1567
  %v1569 = vrot.slane %v1230, %v1568
  %v1570 = vlaneseq
  %v1571 = vshrl.u32 %v1570, 7
  %v1572 = vsub.s32 %v1561, %v1571
  %v1573 = vrot.slane %v1233, %v1572
  %v1574 = vlaneseq
  %v1575 = vshrl.u32 %v1574, 7
  %v1576 = vsub.s32 %v1561, %v1575
  %v1577 = vrot.slane %v1236, %v1576
  %v1578 = vlaneseq
  %v1579 = vshrl.u32 %v1578, 7
  %v1580 = vsub.s32 %v1561, %v1579
  %v1581 = vrot.slane %v1239, %v1580
  %v1582 = vlaneseq
  %v1583 = vshrl.u32 %v1582, 7
  %v1584 = vsub.s32 %v1561, %v1583
  %v1585 = vrot.slane %v1242, %v1584
  %v1586 = vlaneseq
  %v1587 = vshrl.u32 %v1586, 7
  %v1588 = vsub.s32 %v1561, %v1587
  %v1589 = vrot.slane %v1245, %v1588
  %v1590 = vlaneseq
  %v1591 = vshrl.u32 %v1590, 7
  %v1592 = vsub.s32 %v1561, %v1591
  %v1593 = vrot.slane %v1248, %v1592
  %v1594 = vlaneseq
  %v1595 = vshrl.u32 %v1594, 7
  %v1596 = vsub.s32 %v1561, %v1595
  %v1597 = vrot.slane %v1251, %v1596
  %v1598 = vlaneseq
  %v1599 = vshrl.u32 %v1598, 7
  %v1600 = vsub.s32 %v1561, %v1599
  %v1601 = vrot.slane %v1254, %v1600
  %v1602 = vlaneseq
  %v1603 = vshrl.u32 %v1602, 7
  %v1604 = vsub.s32 %v1561, %v1603
  %v1605 = vrot.slane %v1257, %v1604
  %v1606 = vlaneseq
  %v1607 = vshrl.u32 %v1606, 7
  %v1608 = vsub.s32 %v1561, %v1607
  %v1609 = vrot.slane %v1260, %v1608
  %v1610 = vlaneseq
  %v1611 = vshrl.u32 %v1610, 7
  %v1612 = vsub.s32 %v1561, %v1611
  %v1613 = vrot.slane %v1263, %v1612
  %v1614 = vlaneseq
  %v1615 = vshrl.u32 %v1614, 7
  %v1616 = vsub.s32 %v1561, %v1615
  %v1617 = vrot.slane %v1266, %v1616
  %v1618 = vlaneseq
  %v1619 = vshrl.u32 %v1618, 7
  %v1620 = vsub.s32 %v1561, %v1619
  %v1621 = vrot.slane %v1269, %v1620
  %v1622 = vlaneseq
  %v1623 = vshrl.u32 %v1622, 7
  %v1624 = vsub.s32 %v1561, %v1623
  %v1625 = vrot.slane %v1272, %v1624
  %v1626 = vlaneseq
  %v1627 = vshrl.u32 %v1626, 7
  %v1628 = vsub.s32 %v1561, %v1627
  %v1629 = vrot.slane %v1275, %v1628
  %v1630 = vlaneseq
  %v1631 = vshrl.u32 %v1630, 7
  %v1632 = vsub.s32 %v1561, %v1631
  %v1633 = vrot.slane %v1278, %v1632
  %v1634 = vlaneseq
  %v1635 = vshrl.u32 %v1634, 7
  %v1636 = vsub.s32 %v1561, %v1635
  %v1637 = vrot.slane %v1281, %v1636
  %v1638 = vlaneseq
  %v1639 = vshrl.u32 %v1638, 7
  %v1640 = vsub.s32 %v1561, %v1639
  %v1641 = vrot.slane %v1284, %v1640
  %v1642 = vlaneseq
  %v1643 = vshrl.u32 %v1642, 7
  %v1644 = vsub.s32 %v1561, %v1643
  %v1645 = vrot.slane %v1287, %v1644
  %v1646 = vlaneseq
  %v1647 = vshrl.u32 %v1646, 7
  %v1648 = vsub.s32 %v1561, %v1647
  %v1649 = vrot.slane %v1290, %v1648
  %v1650 = vlaneseq
  %v1651 = vshrl.u32 %v1650, 7
  %v1652 = vsub.s32 %v1561, %v1651
  %v1653 = vrot.slane %v1293, %v1652
  %v1654 = vlaneseq
  %v1655 = vshrl.u32 %v1654, 7
  %v1656 = vsub.s32 %v1561, %v1655
  %v1657 = vrot.slane %v1296, %v1656
  %v1658 = vlaneseq
  %v1659 = vshrl.u32 %v1658, 7
  %v1660 = vsub.s32 %v1561, %v1659
  %v1661 = vrot.slane %v1299, %v1660
  %v1662 = vlaneseq
  %v1663 = vshrl.u32 %v1662, 7
  %v1664 = vsub.s32 %v1561, %v1663
  %v1665 = vrot.slane %v1302, %v1664
  %v1666 = vlaneseq
  %v1667 = vshrl.u32 %v1666, 7
  %v1668 = vsub.s32 %v1561, %v1667
  %v1669 = vrot.slane %v1305, %v1668
  %v1670 = vlaneseq
  %v1671 = vshrl.u32 %v1670, 7
  %v1672 = vsub.s32 %v1561, %v1671
  %v1673 = vrot.slane %v1308, %v1672
  %v1674 = vlaneseq
  %v1675 = vshrl.u32 %v1674, 7
  %v1676 = vsub.s32 %v1561, %v1675
  %v1677 = vrot.slane %v1311, %v1676
  %v1678 = vlaneseq
  %v1679 = vshrl.u32 %v1678, 7
  %v1680 = vsub.s32 %v1561, %v1679
  %v1681 = vrot.slane %v1314, %v1680
  %v1682 = vlaneseq
  %v1683 = vshrl.u32 %v1682, 7
  %v1684 = vsub.s32 %v1561, %v1683
  %v1685 = vrot.slane %v1317, %v1684
  %v1686 = vlaneseq
  %v1687 = vshrl.u32 %v1686, 7
  %v1688 = vsub.s32 %v1561, %v1687
  %v1689 = vrot.slane %v1320, %v1688
  %v1690 = vlaneseq
  %v1691 = vshrl.u32 %v1690, 7
  %v1692 = vsub.s32 %v1561, %v1691
  %v1693 = vrot.slane %v1323, %v1692
  %v1694 = vlaneseq
  %v1695 = vshrl.u32 %v1694, 7
  %v1696 = vsub.s32 %v1561, %v1695
  %v1697 = vrot.slane %v1326, %v1696
  %v1698 = vlaneseq
  %v1699 = vshrl.u32 %v1698, 7
  %v1700 = vsub.s32 %v1561, %v1699
  %v1701 = vrot.slane %v1329, %v1700
  %v1702 = vlaneseq
  %v1703 = vshrl.u32 %v1702, 7
  %v1704 = vsub.s32 %v1561, %v1703
  %v1705 = vrot.slane %v1332, %v1704
  %v1706 = vlaneseq
  %v1707 = vshrl.u32 %v1706, 7
  %v1708 = vsub.s32 %v1561, %v1707
  %v1709 = vrot.slane %v1335, %v1708
  %v1710 = vlaneseq
  %v1711 = vshrl.u32 %v1710, 7
  %v1712 = vsub.s32 %v1561, %v1711
  %v1713 = vrot.slane %v1338, %v1712
  %v1714 = vlaneseq
  %v1715 = vshrl.u32 %v1714, 7
  %v1716 = vsub.s32 %v1561, %v1715
  %v1717 = vrot.slane %v1341, %v1716
  %v1718 = vlaneseq
  %v1719 = vshrl.u32 %v1718, 7
  %v1720 = vsub.s32 %v1561, %v1719
  %v1721 = vrot.slane %v1344, %v1720
  %v1722 = vlaneseq
  %v1723 = vshrl.u32 %v1722, 7
  %v1724 = vsub.s32 %v1561, %v1723
  %v1725 = vrot.slane %v1347, %v1724
  %v1726 = vlaneseq
  %v1727 = vshrl.u32 %v1726, 7
  %v1728 = vsub.s32 %v1561, %v1727
  %v1729 = vrot.slane %v1350, %v1728
  %v1730 = vlaneseq
  %v1731 = vshrl.u32 %v1730, 7
  %v1732 = vsub.s32 %v1561, %v1731
  %v1733 = vrot.slane %v1353, %v1732
  %v1734 = vlaneseq
  %v1735 = vshrl.u32 %v1734, 7
  %v1736 = vsub.s32 %v1561, %v1735
  %v1737 = vrot.slane %v1356, %v1736
  %v1738 = vlaneseq
  %v1739 = vshrl.u32 %v1738, 7
  %v1740 = vsub.s32 %v1561, %v1739
  %v1741 = vrot.slane %v1359, %v1740
  %v1742 = vlaneseq
  %v1743 = vshrl.u32 %v1742, 7
  %v1744 = vsub.s32 %v1561, %v1743
  %v1745 = vrot.slane %v1362, %v1744
  %v1746 = vlaneseq
  %v1747 = vshrl.u32 %v1746, 7
  %v1748 = vsub.s32 %v1561, %v1747
  %v1749 = vrot.slane %v1365, %v1748
  %v1750 = vlaneseq
  %v1751 = vshrl.u32 %v1750, 7
  %v1752 = vsub.s32 %v1561, %v1751
  %v1753 = vrot.slane %v1368, %v1752
  %v1754 = vlaneseq
  %v1755 = vshrl.u32 %v1754, 7
  %v1756 = vsub.s32 %v1561, %v1755
  %v1757 = vrot.slane %v1371, %v1756
  %v1758 = vlaneseq
  %v1759 = vshrl.u32 %v1758, 7
  %v1760 = vsub.s32 %v1561, %v1759
  %v1761 = vrot.slane %v1374, %v1760
  %v1762 = vlaneseq
  %v1763 = vshrl.u32 %v1762, 7
  %v1764 = vsub.s32 %v1561, %v1763
  %v1765 = vrot.slane %v1377, %v1764
  %v1766 = vlaneseq
  %v1767 = vshrl.u32 %v1766, 7
  %v1768 = vsub.s32 %v1561, %v1767
  %v1769 = vrot.slane %v1380, %v1768
  %v1770 = vlaneseq
  %v1771 = vshrl.u32 %v1770, 7
  %v1772 = vsub.s32 %v1561, %v1771
  %v1773 = vrot.slane %v1383, %v1772
  %v1774 = vlaneseq
  %v1775 = vshrl.u32 %v1774, 7
  %v1776 = vsub.s32 %v1561, %v1775
  %v1777 = vrot.slane %v1386, %v1776
  %v1778 = vlaneseq
  %v1779 = vshrl.u32 %v1778, 7
  %v1780 = vsub.s32 %v1561, %v1779
  %v1781 = vrot.slane %v1389, %v1780
  %v1782 = vlaneseq
  %v1783 = vshrl.u32 %v1782, 7
  %v1784 = vsub.s32 %v1561, %v1783
  %v1785 = vrot.slane %v1392, %v1784
  %v1786 = vlaneseq
  %v1787 = vshrl.u32 %v1786, 7
  %v1788 = vsub.s32 %v1561, %v1787
  %v1789 = vrot.slane %v1395, %v1788
  %v1790 = vlaneseq
  %v1791 = vshrl.u32 %v1790, 7
  %v1792 = vsub.s32 %v1561, %v1791
  %v1793 = vrot.slane %v1398, %v1792
  %v1794 = vlaneseq
  %v1795 = vshrl.u32 %v1794, 7
  %v1796 = vsub.s32 %v1561, %v1795
  %v1797 = vrot.slane %v1401, %v1796
  %v1798 = vlaneseq
  %v1799 = vshrl.u32 %v1798, 7
  %v1800 = vsub.s32 %v1561, %v1799
  %v1801 = vrot.slane %v1404, %v1800
  %v1802 = vlaneseq
  %v1803 = vshrl.u32 %v1802, 7
  %v1804 = vsub.s32 %v1561, %v1803
  %v1805 = vrot.slane %v1407, %v1804
  %v1806 = vlaneseq
  %v1807 = vshrl.u32 %v1806, 7
  %v1808 = vsub.s32 %v1561, %v1807
  %v1809 = vrot.slane %v1410, %v1808
  %v1810 = vlaneseq
  %v1811 = vshrl.u32 %v1810, 7
  %v1812 = vsub.s32 %v1561, %v1811
  %v1813 = vrot.slane %v1413, %v1812
  %v1814 = vlaneseq
  %v1815 = vshrl.u32 %v1814, 7
  %v1816 = vsub.s32 %v1561, %v1815
  %v1817 = vrot.slane %v1416, %v1816
  %vm1818 = vcmask 1041409
  %v1819 = vsel %vm1818, %v1569, %v1565
  %vm1820 = vcmask 1042434
  %v1821 = vsel %vm1820, %v1573, %v1819
  %vm1822 = vcmask 1043459
  %v1823 = vsel %vm1822, %v1577, %v1821
  %vm1824 = vcmask 1044484
  %v1825 = vsel %vm1824, %v1581, %v1823
  %vm1826 = vcmask 1045509
  %v1827 = vsel %vm1826, %v1585, %v1825
  %vm1828 = vcmask 1046534
  %v1829 = vsel %vm1828, %v1589, %v1827
  %vm1830 = vcmask 1047559
  %v1831 = vsel %vm1830, %v1593, %v1829
  %v1832 = vsel %vm1818, %v1601, %v1597
  %v1833 = vsel %vm1820, %v1605, %v1832
  %v1834 = vsel %vm1822, %v1609, %v1833
  %v1835 = vsel %vm1824, %v1613, %v1834
  %v1836 = vsel %vm1826, %v1617, %v1835
  %v1837 = vsel %vm1828, %v1621, %v1836
  %v1838 = vsel %vm1830, %v1625, %v1837
  %v1839 = vsel %vm1818, %v1633, %v1629
  %v1840 = vsel %vm1820, %v1637, %v1839
  %v1841 = vsel %vm1822, %v1641, %v1840
  %v1842 = vsel %vm1824, %v1645, %v1841
  %v1843 = vsel %vm1826, %v1649, %v1842
  %v1844 = vsel %vm1828, %v1653, %v1843
  %v1845 = vsel %vm1830, %v1657, %v1844
  %v1846 = vsel %vm1818, %v1665, %v1661
  %v1847 = vsel %vm1820, %v1669, %v1846
  %v1848 = vsel %vm1822, %v1673, %v1847
  %v1849 = vsel %vm1824, %v1677, %v1848
  %v1850 = vsel %vm1826, %v1681, %v1849
  %v1851 = vsel %vm1828, %v1685, %v1850
  %v1852 = vsel %vm1830, %v1689, %v1851
  %v1853 = vsel %vm1818, %v1697, %v1693
  %v1854 = vsel %vm1820, %v1701, %v1853
  %v1855 = vsel %vm1822, %v1705, %v1854
  %v1856 = vsel %vm1824, %v1709, %v1855
  %v1857 = vsel %vm1826, %v1713, %v1856
  %v1858 = vsel %vm1828, %v1717, %v1857
  %v1859 = vsel %vm1830, %v1721, %v1858
  %v1860 = vsel %vm1818, %v1729, %v1725
  %v1861 = vsel %vm1820, %v1733, %v1860
  %v1862 = vsel %vm1822, %v1737, %v1861
  %v1863 = vsel %vm1824, %v1741, %v1862
  %v1864 = vsel %vm1826, %v1745, %v1863
  %v1865 = vsel %vm1828, %v1749, %v1864
  %v1866 = vsel %vm1830, %v1753, %v1865
  %v1867 = vsel %vm1818, %v1761, %v1757
  %v1868 = vsel %vm1820, %v1765, %v1867
  %v1869 = vsel %vm1822, %v1769, %v1868
  %v1870 = vsel %vm1824, %v1773, %v1869
  %v1871 = vsel %vm1826, %v1777, %v1870
  %v1872 = vsel %vm1828, %v1781, %v1871
  %v1873 = vsel %vm1830, %v1785, %v1872
  %v1874 = vsel %vm1818, %v1793, %v1789
  %v1875 = vsel %vm1820, %v1797, %v1874
  %v1876 = vsel %vm1822, %v1801, %v1875
  %v1877 = vsel %vm1824, %v1805, %v1876
  %v1878 = vsel %vm1826, %v1809, %v1877
  %v1879 = vsel %vm1828, %v1813, %v1878
  %v1880 = vsel %vm1830, %v1817, %v1879
  %vm1881 = vcmask 15360
  %v1883 = vsel %vm1881, %v1493, 0
  %v1885 = vsel %vm1881, %v1831, 0
  %v1887 = vsel %vm1881, %v1838, 0
  %v1889 = vsel %vm1881, %v1845, 0
  %v1891 = vsel %vm1881, %v1852, 0
  %v1893 = vsel %vm1881, %v1859, 0
  %v1895 = vsel %vm1881, %v1866, 0
  %v1897 = vsel %vm1881, %v1873, 0
  %v1899 = vsel %vm1881, %v1880, 0
  %1901 = vmatprep.subr.mxu0 0.0
  %1902 = vmatpush1.xpose.msra.mxu0 0.0
  %1903 = vmatprep.subr.mxu0 0.0
  %1904 = vmatpush1.xpose.msra.mxu0 0.0
  %1905 = vmatprep.subr.mxu0 0.0
  %1906 = vmatpush1.xpose.msra.mxu0 0.0
  %1907 = vmatprep.subr.mxu0 0.0
  %1908 = vmatpush1.xpose.msra.mxu0 0.0
  %1909 = vmatprep.subr.mxu0 0.0
  %1910 = vmatpush1.xpose.msra.mxu0 0.0
  %1911 = vmatprep.subr.mxu0 0.0
  %1912 = vmatpush1.xpose.msra.mxu0 0.0
  %1913 = vmatprep.subr.mxu0 0.0
  %1914 = vmatpush1.xpose.msra.mxu0 0.0
  %1915 = vmatprep.subr.mxu0 0.0
  %1916 = vmatpush1.xpose.msra.mxu0 0.0
  %1917 = vmatprep.subr.mxu0 0.0
  %1918 = vmatpush1.xpose.msra.mxu0 %v1899
  %1919 = vmatprep.subr.mxu0 0.0
  %1920 = vmatpush1.xpose.msra.mxu0 %v1897
  %1921 = vmatprep.subr.mxu0 0.0
  %1922 = vmatpush1.xpose.msra.mxu0 %v1895
  %1923 = vmatprep.subr.mxu0 0.0
  %1924 = vmatpush1.xpose.msra.mxu0 %v1893
  %1925 = vmatprep.subr.mxu0 0.0
  %1926 = vmatpush1.xpose.msra.mxu0 %v1891
  %1927 = vmatprep.subr.mxu0 0.0
  %1928 = vmatpush1.xpose.msra.mxu0 %v1889
  %1929 = vmatprep.subr.mxu0 0.0
  %1930 = vmatpush1.xpose.msra.mxu0 %v1887
  %1931 = vmatprep.subr.mxu0 0.0
  %1932 = vmatpush1.xpose.msra.mxu0 %v1885
  %1933 = vmatprep.subr.mxu0 0.0
  %1934 = vmatpush2.xpose.msra.mxu0 0.0
  %1935 = vmatprep.subr.mxu0 0.0
  %1936 = vmatpush2.xpose.msra.mxu0 0.0
  %1937 = vmatprep.subr.mxu0 0.0
  %1938 = vmatpush2.xpose.msra.mxu0 0.0
  %1939 = vmatprep.subr.mxu0 0.0
  %1940 = vmatpush2.xpose.msra.mxu0 0.0
  %1941 = vmatprep.subr.mxu0 0.0
  %1942 = vmatpush2.xpose.msra.mxu0 0.0
  %1943 = vmatprep.subr.mxu0 0.0
  %1944 = vmatpush2.xpose.msra.mxu0 0.0
  %1945 = vmatprep.subr.mxu0 0.0
  %1946 = vmatpush2.xpose.msra.mxu0 0.0
  %1947 = vmatprep.subr.mxu0 0.0
  %1948 = vmatpush2.xpose.msra.mxu0 0.0
  %1949 = vmatprep.subr.mxu0 0.0
  %1950 = vmatpush2.xpose.msra.mxu0 0.0
  %1951 = vmatprep.subr.mxu0 0.0
  %1952 = vmatpush2.xpose.msra.mxu0 0.0
  %1953 = vmatprep.subr.mxu0 0.0
  %1954 = vmatpush2.xpose.msra.mxu0 0.0
  %1955 = vmatprep.subr.mxu0 0.0
  %1956 = vmatpush2.xpose.msra.mxu0 0.0
  %1957 = vmatprep.subr.mxu0 0.0
  %1958 = vmatpush2.xpose.msra.mxu0 0.0
  %1959 = vmatprep.subr.mxu0 0.0
  %1960 = vmatpush2.xpose.msra.mxu0 0.0
  %1961 = vmatprep.subr.mxu0 0.0
  %1962 = vmatpush2.xpose.msra.mxu0 0.0
  %1963 = vmatprep.subr.mxu0 0.0
  %1964 = vmatpush2.xpose.msra.mxu0 0.0
  %1965 = vmatprep.mubr.f32.mxu0 0.0
  %1966 = vmatmul.mubr.f32.gmra.mxu0 %v1883
  %v1967 = vpop.f32.mrf.mxu0
  %v1968 = vadd.f32 0.0, %v1967
  %v1969 = vpop.f32.mrf.mxu0
  %1970 = vdwg.mxu0
  %v1971 = vmul.f32 %v1968, 0.70710677
  %v1972 = vlaneseq
  %v1973 = vshrl.u32 %v1972, 7
  %v1974 = vmul.u32 %v1973, 8
  %vm1975 = vcmp.ge.s32.totalorder %v1561, %v1974
  %v1976 = vadd.s32 %v1974, 8
  %vm1977 = vcmp.lt.s32.totalorder %v1561, %v1976
  %vm1978 = vmand %vm1975, %vm1977
  %v1979 = vmul.u32 %v1973, 9
  %vm1980 = vcmp.ne.s32.totalorder %v1561, %v1979
  %vm1981 = vmand %vm1978, %vm1980
  %v1982 = vsel %vm1981, %v1971, -1e+30
  %vm1983 = vcmask 523264
  %v1984 = vsel %vm1983, %v1982, -inf
  %1985 = vmax.xlane.f32.xlu0 %v1984
  %v1986 = vpop.xlane.xlu0 %1985
  %v1987 = vsub.f32 %v1982, %v1986
  %v1988 = vmul.f32 %v1987, 1.442695
  %v1989 = vpow.pop %v1988
  %v1990 = vsel %vm1983, %v1989, 0.0
  %1991 = vadd.xlane.f32.xlu0 %v1990
  %v1992 = vpop.xlane.xlu0 %1991
  %v1993 = vrcp.pop %v1992
  %v1994 = vmul.f32 %v1989, %v1993
  %v1995 = vld [vmem:[%s6] sm:$0xff]
  %v2060 = vlaneseq
  %v2061 = vshrl.u32 %v2060, 7
  %v2062 = vsub.s32 %v1561, %v2061
  %v2063 = vrot.slane %v906, %v2062
  %v2064 = vlaneseq
  %v2065 = vshrl.u32 %v2064, 7
  %v2066 = vsub.s32 %v1561, %v2065
  %v2067 = vrot.slane %v909, %v2066
  %v2068 = vlaneseq
  %v2069 = vshrl.u32 %v2068, 7
  %v2070 = vsub.s32 %v1561, %v2069
  %v2071 = vrot.slane %v912, %v2070
  %v2072 = vlaneseq
  %v2073 = vshrl.u32 %v2072, 7
  %v2074 = vsub.s32 %v1561, %v2073
  %v2075 = vrot.slane %v915, %v2074
  %v2076 = vlaneseq
  %v2077 = vshrl.u32 %v2076, 7
  %v2078 = vsub.s32 %v1561, %v2077
  %v2079 = vrot.slane %v918, %v2078
  %v2080 = vlaneseq
  %v2081 = vshrl.u32 %v2080, 7
  %v2082 = vsub.s32 %v1561, %v2081
  %v2083 = vrot.slane %v921, %v2082
  %v2084 = vlaneseq
  %v2085 = vshrl.u32 %v2084, 7
  %v2086 = vsub.s32 %v1561, %v2085
  %v2087 = vrot.slane %v924, %v2086
  %v2088 = vlaneseq
  %v2089 = vshrl.u32 %v2088, 7
  %v2090 = vsub.s32 %v1561, %v2089
  %v2091 = vrot.slane %v927, %v2090
  %v2092 = vlaneseq
  %v2093 = vshrl.u32 %v2092, 7
  %v2094 = vsub.s32 %v1561, %v2093
  %v2095 = vrot.slane %v930, %v2094
  %v2096 = vlaneseq
  %v2097 = vshrl.u32 %v2096, 7
  %v2098 = vsub.s32 %v1561, %v2097
  %v2099 = vrot.slane %v933, %v2098
  %v2100 = vlaneseq
  %v2101 = vshrl.u32 %v2100, 7
  %v2102 = vsub.s32 %v1561, %v2101
  %v2103 = vrot.slane %v936, %v2102
  %v2104 = vlaneseq
  %v2105 = vshrl.u32 %v2104, 7
  %v2106 = vsub.s32 %v1561, %v2105
  %v2107 = vrot.slane %v939, %v2106
  %v2108 = vlaneseq
  %v2109 = vshrl.u32 %v2108, 7
  %v2110 = vsub.s32 %v1561, %v2109
  %v2111 = vrot.slane %v942, %v2110
  %v2112 = vlaneseq
  %v2113 = vshrl.u32 %v2112, 7
  %v2114 = vsub.s32 %v1561, %v2113
  %v2115 = vrot.slane %v945, %v2114
  %v2116 = vlaneseq
  %v2117 = vshrl.u32 %v2116, 7
  %v2118 = vsub.s32 %v1561, %v2117
  %v2119 = vrot.slane %v948, %v2118
  %v2120 = vlaneseq
  %v2121 = vshrl.u32 %v2120, 7
  %v2122 = vsub.s32 %v1561, %v2121
  %v2123 = vrot.slane %v951, %v2122
  %v2124 = vlaneseq
  %v2125 = vshrl.u32 %v2124, 7
  %v2126 = vsub.s32 %v1561, %v2125
  %v2127 = vrot.slane %v954, %v2126
  %v2128 = vlaneseq
  %v2129 = vshrl.u32 %v2128, 7
  %v2130 = vsub.s32 %v1561, %v2129
  %v2131 = vrot.slane %v957, %v2130
  %v2132 = vlaneseq
  %v2133 = vshrl.u32 %v2132, 7
  %v2134 = vsub.s32 %v1561, %v2133
  %v2135 = vrot.slane %v960, %v2134
  %v2136 = vlaneseq
  %v2137 = vshrl.u32 %v2136, 7
  %v2138 = vsub.s32 %v1561, %v2137
  %v2139 = vrot.slane %v963, %v2138
  %v2140 = vlaneseq
  %v2141 = vshrl.u32 %v2140, 7
  %v2142 = vsub.s32 %v1561, %v2141
  %v2143 = vrot.slane %v966, %v2142
  %v2144 = vlaneseq
  %v2145 = vshrl.u32 %v2144, 7
  %v2146 = vsub.s32 %v1561, %v2145
  %v2147 = vrot.slane %v969, %v2146
  %v2148 = vlaneseq
  %v2149 = vshrl.u32 %v2148, 7
  %v2150 = vsub.s32 %v1561, %v2149
  %v2151 = vrot.slane %v972, %v2150
  %v2152 = vlaneseq
  %v2153 = vshrl.u32 %v2152, 7
  %v2154 = vsub.s32 %v1561, %v2153
  %v2155 = vrot.slane %v975, %v2154
  %v2156 = vlaneseq
  %v2157 = vshrl.u32 %v2156, 7
  %v2158 = vsub.s32 %v1561, %v2157
  %v2159 = vrot.slane %v978, %v2158
  %v2160 = vlaneseq
  %v2161 = vshrl.u32 %v2160, 7
  %v2162 = vsub.s32 %v1561, %v2161
  %v2163 = vrot.slane %v981, %v2162
  %v2164 = vlaneseq
  %v2165 = vshrl.u32 %v2164, 7
  %v2166 = vsub.s32 %v1561, %v2165
  %v2167 = vrot.slane %v984, %v2166
  %v2168 = vlaneseq
  %v2169 = vshrl.u32 %v2168, 7
  %v2170 = vsub.s32 %v1561, %v2169
  %v2171 = vrot.slane %v987, %v2170
  %v2172 = vlaneseq
  %v2173 = vshrl.u32 %v2172, 7
  %v2174 = vsub.s32 %v1561, %v2173
  %v2175 = vrot.slane %v990, %v2174
  %v2176 = vlaneseq
  %v2177 = vshrl.u32 %v2176, 7
  %v2178 = vsub.s32 %v1561, %v2177
  %v2179 = vrot.slane %v993, %v2178
  %v2180 = vlaneseq
  %v2181 = vshrl.u32 %v2180, 7
  %v2182 = vsub.s32 %v1561, %v2181
  %v2183 = vrot.slane %v996, %v2182
  %v2184 = vlaneseq
  %v2185 = vshrl.u32 %v2184, 7
  %v2186 = vsub.s32 %v1561, %v2185
  %v2187 = vrot.slane %v999, %v2186
  %v2188 = vlaneseq
  %v2189 = vshrl.u32 %v2188, 7
  %v2190 = vsub.s32 %v1561, %v2189
  %v2191 = vrot.slane %v1002, %v2190
  %v2192 = vlaneseq
  %v2193 = vshrl.u32 %v2192, 7
  %v2194 = vsub.s32 %v1561, %v2193
  %v2195 = vrot.slane %v1005, %v2194
  %v2196 = vlaneseq
  %v2197 = vshrl.u32 %v2196, 7
  %v2198 = vsub.s32 %v1561, %v2197
  %v2199 = vrot.slane %v1008, %v2198
  %v2200 = vlaneseq
  %v2201 = vshrl.u32 %v2200, 7
  %v2202 = vsub.s32 %v1561, %v2201
  %v2203 = vrot.slane %v1011, %v2202
  %v2204 = vlaneseq
  %v2205 = vshrl.u32 %v2204, 7
  %v2206 = vsub.s32 %v1561, %v2205
  %v2207 = vrot.slane %v1014, %v2206
  %v2208 = vlaneseq
  %v2209 = vshrl.u32 %v2208, 7
  %v2210 = vsub.s32 %v1561, %v2209
  %v2211 = vrot.slane %v1017, %v2210
  %v2212 = vlaneseq
  %v2213 = vshrl.u32 %v2212, 7
  %v2214 = vsub.s32 %v1561, %v2213
  %v2215 = vrot.slane %v1020, %v2214
  %v2216 = vlaneseq
  %v2217 = vshrl.u32 %v2216, 7
  %v2218 = vsub.s32 %v1561, %v2217
  %v2219 = vrot.slane %v1023, %v2218
  %v2220 = vlaneseq
  %v2221 = vshrl.u32 %v2220, 7
  %v2222 = vsub.s32 %v1561, %v2221
  %v2223 = vrot.slane %v1026, %v2222
  %v2224 = vlaneseq
  %v2225 = vshrl.u32 %v2224, 7
  %v2226 = vsub.s32 %v1561, %v2225
  %v2227 = vrot.slane %v1029, %v2226
  %v2228 = vlaneseq
  %v2229 = vshrl.u32 %v2228, 7
  %v2230 = vsub.s32 %v1561, %v2229
  %v2231 = vrot.slane %v1032, %v2230
  %v2232 = vlaneseq
  %v2233 = vshrl.u32 %v2232, 7
  %v2234 = vsub.s32 %v1561, %v2233
  %v2235 = vrot.slane %v1035, %v2234
  %v2236 = vlaneseq
  %v2237 = vshrl.u32 %v2236, 7
  %v2238 = vsub.s32 %v1561, %v2237
  %v2239 = vrot.slane %v1038, %v2238
  %v2240 = vlaneseq
  %v2241 = vshrl.u32 %v2240, 7
  %v2242 = vsub.s32 %v1561, %v2241
  %v2243 = vrot.slane %v1041, %v2242
  %v2244 = vlaneseq
  %v2245 = vshrl.u32 %v2244, 7
  %v2246 = vsub.s32 %v1561, %v2245
  %v2247 = vrot.slane %v1044, %v2246
  %v2248 = vlaneseq
  %v2249 = vshrl.u32 %v2248, 7
  %v2250 = vsub.s32 %v1561, %v2249
  %v2251 = vrot.slane %v1047, %v2250
  %v2252 = vlaneseq
  %v2253 = vshrl.u32 %v2252, 7
  %v2254 = vsub.s32 %v1561, %v2253
  %v2255 = vrot.slane %v1050, %v2254
  %v2256 = vlaneseq
  %v2257 = vshrl.u32 %v2256, 7
  %v2258 = vsub.s32 %v1561, %v2257
  %v2259 = vrot.slane %v1053, %v2258
  %v2260 = vlaneseq
  %v2261 = vshrl.u32 %v2260, 7
  %v2262 = vsub.s32 %v1561, %v2261
  %v2263 = vrot.slane %v1056, %v2262
  %v2264 = vlaneseq
  %v2265 = vshrl.u32 %v2264, 7
  %v2266 = vsub.s32 %v1561, %v2265
  %v2267 = vrot.slane %v1059, %v2266
  %v2268 = vlaneseq
  %v2269 = vshrl.u32 %v2268, 7
  %v2270 = vsub.s32 %v1561, %v2269
  %v2271 = vrot.slane %v1062, %v2270
  %v2272 = vlaneseq
  %v2273 = vshrl.u32 %v2272, 7
  %v2274 = vsub.s32 %v1561, %v2273
  %v2275 = vrot.slane %v1065, %v2274
  %v2276 = vlaneseq
  %v2277 = vshrl.u32 %v2276, 7
  %v2278 = vsub.s32 %v1561, %v2277
  %v2279 = vrot.slane %v1068, %v2278
  %v2280 = vlaneseq
  %v2281 = vshrl.u32 %v2280, 7
  %v2282 = vsub.s32 %v1561, %v2281
  %v2283 = vrot.slane %v1071, %v2282
  %v2284 = vlaneseq
  %v2285 = vshrl.u32 %v2284, 7
  %v2286 = vsub.s32 %v1561, %v2285
  %v2287 = vrot.slane %v1074, %v2286
  %v2288 = vlaneseq
  %v2289 = vshrl.u32 %v2288, 7
  %v2290 = vsub.s32 %v1561, %v2289
  %v2291 = vrot.slane %v1077, %v2290
  %v2292 = vlaneseq
  %v2293 = vshrl.u32 %v2292, 7
  %v2294 = vsub.s32 %v1561, %v2293
  %v2295 = vrot.slane %v1080, %v2294
  %v2296 = vlaneseq
  %v2297 = vshrl.u32 %v2296, 7
  %v2298 = vsub.s32 %v1561, %v2297
  %v2299 = vrot.slane %v1083, %v2298
  %v2300 = vlaneseq
  %v2301 = vshrl.u32 %v2300, 7
  %v2302 = vsub.s32 %v1561, %v2301
  %v2303 = vrot.slane %v1086, %v2302
  %v2304 = vlaneseq
  %v2305 = vshrl.u32 %v2304, 7
  %v2306 = vsub.s32 %v1561, %v2305
  %v2307 = vrot.slane %v1089, %v2306
  %v2308 = vlaneseq
  %v2309 = vshrl.u32 %v2308, 7
  %v2310 = vsub.s32 %v1561, %v2309
  %v2311 = vrot.slane %v1092, %v2310
  %v2312 = vlaneseq
  %v2313 = vshrl.u32 %v2312, 7
  %v2314 = vsub.s32 %v1561, %v2313
  %v2315 = vrot.slane %v1095, %v2314
  %v2316 = vsel %vm1818, %v2067, %v2063
  %v2317 = vsel %vm1820, %v2071, %v2316
  %v2318 = vsel %vm1822, %v2075, %v2317
  %v2319 = vsel %vm1824, %v2079, %v2318
  %v2320 = vsel %vm1826, %v2083, %v2319
  %v2321 = vsel %vm1828, %v2087, %v2320
  %v2322 = vsel %vm1830, %v2091, %v2321
  %v2323 = vsel %vm1818, %v2099, %v2095
  %v2324 = vsel %vm1820, %v2103, %v2323
  %v2325 = vsel %vm1822, %v2107, %v2324
  %v2326 = vsel %vm1824, %v2111, %v2325
  %v2327 = vsel %vm1826, %v2115, %v2326
  %v2328 = vsel %vm1828, %v2119, %v2327
  %v2329 = vsel %vm1830, %v2123, %v2328
  %v2330 = vsel %vm1818, %v2131, %v2127
  %v2331 = vsel %vm1820, %v2135, %v2330
  %v2332 = vsel %vm1822, %v2139, %v2331
  %v2333 = vsel %vm1824, %v2143, %v2332
  %v2334 = vsel %vm1826, %v2147, %v2333
  %v2335 = vsel %vm1828, %v2151, %v2334
  %v2336 = vsel %vm1830, %v2155, %v2335
  %v2337 = vsel %vm1818, %v2163, %v2159
  %v2338 = vsel %vm1820, %v2167, %v2337
  %v2339 = vsel %vm1822, %v2171, %v2338
  %v2340 = vsel %vm1824, %v2175, %v2339
  %v2341 = vsel %vm1826, %v2179, %v2340
  %v2342 = vsel %vm1828, %v2183, %v2341
  %v2343 = vsel %vm1830, %v2187, %v2342
  %v2344 = vsel %vm1818, %v2195, %v2191
  %v2345 = vsel %vm1820, %v2199, %v2344
  %v2346 = vsel %vm1822, %v2203, %v2345
  %v2347 = vsel %vm1824, %v2207, %v2346
  %v2348 = vsel %vm1826, %v2211, %v2347
  %v2349 = vsel %vm1828, %v2215, %v2348
  %v2350 = vsel %vm1830, %v2219, %v2349
  %v2351 = vsel %vm1818, %v2227, %v2223
  %v2352 = vsel %vm1820, %v2231, %v2351
  %v2353 = vsel %vm1822, %v2235, %v2352
  %v2354 = vsel %vm1824, %v2239, %v2353
  %v2355 = vsel %vm1826, %v2243, %v2354
  %v2356 = vsel %vm1828, %v2247, %v2355
  %v2357 = vsel %vm1830, %v2251, %v2356
  %v2358 = vsel %vm1818, %v2259, %v2255
  %v2359 = vsel %vm1820, %v2263, %v2358
  %v2360 = vsel %vm1822, %v2267, %v2359
  %v2361 = vsel %vm1824, %v2271, %v2360
  %v2362 = vsel %vm1826, %v2275, %v2361
  %v2363 = vsel %vm1828, %v2279, %v2362
  %v2364 = vsel %vm1830, %v2283, %v2363
  %v2365 = vsel %vm1818, %v2291, %v2287
  %v2366 = vsel %vm1820, %v2295, %v2365
  %v2367 = vsel %vm1822, %v2299, %v2366
  %v2368 = vsel %vm1824, %v2303, %v2367
  %v2369 = vsel %vm1826, %v2307, %v2368
  %v2370 = vsel %vm1828, %v2311, %v2369
  %v2371 = vsel %vm1830, %v2315, %v2370
  %vm2372 = vcmask 64512
  %v2373 = vsel %vm2372, %v2322, 0
  %v2375 = vsel %vm2372, %v2329, 0
  %v2377 = vsel %vm2372, %v2336, 0
  %v2379 = vsel %vm2372, %v2343, 0
  %v2381 = vsel %vm2372, %v2350, 0
  %v2383 = vsel %vm2372, %v2357, 0
  %v2385 = vsel %vm2372, %v2364, 0
  %v2387 = vsel %vm2372, %v2371, 0
  %2389 = vmatprep.subr.mxu0 0.0
  %2390 = vmatpush1.msra.mxu0 0.0
  %2391 = vmatprep.subr.mxu0 0.0
  %2392 = vmatpush1.msra.mxu0 0.0
  %2393 = vmatprep.subr.mxu0 0.0
  %2394 = vmatpush1.msra.mxu0 0.0
  %2395 = vmatprep.subr.mxu0 0.0
  %2396 = vmatpush1.msra.mxu0 0.0
  %2397 = vmatprep.subr.mxu0 0.0
  %2398 = vmatpush1.msra.mxu0 0.0
  %2399 = vmatprep.subr.mxu0 0.0
  %2400 = vmatpush1.msra.mxu0 0.0
  %2401 = vmatprep.subr.mxu0 0.0
  %2402 = vmatpush1.msra.mxu0 0.0
  %2403 = vmatprep.subr.mxu0 0.0
  %2404 = vmatpush1.msra.mxu0 0.0
  %2405 = vmatprep.subr.mxu0 0.0
  %2406 = vmatpush1.msra.mxu0 0.0
  %2407 = vmatprep.subr.mxu0 0.0
  %2408 = vmatpush1.msra.mxu0 0.0
  %2409 = vmatprep.subr.mxu0 0.0
  %2410 = vmatpush1.msra.mxu0 0.0
  %2411 = vmatprep.subr.mxu0 0.0
  %2412 = vmatpush1.msra.mxu0 0.0
  %2413 = vmatprep.subr.mxu0 0.0
  %2414 = vmatpush1.msra.mxu0 0.0
  %2415 = vmatprep.subr.mxu0 0.0
  %2416 = vmatpush1.msra.mxu0 0.0
  %2417 = vmatprep.subr.mxu0 0.0
  %2418 = vmatpush1.msra.mxu0 0.0
  %2419 = vmatprep.subr.mxu0 0.0
  %2420 = vmatpush1.msra.mxu0 %v1995
  %2421 = vmatprep.subr.mxu0 0.0
  %2422 = vmatpush2.msra.mxu0 0.0
  %2423 = vmatprep.subr.mxu0 0.0
  %2424 = vmatpush2.msra.mxu0 0.0
  %2425 = vmatprep.subr.mxu0 0.0
  %2426 = vmatpush2.msra.mxu0 0.0
  %2427 = vmatprep.subr.mxu0 0.0
  %2428 = vmatpush2.msra.mxu0 0.0
  %2429 = vmatprep.subr.mxu0 0.0
  %2430 = vmatpush2.msra.mxu0 0.0
  %2431 = vmatprep.subr.mxu0 0.0
  %2432 = vmatpush2.msra.mxu0 0.0
  %2433 = vmatprep.subr.mxu0 0.0
  %2434 = vmatpush2.msra.mxu0 0.0
  %2435 = vmatprep.subr.mxu0 0.0
  %2436 = vmatpush2.msra.mxu0 0.0
  %2437 = vmatprep.subr.mxu0 0.0
  %2438 = vmatpush2.msra.mxu0 0.0
  %2439 = vmatprep.subr.mxu0 0.0
  %2440 = vmatpush2.msra.mxu0 0.0
  %2441 = vmatprep.subr.mxu0 0.0
  %2442 = vmatpush2.msra.mxu0 0.0
  %2443 = vmatprep.subr.mxu0 0.0
  %2444 = vmatpush2.msra.mxu0 0.0
  %2445 = vmatprep.subr.mxu0 0.0
  %2446 = vmatpush2.msra.mxu0 0.0
  %2447 = vmatprep.subr.mxu0 0.0
  %2448 = vmatpush2.msra.mxu0 0.0
  %2449 = vmatprep.subr.mxu0 0.0
  %2450 = vmatpush2.msra.mxu0 0.0
  %2451 = vmatprep.subr.mxu0 0.0
  %2452 = vmatpush2.msra.mxu0 0.0
  %2453 = vmatprep.mubr.f32.mxu0 0.0
  %2454 = vmatmul.mubr.f32.gmra.mxu0 %v2373
  %v2455 = vpop.f32.mrf.mxu0
  %v2456 = vadd.f32 0.0, %v2455
  %v2457 = vpop.f32.mrf.mxu0
  %2458 = vmatprep.mubr.f32.mxu0 0.0
  %2459 = vmatmul.mubr.f32.gmra.mxu0 %v2375
  %v2460 = vpop.f32.mrf.mxu0
  %v2461 = vadd.f32 0.0, %v2460
  %v2462 = vpop.f32.mrf.mxu0
  %2463 = vmatprep.mubr.f32.mxu0 0.0
  %2464 = vmatmul.mubr.f32.gmra.mxu0 %v2377
  %v2465 = vpop.f32.mrf.mxu0
  %v2466 = vadd.f32 0.0, %v2465
  %v2467 = vpop.f32.mrf.mxu0
  %2468 = vmatprep.mubr.f32.mxu0 0.0
  %2469 = vmatmul.mubr.f32.gmra.mxu0 %v2379
  %v2470 = vpop.f32.mrf.mxu0
  %v2471 = vadd.f32 0.0, %v2470
  %v2472 = vpop.f32.mrf.mxu0
  %2473 = vmatprep.mubr.f32.mxu0 0.0
  %2474 = vmatmul.mubr.f32.gmra.mxu0 %v2381
  %v2475 = vpop.f32.mrf.mxu0
  %v2476 = vadd.f32 0.0, %v2475
  %v2477 = vpop.f32.mrf.mxu0
  %2478 = vmatprep.mubr.f32.mxu0 0.0
  %2479 = vmatmul.mubr.f32.gmra.mxu0 %v2383
  %v2480 = vpop.f32.mrf.mxu0
  %v2481 = vadd.f32 0.0, %v2480
  %v2482 = vpop.f32.mrf.mxu0
  %2483 = vmatprep.mubr.f32.mxu0 0.0
  %2484 = vmatmul.mubr.f32.gmra.mxu0 %v2385
  %v2485 = vpop.f32.mrf.mxu0
  %v2486 = vadd.f32 0.0, %v2485
  %v2487 = vpop.f32.mrf.mxu0
  %2488 = vmatprep.mubr.f32.mxu0 0.0
  %2489 = vmatmul.mubr.f32.gmra.mxu0 %v2387
  %v2490 = vpop.f32.mrf.mxu0
  %v2491 = vadd.f32 0.0, %v2490
  %v2492 = vpop.f32.mrf.mxu0
  %2493 = vdwg.mxu0
  %v2494 = vld [vmem:[%s3] sm:$0xff]
  %v2495 = vld [vmem:[%s3 + $0x8] sm:$0xff]
  %v2496 = vld [vmem:[%s3 + $0x10] sm:$0xff]
  %v2497 = vld [vmem:[%s3 + $0x18] sm:$0xff]
  %v2498 = vld [vmem:[%s3 + $0x20] sm:$0xff]
  %v2499 = vld [vmem:[%s3 + $0x28] sm:$0xff]
  %v2500 = vld [vmem:[%s3 + $0x30] sm:$0xff]
  %v2501 = vld [vmem:[%s3 + $0x38] sm:$0xff]
  %v2502 = vld [vmem:[%s7] sm:$0xff]
  %v2503 = vld [vmem:[%s7 + $0x8] sm:$0xff]
  %vm2504 = vcmask 130048
  %v2506 = vsel %vm2504, %v2494, 0
  %v2509 = vsel %vm2504, %v2495, 0
  %v2512 = vsel %vm2504, %v2496, 0
  %v2515 = vsel %vm2504, %v2497, 0
  %v2518 = vsel %vm2504, %v2498, 0
  %v2521 = vsel %vm2504, %v2499, 0
  %v2524 = vsel %vm2504, %v2500, 0
  %v2527 = vsel %vm2504, %v2501, 0
  %2529 = vmatprep.subr.mxu0 0.0
  %2530 = vmatpush1.msra.mxu0 0.0
  %2531 = vmatprep.subr.mxu0 0.0
  %2532 = vmatpush1.msra.mxu0 0.0
  %2533 = vmatprep.subr.mxu0 0.0
  %2534 = vmatpush1.msra.mxu0 0.0
  %2535 = vmatprep.subr.mxu0 0.0
  %2536 = vmatpush1.msra.mxu0 0.0
  %2537 = vmatprep.subr.mxu0 0.0
  %2538 = vmatpush1.msra.mxu0 0.0
  %2539 = vmatprep.subr.mxu0 0.0
  %2540 = vmatpush1.msra.mxu0 0.0
  %2541 = vmatprep.subr.mxu0 0.0
  %2542 = vmatpush1.msra.mxu0 0.0
  %2543 = vmatprep.subr.mxu0 0.0
  %2544 = vmatpush1.msra.mxu0 0.0
  %2545 = vmatprep.subr.mxu0 0.0
  %2546 = vmatpush1.msra.mxu0 0.0
  %2547 = vmatprep.subr.mxu0 0.0
  %2548 = vmatpush1.msra.mxu0 0.0
  %2549 = vmatprep.subr.mxu0 0.0
  %2550 = vmatpush1.msra.mxu0 0.0
  %2551 = vmatprep.subr.mxu0 0.0
  %2552 = vmatpush1.msra.mxu0 0.0
  %2553 = vmatprep.subr.mxu0 0.0
  %2554 = vmatpush1.msra.mxu0 0.0
  %2555 = vmatprep.subr.mxu0 0.0
  %2556 = vmatpush1.msra.mxu0 0.0
  %2557 = vmatprep.subr.mxu0 0.0
  %2558 = vmatpush1.msra.mxu0 %v2503
  %2559 = vmatprep.subr.mxu0 0.0
  %2560 = vmatpush1.msra.mxu0 %v2502
  %2561 = vmatprep.subr.mxu0 0.0
  %2562 = vmatpush2.msra.mxu0 0.0
  %2563 = vmatprep.subr.mxu0 0.0
  %2564 = vmatpush2.msra.mxu0 0.0
  %2565 = vmatprep.subr.mxu0 0.0
  %2566 = vmatpush2.msra.mxu0 0.0
  %2567 = vmatprep.subr.mxu0 0.0
  %2568 = vmatpush2.msra.mxu0 0.0
  %2569 = vmatprep.subr.mxu0 0.0
  %2570 = vmatpush2.msra.mxu0 0.0
  %2571 = vmatprep.subr.mxu0 0.0
  %2572 = vmatpush2.msra.mxu0 0.0
  %2573 = vmatprep.subr.mxu0 0.0
  %2574 = vmatpush2.msra.mxu0 0.0
  %2575 = vmatprep.subr.mxu0 0.0
  %2576 = vmatpush2.msra.mxu0 0.0
  %2577 = vmatprep.subr.mxu0 0.0
  %2578 = vmatpush2.msra.mxu0 0.0
  %2579 = vmatprep.subr.mxu0 0.0
  %2580 = vmatpush2.msra.mxu0 0.0
  %2581 = vmatprep.subr.mxu0 0.0
  %2582 = vmatpush2.msra.mxu0 0.0
  %2583 = vmatprep.subr.mxu0 0.0
  %2584 = vmatpush2.msra.mxu0 0.0
  %2585 = vmatprep.subr.mxu0 0.0
  %2586 = vmatpush2.msra.mxu0 0.0
  %2587 = vmatprep.subr.mxu0 0.0
  %2588 = vmatpush2.msra.mxu0 0.0
  %2589 = vmatprep.subr.mxu0 0.0
  %2590 = vmatpush2.msra.mxu0 0.0
  %2591 = vmatprep.subr.mxu0 0.0
  %2592 = vmatpush2.msra.mxu0 0.0
  %2593 = vmatprep.mubr.f32.mxu0 0.0
  %2594 = vmatmul.mubr.f32.gmra.mxu0 %v2506
  %v2595 = vpop.f32.mrf.mxu0
  %v2596 = vadd.f32 0.0, %v2595
  %v2597 = vpop.f32.mrf.mxu0
  %2598 = vmatprep.mubr.f32.mxu0 0.0
  %2599 = vmatmul.mubr.f32.gmra.mxu0 %v2509
  %v2600 = vpop.f32.mrf.mxu0
  %v2601 = vadd.f32 0.0, %v2600
  %v2602 = vpop.f32.mrf.mxu0
  %2603 = vmatprep.mubr.f32.mxu0 0.0
  %2604 = vmatmul.mubr.f32.gmra.mxu0 %v2512
  %v2605 = vpop.f32.mrf.mxu0
  %v2606 = vadd.f32 0.0, %v2605
  %v2607 = vpop.f32.mrf.mxu0
  %2608 = vmatprep.mubr.f32.mxu0 0.0
  %2609 = vmatmul.mubr.f32.gmra.mxu0 %v2515
  %v2610 = vpop.f32.mrf.mxu0
  %v2611 = vadd.f32 0.0, %v2610
  %v2612 = vpop.f32.mrf.mxu0
  %2613 = vmatprep.mubr.f32.mxu0 0.0
  %2614 = vmatmul.mubr.f32.gmra.mxu0 %v2518
  %v2615 = vpop.f32.mrf.mxu0
  %v2616 = vadd.f32 0.0, %v2615
  %v2617 = vpop.f32.mrf.mxu0
  %2618 = vmatprep.mubr.f32.mxu0 0.0
  %2619 = vmatmul.mubr.f32.gmra.mxu0 %v2521
  %v2620 = vpop.f32.mrf.mxu0
  %v2621 = vadd.f32 0.0, %v2620
  %v2622 = vpop.f32.mrf.mxu0
  %2623 = vmatprep.mubr.f32.mxu0 0.0
  %2624 = vmatmul.mubr.f32.gmra.mxu0 %v2524
  %v2625 = vpop.f32.mrf.mxu0
  %v2626 = vadd.f32 0.0, %v2625
  %v2627 = vpop.f32.mrf.mxu0
  %2628 = vmatprep.mubr.f32.mxu0 0.0
  %2629 = vmatmul.mubr.f32.gmra.mxu0 %v2527
  %v2630 = vpop.f32.mrf.mxu0
  %v2631 = vadd.f32 0.0, %v2630
  %v2632 = vpop.f32.mrf.mxu0
  %2633 = vdwg.mxu0
  %v2634 = vmul.f32 %v2456, %v2596
  %v2635 = vmul.f32 %v2461, %v2601
  %v2636 = vmul.f32 %v2466, %v2606
  %v2637 = vmul.f32 %v2471, %v2611
  %v2638 = vmul.f32 %v2476, %v2616
  %v2639 = vmul.f32 %v2481, %v2621
  %v2640 = vmul.f32 %v2486, %v2626
  %v2641 = vmul.f32 %v2491, %v2631
  %v2643 = vsel %vm1983, %v1994, 0
  %2645 = vmatprep.subr.mxu0 0.0
  %2646 = vmatpush1.msra.mxu0 0.0
  %2647 = vmatprep.subr.mxu0 0.0
  %2648 = vmatpush1.msra.mxu0 0.0
  %2649 = vmatprep.subr.mxu0 0.0
  %2650 = vmatpush1.msra.mxu0 0.0
  %2651 = vmatprep.subr.mxu0 0.0
  %2652 = vmatpush1.msra.mxu0 0.0
  %2653 = vmatprep.subr.mxu0 0.0
  %2654 = vmatpush1.msra.mxu0 0.0
  %2655 = vmatprep.subr.mxu0 0.0
  %2656 = vmatpush1.msra.mxu0 0.0
  %2657 = vmatprep.subr.mxu0 0.0
  %2658 = vmatpush1.msra.mxu0 0.0
  %2659 = vmatprep.subr.mxu0 0.0
  %2660 = vmatpush1.msra.mxu0 0.0
  %2661 = vmatprep.subr.mxu0 0.0
  %2662 = vmatpush1.msra.mxu0 %v2641
  %2663 = vmatprep.subr.mxu0 0.0
  %2664 = vmatpush1.msra.mxu0 %v2640
  %2665 = vmatprep.subr.mxu0 0.0
  %2666 = vmatpush1.msra.mxu0 %v2639
  %2667 = vmatprep.subr.mxu0 0.0
  %2668 = vmatpush1.msra.mxu0 %v2638
  %2669 = vmatprep.subr.mxu0 0.0
  %2670 = vmatpush1.msra.mxu0 %v2637
  %2671 = vmatprep.subr.mxu0 0.0
  %2672 = vmatpush1.msra.mxu0 %v2636
  %2673 = vmatprep.subr.mxu0 0.0
  %2674 = vmatpush1.msra.mxu0 %v2635
  %2675 = vmatprep.subr.mxu0 0.0
  %2676 = vmatpush1.msra.mxu0 %v2634
  %2677 = vmatprep.subr.mxu0 0.0
  %2678 = vmatpush2.msra.mxu0 0.0
  %2679 = vmatprep.subr.mxu0 0.0
  %2680 = vmatpush2.msra.mxu0 0.0
  %2681 = vmatprep.subr.mxu0 0.0
  %2682 = vmatpush2.msra.mxu0 0.0
  %2683 = vmatprep.subr.mxu0 0.0
  %2684 = vmatpush2.msra.mxu0 0.0
  %2685 = vmatprep.subr.mxu0 0.0
  %2686 = vmatpush2.msra.mxu0 0.0
  %2687 = vmatprep.subr.mxu0 0.0
  %2688 = vmatpush2.msra.mxu0 0.0
  %2689 = vmatprep.subr.mxu0 0.0
  %2690 = vmatpush2.msra.mxu0 0.0
  %2691 = vmatprep.subr.mxu0 0.0
  %2692 = vmatpush2.msra.mxu0 0.0
  %2693 = vmatprep.subr.mxu0 0.0
  %2694 = vmatpush2.msra.mxu0 0.0
  %2695 = vmatprep.subr.mxu0 0.0
  %2696 = vmatpush2.msra.mxu0 0.0
  %2697 = vmatprep.subr.mxu0 0.0
  %2698 = vmatpush2.msra.mxu0 0.0
  %2699 = vmatprep.subr.mxu0 0.0
  %2700 = vmatpush2.msra.mxu0 0.0
  %2701 = vmatprep.subr.mxu0 0.0
  %2702 = vmatpush2.msra.mxu0 0.0
  %2703 = vmatprep.subr.mxu0 0.0
  %2704 = vmatpush2.msra.mxu0 0.0
  %2705 = vmatprep.subr.mxu0 0.0
  %2706 = vmatpush2.msra.mxu0 0.0
  %2707 = vmatprep.subr.mxu0 0.0
  %2708 = vmatpush2.msra.mxu0 0.0
  %2709 = vmatprep.mubr.f32.mxu0 0.0
  %2710 = vmatmul.mubr.f32.gmra.mxu0 %v2643
  %v2711 = vpop.f32.mrf.mxu0
  %v2712 = vadd.f32 0.0, %v2711
  %v2713 = vpop.f32.mrf.mxu0
  %2714 = vdwg.mxu0
  %v2715 = vld [vmem:[%s8] sm:$0xff]
  %v2716 = vld [vmem:[%s8 + $0x8] sm:$0xff]
  %v2717 = vld [vmem:[%s8 + $0x10] sm:$0xff]
  %v2718 = vld [vmem:[%s8 + $0x18] sm:$0xff]
  %v2719 = vld [vmem:[%s9] sm:$0xf]
  %v2721 = vsel %vm1422, %v2719, 0
  %2723 = vmatprep.subr.mxu0 0.0
  %2724 = vmatpush1.msra.mxu0 0.0
  %2725 = vmatprep.subr.mxu0 0.0
  %2726 = vmatpush1.msra.mxu0 0.0
  %2727 = vmatprep.subr.mxu0 0.0
  %2728 = vmatpush1.msra.mxu0 0.0
  %2729 = vmatprep.subr.mxu0 0.0
  %2730 = vmatpush1.msra.mxu0 0.0
  %2731 = vmatprep.subr.mxu0 0.0
  %2732 = vmatpush1.msra.mxu0 0.0
  %2733 = vmatprep.subr.mxu0 0.0
  %2734 = vmatpush1.msra.mxu0 0.0
  %2735 = vmatprep.subr.mxu0 0.0
  %2736 = vmatpush1.msra.mxu0 0.0
  %2737 = vmatprep.subr.mxu0 0.0
  %2738 = vmatpush1.msra.mxu0 0.0
  %2739 = vmatprep.subr.mxu0 0.0
  %2740 = vmatpush1.msra.mxu0 0.0
  %2741 = vmatprep.subr.mxu0 0.0
  %2742 = vmatpush1.msra.mxu0 0.0
  %2743 = vmatprep.subr.mxu0 0.0
  %2744 = vmatpush1.msra.mxu0 0.0
  %2745 = vmatprep.subr.mxu0 0.0
  %2746 = vmatpush1.msra.mxu0 0.0
  %2747 = vmatprep.subr.mxu0 0.0
  %2748 = vmatpush1.msra.mxu0 0.0
  %2749 = vmatprep.subr.mxu0 0.0
  %2750 = vmatpush1.msra.mxu0 0.0
  %2751 = vmatprep.subr.mxu0 0.0
  %2752 = vmatpush1.msra.mxu0 0.0
  %2753 = vmatprep.subr.mxu0 0.0
  %2754 = vmatpush1.msra.mxu0 %v2721
  %2755 = vmatprep.subr.mxu0 0.0
  %2756 = vmatpush2.msra.mxu0 0.0
  %2757 = vmatprep.subr.mxu0 0.0
  %2758 = vmatpush2.msra.mxu0 0.0
  %2759 = vmatprep.subr.mxu0 0.0
  %2760 = vmatpush2.msra.mxu0 0.0
  %2761 = vmatprep.subr.mxu0 0.0
  %2762 = vmatpush2.msra.mxu0 0.0
  %2763 = vmatprep.subr.mxu0 0.0
  %2764 = vmatpush2.msra.mxu0 0.0
  %2765 = vmatprep.subr.mxu0 0.0
  %2766 = vmatpush2.msra.mxu0 0.0
  %2767 = vmatprep.subr.mxu0 0.0
  %2768 = vmatpush2.msra.mxu0 0.0
  %2769 = vmatprep.subr.mxu0 0.0
  %2770 = vmatpush2.msra.mxu0 0.0
  %2771 = vmatprep.subr.mxu0 0.0
  %2772 = vmatpush2.msra.mxu0 0.0
  %2773 = vmatprep.subr.mxu0 0.0
  %2774 = vmatpush2.msra.mxu0 0.0
  %2775 = vmatprep.subr.mxu0 0.0
  %2776 = vmatpush2.msra.mxu0 0.0
  %2777 = vmatprep.subr.mxu0 0.0
  %2778 = vmatpush2.msra.mxu0 0.0
  %2779 = vmatprep.subr.mxu0 0.0
  %2780 = vmatpush2.msra.mxu0 0.0
  %2781 = vmatprep.subr.mxu0 0.0
  %2782 = vmatpush2.msra.mxu0 0.0
  %2783 = vmatprep.subr.mxu0 0.0
  %2784 = vmatpush2.msra.mxu0 0.0
  %2785 = vmatprep.subr.mxu0 0.0
  %2786 = vmatpush2.msra.mxu0 0.0
  %2787 = vmatprep.mubr.f32.mxu0 0.0
  %2788 = vmatmul.mubr.f32.gmra.mxu0 %v1420
  %v2789 = vpop.f32.mrf.mxu0
  %v2790 = vadd.f32 0.0, %v2789
  %v2791 = vpop.f32.mrf.mxu0
  %2792 = vdwg.mxu0
  %vm2793 = vcmask 261120
  %v2795 = vsel %vm2793, %v2712, 0
  %2797 = vmatprep.subr.mxu0 0.0
  %2798 = vmatpush1.msra.mxu0 0.0
  %2799 = vmatprep.subr.mxu0 0.0
  %2800 = vmatpush1.msra.mxu0 0.0
  %2801 = vmatprep.subr.mxu0 0.0
  %2802 = vmatpush1.msra.mxu0 0.0
  %2803 = vmatprep.subr.mxu0 0.0
  %2804 = vmatpush1.msra.mxu0 0.0
  %2805 = vmatprep.subr.mxu0 0.0
  %2806 = vmatpush1.msra.mxu0 0.0
  %2807 = vmatprep.subr.mxu0 0.0
  %2808 = vmatpush1.msra.mxu0 0.0
  %2809 = vmatprep.subr.mxu0 0.0
  %2810 = vmatpush1.msra.mxu0 0.0
  %2811 = vmatprep.subr.mxu0 0.0
  %2812 = vmatpush1.msra.mxu0 0.0
  %2813 = vmatprep.subr.mxu0 0.0
  %2814 = vmatpush1.msra.mxu0 0.0
  %2815 = vmatprep.subr.mxu0 0.0
  %2816 = vmatpush1.msra.mxu0 0.0
  %2817 = vmatprep.subr.mxu0 0.0
  %2818 = vmatpush1.msra.mxu0 0.0
  %2819 = vmatprep.subr.mxu0 0.0
  %2820 = vmatpush1.msra.mxu0 0.0
  %2821 = vmatprep.subr.mxu0 0.0
  %2822 = vmatpush1.msra.mxu0 %v2718
  %2823 = vmatprep.subr.mxu0 0.0
  %2824 = vmatpush1.msra.mxu0 %v2717
  %2825 = vmatprep.subr.mxu0 0.0
  %2826 = vmatpush1.msra.mxu0 %v2716
  %2827 = vmatprep.subr.mxu0 0.0
  %2828 = vmatpush1.msra.mxu0 %v2715
  %2829 = vmatprep.subr.mxu0 0.0
  %2830 = vmatpush2.msra.mxu0 0.0
  %2831 = vmatprep.subr.mxu0 0.0
  %2832 = vmatpush2.msra.mxu0 0.0
  %2833 = vmatprep.subr.mxu0 0.0
  %2834 = vmatpush2.msra.mxu0 0.0
  %2835 = vmatprep.subr.mxu0 0.0
  %2836 = vmatpush2.msra.mxu0 0.0
  %2837 = vmatprep.subr.mxu0 0.0
  %2838 = vmatpush2.msra.mxu0 0.0
  %2839 = vmatprep.subr.mxu0 0.0
  %2840 = vmatpush2.msra.mxu0 0.0
  %2841 = vmatprep.subr.mxu0 0.0
  %2842 = vmatpush2.msra.mxu0 0.0
  %2843 = vmatprep.subr.mxu0 0.0
  %2844 = vmatpush2.msra.mxu0 0.0
  %2845 = vmatprep.subr.mxu0 0.0
  %2846 = vmatpush2.msra.mxu0 0.0
  %2847 = vmatprep.subr.mxu0 0.0
  %2848 = vmatpush2.msra.mxu0 0.0
  %2849 = vmatprep.subr.mxu0 0.0
  %2850 = vmatpush2.msra.mxu0 0.0
  %2851 = vmatprep.subr.mxu0 0.0
  %2852 = vmatpush2.msra.mxu0 0.0
  %2853 = vmatprep.subr.mxu0 0.0
  %2854 = vmatpush2.msra.mxu0 0.0
  %2855 = vmatprep.subr.mxu0 0.0
  %2856 = vmatpush2.msra.mxu0 0.0
  %2857 = vmatprep.subr.mxu0 0.0
  %2858 = vmatpush2.msra.mxu0 0.0
  %2859 = vmatprep.subr.mxu0 0.0
  %2860 = vmatpush2.msra.mxu0 0.0
  %2861 = vmatprep.mubr.f32.mxu0 0.0
  %2862 = vmatmul.mubr.f32.gmra.mxu0 %v2795
  %v2863 = vpop.f32.mrf.mxu0
  %v2864 = vadd.f32 %v2790, %v2863
  %v2865 = vpop.f32.mrf.mxu0
  %2866 = vdwg.mxu0
  %v2867 = vmul.f32 %v2864, %v2864
  %v2868 = vld [vmem:[%s10] sm:$0xff]
  %v2869 = vld [vmem:[%s10 + $0x8] sm:$0xff]
  %v2870 = vld [vmem:[%s10 + $0x10] sm:$0xff]
  %v2871 = vld [vmem:[%s10 + $0x18] sm:$0xff]
  %v2872 = vld [vmem:[%s10 + $0x20] sm:$0xff]
  %v2873 = vld [vmem:[%s10 + $0x28] sm:$0xff]
  %v2874 = vld [vmem:[%s10 + $0x30] sm:$0xff]
  %v2875 = vld [vmem:[%s10 + $0x38] sm:$0xff]
  %v2876 = vld [vmem:[%s10 + $0x40] sm:$0xff]
  %v2877 = vld [vmem:[%s10 + $0x48] sm:$0xff]
  %v2878 = vld [vmem:[%s10 + $0x50] sm:$0xff]
  %v2879 = vld [vmem:[%s10 + $0x58] sm:$0xff]
  %v2880 = vld [vmem:[%s10 + $0x60] sm:$0xff]
  %v2881 = vld [vmem:[%s10 + $0x68] sm:$0xff]
  %v2882 = vld [vmem:[%s10 + $0x70] sm:$0xff]
  %v2883 = vld [vmem:[%s10 + $0x78] sm:$0xff]
  %2884 = vmatprep.subr.mxu0 0.0
  %2885 = vmatpush1.msra.mxu0 %v2883
  %2886 = vmatprep.subr.mxu0 0.0
  %2887 = vmatpush1.msra.mxu0 %v2882
  %2888 = vmatprep.subr.mxu0 0.0
  %2889 = vmatpush1.msra.mxu0 %v2881
  %2890 = vmatprep.subr.mxu0 0.0
  %2891 = vmatpush1.msra.mxu0 %v2880
  %2892 = vmatprep.subr.mxu0 0.0
  %2893 = vmatpush1.msra.mxu0 %v2879
  %2894 = vmatprep.subr.mxu0 0.0
  %2895 = vmatpush1.msra.mxu0 %v2878
  %2896 = vmatprep.subr.mxu0 0.0
  %2897 = vmatpush1.msra.mxu0 %v2877
  %2898 = vmatprep.subr.mxu0 0.0
  %2899 = vmatpush1.msra.mxu0 %v2876
  %2900 = vmatprep.subr.mxu0 0.0
  %2901 = vmatpush1.msra.mxu0 %v2875
  %2902 = vmatprep.subr.mxu0 0.0
  %2903 = vmatpush1.msra.mxu0 %v2874
  %2904 = vmatprep.subr.mxu0 0.0
  %2905 = vmatpush1.msra.mxu0 %v2873
  %2906 = vmatprep.subr.mxu0 0.0
  %2907 = vmatpush1.msra.mxu0 %v2872
  %2908 = vmatprep.subr.mxu0 0.0
  %2909 = vmatpush1.msra.mxu0 %v2871
  %2910 = vmatprep.subr.mxu0 0.0
  %2911 = vmatpush1.msra.mxu0 %v2870
  %2912 = vmatprep.subr.mxu0 0.0
  %2913 = vmatpush1.msra.mxu0 %v2869
  %2914 = vmatprep.subr.mxu0 0.0
  %2915 = vmatpush1.msra.mxu0 %v2868
  %2916 = vmatprep.subr.mxu0 0.0
  %2917 = vmatpush2.msra.mxu0 0.0
  %2918 = vmatprep.subr.mxu0 0.0
  %2919 = vmatpush2.msra.mxu0 0.0
  %2920 = vmatprep.subr.mxu0 0.0
  %2921 = vmatpush2.msra.mxu0 0.0
  %2922 = vmatprep.subr.mxu0 0.0
  %2923 = vmatpush2.msra.mxu0 0.0
  %2924 = vmatprep.subr.mxu0 0.0
  %2925 = vmatpush2.msra.mxu0 0.0
  %2926 = vmatprep.subr.mxu0 0.0
  %2927 = vmatpush2.msra.mxu0 0.0
  %2928 = vmatprep.subr.mxu0 0.0
  %2929 = vmatpush2.msra.mxu0 0.0
  %2930 = vmatprep.subr.mxu0 0.0
  %2931 = vmatpush2.msra.mxu0 0.0
  %2932 = vmatprep.subr.mxu0 0.0
  %2933 = vmatpush2.msra.mxu0 0.0
  %2934 = vmatprep.subr.mxu0 0.0
  %2935 = vmatpush2.msra.mxu0 0.0
  %2936 = vmatprep.subr.mxu0 0.0
  %2937 = vmatpush2.msra.mxu0 0.0
  %2938 = vmatprep.subr.mxu0 0.0
  %2939 = vmatpush2.msra.mxu0 0.0
  %2940 = vmatprep.subr.mxu0 0.0
  %2941 = vmatpush2.msra.mxu0 0.0
  %2942 = vmatprep.subr.mxu0 0.0
  %2943 = vmatpush2.msra.mxu0 0.0
  %2944 = vmatprep.subr.mxu0 0.0
  %2945 = vmatpush2.msra.mxu0 0.0
  %2946 = vmatprep.subr.mxu0 0.0
  %2947 = vmatpush2.msra.mxu0 0.0
  %2948 = vmatprep.mubr.f32.mxu0 0.0
  %2949 = vmatmul.mubr.f32.gmra.mxu0 %v2867
  %v2950 = vpop.f32.mrf.mxu0
  %v2951 = vadd.f32 1e-12, %v2950
  %v2952 = vpop.f32.mrf.mxu0
  %2953 = vdwg.mxu0
  %v2954 = vrsqrt.pop %v2951
  %v2955 = vmul.f32 %v2951, %v2954
  %v2956 = vld [vmem:[%s12] sm:$0x1]
  %v2958 = vlaneseq
  %v2959 = vshrl.u32 %v2958, 7
  %v2960 = vsub.s32 0, %v2959
  %v2961 = vrot.slane %v2956, %v2960
  %v2963 = vmul.f32 %v2955, %v2961
  %v2964 = vld [vmem:[%s13] sm:$0x1]
  %v2966 = vlaneseq
  %v2967 = vshrl.u32 %v2966, 7
  %v2968 = vsub.s32 0, %v2967
  %v2969 = vrot.slane %v2964, %v2968
  %v2971 = vadd.f32 %v2963, %v2969
  %v2972 = vmax.f32 %v2971, 0.0
  %v2973 = vmul.f32 %v2972, %v2954
  %v2974 = vld [vmem:[%s11] sm:$0xff]
  %v2975 = vld [vmem:[%s11 + $0x8] sm:$0xff]
  %v2976 = vld [vmem:[%s11 + $0x10] sm:$0xff]
  %v2977 = vld [vmem:[%s11 + $0x18] sm:$0xff]
  %v2979 = vsel %vm2793, %v2973, 0
  %2981 = vmatprep.subr.mxu0 0.0
  %2982 = vmatpush1.msra.mxu0 0.0
  %2983 = vmatprep.subr.mxu0 0.0
  %2984 = vmatpush1.msra.mxu0 0.0
  %2985 = vmatprep.subr.mxu0 0.0
  %2986 = vmatpush1.msra.mxu0 0.0
  %2987 = vmatprep.subr.mxu0 0.0
  %2988 = vmatpush1.msra.mxu0 0.0
  %2989 = vmatprep.subr.mxu0 0.0
  %2990 = vmatpush1.msra.mxu0 0.0
  %2991 = vmatprep.subr.mxu0 0.0
  %2992 = vmatpush1.msra.mxu0 0.0
  %2993 = vmatprep.subr.mxu0 0.0
  %2994 = vmatpush1.msra.mxu0 0.0
  %2995 = vmatprep.subr.mxu0 0.0
  %2996 = vmatpush1.msra.mxu0 0.0
  %2997 = vmatprep.subr.mxu0 0.0
  %2998 = vmatpush1.msra.mxu0 0.0
  %2999 = vmatprep.subr.mxu0 0.0
  %3000 = vmatpush1.msra.mxu0 0.0
  %3001 = vmatprep.subr.mxu0 0.0
  %3002 = vmatpush1.msra.mxu0 0.0
  %3003 = vmatprep.subr.mxu0 0.0
  %3004 = vmatpush1.msra.mxu0 0.0
  %3005 = vmatprep.subr.mxu0 0.0
  %3006 = vmatpush1.msra.mxu0 %v2977
  %3007 = vmatprep.subr.mxu0 0.0
  %3008 = vmatpush1.msra.mxu0 %v2976
  %3009 = vmatprep.subr.mxu0 0.0
  %3010 = vmatpush1.msra.mxu0 %v2975
  %3011 = vmatprep.subr.mxu0 0.0
  %3012 = vmatpush1.msra.mxu0 %v2974
  %3013 = vmatprep.subr.mxu0 0.0
  %3014 = vmatpush2.msra.mxu0 0.0
  %3015 = vmatprep.subr.mxu0 0.0
  %3016 = vmatpush2.msra.mxu0 0.0
  %3017 = vmatprep.subr.mxu0 0.0
  %3018 = vmatpush2.msra.mxu0 0.0
  %3019 = vmatprep.subr.mxu0 0.0
  %3020 = vmatpush2.msra.mxu0 0.0
  %3021 = vmatprep.subr.mxu0 0.0
  %3022 = vmatpush2.msra.mxu0 0.0
  %3023 = vmatprep.subr.mxu0 0.0
  %3024 = vmatpush2.msra.mxu0 0.0
  %3025 = vmatprep.subr.mxu0 0.0
  %3026 = vmatpush2.msra.mxu0 0.0
  %3027 = vmatprep.subr.mxu0 0.0
  %3028 = vmatpush2.msra.mxu0 0.0
  %3029 = vmatprep.subr.mxu0 0.0
  %3030 = vmatpush2.msra.mxu0 0.0
  %3031 = vmatprep.subr.mxu0 0.0
  %3032 = vmatpush2.msra.mxu0 0.0
  %3033 = vmatprep.subr.mxu0 0.0
  %3034 = vmatpush2.msra.mxu0 0.0
  %3035 = vmatprep.subr.mxu0 0.0
  %3036 = vmatpush2.msra.mxu0 0.0
  %3037 = vmatprep.subr.mxu0 0.0
  %3038 = vmatpush2.msra.mxu0 0.0
  %3039 = vmatprep.subr.mxu0 0.0
  %3040 = vmatpush2.msra.mxu0 0.0
  %3041 = vmatprep.subr.mxu0 0.0
  %3042 = vmatpush2.msra.mxu0 0.0
  %3043 = vmatprep.subr.mxu0 0.0
  %3044 = vmatpush2.msra.mxu0 0.0
  %3045 = vmatprep.mubr.f32.mxu0 0.0
  %3046 = vmatmul.mubr.f32.gmra.mxu0 %v2979
  %v3047 = vpop.f32.mrf.mxu0
  %v3048 = vadd.f32 0.0, %v3047
  %v3049 = vpop.f32.mrf.mxu0
  %3050 = vdwg.mxu0
  %v3051 = vmul.f32 %v2864, %v3048
  %3052 = vst [vmem:[%s14] sm:$0xff] %v3051
  // Predicated region
  $region58: #{se3_transformer_forward.6} parent=0 // pred_check
    _
  $region59: #{se3_transformer_forward.6} parent=0 // pred_check_branch
    %3054 = sbr.rel (0) target = $region61
  $region60: #{se3_transformer_forward.6} parent=0 // pred_region
    _
  $region61: #{se3_transformer_forward.6} parent=0 // pred_fallthru
    _
  // Predicated region
  $region62: #{se3_transformer_forward.6} parent=0 // pred_check
    _
  $region63: #{se3_transformer_forward.6} parent=0 // pred_check_branch
    %3056 = sbr.rel (0) target = $region65
  $region64: #{se3_transformer_forward.6} parent=0 // pred_region
    _
  $region65: #{se3_transformer_forward.6} parent=0 // pred_fallthru
    _

// kernel: se3_transformer_forward.7
$region0: #{se3_transformer_forward.7}
  #allocation0 [shape = 'u32[]', space=smem, size = 0x4, offset = 0x4, fixed_abs, tag = 'smem constant byte address 0x4 - core index']
  #allocation1 [shape = 'u32[144,128]{1,0:T(1,128)}', space=vmem, size = 0x12000, scoped, tag = 'internal scratch']
  #allocation2 [shape = 'f32[1,1]{1,0:T(1,128)S(1)}', space=vmem, size = 0x200, scoped, tag = 'scoped memory for se3_transformer_forward.7']
  %s0 = inlined_call_operand.vmem [shape: f32[64,32,32], index: 0, kind: input, shape index: {}]
  %s1 = inlined_call_operand.vmem [shape: f32[64,128], index: 1, kind: input, shape index: {}]
  %s2 = inlined_call_operand.vmem [shape: f32[64,128], index: 2, kind: input, shape index: {}]
  %s3 = inlined_call_operand.vmem [shape: f32[128,32], index: 3, kind: input, shape index: {}]
  %s4 = inlined_call_operand.vmem [shape: f32[8,64], index: 4, kind: input, shape index: {}]
  %s5 = inlined_call_operand.vmem [shape: f32[8,8], index: 5, kind: input, shape index: {}]
  %s6 = inlined_call_operand.vmem [shape: f32[8,32], index: 6, kind: input, shape index: {}]
  %s7 = inlined_call_operand.vmem [shape: f32[32,32], index: 7, kind: input, shape index: {}]
  %s8 = inlined_call_operand.vmem [shape: f32[1,32], index: 8, kind: input, shape index: {}]
  %s9 = inlined_call_operand.vmem [shape: f32[32,1], index: 9, kind: input, shape index: {}]
  %s10 = inlined_call_operand.<no memory space> [shape: f32[1,1], index: 10, kind: input, shape index: {}]
  %s11 = inlined_call_operand.hbm [shape: f32[1,1], index: 11, kind: output, shape index: {}]
  %s12 = sld [smem:[#allocation0]]
  $region54: #{se3_transformer_forward.7} parent=0
    _
  %s14 = ssub.s32 1, %s12
  %s15 = scalar_select 0, %s14, %s12
  %v16 = vstv %s10
  %17 = vst [vmem:[#allocation2] sm:$0x1] %v16
  $region1: #{se3_transformer_forward.7} parent=0
    #allocation3 [shape = 'u8[512]{0}', space=vmem, size = 0x400, scoped, tag = 'output window, operand 0, single buffered']
    #allocation4 [shape = 's32[1]{0}', space=sflag, size = 0x4, scoped, tag = 'scoped memory for se3_transformer_forward.7']
    %18 = vsyncpa [#allocation4], 0
    // Predicated region
    $region2: #{se3_transformer_forward.7} parent=1 // pred_check
      _
    $region3: #{se3_transformer_forward.7} parent=1 // pred_check_branch
      %20 = sbr.rel (0) target = $region5
    $region4: #{se3_transformer_forward.7} parent=1 // pred_region
      _
    $region5: #{se3_transformer_forward.7} parent=1 // pred_fallthru
      _
    // Predicated region
    $region6: #{se3_transformer_forward.7} parent=1 // pred_check
      _
    $region7: #{se3_transformer_forward.7} parent=1 // pred_check_branch
      %22 = sbr.rel (0) target = $region9
    $region8: #{se3_transformer_forward.7} parent=1 // pred_region
      _
    $region9: #{se3_transformer_forward.7} parent=1 // pred_fallthru
      _
    // Predicated region
    $region10: #{se3_transformer_forward.7} parent=1 // pred_check
      _
    $region11: #{se3_transformer_forward.7} parent=1 // pred_check_branch
      %24 = sbr.rel (0) target = $region13
    $region12: #{se3_transformer_forward.7} parent=1 // pred_region
      _
    $region13: #{se3_transformer_forward.7} parent=1 // pred_fallthru
      _
    // Predicated region
    $region14: #{se3_transformer_forward.7} parent=1 // pred_check
      _
    $region15: #{se3_transformer_forward.7} parent=1 // pred_check_branch
      %26 = sbr.rel (0) target = $region17
    $region16: #{se3_transformer_forward.7} parent=1 // pred_region
      _
    $region17: #{se3_transformer_forward.7} parent=1 // pred_fallthru
      _
    // Predicated region
    $region18: #{se3_transformer_forward.7} parent=1 // pred_check
      _
    $region19: #{se3_transformer_forward.7} parent=1 // pred_check_branch
      %28 = sbr.rel (0) target = $region21
    $region20: #{se3_transformer_forward.7} parent=1 // pred_region
      _
    $region21: #{se3_transformer_forward.7} parent=1 // pred_fallthru
      _
    // Predicated region
    $region22: #{se3_transformer_forward.7} parent=1 // pred_check
      _
    $region23: #{se3_transformer_forward.7} parent=1 // pred_check_branch
      %30 = sbr.rel (0) target = $region25
    $region24: #{se3_transformer_forward.7} parent=1 // pred_region
      _
    $region25: #{se3_transformer_forward.7} parent=1 // pred_fallthru
      _
    // Predicated region
    $region26: #{se3_transformer_forward.7} parent=1 // pred_check
      _
    $region27: #{se3_transformer_forward.7} parent=1 // pred_check_branch
      %32 = sbr.rel (0) target = $region29
    $region28: #{se3_transformer_forward.7} parent=1 // pred_region
      _
    $region29: #{se3_transformer_forward.7} parent=1 // pred_fallthru
      _
    // Predicated region
    $region30: #{se3_transformer_forward.7} parent=1 // pred_check
      _
    $region31: #{se3_transformer_forward.7} parent=1 // pred_check_branch
      %34 = sbr.rel (0) target = $region33
    $region32: #{se3_transformer_forward.7} parent=1 // pred_region
      _
    $region33: #{se3_transformer_forward.7} parent=1 // pred_fallthru
      _
    // Predicated region
    $region34: #{se3_transformer_forward.7} parent=1 // pred_check
      _
    $region35: #{se3_transformer_forward.7} parent=1 // pred_check_branch
      %36 = sbr.rel (0) target = $region37
    $region36: #{se3_transformer_forward.7} parent=1 // pred_region
      _
    $region37: #{se3_transformer_forward.7} parent=1 // pred_fallthru
      _
    // Predicated region
    $region38: #{se3_transformer_forward.7} parent=1 // pred_check
      _
    $region39: #{se3_transformer_forward.7} parent=1 // pred_check_branch
      %38 = sbr.rel (0) target = $region41
    $region40: #{se3_transformer_forward.7} parent=1 // pred_region
      _
    $region41: #{se3_transformer_forward.7} parent=1 // pred_fallthru
      _
    // Predicated region
    $region42: #{se3_transformer_forward.7} parent=1 // pred_check
      _
    $region43: #{se3_transformer_forward.7} parent=1 // pred_check_branch
      %40 = sbr.rel (0) target = $region45
    $region44: #{se3_transformer_forward.7} parent=1 // pred_region
      _
    $region45: #{se3_transformer_forward.7} parent=1 // pred_fallthru
      _
    %v41 = vld [vmem:[%s1] sm:$0xff]
    %v42 = vld [vmem:[%s1 + $0x8] sm:$0xff]
    %v43 = vld [vmem:[%s1 + $0x10] sm:$0xff]
    %v44 = vld [vmem:[%s1 + $0x18] sm:$0xff]
    %v45 = vld [vmem:[%s1 + $0x20] sm:$0xff]
    %v46 = vld [vmem:[%s1 + $0x28] sm:$0xff]
    %v47 = vld [vmem:[%s1 + $0x30] sm:$0xff]
    %v48 = vld [vmem:[%s1 + $0x38] sm:$0xff]
    %v49 = vld [vmem:[%s2] sm:$0xff]
    %v50 = vld [vmem:[%s2 + $0x8] sm:$0xff]
    %v51 = vld [vmem:[%s2 + $0x10] sm:$0xff]
    %v52 = vld [vmem:[%s2 + $0x18] sm:$0xff]
    %v53 = vld [vmem:[%s2 + $0x20] sm:$0xff]
    %v54 = vld [vmem:[%s2 + $0x28] sm:$0xff]
    %v55 = vld [vmem:[%s2 + $0x30] sm:$0xff]
    %v56 = vld [vmem:[%s2 + $0x38] sm:$0xff]
    %v57 = vmul.f32 %v41, %v49
    %v58 = vmul.f32 %v42, %v50
    %v59 = vmul.f32 %v43, %v51
    %v60 = vmul.f32 %v44, %v52
    %v61 = vmul.f32 %v45, %v53
    %v62 = vmul.f32 %v46, %v54
    %v63 = vmul.f32 %v47, %v55
    %v64 = vmul.f32 %v48, %v56
    %v65 = vld [vmem:[%s3] sm:$0xff]
    %v66 = vld [vmem:[%s3 + $0x8] sm:$0xff]
    %v67 = vld [vmem:[%s3 + $0x10] sm:$0xff]
    %v68 = vld [vmem:[%s3 + $0x18] sm:$0xff]
    %v69 = vld [vmem:[%s3 + $0x20] sm:$0xff]
    %v70 = vld [vmem:[%s3 + $0x28] sm:$0xff]
    %v71 = vld [vmem:[%s3 + $0x30] sm:$0xff]
    %v72 = vld [vmem:[%s3 + $0x38] sm:$0xff]
    %v73 = vld [vmem:[%s3 + $0x40] sm:$0xff]
    %v74 = vld [vmem:[%s3 + $0x48] sm:$0xff]
    %v75 = vld [vmem:[%s3 + $0x50] sm:$0xff]
    %v76 = vld [vmem:[%s3 + $0x58] sm:$0xff]
    %v77 = vld [vmem:[%s3 + $0x60] sm:$0xff]
    %v78 = vld [vmem:[%s3 + $0x68] sm:$0xff]
    %v79 = vld [vmem:[%s3 + $0x70] sm:$0xff]
    %v80 = vld [vmem:[%s3 + $0x78] sm:$0xff]
    %81 = vmatprep.subr.mxu0 0.0
    %82 = vmatpush1.msra.mxu0 %v80
    %83 = vmatprep.subr.mxu0 0.0
    %84 = vmatpush1.msra.mxu0 %v79
    %85 = vmatprep.subr.mxu0 0.0
    %86 = vmatpush1.msra.mxu0 %v78
    %87 = vmatprep.subr.mxu0 0.0
    %88 = vmatpush1.msra.mxu0 %v77
    %89 = vmatprep.subr.mxu0 0.0
    %90 = vmatpush1.msra.mxu0 %v76
    %91 = vmatprep.subr.mxu0 0.0
    %92 = vmatpush1.msra.mxu0 %v75
    %93 = vmatprep.subr.mxu0 0.0
    %94 = vmatpush1.msra.mxu0 %v74
    %95 = vmatprep.subr.mxu0 0.0
    %96 = vmatpush1.msra.mxu0 %v73
    %97 = vmatprep.subr.mxu0 0.0
    %98 = vmatpush1.msra.mxu0 %v72
    %99 = vmatprep.subr.mxu0 0.0
    %100 = vmatpush1.msra.mxu0 %v71
    %101 = vmatprep.subr.mxu0 0.0
    %102 = vmatpush1.msra.mxu0 %v70
    %103 = vmatprep.subr.mxu0 0.0
    %104 = vmatpush1.msra.mxu0 %v69
    %105 = vmatprep.subr.mxu0 0.0
    %106 = vmatpush1.msra.mxu0 %v68
    %107 = vmatprep.subr.mxu0 0.0
    %108 = vmatpush1.msra.mxu0 %v67
    %109 = vmatprep.subr.mxu0 0.0
    %110 = vmatpush1.msra.mxu0 %v66
    %111 = vmatprep.subr.mxu0 0.0
    %112 = vmatpush1.msra.mxu0 %v65
    %113 = vmatprep.subr.mxu0 0.0
    %114 = vmatpush2.msra.mxu0 0.0
    %115 = vmatprep.subr.mxu0 0.0
    %116 = vmatpush2.msra.mxu0 0.0
    %117 = vmatprep.subr.mxu0 0.0
    %118 = vmatpush2.msra.mxu0 0.0
    %119 = vmatprep.subr.mxu0 0.0
    %120 = vmatpush2.msra.mxu0 0.0
    %121 = vmatprep.subr.mxu0 0.0
    %122 = vmatpush2.msra.mxu0 0.0
    %123 = vmatprep.subr.mxu0 0.0
    %124 = vmatpush2.msra.mxu0 0.0
    %125 = vmatprep.subr.mxu0 0.0
    %126 = vmatpush2.msra.mxu0 0.0
    %127 = vmatprep.subr.mxu0 0.0
    %128 = vmatpush2.msra.mxu0 0.0
    %129 = vmatprep.subr.mxu0 0.0
    %130 = vmatpush2.msra.mxu0 0.0
    %131 = vmatprep.subr.mxu0 0.0
    %132 = vmatpush2.msra.mxu0 0.0
    %133 = vmatprep.subr.mxu0 0.0
    %134 = vmatpush2.msra.mxu0 0.0
    %135 = vmatprep.subr.mxu0 0.0
    %136 = vmatpush2.msra.mxu0 0.0
    %137 = vmatprep.subr.mxu0 0.0
    %138 = vmatpush2.msra.mxu0 0.0
    %139 = vmatprep.subr.mxu0 0.0
    %140 = vmatpush2.msra.mxu0 0.0
    %141 = vmatprep.subr.mxu0 0.0
    %142 = vmatpush2.msra.mxu0 0.0
    %143 = vmatprep.subr.mxu0 0.0
    %144 = vmatpush2.msra.mxu0 0.0
    %145 = vmatprep.mubr.f32.mxu0 0.0
    %146 = vmatmul.mubr.f32.gmra.mxu0 %v57
    %v147 = vpop.f32.mrf.mxu0
    %v148 = vadd.f32 0.0, %v147
    %v149 = vpop.f32.mrf.mxu0
    %150 = vmatprep.mubr.f32.mxu0 0.0
    %151 = vmatmul.mubr.f32.gmra.mxu0 %v58
    %v152 = vpop.f32.mrf.mxu0
    %v153 = vadd.f32 0.0, %v152
    %v154 = vpop.f32.mrf.mxu0
    %155 = vmatprep.mubr.f32.mxu0 0.0
    %156 = vmatmul.mubr.f32.gmra.mxu0 %v59
    %v157 = vpop.f32.mrf.mxu0
    %v158 = vadd.f32 0.0, %v157
    %v159 = vpop.f32.mrf.mxu0
    %160 = vmatprep.mubr.f32.mxu0 0.0
    %161 = vmatmul.mubr.f32.gmra.mxu0 %v60
    %v162 = vpop.f32.mrf.mxu0
    %v163 = vadd.f32 0.0, %v162
    %v164 = vpop.f32.mrf.mxu0
    %165 = vmatprep.mubr.f32.mxu0 0.0
    %166 = vmatmul.mubr.f32.gmra.mxu0 %v61
    %v167 = vpop.f32.mrf.mxu0
    %v168 = vadd.f32 0.0, %v167
    %v169 = vpop.f32.mrf.mxu0
    %170 = vmatprep.mubr.f32.mxu0 0.0
    %171 = vmatmul.mubr.f32.gmra.mxu0 %v62
    %v172 = vpop.f32.mrf.mxu0
    %v173 = vadd.f32 0.0, %v172
    %v174 = vpop.f32.mrf.mxu0
    %175 = vmatprep.mubr.f32.mxu0 0.0
    %176 = vmatmul.mubr.f32.gmra.mxu0 %v63
    %v177 = vpop.f32.mrf.mxu0
    %v178 = vadd.f32 0.0, %v177
    %v179 = vpop.f32.mrf.mxu0
    %180 = vmatprep.mubr.f32.mxu0 0.0
    %181 = vmatmul.mubr.f32.gmra.mxu0 %v64
    %v182 = vpop.f32.mrf.mxu0
    %v183 = vadd.f32 0.0, %v182
    %v184 = vpop.f32.mrf.mxu0
    %185 = vdwg.mxu0
    %v186 = vld [vmem:[%s0] sm:$0xff]
    %v187 = vld [vmem:[%s0 + $0x8] sm:$0xff]
    %v188 = vld [vmem:[%s0 + $0x10] sm:$0xff]
    %v189 = vld [vmem:[%s0 + $0x18] sm:$0xff]
    %v190 = vld [vmem:[%s0 + $0x20] sm:$0xff]
    %v191 = vld [vmem:[%s0 + $0x28] sm:$0xff]
    %v192 = vld [vmem:[%s0 + $0x30] sm:$0xff]
    %v193 = vld [vmem:[%s0 + $0x38] sm:$0xff]
    %v194 = vld [vmem:[%s0 + $0x40] sm:$0xff]
    %v195 = vld [vmem:[%s0 + $0x48] sm:$0xff]
    %v196 = vld [vmem:[%s0 + $0x50] sm:$0xff]
    %v197 = vld [vmem:[%s0 + $0x58] sm:$0xff]
    %v198 = vld [vmem:[%s0 + $0x60] sm:$0xff]
    %v199 = vld [vmem:[%s0 + $0x68] sm:$0xff]
    %v200 = vld [vmem:[%s0 + $0x70] sm:$0xff]
    %v201 = vld [vmem:[%s0 + $0x78] sm:$0xff]
    %v202 = vld [vmem:[%s0 + $0x80] sm:$0xff]
    %v203 = vld [vmem:[%s0 + $0x88] sm:$0xff]
    %v204 = vld [vmem:[%s0 + $0x90] sm:$0xff]
    %v205 = vld [vmem:[%s0 + $0x98] sm:$0xff]
    %v206 = vld [vmem:[%s0 + $0xa0] sm:$0xff]
    %v207 = vld [vmem:[%s0 + $0xa8] sm:$0xff]
    %v208 = vld [vmem:[%s0 + $0xb0] sm:$0xff]
    %v209 = vld [vmem:[%s0 + $0xb8] sm:$0xff]
    %v210 = vld [vmem:[%s0 + $0xc0] sm:$0xff]
    %v211 = vld [vmem:[%s0 + $0xc8] sm:$0xff]
    %v212 = vld [vmem:[%s0 + $0xd0] sm:$0xff]
    %v213 = vld [vmem:[%s0 + $0xd8] sm:$0xff]
    %v214 = vld [vmem:[%s0 + $0xe0] sm:$0xff]
    %v215 = vld [vmem:[%s0 + $0xe8] sm:$0xff]
    %v216 = vld [vmem:[%s0 + $0xf0] sm:$0xff]
    %v217 = vld [vmem:[%s0 + $0xf8] sm:$0xff]
    %v218 = vld [vmem:[%s0 + $0x100] sm:$0xff]
    %v219 = vld [vmem:[%s0 + $0x108] sm:$0xff]
    %v220 = vld [vmem:[%s0 + $0x110] sm:$0xff]
    %v221 = vld [vmem:[%s0 + $0x118] sm:$0xff]
    %v222 = vld [vmem:[%s0 + $0x120] sm:$0xff]
    %v223 = vld [vmem:[%s0 + $0x128] sm:$0xff]
    %v224 = vld [vmem:[%s0 + $0x130] sm:$0xff]
    %v225 = vld [vmem:[%s0 + $0x138] sm:$0xff]
    %v226 = vld [vmem:[%s0 + $0x140] sm:$0xff]
    %v227 = vld [vmem:[%s0 + $0x148] sm:$0xff]
    %v228 = vld [vmem:[%s0 + $0x150] sm:$0xff]
    %v229 = vld [vmem:[%s0 + $0x158] sm:$0xff]
    %v230 = vld [vmem:[%s0 + $0x160] sm:$0xff]
    %v231 = vld [vmem:[%s0 + $0x168] sm:$0xff]
    %v232 = vld [vmem:[%s0 + $0x170] sm:$0xff]
    %v233 = vld [vmem:[%s0 + $0x178] sm:$0xff]
    %v234 = vld [vmem:[%s0 + $0x180] sm:$0xff]
    %v235 = vld [vmem:[%s0 + $0x188] sm:$0xff]
    %v236 = vld [vmem:[%s0 + $0x190] sm:$0xff]
    %v237 = vld [vmem:[%s0 + $0x198] sm:$0xff]
    %v238 = vld [vmem:[%s0 + $0x1a0] sm:$0xff]
    %v239 = vld [vmem:[%s0 + $0x1a8] sm:$0xff]
    %v240 = vld [vmem:[%s0 + $0x1b0] sm:$0xff]
    %v241 = vld [vmem:[%s0 + $0x1b8] sm:$0xff]
    %v242 = vld [vmem:[%s0 + $0x1c0] sm:$0xff]
    %v243 = vld [vmem:[%s0 + $0x1c8] sm:$0xff]
    %v244 = vld [vmem:[%s0 + $0x1d0] sm:$0xff]
    %v245 = vld [vmem:[%s0 + $0x1d8] sm:$0xff]
    %v246 = vld [vmem:[%s0 + $0x1e0] sm:$0xff]
    %v247 = vld [vmem:[%s0 + $0x1e8] sm:$0xff]
    %v248 = vld [vmem:[%s0 + $0x1f0] sm:$0xff]
    %v249 = vld [vmem:[%s0 + $0x1f8] sm:$0xff]
    %v250 = vld [vmem:[%s0 + $0x200] sm:$0xff]
    %v251 = vld [vmem:[%s0 + $0x208] sm:$0xff]
    %v252 = vld [vmem:[%s0 + $0x210] sm:$0xff]
    %v253 = vld [vmem:[%s0 + $0x218] sm:$0xff]
    %v254 = vld [vmem:[%s0 + $0x220] sm:$0xff]
    %v255 = vld [vmem:[%s0 + $0x228] sm:$0xff]
    %v256 = vld [vmem:[%s0 + $0x230] sm:$0xff]
    %v257 = vld [vmem:[%s0 + $0x238] sm:$0xff]
    %v258 = vld [vmem:[%s0 + $0x240] sm:$0xff]
    %v259 = vld [vmem:[%s0 + $0x248] sm:$0xff]
    %v260 = vld [vmem:[%s0 + $0x250] sm:$0xff]
    %v261 = vld [vmem:[%s0 + $0x258] sm:$0xff]
    %v262 = vld [vmem:[%s0 + $0x260] sm:$0xff]
    %v263 = vld [vmem:[%s0 + $0x268] sm:$0xff]
    %v264 = vld [vmem:[%s0 + $0x270] sm:$0xff]
    %v265 = vld [vmem:[%s0 + $0x278] sm:$0xff]
    %v266 = vld [vmem:[%s0 + $0x280] sm:$0xff]
    %v267 = vld [vmem:[%s0 + $0x288] sm:$0xff]
    %v268 = vld [vmem:[%s0 + $0x290] sm:$0xff]
    %v269 = vld [vmem:[%s0 + $0x298] sm:$0xff]
    %v270 = vld [vmem:[%s0 + $0x2a0] sm:$0xff]
    %v271 = vld [vmem:[%s0 + $0x2a8] sm:$0xff]
    %v272 = vld [vmem:[%s0 + $0x2b0] sm:$0xff]
    %v273 = vld [vmem:[%s0 + $0x2b8] sm:$0xff]
    %v274 = vld [vmem:[%s0 + $0x2c0] sm:$0xff]
    %v275 = vld [vmem:[%s0 + $0x2c8] sm:$0xff]
    %v276 = vld [vmem:[%s0 + $0x2d0] sm:$0xff]
    %v277 = vld [vmem:[%s0 + $0x2d8] sm:$0xff]
    %v278 = vld [vmem:[%s0 + $0x2e0] sm:$0xff]
    %v279 = vld [vmem:[%s0 + $0x2e8] sm:$0xff]
    %v280 = vld [vmem:[%s0 + $0x2f0] sm:$0xff]
    %v281 = vld [vmem:[%s0 + $0x2f8] sm:$0xff]
    %v282 = vld [vmem:[%s0 + $0x300] sm:$0xff]
    %v283 = vld [vmem:[%s0 + $0x308] sm:$0xff]
    %v284 = vld [vmem:[%s0 + $0x310] sm:$0xff]
    %v285 = vld [vmem:[%s0 + $0x318] sm:$0xff]
    %v286 = vld [vmem:[%s0 + $0x320] sm:$0xff]
    %v287 = vld [vmem:[%s0 + $0x328] sm:$0xff]
    %v288 = vld [vmem:[%s0 + $0x330] sm:$0xff]
    %v289 = vld [vmem:[%s0 + $0x338] sm:$0xff]
    %v290 = vld [vmem:[%s0 + $0x340] sm:$0xff]
    %v291 = vld [vmem:[%s0 + $0x348] sm:$0xff]
    %v292 = vld [vmem:[%s0 + $0x350] sm:$0xff]
    %v293 = vld [vmem:[%s0 + $0x358] sm:$0xff]
    %v294 = vld [vmem:[%s0 + $0x360] sm:$0xff]
    %v295 = vld [vmem:[%s0 + $0x368] sm:$0xff]
    %v296 = vld [vmem:[%s0 + $0x370] sm:$0xff]
    %v297 = vld [vmem:[%s0 + $0x378] sm:$0xff]
    %v298 = vld [vmem:[%s0 + $0x380] sm:$0xff]
    %v299 = vld [vmem:[%s0 + $0x388] sm:$0xff]
    %v300 = vld [vmem:[%s0 + $0x390] sm:$0xff]
    %v301 = vld [vmem:[%s0 + $0x398] sm:$0xff]
    %v302 = vld [vmem:[%s0 + $0x3a0] sm:$0xff]
    %v303 = vld [vmem:[%s0 + $0x3a8] sm:$0xff]
    %v304 = vld [vmem:[%s0 + $0x3b0] sm:$0xff]
    %v305 = vld [vmem:[%s0 + $0x3b8] sm:$0xff]
    %v306 = vld [vmem:[%s0 + $0x3c0] sm:$0xff]
    %v307 = vld [vmem:[%s0 + $0x3c8] sm:$0xff]
    %v308 = vld [vmem:[%s0 + $0x3d0] sm:$0xff]
    %v309 = vld [vmem:[%s0 + $0x3d8] sm:$0xff]
    %v310 = vld [vmem:[%s0 + $0x3e0] sm:$0xff]
    %v311 = vld [vmem:[%s0 + $0x3e8] sm:$0xff]
    %v312 = vld [vmem:[%s0 + $0x3f0] sm:$0xff]
    %v313 = vld [vmem:[%s0 + $0x3f8] sm:$0xff]
    %v314 = vld [vmem:[%s0 + $0x400] sm:$0xff]
    %v315 = vld [vmem:[%s0 + $0x408] sm:$0xff]
    %v316 = vld [vmem:[%s0 + $0x410] sm:$0xff]
    %v317 = vld [vmem:[%s0 + $0x418] sm:$0xff]
    %v318 = vld [vmem:[%s0 + $0x420] sm:$0xff]
    %v319 = vld [vmem:[%s0 + $0x428] sm:$0xff]
    %v320 = vld [vmem:[%s0 + $0x430] sm:$0xff]
    %v321 = vld [vmem:[%s0 + $0x438] sm:$0xff]
    %v322 = vld [vmem:[%s0 + $0x440] sm:$0xff]
    %v323 = vld [vmem:[%s0 + $0x448] sm:$0xff]
    %v324 = vld [vmem:[%s0 + $0x450] sm:$0xff]
    %v325 = vld [vmem:[%s0 + $0x458] sm:$0xff]
    %v326 = vld [vmem:[%s0 + $0x460] sm:$0xff]
    %v327 = vld [vmem:[%s0 + $0x468] sm:$0xff]
    %v328 = vld [vmem:[%s0 + $0x470] sm:$0xff]
    %v329 = vld [vmem:[%s0 + $0x478] sm:$0xff]
    %v330 = vld [vmem:[%s0 + $0x480] sm:$0xff]
    %v331 = vld [vmem:[%s0 + $0x488] sm:$0xff]
    %v332 = vld [vmem:[%s0 + $0x490] sm:$0xff]
    %v333 = vld [vmem:[%s0 + $0x498] sm:$0xff]
    %v334 = vld [vmem:[%s0 + $0x4a0] sm:$0xff]
    %v335 = vld [vmem:[%s0 + $0x4a8] sm:$0xff]
    %v336 = vld [vmem:[%s0 + $0x4b0] sm:$0xff]
    %v337 = vld [vmem:[%s0 + $0x4b8] sm:$0xff]
    %v338 = vld [vmem:[%s0 + $0x4c0] sm:$0xff]
    %v339 = vld [vmem:[%s0 + $0x4c8] sm:$0xff]
    %v340 = vld [vmem:[%s0 + $0x4d0] sm:$0xff]
    %v341 = vld [vmem:[%s0 + $0x4d8] sm:$0xff]
    %v342 = vld [vmem:[%s0 + $0x4e0] sm:$0xff]
    %v343 = vld [vmem:[%s0 + $0x4e8] sm:$0xff]
    %v344 = vld [vmem:[%s0 + $0x4f0] sm:$0xff]
    %v345 = vld [vmem:[%s0 + $0x4f8] sm:$0xff]
    %v346 = vld [vmem:[%s0 + $0x500] sm:$0xff]
    %v347 = vld [vmem:[%s0 + $0x508] sm:$0xff]
    %v348 = vld [vmem:[%s0 + $0x510] sm:$0xff]
    %v349 = vld [vmem:[%s0 + $0x518] sm:$0xff]
    %v350 = vld [vmem:[%s0 + $0x520] sm:$0xff]
    %v351 = vld [vmem:[%s0 + $0x528] sm:$0xff]
    %v352 = vld [vmem:[%s0 + $0x530] sm:$0xff]
    %v353 = vld [vmem:[%s0 + $0x538] sm:$0xff]
    %v354 = vld [vmem:[%s0 + $0x540] sm:$0xff]
    %v355 = vld [vmem:[%s0 + $0x548] sm:$0xff]
    %v356 = vld [vmem:[%s0 + $0x550] sm:$0xff]
    %v357 = vld [vmem:[%s0 + $0x558] sm:$0xff]
    %v358 = vld [vmem:[%s0 + $0x560] sm:$0xff]
    %v359 = vld [vmem:[%s0 + $0x568] sm:$0xff]
    %v360 = vld [vmem:[%s0 + $0x570] sm:$0xff]
    %v361 = vld [vmem:[%s0 + $0x578] sm:$0xff]
    %v362 = vld [vmem:[%s0 + $0x580] sm:$0xff]
    %v363 = vld [vmem:[%s0 + $0x588] sm:$0xff]
    %v364 = vld [vmem:[%s0 + $0x590] sm:$0xff]
    %v365 = vld [vmem:[%s0 + $0x598] sm:$0xff]
    %v366 = vld [vmem:[%s0 + $0x5a0] sm:$0xff]
    %v367 = vld [vmem:[%s0 + $0x5a8] sm:$0xff]
    %v368 = vld [vmem:[%s0 + $0x5b0] sm:$0xff]
    %v369 = vld [vmem:[%s0 + $0x5b8] sm:$0xff]
    %v370 = vld [vmem:[%s0 + $0x5c0] sm:$0xff]
    %v371 = vld [vmem:[%s0 + $0x5c8] sm:$0xff]
    %v372 = vld [vmem:[%s0 + $0x5d0] sm:$0xff]
    %v373 = vld [vmem:[%s0 + $0x5d8] sm:$0xff]
    %v374 = vld [vmem:[%s0 + $0x5e0] sm:$0xff]
    %v375 = vld [vmem:[%s0 + $0x5e8] sm:$0xff]
    %v376 = vld [vmem:[%s0 + $0x5f0] sm:$0xff]
    %v377 = vld [vmem:[%s0 + $0x5f8] sm:$0xff]
    %v378 = vld [vmem:[%s0 + $0x600] sm:$0xff]
    %v379 = vld [vmem:[%s0 + $0x608] sm:$0xff]
    %v380 = vld [vmem:[%s0 + $0x610] sm:$0xff]
    %v381 = vld [vmem:[%s0 + $0x618] sm:$0xff]
    %v382 = vld [vmem:[%s0 + $0x620] sm:$0xff]
    %v383 = vld [vmem:[%s0 + $0x628] sm:$0xff]
    %v384 = vld [vmem:[%s0 + $0x630] sm:$0xff]
    %v385 = vld [vmem:[%s0 + $0x638] sm:$0xff]
    %v386 = vld [vmem:[%s0 + $0x640] sm:$0xff]
    %v387 = vld [vmem:[%s0 + $0x648] sm:$0xff]
    %v388 = vld [vmem:[%s0 + $0x650] sm:$0xff]
    %v389 = vld [vmem:[%s0 + $0x658] sm:$0xff]
    %v390 = vld [vmem:[%s0 + $0x660] sm:$0xff]
    %v391 = vld [vmem:[%s0 + $0x668] sm:$0xff]
    %v392 = vld [vmem:[%s0 + $0x670] sm:$0xff]
    %v393 = vld [vmem:[%s0 + $0x678] sm:$0xff]
    %v394 = vld [vmem:[%s0 + $0x680] sm:$0xff]
    %v395 = vld [vmem:[%s0 + $0x688] sm:$0xff]
    %v396 = vld [vmem:[%s0 + $0x690] sm:$0xff]
    %v397 = vld [vmem:[%s0 + $0x698] sm:$0xff]
    %v398 = vld [vmem:[%s0 + $0x6a0] sm:$0xff]
    %v399 = vld [vmem:[%s0 + $0x6a8] sm:$0xff]
    %v400 = vld [vmem:[%s0 + $0x6b0] sm:$0xff]
    %v401 = vld [vmem:[%s0 + $0x6b8] sm:$0xff]
    %v402 = vld [vmem:[%s0 + $0x6c0] sm:$0xff]
    %v403 = vld [vmem:[%s0 + $0x6c8] sm:$0xff]
    %v404 = vld [vmem:[%s0 + $0x6d0] sm:$0xff]
    %v405 = vld [vmem:[%s0 + $0x6d8] sm:$0xff]
    %v406 = vld [vmem:[%s0 + $0x6e0] sm:$0xff]
    %v407 = vld [vmem:[%s0 + $0x6e8] sm:$0xff]
    %v408 = vld [vmem:[%s0 + $0x6f0] sm:$0xff]
    %v409 = vld [vmem:[%s0 + $0x6f8] sm:$0xff]
    %v410 = vld [vmem:[%s0 + $0x700] sm:$0xff]
    %v411 = vld [vmem:[%s0 + $0x708] sm:$0xff]
    %v412 = vld [vmem:[%s0 + $0x710] sm:$0xff]
    %v413 = vld [vmem:[%s0 + $0x718] sm:$0xff]
    %v414 = vld [vmem:[%s0 + $0x720] sm:$0xff]
    %v415 = vld [vmem:[%s0 + $0x728] sm:$0xff]
    %v416 = vld [vmem:[%s0 + $0x730] sm:$0xff]
    %v417 = vld [vmem:[%s0 + $0x738] sm:$0xff]
    %v418 = vld [vmem:[%s0 + $0x740] sm:$0xff]
    %v419 = vld [vmem:[%s0 + $0x748] sm:$0xff]
    %v420 = vld [vmem:[%s0 + $0x750] sm:$0xff]
    %v421 = vld [vmem:[%s0 + $0x758] sm:$0xff]
    %v422 = vld [vmem:[%s0 + $0x760] sm:$0xff]
    %v423 = vld [vmem:[%s0 + $0x768] sm:$0xff]
    %v424 = vld [vmem:[%s0 + $0x770] sm:$0xff]
    %v425 = vld [vmem:[%s0 + $0x778] sm:$0xff]
    %v426 = vld [vmem:[%s0 + $0x780] sm:$0xff]
    %v427 = vld [vmem:[%s0 + $0x788] sm:$0xff]
    %v428 = vld [vmem:[%s0 + $0x790] sm:$0xff]
    %v429 = vld [vmem:[%s0 + $0x798] sm:$0xff]
    %v430 = vld [vmem:[%s0 + $0x7a0] sm:$0xff]
    %v431 = vld [vmem:[%s0 + $0x7a8] sm:$0xff]
    %v432 = vld [vmem:[%s0 + $0x7b0] sm:$0xff]
    %v433 = vld [vmem:[%s0 + $0x7b8] sm:$0xff]
    %v434 = vld [vmem:[%s0 + $0x7c0] sm:$0xff]
    %v435 = vld [vmem:[%s0 + $0x7c8] sm:$0xff]
    %v436 = vld [vmem:[%s0 + $0x7d0] sm:$0xff]
    %v437 = vld [vmem:[%s0 + $0x7d8] sm:$0xff]
    %v438 = vld [vmem:[%s0 + $0x7e0] sm:$0xff]
    %v439 = vld [vmem:[%s0 + $0x7e8] sm:$0xff]
    %v440 = vld [vmem:[%s0 + $0x7f0] sm:$0xff]
    %v441 = vld [vmem:[%s0 + $0x7f8] sm:$0xff]
    %v450 = vcombine.high %v148, %v148
    %v452 = vunpack.c.l.s4 1966171168
    %v453 = vunpack.c.0.s8 %v452
    %v454 = vlaneseq
    %v455 = vshrl.u32 %v454, 7
    %v456 = vsub.s32 %v453, %v455
    %v457 = vrot.slane %v148, %v456
    %v459 = vunpack.c.l.s4 1966171168
    %v460 = vunpack.c.0.s8 %v459
    %v461 = vlaneseq
    %v462 = vshrl.u32 %v461, 7
    %v463 = vsub.s32 %v460, %v462
    %v464 = vrot.slane %v450, %v463
    %v465 = vcombine.high %v457, %v457
    %v466 = vcombine.high %v464, %v464
    %v468 = vunpack.c.l.s4 1966171168
    %v469 = vunpack.c.0.s8 %v468
    %v470 = vlaneseq
    %v471 = vshrl.u32 %v470, 7
    %v472 = vsub.s32 %v469, %v471
    %v473 = vrot.slane %v457, %v472
    %v475 = vunpack.c.l.s4 1966171168
    %v476 = vunpack.c.0.s8 %v475
    %v477 = vlaneseq
    %v478 = vshrl.u32 %v477, 7
    %v479 = vsub.s32 %v476, %v478
    %v480 = vrot.slane %v464, %v479
    %v482 = vunpack.c.l.s4 1966171168
    %v483 = vunpack.c.0.s8 %v482
    %v484 = vlaneseq
    %v485 = vshrl.u32 %v484, 7
    %v486 = vsub.s32 %v483, %v485
    %v487 = vrot.slane %v465, %v486
    %v489 = vunpack.c.l.s4 1966171168
    %v490 = vunpack.c.0.s8 %v489
    %v491 = vlaneseq
    %v492 = vshrl.u32 %v491, 7
    %v493 = vsub.s32 %v490, %v492
    %v494 = vrot.slane %v466, %v493
    %v495 = vcombine.high %v473, %v473
    %v496 = vcombine.high %v480, %v480
    %v497 = vcombine.high %v487, %v487
    %v498 = vcombine.high %v494, %v494
    %v499 = vcombine.high %v153, %v153
    %v501 = vunpack.c.l.s4 1966171168
    %v502 = vunpack.c.0.s8 %v501
    %v503 = vlaneseq
    %v504 = vshrl.u32 %v503, 7
    %v505 = vsub.s32 %v502, %v504
    %v506 = vrot.slane %v153, %v505
    %v508 = vunpack.c.l.s4 1966171168
    %v509 = vunpack.c.0.s8 %v508
    %v510 = vlaneseq
    %v511 = vshrl.u32 %v510, 7
    %v512 = vsub.s32 %v509, %v511
    %v513 = vrot.slane %v499, %v512
    %v514 = vcombine.high %v506, %v506
    %v515 = vcombine.high %v513, %v513
    %v517 = vunpack.c.l.s4 1966171168
    %v518 = vunpack.c.0.s8 %v517
    %v519 = vlaneseq
    %v520 = vshrl.u32 %v519, 7
    %v521 = vsub.s32 %v518, %v520
    %v522 = vrot.slane %v506, %v521
    %v524 = vunpack.c.l.s4 1966171168
    %v525 = vunpack.c.0.s8 %v524
    %v526 = vlaneseq
    %v527 = vshrl.u32 %v526, 7
    %v528 = vsub.s32 %v525, %v527
    %v529 = vrot.slane %v513, %v528
    %v531 = vunpack.c.l.s4 1966171168
    %v532 = vunpack.c.0.s8 %v531
    %v533 = vlaneseq
    %v534 = vshrl.u32 %v533, 7
    %v535 = vsub.s32 %v532, %v534
    %v536 = vrot.slane %v514, %v535
    %v538 = vunpack.c.l.s4 1966171168
    %v539 = vunpack.c.0.s8 %v538
    %v540 = vlaneseq
    %v541 = vshrl.u32 %v540, 7
    %v542 = vsub.s32 %v539, %v541
    %v543 = vrot.slane %v515, %v542
    %v544 = vcombine.high %v522, %v522
    %v545 = vcombine.high %v529, %v529
    %v546 = vcombine.high %v536, %v536
    %v547 = vcombine.high %v543, %v543
    %v548 = vcombine.high %v158, %v158
    %v550 = vunpack.c.l.s4 1966171168
    %v551 = vunpack.c.0.s8 %v550
    %v552 = vlaneseq
    %v553 = vshrl.u32 %v552, 7
    %v554 = vsub.s32 %v551, %v553
    %v555 = vrot.slane %v158, %v554
    %v557 = vunpack.c.l.s4 1966171168
    %v558 = vunpack.c.0.s8 %v557
    %v559 = vlaneseq
    %v560 = vshrl.u32 %v559, 7
    %v561 = vsub.s32 %v558, %v560
    %v562 = vrot.slane %v548, %v561
    %v563 = vcombine.high %v555, %v555
    %v564 = vcombine.high %v562, %v562
    %v566 = vunpack.c.l.s4 1966171168
    %v567 = vunpack.c.0.s8 %v566
    %v568 = vlaneseq
    %v569 = vshrl.u32 %v568, 7
    %v570 = vsub.s32 %v567, %v569
    %v571 = vrot.slane %v555, %v570
    %v573 = vunpack.c.l.s4 1966171168
    %v574 = vunpack.c.0.s8 %v573
    %v575 = vlaneseq
    %v576 = vshrl.u32 %v575, 7
    %v577 = vsub.s32 %v574, %v576
    %v578 = vrot.slane %v562, %v577
    %v580 = vunpack.c.l.s4 1966171168
    %v581 = vunpack.c.0.s8 %v580
    %v582 = vlaneseq
    %v583 = vshrl.u32 %v582, 7
    %v584 = vsub.s32 %v581, %v583
    %v585 = vrot.slane %v563, %v584
    %v587 = vunpack.c.l.s4 1966171168
    %v588 = vunpack.c.0.s8 %v587
    %v589 = vlaneseq
    %v590 = vshrl.u32 %v589, 7
    %v591 = vsub.s32 %v588, %v590
    %v592 = vrot.slane %v564, %v591
    %v593 = vcombine.high %v571, %v571
    %v594 = vcombine.high %v578, %v578
    %v595 = vcombine.high %v585, %v585
    %v596 = vcombine.high %v592, %v592
    %v597 = vcombine.high %v163, %v163
    %v599 = vunpack.c.l.s4 1966171168
    %v600 = vunpack.c.0.s8 %v599
    %v601 = vlaneseq
    %v602 = vshrl.u32 %v601, 7
    %v603 = vsub.s32 %v600, %v602
    %v604 = vrot.slane %v163, %v603
    %v606 = vunpack.c.l.s4 1966171168
    %v607 = vunpack.c.0.s8 %v606
    %v608 = vlaneseq
    %v609 = vshrl.u32 %v608, 7
    %v610 = vsub.s32 %v607, %v609
    %v611 = vrot.slane %v597, %v610
    %v612 = vcombine.high %v604, %v604
    %v613 = vcombine.high %v611, %v611
    %v615 = vunpack.c.l.s4 1966171168
    %v616 = vunpack.c.0.s8 %v615
    %v617 = vlaneseq
    %v618 = vshrl.u32 %v617, 7
    %v619 = vsub.s32 %v616, %v618
    %v620 = vrot.slane %v604, %v619
    %v622 = vunpack.c.l.s4 1966171168
    %v623 = vunpack.c.0.s8 %v622
    %v624 = vlaneseq
    %v625 = vshrl.u32 %v624, 7
    %v626 = vsub.s32 %v623, %v625
    %v627 = vrot.slane %v611, %v626
    %v629 = vunpack.c.l.s4 1966171168
    %v630 = vunpack.c.0.s8 %v629
    %v631 = vlaneseq
    %v632 = vshrl.u32 %v631, 7
    %v633 = vsub.s32 %v630, %v632
    %v634 = vrot.slane %v612, %v633
    %v636 = vunpack.c.l.s4 1966171168
    %v637 = vunpack.c.0.s8 %v636
    %v638 = vlaneseq
    %v639 = vshrl.u32 %v638, 7
    %v640 = vsub.s32 %v637, %v639
    %v641 = vrot.slane %v613, %v640
    %v642 = vcombine.high %v620, %v620
    %v643 = vcombine.high %v627, %v627
    %v644 = vcombine.high %v634, %v634
    %v645 = vcombine.high %v641, %v641
    %v646 = vcombine.high %v168, %v168
    %v648 = vunpack.c.l.s4 1966171168
    %v649 = vunpack.c.0.s8 %v648
    %v650 = vlaneseq
    %v651 = vshrl.u32 %v650, 7
    %v652 = vsub.s32 %v649, %v651
    %v653 = vrot.slane %v168, %v652
    %v655 = vunpack.c.l.s4 1966171168
    %v656 = vunpack.c.0.s8 %v655
    %v657 = vlaneseq
    %v658 = vshrl.u32 %v657, 7
    %v659 = vsub.s32 %v656, %v658
    %v660 = vrot.slane %v646, %v659
    %v661 = vcombine.high %v653, %v653
    %v662 = vcombine.high %v660, %v660
    %v664 = vunpack.c.l.s4 1966171168
    %v665 = vunpack.c.0.s8 %v664
    %v666 = vlaneseq
    %v667 = vshrl.u32 %v666, 7
    %v668 = vsub.s32 %v665, %v667
    %v669 = vrot.slane %v653, %v668
    %v671 = vunpack.c.l.s4 1966171168
    %v672 = vunpack.c.0.s8 %v671
    %v673 = vlaneseq
    %v674 = vshrl.u32 %v673, 7
    %v675 = vsub.s32 %v672, %v674
    %v676 = vrot.slane %v660, %v675
    %v678 = vunpack.c.l.s4 1966171168
    %v679 = vunpack.c.0.s8 %v678
    %v680 = vlaneseq
    %v681 = vshrl.u32 %v680, 7
    %v682 = vsub.s32 %v679, %v681
    %v683 = vrot.slane %v661, %v682
    %v685 = vunpack.c.l.s4 1966171168
    %v686 = vunpack.c.0.s8 %v685
    %v687 = vlaneseq
    %v688 = vshrl.u32 %v687, 7
    %v689 = vsub.s32 %v686, %v688
    %v690 = vrot.slane %v662, %v689
    %v691 = vcombine.high %v669, %v669
    %v692 = vcombine.high %v676, %v676
    %v693 = vcombine.high %v683, %v683
    %v694 = vcombine.high %v690, %v690
    %v695 = vcombine.high %v173, %v173
    %v697 = vunpack.c.l.s4 1966171168
    %v698 = vunpack.c.0.s8 %v697
    %v699 = vlaneseq
    %v700 = vshrl.u32 %v699, 7
    %v701 = vsub.s32 %v698, %v700
    %v702 = vrot.slane %v173, %v701
    %v704 = vunpack.c.l.s4 1966171168
    %v705 = vunpack.c.0.s8 %v704
    %v706 = vlaneseq
    %v707 = vshrl.u32 %v706, 7
    %v708 = vsub.s32 %v705, %v707
    %v709 = vrot.slane %v695, %v708
    %v710 = vcombine.high %v702, %v702
    %v711 = vcombine.high %v709, %v709
    %v713 = vunpack.c.l.s4 1966171168
    %v714 = vunpack.c.0.s8 %v713
    %v715 = vlaneseq
    %v716 = vshrl.u32 %v715, 7
    %v717 = vsub.s32 %v714, %v716
    %v718 = vrot.slane %v702, %v717
    %v720 = vunpack.c.l.s4 1966171168
    %v721 = vunpack.c.0.s8 %v720
    %v722 = vlaneseq
    %v723 = vshrl.u32 %v722, 7
    %v724 = vsub.s32 %v721, %v723
    %v725 = vrot.slane %v709, %v724
    %v727 = vunpack.c.l.s4 1966171168
    %v728 = vunpack.c.0.s8 %v727
    %v729 = vlaneseq
    %v730 = vshrl.u32 %v729, 7
    %v731 = vsub.s32 %v728, %v730
    %v732 = vrot.slane %v710, %v731
    %v734 = vunpack.c.l.s4 1966171168
    %v735 = vunpack.c.0.s8 %v734
    %v736 = vlaneseq
    %v737 = vshrl.u32 %v736, 7
    %v738 = vsub.s32 %v735, %v737
    %v739 = vrot.slane %v711, %v738
    %v740 = vcombine.high %v718, %v718
    %v741 = vcombine.high %v725, %v725
    %v742 = vcombine.high %v732, %v732
    %v743 = vcombine.high %v739, %v739
    %v744 = vcombine.high %v178, %v178
    %v746 = vunpack.c.l.s4 1966171168
    %v747 = vunpack.c.0.s8 %v746
    %v748 = vlaneseq
    %v749 = vshrl.u32 %v748, 7
    %v750 = vsub.s32 %v747, %v749
    %v751 = vrot.slane %v178, %v750
    %v753 = vunpack.c.l.s4 1966171168
    %v754 = vunpack.c.0.s8 %v753
    %v755 = vlaneseq
    %v756 = vshrl.u32 %v755, 7
    %v757 = vsub.s32 %v754, %v756
    %v758 = vrot.slane %v744, %v757
    %v759 = vcombine.high %v751, %v751
    %v760 = vcombine.high %v758, %v758
    %v762 = vunpack.c.l.s4 1966171168
    %v763 = vunpack.c.0.s8 %v762
    %v764 = vlaneseq
    %v765 = vshrl.u32 %v764, 7
    %v766 = vsub.s32 %v763, %v765
    %v767 = vrot.slane %v751, %v766
    %v769 = vunpack.c.l.s4 1966171168
    %v770 = vunpack.c.0.s8 %v769
    %v771 = vlaneseq
    %v772 = vshrl.u32 %v771, 7
    %v773 = vsub.s32 %v770, %v772
    %v774 = vrot.slane %v758, %v773
    %v776 = vunpack.c.l.s4 1966171168
    %v777 = vunpack.c.0.s8 %v776
    %v778 = vlaneseq
    %v779 = vshrl.u32 %v778, 7
    %v780 = vsub.s32 %v777, %v779
    %v781 = vrot.slane %v759, %v780
    %v783 = vunpack.c.l.s4 1966171168
    %v784 = vunpack.c.0.s8 %v783
    %v785 = vlaneseq
    %v786 = vshrl.u32 %v785, 7
    %v787 = vsub.s32 %v784, %v786
    %v788 = vrot.slane %v760, %v787
    %v789 = vcombine.high %v767, %v767
    %v790 = vcombine.high %v774, %v774
    %v791 = vcombine.high %v781, %v781
    %v792 = vcombine.high %v788, %v788
    %v793 = vcombine.high %v183, %v183
    %v795 = vunpack.c.l.s4 1966171168
    %v796 = vunpack.c.0.s8 %v795
    %v797 = vlaneseq
    %v798 = vshrl.u32 %v797, 7
    %v799 = vsub.s32 %v796, %v798
    %v800 = vrot.slane %v183, %v799
    %v802 = vunpack.c.l.s4 1966171168
    %v803 = vunpack.c.0.s8 %v802
    %v804 = vlaneseq
    %v805 = vshrl.u32 %v804, 7
    %v806 = vsub.s32 %v803, %v805
    %v807 = vrot.slane %v793, %v806
    %v808 = vcombine.high %v800, %v800
    %v809 = vcombine.high %v807, %v807
    %v811 = vunpack.c.l.s4 1966171168
    %v812 = vunpack.c.0.s8 %v811
    %v813 = vlaneseq
    %v814 = vshrl.u32 %v813, 7
    %v815 = vsub.s32 %v812, %v814
    %v816 = vrot.slane %v800, %v815
    %v818 = vunpack.c.l.s4 1966171168
    %v819 = vunpack.c.0.s8 %v818
    %v820 = vlaneseq
    %v821 = vshrl.u32 %v820, 7
    %v822 = vsub.s32 %v819, %v821
    %v823 = vrot.slane %v807, %v822
    %v825 = vunpack.c.l.s4 1966171168
    %v826 = vunpack.c.0.s8 %v825
    %v827 = vlaneseq
    %v828 = vshrl.u32 %v827, 7
    %v829 = vsub.s32 %v826, %v828
    %v830 = vrot.slane %v808, %v829
    %v832 = vunpack.c.l.s4 1966171168
    %v833 = vunpack.c.0.s8 %v832
    %v834 = vlaneseq
    %v835 = vshrl.u32 %v834, 7
    %v836 = vsub.s32 %v833, %v835
    %v837 = vrot.slane %v809, %v836
    %v838 = vcombine.high %v816, %v816
    %v839 = vcombine.high %v823, %v823
    %v840 = vcombine.high %v830, %v830
    %v841 = vcombine.high %v837, %v837
    %v842 = vlaneseq
    %v843 = vshrl.u32 %v842, 7
    %v844 = vsub.s32 0, %v843
    %v845 = vrot.slane %v473, %v844
    %v846 = vlaneseq
    %v847 = vshrl.u32 %v846, 7
    %v848 = vsub.s32 0, %v847
    %v849 = vrot.slane %v487, %v848
    %v850 = vlaneseq
    %v851 = vshrl.u32 %v850, 7
    %v852 = vsub.s32 0, %v851
    %v853 = vrot.slane %v495, %v852
    %v854 = vlaneseq
    %v855 = vshrl.u32 %v854, 7
    %v856 = vsub.s32 0, %v855
    %v857 = vrot.slane %v497, %v856
    %v858 = vlaneseq
    %v859 = vshrl.u32 %v858, 7
    %v860 = vsub.s32 0, %v859
    %v861 = vrot.slane %v480, %v860
    %v862 = vlaneseq
    %v863 = vshrl.u32 %v862, 7
    %v864 = vsub.s32 0, %v863
    %v865 = vrot.slane %v494, %v864
    %v866 = vlaneseq
    %v867 = vshrl.u32 %v866, 7
    %v868 = vsub.s32 0, %v867
    %v869 = vrot.slane %v496, %v868
    %v870 = vlaneseq
    %v871 = vshrl.u32 %v870, 7
    %v872 = vsub.s32 0, %v871
    %v873 = vrot.slane %v498, %v872
    %v874 = vlaneseq
    %v875 = vshrl.u32 %v874, 7
    %v876 = vsub.s32 0, %v875
    %v877 = vrot.slane %v522, %v876
    %v878 = vlaneseq
    %v879 = vshrl.u32 %v878, 7
    %v880 = vsub.s32 0, %v879
    %v881 = vrot.slane %v536, %v880
    %v882 = vlaneseq
    %v883 = vshrl.u32 %v882, 7
    %v884 = vsub.s32 0, %v883
    %v885 = vrot.slane %v544, %v884
    %v886 = vlaneseq
    %v887 = vshrl.u32 %v886, 7
    %v888 = vsub.s32 0, %v887
    %v889 = vrot.slane %v546, %v888
    %v890 = vlaneseq
    %v891 = vshrl.u32 %v890, 7
    %v892 = vsub.s32 0, %v891
    %v893 = vrot.slane %v529, %v892
    %v894 = vlaneseq
    %v895 = vshrl.u32 %v894, 7
    %v896 = vsub.s32 0, %v895
    %v897 = vrot.slane %v543, %v896
    %v898 = vlaneseq
    %v899 = vshrl.u32 %v898, 7
    %v900 = vsub.s32 0, %v899
    %v901 = vrot.slane %v545, %v900
    %v902 = vlaneseq
    %v903 = vshrl.u32 %v902, 7
    %v904 = vsub.s32 0, %v903
    %v905 = vrot.slane %v547, %v904
    %v906 = vlaneseq
    %v907 = vshrl.u32 %v906, 7
    %v908 = vsub.s32 0, %v907
    %v909 = vrot.slane %v571, %v908
    %v910 = vlaneseq
    %v911 = vshrl.u32 %v910, 7
    %v912 = vsub.s32 0, %v911
    %v913 = vrot.slane %v585, %v912
    %v914 = vlaneseq
    %v915 = vshrl.u32 %v914, 7
    %v916 = vsub.s32 0, %v915
    %v917 = vrot.slane %v593, %v916
    %v918 = vlaneseq
    %v919 = vshrl.u32 %v918, 7
    %v920 = vsub.s32 0, %v919
    %v921 = vrot.slane %v595, %v920
    %v922 = vlaneseq
    %v923 = vshrl.u32 %v922, 7
    %v924 = vsub.s32 0, %v923
    %v925 = vrot.slane %v578, %v924
    %v926 = vlaneseq
    %v927 = vshrl.u32 %v926, 7
    %v928 = vsub.s32 0, %v927
    %v929 = vrot.slane %v592, %v928
    %v930 = vlaneseq
    %v931 = vshrl.u32 %v930, 7
    %v932 = vsub.s32 0, %v931
    %v933 = vrot.slane %v594, %v932
    %v934 = vlaneseq
    %v935 = vshrl.u32 %v934, 7
    %v936 = vsub.s32 0, %v935
    %v937 = vrot.slane %v596, %v936
    %v938 = vlaneseq
    %v939 = vshrl.u32 %v938, 7
    %v940 = vsub.s32 0, %v939
    %v941 = vrot.slane %v620, %v940
    %v942 = vlaneseq
    %v943 = vshrl.u32 %v942, 7
    %v944 = vsub.s32 0, %v943
    %v945 = vrot.slane %v634, %v944
    %v946 = vlaneseq
    %v947 = vshrl.u32 %v946, 7
    %v948 = vsub.s32 0, %v947
    %v949 = vrot.slane %v642, %v948
    %v950 = vlaneseq
    %v951 = vshrl.u32 %v950, 7
    %v952 = vsub.s32 0, %v951
    %v953 = vrot.slane %v644, %v952
    %v954 = vlaneseq
    %v955 = vshrl.u32 %v954, 7
    %v956 = vsub.s32 0, %v955
    %v957 = vrot.slane %v627, %v956
    %v958 = vlaneseq
    %v959 = vshrl.u32 %v958, 7
    %v960 = vsub.s32 0, %v959
    %v961 = vrot.slane %v641, %v960
    %v962 = vlaneseq
    %v963 = vshrl.u32 %v962, 7
    %v964 = vsub.s32 0, %v963
    %v965 = vrot.slane %v643, %v964
    %v966 = vlaneseq
    %v967 = vshrl.u32 %v966, 7
    %v968 = vsub.s32 0, %v967
    %v969 = vrot.slane %v645, %v968
    %v970 = vlaneseq
    %v971 = vshrl.u32 %v970, 7
    %v972 = vsub.s32 0, %v971
    %v973 = vrot.slane %v669, %v972
    %v974 = vlaneseq
    %v975 = vshrl.u32 %v974, 7
    %v976 = vsub.s32 0, %v975
    %v977 = vrot.slane %v683, %v976
    %v978 = vlaneseq
    %v979 = vshrl.u32 %v978, 7
    %v980 = vsub.s32 0, %v979
    %v981 = vrot.slane %v691, %v980
    %v982 = vlaneseq
    %v983 = vshrl.u32 %v982, 7
    %v984 = vsub.s32 0, %v983
    %v985 = vrot.slane %v693, %v984
    %v986 = vlaneseq
    %v987 = vshrl.u32 %v986, 7
    %v988 = vsub.s32 0, %v987
    %v989 = vrot.slane %v676, %v988
    %v990 = vlaneseq
    %v991 = vshrl.u32 %v990, 7
    %v992 = vsub.s32 0, %v991
    %v993 = vrot.slane %v690, %v992
    %v994 = vlaneseq
    %v995 = vshrl.u32 %v994, 7
    %v996 = vsub.s32 0, %v995
    %v997 = vrot.slane %v692, %v996
    %v998 = vlaneseq
    %v999 = vshrl.u32 %v998, 7
    %v1000 = vsub.s32 0, %v999
    %v1001 = vrot.slane %v694, %v1000
    %v1002 = vlaneseq
    %v1003 = vshrl.u32 %v1002, 7
    %v1004 = vsub.s32 0, %v1003
    %v1005 = vrot.slane %v718, %v1004
    %v1006 = vlaneseq
    %v1007 = vshrl.u32 %v1006, 7
    %v1008 = vsub.s32 0, %v1007
    %v1009 = vrot.slane %v732, %v1008
    %v1010 = vlaneseq
    %v1011 = vshrl.u32 %v1010, 7
    %v1012 = vsub.s32 0, %v1011
    %v1013 = vrot.slane %v740, %v1012
    %v1014 = vlaneseq
    %v1015 = vshrl.u32 %v1014, 7
    %v1016 = vsub.s32 0, %v1015
    %v1017 = vrot.slane %v742, %v1016
    %v1018 = vlaneseq
    %v1019 = vshrl.u32 %v1018, 7
    %v1020 = vsub.s32 0, %v1019
    %v1021 = vrot.slane %v725, %v1020
    %v1022 = vlaneseq
    %v1023 = vshrl.u32 %v1022, 7
    %v1024 = vsub.s32 0, %v1023
    %v1025 = vrot.slane %v739, %v1024
    %v1026 = vlaneseq
    %v1027 = vshrl.u32 %v1026, 7
    %v1028 = vsub.s32 0, %v1027
    %v1029 = vrot.slane %v741, %v1028
    %v1030 = vlaneseq
    %v1031 = vshrl.u32 %v1030, 7
    %v1032 = vsub.s32 0, %v1031
    %v1033 = vrot.slane %v743, %v1032
    %v1034 = vlaneseq
    %v1035 = vshrl.u32 %v1034, 7
    %v1036 = vsub.s32 0, %v1035
    %v1037 = vrot.slane %v767, %v1036
    %v1038 = vlaneseq
    %v1039 = vshrl.u32 %v1038, 7
    %v1040 = vsub.s32 0, %v1039
    %v1041 = vrot.slane %v781, %v1040
    %v1042 = vlaneseq
    %v1043 = vshrl.u32 %v1042, 7
    %v1044 = vsub.s32 0, %v1043
    %v1045 = vrot.slane %v789, %v1044
    %v1046 = vlaneseq
    %v1047 = vshrl.u32 %v1046, 7
    %v1048 = vsub.s32 0, %v1047
    %v1049 = vrot.slane %v791, %v1048
    %v1050 = vlaneseq
    %v1051 = vshrl.u32 %v1050, 7
    %v1052 = vsub.s32 0, %v1051
    %v1053 = vrot.slane %v774, %v1052
    %v1054 = vlaneseq
    %v1055 = vshrl.u32 %v1054, 7
    %v1056 = vsub.s32 0, %v1055
    %v1057 = vrot.slane %v788, %v1056
    %v1058 = vlaneseq
    %v1059 = vshrl.u32 %v1058, 7
    %v1060 = vsub.s32 0, %v1059
    %v1061 = vrot.slane %v790, %v1060
    %v1062 = vlaneseq
    %v1063 = vshrl.u32 %v1062, 7
    %v1064 = vsub.s32 0, %v1063
    %v1065 = vrot.slane %v792, %v1064
    %v1066 = vlaneseq
    %v1067 = vshrl.u32 %v1066, 7
    %v1068 = vsub.s32 0, %v1067
    %v1069 = vrot.slane %v816, %v1068
    %v1070 = vlaneseq
    %v1071 = vshrl.u32 %v1070, 7
    %v1072 = vsub.s32 0, %v1071
    %v1073 = vrot.slane %v830, %v1072
    %v1074 = vlaneseq
    %v1075 = vshrl.u32 %v1074, 7
    %v1076 = vsub.s32 0, %v1075
    %v1077 = vrot.slane %v838, %v1076
    %v1078 = vlaneseq
    %v1079 = vshrl.u32 %v1078, 7
    %v1080 = vsub.s32 0, %v1079
    %v1081 = vrot.slane %v840, %v1080
    %v1082 = vlaneseq
    %v1083 = vshrl.u32 %v1082, 7
    %v1084 = vsub.s32 0, %v1083
    %v1085 = vrot.slane %v823, %v1084
    %v1086 = vlaneseq
    %v1087 = vshrl.u32 %v1086, 7
    %v1088 = vsub.s32 0, %v1087
    %v1089 = vrot.slane %v837, %v1088
    %v1090 = vlaneseq
    %v1091 = vshrl.u32 %v1090, 7
    %v1092 = vsub.s32 0, %v1091
    %v1093 = vrot.slane %v839, %v1092
    %v1094 = vlaneseq
    %v1095 = vshrl.u32 %v1094, 7
    %v1096 = vsub.s32 0, %v1095
    %v1097 = vrot.slane %v841, %v1096
    %v1162 = vmul.f32 %v186, %v845
    %v1163 = vmul.f32 %v187, %v845
    %v1164 = vmul.f32 %v188, %v845
    %v1165 = vmul.f32 %v189, %v845
    %v1166 = vmul.f32 %v190, %v849
    %v1167 = vmul.f32 %v191, %v849
    %v1168 = vmul.f32 %v192, %v849
    %v1169 = vmul.f32 %v193, %v849
    %v1170 = vmul.f32 %v194, %v853
    %v1171 = vmul.f32 %v195, %v853
    %v1172 = vmul.f32 %v196, %v853
    %v1173 = vmul.f32 %v197, %v853
    %v1174 = vmul.f32 %v198, %v857
    %v1175 = vmul.f32 %v199, %v857
    %v1176 = vmul.f32 %v200, %v857
    %v1177 = vmul.f32 %v201, %v857
    %v1178 = vmul.f32 %v202, %v861
    %v1179 = vmul.f32 %v203, %v861
    %v1180 = vmul.f32 %v204, %v861
    %v1181 = vmul.f32 %v205, %v861
    %v1182 = vmul.f32 %v206, %v865
    %v1183 = vmul.f32 %v207, %v865
    %v1184 = vmul.f32 %v208, %v865
    %v1185 = vmul.f32 %v209, %v865
    %v1186 = vmul.f32 %v210, %v869
    %v1187 = vmul.f32 %v211, %v869
    %v1188 = vmul.f32 %v212, %v869
    %v1189 = vmul.f32 %v213, %v869
    %v1190 = vmul.f32 %v214, %v873
    %v1191 = vmul.f32 %v215, %v873
    %v1192 = vmul.f32 %v216, %v873
    %v1193 = vmul.f32 %v217, %v873
    %v1194 = vmul.f32 %v218, %v877
    %v1195 = vmul.f32 %v219, %v877
    %v1196 = vmul.f32 %v220, %v877
    %v1197 = vmul.f32 %v221, %v877
    %v1198 = vmul.f32 %v222, %v881
    %v1199 = vmul.f32 %v223, %v881
    %v1200 = vmul.f32 %v224, %v881
    %v1201 = vmul.f32 %v225, %v881
    %v1202 = vmul.f32 %v226, %v885
    %v1203 = vmul.f32 %v227, %v885
    %v1204 = vmul.f32 %v228, %v885
    %v1205 = vmul.f32 %v229, %v885
    %v1206 = vmul.f32 %v230, %v889
    %v1207 = vmul.f32 %v231, %v889
    %v1208 = vmul.f32 %v232, %v889
    %v1209 = vmul.f32 %v233, %v889
    %v1210 = vmul.f32 %v234, %v893
    %v1211 = vmul.f32 %v235, %v893
    %v1212 = vmul.f32 %v236, %v893
    %v1213 = vmul.f32 %v237, %v893
    %v1214 = vmul.f32 %v238, %v897
    %v1215 = vmul.f32 %v239, %v897
    %v1216 = vmul.f32 %v240, %v897
    %v1217 = vmul.f32 %v241, %v897
    %v1218 = vmul.f32 %v242, %v901
    %v1219 = vmul.f32 %v243, %v901
    %v1220 = vmul.f32 %v244, %v901
    %v1221 = vmul.f32 %v245, %v901
    %v1222 = vmul.f32 %v246, %v905
    %v1223 = vmul.f32 %v247, %v905
    %v1224 = vmul.f32 %v248, %v905
    %v1225 = vmul.f32 %v249, %v905
    %v1226 = vmul.f32 %v250, %v909
    %v1227 = vmul.f32 %v251, %v909
    %v1228 = vmul.f32 %v252, %v909
    %v1229 = vmul.f32 %v253, %v909
    %v1230 = vmul.f32 %v254, %v913
    %v1231 = vmul.f32 %v255, %v913
    %v1232 = vmul.f32 %v256, %v913
    %v1233 = vmul.f32 %v257, %v913
    %v1234 = vmul.f32 %v258, %v917
    %v1235 = vmul.f32 %v259, %v917
    %v1236 = vmul.f32 %v260, %v917
    %v1237 = vmul.f32 %v261, %v917
    %v1238 = vmul.f32 %v262, %v921
    %v1239 = vmul.f32 %v263, %v921
    %v1240 = vmul.f32 %v264, %v921
    %v1241 = vmul.f32 %v265, %v921
    %v1242 = vmul.f32 %v266, %v925
    %v1243 = vmul.f32 %v267, %v925
    %v1244 = vmul.f32 %v268, %v925
    %v1245 = vmul.f32 %v269, %v925
    %v1246 = vmul.f32 %v270, %v929
    %v1247 = vmul.f32 %v271, %v929
    %v1248 = vmul.f32 %v272, %v929
    %v1249 = vmul.f32 %v273, %v929
    %v1250 = vmul.f32 %v274, %v933
    %v1251 = vmul.f32 %v275, %v933
    %v1252 = vmul.f32 %v276, %v933
    %v1253 = vmul.f32 %v277, %v933
    %v1254 = vmul.f32 %v278, %v937
    %v1255 = vmul.f32 %v279, %v937
    %v1256 = vmul.f32 %v280, %v937
    %v1257 = vmul.f32 %v281, %v937
    %v1258 = vmul.f32 %v282, %v941
    %v1259 = vmul.f32 %v283, %v941
    %v1260 = vmul.f32 %v284, %v941
    %v1261 = vmul.f32 %v285, %v941
    %v1262 = vmul.f32 %v286, %v945
    %v1263 = vmul.f32 %v287, %v945
    %v1264 = vmul.f32 %v288, %v945
    %v1265 = vmul.f32 %v289, %v945
    %v1266 = vmul.f32 %v290, %v949
    %v1267 = vmul.f32 %v291, %v949
    %v1268 = vmul.f32 %v292, %v949
    %v1269 = vmul.f32 %v293, %v949
    %v1270 = vmul.f32 %v294, %v953
    %v1271 = vmul.f32 %v295, %v953
    %v1272 = vmul.f32 %v296, %v953
    %v1273 = vmul.f32 %v297, %v953
    %v1274 = vmul.f32 %v298, %v957
    %v1275 = vmul.f32 %v299, %v957
    %v1276 = vmul.f32 %v300, %v957
    %v1277 = vmul.f32 %v301, %v957
    %v1278 = vmul.f32 %v302, %v961
    %v1279 = vmul.f32 %v303, %v961
    %v1280 = vmul.f32 %v304, %v961
    %v1281 = vmul.f32 %v305, %v961
    %v1282 = vmul.f32 %v306, %v965
    %v1283 = vmul.f32 %v307, %v965
    %v1284 = vmul.f32 %v308, %v965
    %v1285 = vmul.f32 %v309, %v965
    %v1286 = vmul.f32 %v310, %v969
    %v1287 = vmul.f32 %v311, %v969
    %v1288 = vmul.f32 %v312, %v969
    %v1289 = vmul.f32 %v313, %v969
    %v1290 = vmul.f32 %v314, %v973
    %v1291 = vmul.f32 %v315, %v973
    %v1292 = vmul.f32 %v316, %v973
    %v1293 = vmul.f32 %v317, %v973
    %v1294 = vmul.f32 %v318, %v977
    %v1295 = vmul.f32 %v319, %v977
    %v1296 = vmul.f32 %v320, %v977
    %v1297 = vmul.f32 %v321, %v977
    %v1298 = vmul.f32 %v322, %v981
    %v1299 = vmul.f32 %v323, %v981
    %v1300 = vmul.f32 %v324, %v981
    %v1301 = vmul.f32 %v325, %v981
    %v1302 = vmul.f32 %v326, %v985
    %v1303 = vmul.f32 %v327, %v985
    %v1304 = vmul.f32 %v328, %v985
    %v1305 = vmul.f32 %v329, %v985
    %v1306 = vmul.f32 %v330, %v989
    %v1307 = vmul.f32 %v331, %v989
    %v1308 = vmul.f32 %v332, %v989
    %v1309 = vmul.f32 %v333, %v989
    %v1310 = vmul.f32 %v334, %v993
    %v1311 = vmul.f32 %v335, %v993
    %v1312 = vmul.f32 %v336, %v993
    %v1313 = vmul.f32 %v337, %v993
    %v1314 = vmul.f32 %v338, %v997
    %v1315 = vmul.f32 %v339, %v997
    %v1316 = vmul.f32 %v340, %v997
    %v1317 = vmul.f32 %v341, %v997
    %v1318 = vmul.f32 %v342, %v1001
    %v1319 = vmul.f32 %v343, %v1001
    %v1320 = vmul.f32 %v344, %v1001
    %v1321 = vmul.f32 %v345, %v1001
    %v1322 = vmul.f32 %v346, %v1005
    %v1323 = vmul.f32 %v347, %v1005
    %v1324 = vmul.f32 %v348, %v1005
    %v1325 = vmul.f32 %v349, %v1005
    %v1326 = vmul.f32 %v350, %v1009
    %v1327 = vmul.f32 %v351, %v1009
    %v1328 = vmul.f32 %v352, %v1009
    %v1329 = vmul.f32 %v353, %v1009
    %v1330 = vmul.f32 %v354, %v1013
    %v1331 = vmul.f32 %v355, %v1013
    %v1332 = vmul.f32 %v356, %v1013
    %v1333 = vmul.f32 %v357, %v1013
    %v1334 = vmul.f32 %v358, %v1017
    %v1335 = vmul.f32 %v359, %v1017
    %v1336 = vmul.f32 %v360, %v1017
    %v1337 = vmul.f32 %v361, %v1017
    %v1338 = vmul.f32 %v362, %v1021
    %v1339 = vmul.f32 %v363, %v1021
    %v1340 = vmul.f32 %v364, %v1021
    %v1341 = vmul.f32 %v365, %v1021
    %v1342 = vmul.f32 %v366, %v1025
    %v1343 = vmul.f32 %v367, %v1025
    %v1344 = vmul.f32 %v368, %v1025
    %v1345 = vmul.f32 %v369, %v1025
    %v1346 = vmul.f32 %v370, %v1029
    %v1347 = vmul.f32 %v371, %v1029
    %v1348 = vmul.f32 %v372, %v1029
    %v1349 = vmul.f32 %v373, %v1029
    %v1350 = vmul.f32 %v374, %v1033
    %v1351 = vmul.f32 %v375, %v1033
    %v1352 = vmul.f32 %v376, %v1033
    %v1353 = vmul.f32 %v377, %v1033
    %v1354 = vmul.f32 %v378, %v1037
    %v1355 = vmul.f32 %v379, %v1037
    %v1356 = vmul.f32 %v380, %v1037
    %v1357 = vmul.f32 %v381, %v1037
    %v1358 = vmul.f32 %v382, %v1041
    %v1359 = vmul.f32 %v383, %v1041
    %v1360 = vmul.f32 %v384, %v1041
    %v1361 = vmul.f32 %v385, %v1041
    %v1362 = vmul.f32 %v386, %v1045
    %v1363 = vmul.f32 %v387, %v1045
    %v1364 = vmul.f32 %v388, %v1045
    %v1365 = vmul.f32 %v389, %v1045
    %v1366 = vmul.f32 %v390, %v1049
    %v1367 = vmul.f32 %v391, %v1049
    %v1368 = vmul.f32 %v392, %v1049
    %v1369 = vmul.f32 %v393, %v1049
    %v1370 = vmul.f32 %v394, %v1053
    %v1371 = vmul.f32 %v395, %v1053
    %v1372 = vmul.f32 %v396, %v1053
    %v1373 = vmul.f32 %v397, %v1053
    %v1374 = vmul.f32 %v398, %v1057
    %v1375 = vmul.f32 %v399, %v1057
    %v1376 = vmul.f32 %v400, %v1057
    %v1377 = vmul.f32 %v401, %v1057
    %v1378 = vmul.f32 %v402, %v1061
    %v1379 = vmul.f32 %v403, %v1061
    %v1380 = vmul.f32 %v404, %v1061
    %v1381 = vmul.f32 %v405, %v1061
    %v1382 = vmul.f32 %v406, %v1065
    %v1383 = vmul.f32 %v407, %v1065
    %v1384 = vmul.f32 %v408, %v1065
    %v1385 = vmul.f32 %v409, %v1065
    %v1386 = vmul.f32 %v410, %v1069
    %v1387 = vmul.f32 %v411, %v1069
    %v1388 = vmul.f32 %v412, %v1069
    %v1389 = vmul.f32 %v413, %v1069
    %v1390 = vmul.f32 %v414, %v1073
    %v1391 = vmul.f32 %v415, %v1073
    %v1392 = vmul.f32 %v416, %v1073
    %v1393 = vmul.f32 %v417, %v1073
    %v1394 = vmul.f32 %v418, %v1077
    %v1395 = vmul.f32 %v419, %v1077
    %v1396 = vmul.f32 %v420, %v1077
    %v1397 = vmul.f32 %v421, %v1077
    %v1398 = vmul.f32 %v422, %v1081
    %v1399 = vmul.f32 %v423, %v1081
    %v1400 = vmul.f32 %v424, %v1081
    %v1401 = vmul.f32 %v425, %v1081
    %v1402 = vmul.f32 %v426, %v1085
    %v1403 = vmul.f32 %v427, %v1085
    %v1404 = vmul.f32 %v428, %v1085
    %v1405 = vmul.f32 %v429, %v1085
    %v1406 = vmul.f32 %v430, %v1089
    %v1407 = vmul.f32 %v431, %v1089
    %v1408 = vmul.f32 %v432, %v1089
    %v1409 = vmul.f32 %v433, %v1089
    %v1410 = vmul.f32 %v434, %v1093
    %v1411 = vmul.f32 %v435, %v1093
    %v1412 = vmul.f32 %v436, %v1093
    %v1413 = vmul.f32 %v437, %v1093
    %v1414 = vmul.f32 %v438, %v1097
    %v1415 = vmul.f32 %v439, %v1097
    %v1416 = vmul.f32 %v440, %v1097
    %v1417 = vmul.f32 %v441, %v1097
    %vm1418 = vcmask 261120
    %v1419 = vsel %vm1418, %v1162, 0.0
    %1420 = vadd.xlane.f32.xlu0 %v1419
    %v1421 = vpop.xlane.xlu0 %1420
    %v1422 = vsel %vm1418, %v1163, 0.0
    %1423 = vadd.xlane.f32.xlu0 %v1422
    %v1424 = vpop.xlane.xlu0 %1423
    %v1425 = vsel %vm1418, %v1164, 0.0
    %1426 = vadd.xlane.f32.xlu0 %v1425
    %v1427 = vpop.xlane.xlu0 %1426
    %v1428 = vsel %vm1418, %v1165, 0.0
    %1429 = vadd.xlane.f32.xlu0 %v1428
    %v1430 = vpop.xlane.xlu0 %1429
    %v1431 = vsel %vm1418, %v1166, 0.0
    %1432 = vadd.xlane.f32.xlu0 %v1431
    %v1433 = vpop.xlane.xlu0 %1432
    %v1434 = vsel %vm1418, %v1167, 0.0
    %1435 = vadd.xlane.f32.xlu0 %v1434
    %v1436 = vpop.xlane.xlu0 %1435
    %v1437 = vsel %vm1418, %v1168, 0.0
    %1438 = vadd.xlane.f32.xlu0 %v1437
    %v1439 = vpop.xlane.xlu0 %1438
    %v1440 = vsel %vm1418, %v1169, 0.0
    %1441 = vadd.xlane.f32.xlu0 %v1440
    %v1442 = vpop.xlane.xlu0 %1441
    %v1443 = vsel %vm1418, %v1170, 0.0
    %1444 = vadd.xlane.f32.xlu0 %v1443
    %v1445 = vpop.xlane.xlu0 %1444
    %v1446 = vsel %vm1418, %v1171, 0.0
    %1447 = vadd.xlane.f32.xlu0 %v1446
    %v1448 = vpop.xlane.xlu0 %1447
    %v1449 = vsel %vm1418, %v1172, 0.0
    %1450 = vadd.xlane.f32.xlu0 %v1449
    %v1451 = vpop.xlane.xlu0 %1450
    %v1452 = vsel %vm1418, %v1173, 0.0
    %1453 = vadd.xlane.f32.xlu0 %v1452
    %v1454 = vpop.xlane.xlu0 %1453
    %v1455 = vsel %vm1418, %v1174, 0.0
    %1456 = vadd.xlane.f32.xlu0 %v1455
    %v1457 = vpop.xlane.xlu0 %1456
    %v1458 = vsel %vm1418, %v1175, 0.0
    %1459 = vadd.xlane.f32.xlu0 %v1458
    %v1460 = vpop.xlane.xlu0 %1459
    %v1461 = vsel %vm1418, %v1176, 0.0
    %1462 = vadd.xlane.f32.xlu0 %v1461
    %v1463 = vpop.xlane.xlu0 %1462
    %v1464 = vsel %vm1418, %v1177, 0.0
    %1465 = vadd.xlane.f32.xlu0 %v1464
    %v1466 = vpop.xlane.xlu0 %1465
    %v1467 = vsel %vm1418, %v1178, 0.0
    %1468 = vadd.xlane.f32.xlu0 %v1467
    %v1469 = vpop.xlane.xlu0 %1468
    %v1470 = vsel %vm1418, %v1179, 0.0
    %1471 = vadd.xlane.f32.xlu0 %v1470
    %v1472 = vpop.xlane.xlu0 %1471
    %v1473 = vsel %vm1418, %v1180, 0.0
    %1474 = vadd.xlane.f32.xlu0 %v1473
    %v1475 = vpop.xlane.xlu0 %1474
    %v1476 = vsel %vm1418, %v1181, 0.0
    %1477 = vadd.xlane.f32.xlu0 %v1476
    %v1478 = vpop.xlane.xlu0 %1477
    %v1479 = vsel %vm1418, %v1182, 0.0
    %1480 = vadd.xlane.f32.xlu0 %v1479
    %v1481 = vpop.xlane.xlu0 %1480
    %v1482 = vsel %vm1418, %v1183, 0.0
    %1483 = vadd.xlane.f32.xlu0 %v1482
    %v1484 = vpop.xlane.xlu0 %1483
    %v1485 = vsel %vm1418, %v1184, 0.0
    %1486 = vadd.xlane.f32.xlu0 %v1485
    %v1487 = vpop.xlane.xlu0 %1486
    %v1488 = vsel %vm1418, %v1185, 0.0
    %1489 = vadd.xlane.f32.xlu0 %v1488
    %v1490 = vpop.xlane.xlu0 %1489
    %v1491 = vsel %vm1418, %v1186, 0.0
    %1492 = vadd.xlane.f32.xlu0 %v1491
    %v1493 = vpop.xlane.xlu0 %1492
    %v1494 = vsel %vm1418, %v1187, 0.0
    %1495 = vadd.xlane.f32.xlu0 %v1494
    %v1496 = vpop.xlane.xlu0 %1495
    %v1497 = vsel %vm1418, %v1188, 0.0
    %1498 = vadd.xlane.f32.xlu0 %v1497
    %v1499 = vpop.xlane.xlu0 %1498
    %v1500 = vsel %vm1418, %v1189, 0.0
    %1501 = vadd.xlane.f32.xlu0 %v1500
    %v1502 = vpop.xlane.xlu0 %1501
    %v1503 = vsel %vm1418, %v1190, 0.0
    %1504 = vadd.xlane.f32.xlu0 %v1503
    %v1505 = vpop.xlane.xlu0 %1504
    %v1506 = vsel %vm1418, %v1191, 0.0
    %1507 = vadd.xlane.f32.xlu0 %v1506
    %v1508 = vpop.xlane.xlu0 %1507
    %v1509 = vsel %vm1418, %v1192, 0.0
    %1510 = vadd.xlane.f32.xlu0 %v1509
    %v1511 = vpop.xlane.xlu0 %1510
    %v1512 = vsel %vm1418, %v1193, 0.0
    %1513 = vadd.xlane.f32.xlu0 %v1512
    %v1514 = vpop.xlane.xlu0 %1513
    %v1515 = vsel %vm1418, %v1194, 0.0
    %1516 = vadd.xlane.f32.xlu0 %v1515
    %v1517 = vpop.xlane.xlu0 %1516
    %v1518 = vsel %vm1418, %v1195, 0.0
    %1519 = vadd.xlane.f32.xlu0 %v1518
    %v1520 = vpop.xlane.xlu0 %1519
    %v1521 = vsel %vm1418, %v1196, 0.0
    %1522 = vadd.xlane.f32.xlu0 %v1521
    %v1523 = vpop.xlane.xlu0 %1522
    %v1524 = vsel %vm1418, %v1197, 0.0
    %1525 = vadd.xlane.f32.xlu0 %v1524
    %v1526 = vpop.xlane.xlu0 %1525
    %v1527 = vsel %vm1418, %v1198, 0.0
    %1528 = vadd.xlane.f32.xlu0 %v1527
    %v1529 = vpop.xlane.xlu0 %1528
    %v1530 = vsel %vm1418, %v1199, 0.0
    %1531 = vadd.xlane.f32.xlu0 %v1530
    %v1532 = vpop.xlane.xlu0 %1531
    %v1533 = vsel %vm1418, %v1200, 0.0
    %1534 = vadd.xlane.f32.xlu0 %v1533
    %v1535 = vpop.xlane.xlu0 %1534
    %v1536 = vsel %vm1418, %v1201, 0.0
    %1537 = vadd.xlane.f32.xlu0 %v1536
    %v1538 = vpop.xlane.xlu0 %1537
    %v1539 = vsel %vm1418, %v1202, 0.0
    %1540 = vadd.xlane.f32.xlu0 %v1539
    %v1541 = vpop.xlane.xlu0 %1540
    %v1542 = vsel %vm1418, %v1203, 0.0
    %1543 = vadd.xlane.f32.xlu0 %v1542
    %v1544 = vpop.xlane.xlu0 %1543
    %v1545 = vsel %vm1418, %v1204, 0.0
    %1546 = vadd.xlane.f32.xlu0 %v1545
    %v1547 = vpop.xlane.xlu0 %1546
    %v1548 = vsel %vm1418, %v1205, 0.0
    %1549 = vadd.xlane.f32.xlu0 %v1548
    %v1550 = vpop.xlane.xlu0 %1549
    %v1551 = vsel %vm1418, %v1206, 0.0
    %1552 = vadd.xlane.f32.xlu0 %v1551
    %v1553 = vpop.xlane.xlu0 %1552
    %v1554 = vsel %vm1418, %v1207, 0.0
    %1555 = vadd.xlane.f32.xlu0 %v1554
    %v1556 = vpop.xlane.xlu0 %1555
    %v1557 = vsel %vm1418, %v1208, 0.0
    %1558 = vadd.xlane.f32.xlu0 %v1557
    %v1559 = vpop.xlane.xlu0 %1558
    %v1560 = vsel %vm1418, %v1209, 0.0
    %1561 = vadd.xlane.f32.xlu0 %v1560
    %v1562 = vpop.xlane.xlu0 %1561
    %v1563 = vsel %vm1418, %v1210, 0.0
    %1564 = vadd.xlane.f32.xlu0 %v1563
    %v1565 = vpop.xlane.xlu0 %1564
    %v1566 = vsel %vm1418, %v1211, 0.0
    %1567 = vadd.xlane.f32.xlu0 %v1566
    %v1568 = vpop.xlane.xlu0 %1567
    %v1569 = vsel %vm1418, %v1212, 0.0
    %1570 = vadd.xlane.f32.xlu0 %v1569
    %v1571 = vpop.xlane.xlu0 %1570
    %v1572 = vsel %vm1418, %v1213, 0.0
    %1573 = vadd.xlane.f32.xlu0 %v1572
    %v1574 = vpop.xlane.xlu0 %1573
    %v1575 = vsel %vm1418, %v1214, 0.0
    %1576 = vadd.xlane.f32.xlu0 %v1575
    %v1577 = vpop.xlane.xlu0 %1576
    %v1578 = vsel %vm1418, %v1215, 0.0
    %1579 = vadd.xlane.f32.xlu0 %v1578
    %v1580 = vpop.xlane.xlu0 %1579
    %v1581 = vsel %vm1418, %v1216, 0.0
    %1582 = vadd.xlane.f32.xlu0 %v1581
    %v1583 = vpop.xlane.xlu0 %1582
    %v1584 = vsel %vm1418, %v1217, 0.0
    %1585 = vadd.xlane.f32.xlu0 %v1584
    %v1586 = vpop.xlane.xlu0 %1585
    %v1587 = vsel %vm1418, %v1218, 0.0
    %1588 = vadd.xlane.f32.xlu0 %v1587
    %v1589 = vpop.xlane.xlu0 %1588
    %v1590 = vsel %vm1418, %v1219, 0.0
    %1591 = vadd.xlane.f32.xlu0 %v1590
    %v1592 = vpop.xlane.xlu0 %1591
    %v1593 = vsel %vm1418, %v1220, 0.0
    %1594 = vadd.xlane.f32.xlu0 %v1593
    %v1595 = vpop.xlane.xlu0 %1594
    %v1596 = vsel %vm1418, %v1221, 0.0
    %1597 = vadd.xlane.f32.xlu0 %v1596
    %v1598 = vpop.xlane.xlu0 %1597
    %v1599 = vsel %vm1418, %v1222, 0.0
    %1600 = vadd.xlane.f32.xlu0 %v1599
    %v1601 = vpop.xlane.xlu0 %1600
    %v1602 = vsel %vm1418, %v1223, 0.0
    %1603 = vadd.xlane.f32.xlu0 %v1602
    %v1604 = vpop.xlane.xlu0 %1603
    %v1605 = vsel %vm1418, %v1224, 0.0
    %1606 = vadd.xlane.f32.xlu0 %v1605
    %v1607 = vpop.xlane.xlu0 %1606
    %v1608 = vsel %vm1418, %v1225, 0.0
    %1609 = vadd.xlane.f32.xlu0 %v1608
    %v1610 = vpop.xlane.xlu0 %1609
    %v1611 = vsel %vm1418, %v1226, 0.0
    %1612 = vadd.xlane.f32.xlu0 %v1611
    %v1613 = vpop.xlane.xlu0 %1612
    %v1614 = vsel %vm1418, %v1227, 0.0
    %1615 = vadd.xlane.f32.xlu0 %v1614
    %v1616 = vpop.xlane.xlu0 %1615
    %v1617 = vsel %vm1418, %v1228, 0.0
    %1618 = vadd.xlane.f32.xlu0 %v1617
    %v1619 = vpop.xlane.xlu0 %1618
    %v1620 = vsel %vm1418, %v1229, 0.0
    %1621 = vadd.xlane.f32.xlu0 %v1620
    %v1622 = vpop.xlane.xlu0 %1621
    %v1623 = vsel %vm1418, %v1230, 0.0
    %1624 = vadd.xlane.f32.xlu0 %v1623
    %v1625 = vpop.xlane.xlu0 %1624
    %v1626 = vsel %vm1418, %v1231, 0.0
    %1627 = vadd.xlane.f32.xlu0 %v1626
    %v1628 = vpop.xlane.xlu0 %1627
    %v1629 = vsel %vm1418, %v1232, 0.0
    %1630 = vadd.xlane.f32.xlu0 %v1629
    %v1631 = vpop.xlane.xlu0 %1630
    %v1632 = vsel %vm1418, %v1233, 0.0
    %1633 = vadd.xlane.f32.xlu0 %v1632
    %v1634 = vpop.xlane.xlu0 %1633
    %v1635 = vsel %vm1418, %v1234, 0.0
    %1636 = vadd.xlane.f32.xlu0 %v1635
    %v1637 = vpop.xlane.xlu0 %1636
    %v1638 = vsel %vm1418, %v1235, 0.0
    %1639 = vadd.xlane.f32.xlu0 %v1638
    %v1640 = vpop.xlane.xlu0 %1639
    %v1641 = vsel %vm1418, %v1236, 0.0
    %1642 = vadd.xlane.f32.xlu0 %v1641
    %v1643 = vpop.xlane.xlu0 %1642
    %v1644 = vsel %vm1418, %v1237, 0.0
    %1645 = vadd.xlane.f32.xlu0 %v1644
    %v1646 = vpop.xlane.xlu0 %1645
    %v1647 = vsel %vm1418, %v1238, 0.0
    %1648 = vadd.xlane.f32.xlu0 %v1647
    %v1649 = vpop.xlane.xlu0 %1648
    %v1650 = vsel %vm1418, %v1239, 0.0
    %1651 = vadd.xlane.f32.xlu0 %v1650
    %v1652 = vpop.xlane.xlu0 %1651
    %v1653 = vsel %vm1418, %v1240, 0.0
    %1654 = vadd.xlane.f32.xlu0 %v1653
    %v1655 = vpop.xlane.xlu0 %1654
    %v1656 = vsel %vm1418, %v1241, 0.0
    %1657 = vadd.xlane.f32.xlu0 %v1656
    %v1658 = vpop.xlane.xlu0 %1657
    %v1659 = vsel %vm1418, %v1242, 0.0
    %1660 = vadd.xlane.f32.xlu0 %v1659
    %v1661 = vpop.xlane.xlu0 %1660
    %v1662 = vsel %vm1418, %v1243, 0.0
    %1663 = vadd.xlane.f32.xlu0 %v1662
    %v1664 = vpop.xlane.xlu0 %1663
    %v1665 = vsel %vm1418, %v1244, 0.0
    %1666 = vadd.xlane.f32.xlu0 %v1665
    %v1667 = vpop.xlane.xlu0 %1666
    %v1668 = vsel %vm1418, %v1245, 0.0
    %1669 = vadd.xlane.f32.xlu0 %v1668
    %v1670 = vpop.xlane.xlu0 %1669
    %v1671 = vsel %vm1418, %v1246, 0.0
    %1672 = vadd.xlane.f32.xlu0 %v1671
    %v1673 = vpop.xlane.xlu0 %1672
    %v1674 = vsel %vm1418, %v1247, 0.0
    %1675 = vadd.xlane.f32.xlu0 %v1674
    %v1676 = vpop.xlane.xlu0 %1675
    %v1677 = vsel %vm1418, %v1248, 0.0
    %1678 = vadd.xlane.f32.xlu0 %v1677
    %v1679 = vpop.xlane.xlu0 %1678
    %v1680 = vsel %vm1418, %v1249, 0.0
    %1681 = vadd.xlane.f32.xlu0 %v1680
    %v1682 = vpop.xlane.xlu0 %1681
    %v1683 = vsel %vm1418, %v1250, 0.0
    %1684 = vadd.xlane.f32.xlu0 %v1683
    %v1685 = vpop.xlane.xlu0 %1684
    %v1686 = vsel %vm1418, %v1251, 0.0
    %1687 = vadd.xlane.f32.xlu0 %v1686
    %v1688 = vpop.xlane.xlu0 %1687
    %v1689 = vsel %vm1418, %v1252, 0.0
    %1690 = vadd.xlane.f32.xlu0 %v1689
    %v1691 = vpop.xlane.xlu0 %1690
    %v1692 = vsel %vm1418, %v1253, 0.0
    %1693 = vadd.xlane.f32.xlu0 %v1692
    %v1694 = vpop.xlane.xlu0 %1693
    %v1695 = vsel %vm1418, %v1254, 0.0
    %1696 = vadd.xlane.f32.xlu0 %v1695
    %v1697 = vpop.xlane.xlu0 %1696
    %v1698 = vsel %vm1418, %v1255, 0.0
    %1699 = vadd.xlane.f32.xlu0 %v1698
    %v1700 = vpop.xlane.xlu0 %1699
    %v1701 = vsel %vm1418, %v1256, 0.0
    %1702 = vadd.xlane.f32.xlu0 %v1701
    %v1703 = vpop.xlane.xlu0 %1702
    %v1704 = vsel %vm1418, %v1257, 0.0
    %1705 = vadd.xlane.f32.xlu0 %v1704
    %v1706 = vpop.xlane.xlu0 %1705
    %v1707 = vsel %vm1418, %v1258, 0.0
    %1708 = vadd.xlane.f32.xlu0 %v1707
    %v1709 = vpop.xlane.xlu0 %1708
    %v1710 = vsel %vm1418, %v1259, 0.0
    %1711 = vadd.xlane.f32.xlu0 %v1710
    %v1712 = vpop.xlane.xlu0 %1711
    %v1713 = vsel %vm1418, %v1260, 0.0
    %1714 = vadd.xlane.f32.xlu0 %v1713
    %v1715 = vpop.xlane.xlu0 %1714
    %v1716 = vsel %vm1418, %v1261, 0.0
    %1717 = vadd.xlane.f32.xlu0 %v1716
    %v1718 = vpop.xlane.xlu0 %1717
    %v1719 = vsel %vm1418, %v1262, 0.0
    %1720 = vadd.xlane.f32.xlu0 %v1719
    %v1721 = vpop.xlane.xlu0 %1720
    %v1722 = vsel %vm1418, %v1263, 0.0
    %1723 = vadd.xlane.f32.xlu0 %v1722
    %v1724 = vpop.xlane.xlu0 %1723
    %v1725 = vsel %vm1418, %v1264, 0.0
    %1726 = vadd.xlane.f32.xlu0 %v1725
    %v1727 = vpop.xlane.xlu0 %1726
    %v1728 = vsel %vm1418, %v1265, 0.0
    %1729 = vadd.xlane.f32.xlu0 %v1728
    %v1730 = vpop.xlane.xlu0 %1729
    %v1731 = vsel %vm1418, %v1266, 0.0
    %1732 = vadd.xlane.f32.xlu0 %v1731
    %v1733 = vpop.xlane.xlu0 %1732
    %v1734 = vsel %vm1418, %v1267, 0.0
    %1735 = vadd.xlane.f32.xlu0 %v1734
    %v1736 = vpop.xlane.xlu0 %1735
    %v1737 = vsel %vm1418, %v1268, 0.0
    %1738 = vadd.xlane.f32.xlu0 %v1737
    %v1739 = vpop.xlane.xlu0 %1738
    %v1740 = vsel %vm1418, %v1269, 0.0
    %1741 = vadd.xlane.f32.xlu0 %v1740
    %v1742 = vpop.xlane.xlu0 %1741
    %v1743 = vsel %vm1418, %v1270, 0.0
    %1744 = vadd.xlane.f32.xlu0 %v1743
    %v1745 = vpop.xlane.xlu0 %1744
    %v1746 = vsel %vm1418, %v1271, 0.0
    %1747 = vadd.xlane.f32.xlu0 %v1746
    %v1748 = vpop.xlane.xlu0 %1747
    %v1749 = vsel %vm1418, %v1272, 0.0
    %1750 = vadd.xlane.f32.xlu0 %v1749
    %v1751 = vpop.xlane.xlu0 %1750
    %v1752 = vsel %vm1418, %v1273, 0.0
    %1753 = vadd.xlane.f32.xlu0 %v1752
    %v1754 = vpop.xlane.xlu0 %1753
    %v1755 = vsel %vm1418, %v1274, 0.0
    %1756 = vadd.xlane.f32.xlu0 %v1755
    %v1757 = vpop.xlane.xlu0 %1756
    %v1758 = vsel %vm1418, %v1275, 0.0
    %1759 = vadd.xlane.f32.xlu0 %v1758
    %v1760 = vpop.xlane.xlu0 %1759
    %v1761 = vsel %vm1418, %v1276, 0.0
    %1762 = vadd.xlane.f32.xlu0 %v1761
    %v1763 = vpop.xlane.xlu0 %1762
    %v1764 = vsel %vm1418, %v1277, 0.0
    %1765 = vadd.xlane.f32.xlu0 %v1764
    %v1766 = vpop.xlane.xlu0 %1765
    %v1767 = vsel %vm1418, %v1278, 0.0
    %1768 = vadd.xlane.f32.xlu0 %v1767
    %v1769 = vpop.xlane.xlu0 %1768
    %v1770 = vsel %vm1418, %v1279, 0.0
    %1771 = vadd.xlane.f32.xlu0 %v1770
    %v1772 = vpop.xlane.xlu0 %1771
    %v1773 = vsel %vm1418, %v1280, 0.0
    %1774 = vadd.xlane.f32.xlu0 %v1773
    %v1775 = vpop.xlane.xlu0 %1774
    %v1776 = vsel %vm1418, %v1281, 0.0
    %1777 = vadd.xlane.f32.xlu0 %v1776
    %v1778 = vpop.xlane.xlu0 %1777
    %v1779 = vsel %vm1418, %v1282, 0.0
    %1780 = vadd.xlane.f32.xlu0 %v1779
    %v1781 = vpop.xlane.xlu0 %1780
    %v1782 = vsel %vm1418, %v1283, 0.0
    %1783 = vadd.xlane.f32.xlu0 %v1782
    %v1784 = vpop.xlane.xlu0 %1783
    %v1785 = vsel %vm1418, %v1284, 0.0
    %1786 = vadd.xlane.f32.xlu0 %v1785
    %v1787 = vpop.xlane.xlu0 %1786
    %v1788 = vsel %vm1418, %v1285, 0.0
    %1789 = vadd.xlane.f32.xlu0 %v1788
    %v1790 = vpop.xlane.xlu0 %1789
    %v1791 = vsel %vm1418, %v1286, 0.0
    %1792 = vadd.xlane.f32.xlu0 %v1791
    %v1793 = vpop.xlane.xlu0 %1792
    %v1794 = vsel %vm1418, %v1287, 0.0
    %1795 = vadd.xlane.f32.xlu0 %v1794
    %v1796 = vpop.xlane.xlu0 %1795
    %v1797 = vsel %vm1418, %v1288, 0.0
    %1798 = vadd.xlane.f32.xlu0 %v1797
    %v1799 = vpop.xlane.xlu0 %1798
    %v1800 = vsel %vm1418, %v1289, 0.0
    %1801 = vadd.xlane.f32.xlu0 %v1800
    %v1802 = vpop.xlane.xlu0 %1801
    %v1803 = vsel %vm1418, %v1290, 0.0
    %1804 = vadd.xlane.f32.xlu0 %v1803
    %v1805 = vpop.xlane.xlu0 %1804
    %v1806 = vsel %vm1418, %v1291, 0.0
    %1807 = vadd.xlane.f32.xlu0 %v1806
    %v1808 = vpop.xlane.xlu0 %1807
    %v1809 = vsel %vm1418, %v1292, 0.0
    %1810 = vadd.xlane.f32.xlu0 %v1809
    %v1811 = vpop.xlane.xlu0 %1810
    %v1812 = vsel %vm1418, %v1293, 0.0
    %1813 = vadd.xlane.f32.xlu0 %v1812
    %v1814 = vpop.xlane.xlu0 %1813
    %v1815 = vsel %vm1418, %v1294, 0.0
    %1816 = vadd.xlane.f32.xlu0 %v1815
    %v1817 = vpop.xlane.xlu0 %1816
    %v1818 = vsel %vm1418, %v1295, 0.0
    %1819 = vadd.xlane.f32.xlu0 %v1818
    %v1820 = vpop.xlane.xlu0 %1819
    %v1821 = vsel %vm1418, %v1296, 0.0
    %1822 = vadd.xlane.f32.xlu0 %v1821
    %v1823 = vpop.xlane.xlu0 %1822
    %v1824 = vsel %vm1418, %v1297, 0.0
    %1825 = vadd.xlane.f32.xlu0 %v1824
    %v1826 = vpop.xlane.xlu0 %1825
    %v1827 = vsel %vm1418, %v1298, 0.0
    %1828 = vadd.xlane.f32.xlu0 %v1827
    %v1829 = vpop.xlane.xlu0 %1828
    %v1830 = vsel %vm1418, %v1299, 0.0
    %1831 = vadd.xlane.f32.xlu0 %v1830
    %v1832 = vpop.xlane.xlu0 %1831
    %v1833 = vsel %vm1418, %v1300, 0.0
    %1834 = vadd.xlane.f32.xlu0 %v1833
    %v1835 = vpop.xlane.xlu0 %1834
    %v1836 = vsel %vm1418, %v1301, 0.0
    %1837 = vadd.xlane.f32.xlu0 %v1836
    %v1838 = vpop.xlane.xlu0 %1837
    %v1839 = vsel %vm1418, %v1302, 0.0
    %1840 = vadd.xlane.f32.xlu0 %v1839
    %v1841 = vpop.xlane.xlu0 %1840
    %v1842 = vsel %vm1418, %v1303, 0.0
    %1843 = vadd.xlane.f32.xlu0 %v1842
    %v1844 = vpop.xlane.xlu0 %1843
    %v1845 = vsel %vm1418, %v1304, 0.0
    %1846 = vadd.xlane.f32.xlu0 %v1845
    %v1847 = vpop.xlane.xlu0 %1846
    %v1848 = vsel %vm1418, %v1305, 0.0
    %1849 = vadd.xlane.f32.xlu0 %v1848
    %v1850 = vpop.xlane.xlu0 %1849
    %v1851 = vsel %vm1418, %v1306, 0.0
    %1852 = vadd.xlane.f32.xlu0 %v1851
    %v1853 = vpop.xlane.xlu0 %1852
    %v1854 = vsel %vm1418, %v1307, 0.0
    %1855 = vadd.xlane.f32.xlu0 %v1854
    %v1856 = vpop.xlane.xlu0 %1855
    %v1857 = vsel %vm1418, %v1308, 0.0
    %1858 = vadd.xlane.f32.xlu0 %v1857
    %v1859 = vpop.xlane.xlu0 %1858
    %v1860 = vsel %vm1418, %v1309, 0.0
    %1861 = vadd.xlane.f32.xlu0 %v1860
    %v1862 = vpop.xlane.xlu0 %1861
    %v1863 = vsel %vm1418, %v1310, 0.0
    %1864 = vadd.xlane.f32.xlu0 %v1863
    %v1865 = vpop.xlane.xlu0 %1864
    %v1866 = vsel %vm1418, %v1311, 0.0
    %1867 = vadd.xlane.f32.xlu0 %v1866
    %v1868 = vpop.xlane.xlu0 %1867
    %v1869 = vsel %vm1418, %v1312, 0.0
    %1870 = vadd.xlane.f32.xlu0 %v1869
    %v1871 = vpop.xlane.xlu0 %1870
    %v1872 = vsel %vm1418, %v1313, 0.0
    %1873 = vadd.xlane.f32.xlu0 %v1872
    %v1874 = vpop.xlane.xlu0 %1873
    %v1875 = vsel %vm1418, %v1314, 0.0
    %1876 = vadd.xlane.f32.xlu0 %v1875
    %v1877 = vpop.xlane.xlu0 %1876
    %v1878 = vsel %vm1418, %v1315, 0.0
    %1879 = vadd.xlane.f32.xlu0 %v1878
    %v1880 = vpop.xlane.xlu0 %1879
    %v1881 = vsel %vm1418, %v1316, 0.0
    %1882 = vadd.xlane.f32.xlu0 %v1881
    %v1883 = vpop.xlane.xlu0 %1882
    %v1884 = vsel %vm1418, %v1317, 0.0
    %1885 = vadd.xlane.f32.xlu0 %v1884
    %v1886 = vpop.xlane.xlu0 %1885
    %v1887 = vsel %vm1418, %v1318, 0.0
    %1888 = vadd.xlane.f32.xlu0 %v1887
    %v1889 = vpop.xlane.xlu0 %1888
    %v1890 = vsel %vm1418, %v1319, 0.0
    %1891 = vadd.xlane.f32.xlu0 %v1890
    %v1892 = vpop.xlane.xlu0 %1891
    %v1893 = vsel %vm1418, %v1320, 0.0
    %1894 = vadd.xlane.f32.xlu0 %v1893
    %v1895 = vpop.xlane.xlu0 %1894
    %v1896 = vsel %vm1418, %v1321, 0.0
    %1897 = vadd.xlane.f32.xlu0 %v1896
    %v1898 = vpop.xlane.xlu0 %1897
    %v1899 = vsel %vm1418, %v1322, 0.0
    %1900 = vadd.xlane.f32.xlu0 %v1899
    %v1901 = vpop.xlane.xlu0 %1900
    %v1902 = vsel %vm1418, %v1323, 0.0
    %1903 = vadd.xlane.f32.xlu0 %v1902
    %v1904 = vpop.xlane.xlu0 %1903
    %v1905 = vsel %vm1418, %v1324, 0.0
    %1906 = vadd.xlane.f32.xlu0 %v1905
    %v1907 = vpop.xlane.xlu0 %1906
    %v1908 = vsel %vm1418, %v1325, 0.0
    %1909 = vadd.xlane.f32.xlu0 %v1908
    %v1910 = vpop.xlane.xlu0 %1909
    %v1911 = vsel %vm1418, %v1326, 0.0
    %1912 = vadd.xlane.f32.xlu0 %v1911
    %v1913 = vpop.xlane.xlu0 %1912
    %v1914 = vsel %vm1418, %v1327, 0.0
    %1915 = vadd.xlane.f32.xlu0 %v1914
    %v1916 = vpop.xlane.xlu0 %1915
    %v1917 = vsel %vm1418, %v1328, 0.0
    %1918 = vadd.xlane.f32.xlu0 %v1917
    %v1919 = vpop.xlane.xlu0 %1918
    %v1920 = vsel %vm1418, %v1329, 0.0
    %1921 = vadd.xlane.f32.xlu0 %v1920
    %v1922 = vpop.xlane.xlu0 %1921
    %v1923 = vsel %vm1418, %v1330, 0.0
    %1924 = vadd.xlane.f32.xlu0 %v1923
    %v1925 = vpop.xlane.xlu0 %1924
    %v1926 = vsel %vm1418, %v1331, 0.0
    %1927 = vadd.xlane.f32.xlu0 %v1926
    %v1928 = vpop.xlane.xlu0 %1927
    %v1929 = vsel %vm1418, %v1332, 0.0
    %1930 = vadd.xlane.f32.xlu0 %v1929
    %v1931 = vpop.xlane.xlu0 %1930
    %v1932 = vsel %vm1418, %v1333, 0.0
    %1933 = vadd.xlane.f32.xlu0 %v1932
    %v1934 = vpop.xlane.xlu0 %1933
    %v1935 = vsel %vm1418, %v1334, 0.0
    %1936 = vadd.xlane.f32.xlu0 %v1935
    %v1937 = vpop.xlane.xlu0 %1936
    %v1938 = vsel %vm1418, %v1335, 0.0
    %1939 = vadd.xlane.f32.xlu0 %v1938
    %v1940 = vpop.xlane.xlu0 %1939
    %v1941 = vsel %vm1418, %v1336, 0.0
    %1942 = vadd.xlane.f32.xlu0 %v1941
    %v1943 = vpop.xlane.xlu0 %1942
    %v1944 = vsel %vm1418, %v1337, 0.0
    %1945 = vadd.xlane.f32.xlu0 %v1944
    %v1946 = vpop.xlane.xlu0 %1945
    %v1947 = vsel %vm1418, %v1338, 0.0
    %1948 = vadd.xlane.f32.xlu0 %v1947
    %v1949 = vpop.xlane.xlu0 %1948
    %v1950 = vsel %vm1418, %v1339, 0.0
    %1951 = vadd.xlane.f32.xlu0 %v1950
    %v1952 = vpop.xlane.xlu0 %1951
    %v1953 = vsel %vm1418, %v1340, 0.0
    %1954 = vadd.xlane.f32.xlu0 %v1953
    %v1955 = vpop.xlane.xlu0 %1954
    %v1956 = vsel %vm1418, %v1341, 0.0
    %1957 = vadd.xlane.f32.xlu0 %v1956
    %v1958 = vpop.xlane.xlu0 %1957
    %v1959 = vsel %vm1418, %v1342, 0.0
    %1960 = vadd.xlane.f32.xlu0 %v1959
    %v1961 = vpop.xlane.xlu0 %1960
    %v1962 = vsel %vm1418, %v1343, 0.0
    %1963 = vadd.xlane.f32.xlu0 %v1962
    %v1964 = vpop.xlane.xlu0 %1963
    %v1965 = vsel %vm1418, %v1344, 0.0
    %1966 = vadd.xlane.f32.xlu0 %v1965
    %v1967 = vpop.xlane.xlu0 %1966
    %v1968 = vsel %vm1418, %v1345, 0.0
    %1969 = vadd.xlane.f32.xlu0 %v1968
    %v1970 = vpop.xlane.xlu0 %1969
    %v1971 = vsel %vm1418, %v1346, 0.0
    %1972 = vadd.xlane.f32.xlu0 %v1971
    %v1973 = vpop.xlane.xlu0 %1972
    %v1974 = vsel %vm1418, %v1347, 0.0
    %1975 = vadd.xlane.f32.xlu0 %v1974
    %v1976 = vpop.xlane.xlu0 %1975
    %v1977 = vsel %vm1418, %v1348, 0.0
    %1978 = vadd.xlane.f32.xlu0 %v1977
    %v1979 = vpop.xlane.xlu0 %1978
    %v1980 = vsel %vm1418, %v1349, 0.0
    %1981 = vadd.xlane.f32.xlu0 %v1980
    %v1982 = vpop.xlane.xlu0 %1981
    %v1983 = vsel %vm1418, %v1350, 0.0
    %1984 = vadd.xlane.f32.xlu0 %v1983
    %v1985 = vpop.xlane.xlu0 %1984
    %v1986 = vsel %vm1418, %v1351, 0.0
    %1987 = vadd.xlane.f32.xlu0 %v1986
    %v1988 = vpop.xlane.xlu0 %1987
    %v1989 = vsel %vm1418, %v1352, 0.0
    %1990 = vadd.xlane.f32.xlu0 %v1989
    %v1991 = vpop.xlane.xlu0 %1990
    %v1992 = vsel %vm1418, %v1353, 0.0
    %1993 = vadd.xlane.f32.xlu0 %v1992
    %v1994 = vpop.xlane.xlu0 %1993
    %v1995 = vsel %vm1418, %v1354, 0.0
    %1996 = vadd.xlane.f32.xlu0 %v1995
    %v1997 = vpop.xlane.xlu0 %1996
    %v1998 = vsel %vm1418, %v1355, 0.0
    %1999 = vadd.xlane.f32.xlu0 %v1998
    %v2000 = vpop.xlane.xlu0 %1999
    %v2001 = vsel %vm1418, %v1356, 0.0
    %2002 = vadd.xlane.f32.xlu0 %v2001
    %v2003 = vpop.xlane.xlu0 %2002
    %v2004 = vsel %vm1418, %v1357, 0.0
    %2005 = vadd.xlane.f32.xlu0 %v2004
    %v2006 = vpop.xlane.xlu0 %2005
    %v2007 = vsel %vm1418, %v1358, 0.0
    %2008 = vadd.xlane.f32.xlu0 %v2007
    %v2009 = vpop.xlane.xlu0 %2008
    %v2010 = vsel %vm1418, %v1359, 0.0
    %2011 = vadd.xlane.f32.xlu0 %v2010
    %v2012 = vpop.xlane.xlu0 %2011
    %v2013 = vsel %vm1418, %v1360, 0.0
    %2014 = vadd.xlane.f32.xlu0 %v2013
    %v2015 = vpop.xlane.xlu0 %2014
    %v2016 = vsel %vm1418, %v1361, 0.0
    %2017 = vadd.xlane.f32.xlu0 %v2016
    %v2018 = vpop.xlane.xlu0 %2017
    %v2019 = vsel %vm1418, %v1362, 0.0
    %2020 = vadd.xlane.f32.xlu0 %v2019
    %v2021 = vpop.xlane.xlu0 %2020
    %v2022 = vsel %vm1418, %v1363, 0.0
    %2023 = vadd.xlane.f32.xlu0 %v2022
    %v2024 = vpop.xlane.xlu0 %2023
    %v2025 = vsel %vm1418, %v1364, 0.0
    %2026 = vadd.xlane.f32.xlu0 %v2025
    %v2027 = vpop.xlane.xlu0 %2026
    %v2028 = vsel %vm1418, %v1365, 0.0
    %2029 = vadd.xlane.f32.xlu0 %v2028
    %v2030 = vpop.xlane.xlu0 %2029
    %v2031 = vsel %vm1418, %v1366, 0.0
    %2032 = vadd.xlane.f32.xlu0 %v2031
    %v2033 = vpop.xlane.xlu0 %2032
    %v2034 = vsel %vm1418, %v1367, 0.0
    %2035 = vadd.xlane.f32.xlu0 %v2034
    %v2036 = vpop.xlane.xlu0 %2035
    %v2037 = vsel %vm1418, %v1368, 0.0
    %2038 = vadd.xlane.f32.xlu0 %v2037
    %v2039 = vpop.xlane.xlu0 %2038
    %v2040 = vsel %vm1418, %v1369, 0.0
    %2041 = vadd.xlane.f32.xlu0 %v2040
    %v2042 = vpop.xlane.xlu0 %2041
    %v2043 = vsel %vm1418, %v1370, 0.0
    %2044 = vadd.xlane.f32.xlu0 %v2043
    %v2045 = vpop.xlane.xlu0 %2044
    %v2046 = vsel %vm1418, %v1371, 0.0
    %2047 = vadd.xlane.f32.xlu0 %v2046
    %v2048 = vpop.xlane.xlu0 %2047
    %v2049 = vsel %vm1418, %v1372, 0.0
    %2050 = vadd.xlane.f32.xlu0 %v2049
    %v2051 = vpop.xlane.xlu0 %2050
    %v2052 = vsel %vm1418, %v1373, 0.0
    %2053 = vadd.xlane.f32.xlu0 %v2052
    %v2054 = vpop.xlane.xlu0 %2053
    %v2055 = vsel %vm1418, %v1374, 0.0
    %2056 = vadd.xlane.f32.xlu0 %v2055
    %v2057 = vpop.xlane.xlu0 %2056
    %v2058 = vsel %vm1418, %v1375, 0.0
    %2059 = vadd.xlane.f32.xlu0 %v2058
    %v2060 = vpop.xlane.xlu0 %2059
    %v2061 = vsel %vm1418, %v1376, 0.0
    %2062 = vadd.xlane.f32.xlu0 %v2061
    %v2063 = vpop.xlane.xlu0 %2062
    %v2064 = vsel %vm1418, %v1377, 0.0
    %2065 = vadd.xlane.f32.xlu0 %v2064
    %v2066 = vpop.xlane.xlu0 %2065
    %v2067 = vsel %vm1418, %v1378, 0.0
    %2068 = vadd.xlane.f32.xlu0 %v2067
    %v2069 = vpop.xlane.xlu0 %2068
    %v2070 = vsel %vm1418, %v1379, 0.0
    %2071 = vadd.xlane.f32.xlu0 %v2070
    %v2072 = vpop.xlane.xlu0 %2071
    %v2073 = vsel %vm1418, %v1380, 0.0
    %2074 = vadd.xlane.f32.xlu0 %v2073
    %v2075 = vpop.xlane.xlu0 %2074
    %v2076 = vsel %vm1418, %v1381, 0.0
    %2077 = vadd.xlane.f32.xlu0 %v2076
    %v2078 = vpop.xlane.xlu0 %2077
    %v2079 = vsel %vm1418, %v1382, 0.0
    %2080 = vadd.xlane.f32.xlu0 %v2079
    %v2081 = vpop.xlane.xlu0 %2080
    %v2082 = vsel %vm1418, %v1383, 0.0
    %2083 = vadd.xlane.f32.xlu0 %v2082
    %v2084 = vpop.xlane.xlu0 %2083
    %v2085 = vsel %vm1418, %v1384, 0.0
    %2086 = vadd.xlane.f32.xlu0 %v2085
    %v2087 = vpop.xlane.xlu0 %2086
    %v2088 = vsel %vm1418, %v1385, 0.0
    %2089 = vadd.xlane.f32.xlu0 %v2088
    %v2090 = vpop.xlane.xlu0 %2089
    %v2091 = vsel %vm1418, %v1386, 0.0
    %2092 = vadd.xlane.f32.xlu0 %v2091
    %v2093 = vpop.xlane.xlu0 %2092
    %v2094 = vsel %vm1418, %v1387, 0.0
    %2095 = vadd.xlane.f32.xlu0 %v2094
    %v2096 = vpop.xlane.xlu0 %2095
    %v2097 = vsel %vm1418, %v1388, 0.0
    %2098 = vadd.xlane.f32.xlu0 %v2097
    %v2099 = vpop.xlane.xlu0 %2098
    %v2100 = vsel %vm1418, %v1389, 0.0
    %2101 = vadd.xlane.f32.xlu0 %v2100
    %v2102 = vpop.xlane.xlu0 %2101
    %v2103 = vsel %vm1418, %v1390, 0.0
    %2104 = vadd.xlane.f32.xlu0 %v2103
    %v2105 = vpop.xlane.xlu0 %2104
    %v2106 = vsel %vm1418, %v1391, 0.0
    %2107 = vadd.xlane.f32.xlu0 %v2106
    %v2108 = vpop.xlane.xlu0 %2107
    %v2109 = vsel %vm1418, %v1392, 0.0
    %2110 = vadd.xlane.f32.xlu0 %v2109
    %v2111 = vpop.xlane.xlu0 %2110
    %v2112 = vsel %vm1418, %v1393, 0.0
    %2113 = vadd.xlane.f32.xlu0 %v2112
    %v2114 = vpop.xlane.xlu0 %2113
    %v2115 = vsel %vm1418, %v1394, 0.0
    %2116 = vadd.xlane.f32.xlu0 %v2115
    %v2117 = vpop.xlane.xlu0 %2116
    %v2118 = vsel %vm1418, %v1395, 0.0
    %2119 = vadd.xlane.f32.xlu0 %v2118
    %v2120 = vpop.xlane.xlu0 %2119
    %v2121 = vsel %vm1418, %v1396, 0.0
    %2122 = vadd.xlane.f32.xlu0 %v2121
    %v2123 = vpop.xlane.xlu0 %2122
    %v2124 = vsel %vm1418, %v1397, 0.0
    %2125 = vadd.xlane.f32.xlu0 %v2124
    %v2126 = vpop.xlane.xlu0 %2125
    %v2127 = vsel %vm1418, %v1398, 0.0
    %2128 = vadd.xlane.f32.xlu0 %v2127
    %v2129 = vpop.xlane.xlu0 %2128
    %v2130 = vsel %vm1418, %v1399, 0.0
    %2131 = vadd.xlane.f32.xlu0 %v2130
    %v2132 = vpop.xlane.xlu0 %2131
    %v2133 = vsel %vm1418, %v1400, 0.0
    %2134 = vadd.xlane.f32.xlu0 %v2133
    %v2135 = vpop.xlane.xlu0 %2134
    %v2136 = vsel %vm1418, %v1401, 0.0
    %2137 = vadd.xlane.f32.xlu0 %v2136
    %v2138 = vpop.xlane.xlu0 %2137
    %v2139 = vsel %vm1418, %v1402, 0.0
    %2140 = vadd.xlane.f32.xlu0 %v2139
    %v2141 = vpop.xlane.xlu0 %2140
    %v2142 = vsel %vm1418, %v1403, 0.0
    %2143 = vadd.xlane.f32.xlu0 %v2142
    %v2144 = vpop.xlane.xlu0 %2143
    %v2145 = vsel %vm1418, %v1404, 0.0
    %2146 = vadd.xlane.f32.xlu0 %v2145
    %v2147 = vpop.xlane.xlu0 %2146
    %v2148 = vsel %vm1418, %v1405, 0.0
    %2149 = vadd.xlane.f32.xlu0 %v2148
    %v2150 = vpop.xlane.xlu0 %2149
    %v2151 = vsel %vm1418, %v1406, 0.0
    %2152 = vadd.xlane.f32.xlu0 %v2151
    %v2153 = vpop.xlane.xlu0 %2152
    %v2154 = vsel %vm1418, %v1407, 0.0
    %2155 = vadd.xlane.f32.xlu0 %v2154
    %v2156 = vpop.xlane.xlu0 %2155
    %v2157 = vsel %vm1418, %v1408, 0.0
    %2158 = vadd.xlane.f32.xlu0 %v2157
    %v2159 = vpop.xlane.xlu0 %2158
    %v2160 = vsel %vm1418, %v1409, 0.0
    %2161 = vadd.xlane.f32.xlu0 %v2160
    %v2162 = vpop.xlane.xlu0 %2161
    %v2163 = vsel %vm1418, %v1410, 0.0
    %2164 = vadd.xlane.f32.xlu0 %v2163
    %v2165 = vpop.xlane.xlu0 %2164
    %v2166 = vsel %vm1418, %v1411, 0.0
    %2167 = vadd.xlane.f32.xlu0 %v2166
    %v2168 = vpop.xlane.xlu0 %2167
    %v2169 = vsel %vm1418, %v1412, 0.0
    %2170 = vadd.xlane.f32.xlu0 %v2169
    %v2171 = vpop.xlane.xlu0 %2170
    %v2172 = vsel %vm1418, %v1413, 0.0
    %2173 = vadd.xlane.f32.xlu0 %v2172
    %v2174 = vpop.xlane.xlu0 %2173
    %v2175 = vsel %vm1418, %v1414, 0.0
    %2176 = vadd.xlane.f32.xlu0 %v2175
    %v2177 = vpop.xlane.xlu0 %2176
    %v2178 = vsel %vm1418, %v1415, 0.0
    %2179 = vadd.xlane.f32.xlu0 %v2178
    %v2180 = vpop.xlane.xlu0 %2179
    %v2181 = vsel %vm1418, %v1416, 0.0
    %2182 = vadd.xlane.f32.xlu0 %v2181
    %v2183 = vpop.xlane.xlu0 %2182
    %v2184 = vsel %vm1418, %v1417, 0.0
    %2185 = vadd.xlane.f32.xlu0 %v2184
    %v2186 = vpop.xlane.xlu0 %2185
    %v2187 = vld [vmem:[%s4] sm:$0xff]
    %v2188 = vld [vmem:[%s5] sm:$0xff]
    %v2189 = vld [vmem:[%s6] sm:$0xff]
    %vm2190 = vcmask 64512
    %v2192 = vsel %vm2190, %v2188, 0
    %2194 = vmatprep.subr.mxu0 0.0
    %2195 = vmatpush1.msra.mxu0 0.0
    %2196 = vmatprep.subr.mxu0 0.0
    %2197 = vmatpush1.msra.mxu0 0.0
    %2198 = vmatprep.subr.mxu0 0.0
    %2199 = vmatpush1.msra.mxu0 0.0
    %2200 = vmatprep.subr.mxu0 0.0
    %2201 = vmatpush1.msra.mxu0 0.0
    %2202 = vmatprep.subr.mxu0 0.0
    %2203 = vmatpush1.msra.mxu0 0.0
    %2204 = vmatprep.subr.mxu0 0.0
    %2205 = vmatpush1.msra.mxu0 0.0
    %2206 = vmatprep.subr.mxu0 0.0
    %2207 = vmatpush1.msra.mxu0 0.0
    %2208 = vmatprep.subr.mxu0 0.0
    %2209 = vmatpush1.msra.mxu0 0.0
    %2210 = vmatprep.subr.mxu0 0.0
    %2211 = vmatpush1.msra.mxu0 0.0
    %2212 = vmatprep.subr.mxu0 0.0
    %2213 = vmatpush1.msra.mxu0 0.0
    %2214 = vmatprep.subr.mxu0 0.0
    %2215 = vmatpush1.msra.mxu0 0.0
    %2216 = vmatprep.subr.mxu0 0.0
    %2217 = vmatpush1.msra.mxu0 0.0
    %2218 = vmatprep.subr.mxu0 0.0
    %2219 = vmatpush1.msra.mxu0 0.0
    %2220 = vmatprep.subr.mxu0 0.0
    %2221 = vmatpush1.msra.mxu0 0.0
    %2222 = vmatprep.subr.mxu0 0.0
    %2223 = vmatpush1.msra.mxu0 0.0
    %2224 = vmatprep.subr.mxu0 0.0
    %2225 = vmatpush1.msra.mxu0 %v2189
    %2226 = vmatprep.subr.mxu0 0.0
    %2227 = vmatpush2.msra.mxu0 0.0
    %2228 = vmatprep.subr.mxu0 0.0
    %2229 = vmatpush2.msra.mxu0 0.0
    %2230 = vmatprep.subr.mxu0 0.0
    %2231 = vmatpush2.msra.mxu0 0.0
    %2232 = vmatprep.subr.mxu0 0.0
    %2233 = vmatpush2.msra.mxu0 0.0
    %2234 = vmatprep.subr.mxu0 0.0
    %2235 = vmatpush2.msra.mxu0 0.0
    %2236 = vmatprep.subr.mxu0 0.0
    %2237 = vmatpush2.msra.mxu0 0.0
    %2238 = vmatprep.subr.mxu0 0.0
    %2239 = vmatpush2.msra.mxu0 0.0
    %2240 = vmatprep.subr.mxu0 0.0
    %2241 = vmatpush2.msra.mxu0 0.0
    %2242 = vmatprep.subr.mxu0 0.0
    %2243 = vmatpush2.msra.mxu0 0.0
    %2244 = vmatprep.subr.mxu0 0.0
    %2245 = vmatpush2.msra.mxu0 0.0
    %2246 = vmatprep.subr.mxu0 0.0
    %2247 = vmatpush2.msra.mxu0 0.0
    %2248 = vmatprep.subr.mxu0 0.0
    %2249 = vmatpush2.msra.mxu0 0.0
    %2250 = vmatprep.subr.mxu0 0.0
    %2251 = vmatpush2.msra.mxu0 0.0
    %2252 = vmatprep.subr.mxu0 0.0
    %2253 = vmatpush2.msra.mxu0 0.0
    %2254 = vmatprep.subr.mxu0 0.0
    %2255 = vmatpush2.msra.mxu0 0.0
    %2256 = vmatprep.subr.mxu0 0.0
    %2257 = vmatpush2.msra.mxu0 0.0
    %2258 = vmatprep.mubr.f32.mxu0 0.0
    %2259 = vmatmul.mubr.f32.gmra.mxu0 %v2192
    %v2260 = vpop.f32.mrf.mxu0
    %v2261 = vadd.f32 0.0, %v2260
    %v2262 = vpop.f32.mrf.mxu0
    %2263 = vdwg.mxu0
    %v2520 = vlaneseq
    %v2521 = vand.u32 %v2520, 127
    %v2522 = vlaneseq
    %v2523 = vshrl.u32 %v2522, 7
    %v2524 = vsub.s32 %v2521, %v2523
    %v2525 = vrot.slane %v1421, %v2524
    %v2526 = vadd.s32 %v2521, 4294967288
    %v2527 = vlaneseq
    %v2528 = vshrl.u32 %v2527, 7
    %v2529 = vsub.s32 %v2526, %v2528
    %v2530 = vrot.slane %v1424, %v2529
    %vm2531 = vcmask 130112
    %v2532 = vsel %vm2531, %v2530, %v2525
    %v2533 = vadd.s32 %v2521, 4294967280
    %v2534 = vlaneseq
    %v2535 = vshrl.u32 %v2534, 7
    %v2536 = vsub.s32 %v2533, %v2535
    %v2537 = vrot.slane %v1427, %v2536
    %vm2538 = vcmask 195712
    %v2539 = vsel %vm2538, %v2537, %v2532
    %v2540 = vadd.s32 %v2521, 4294967272
    %v2541 = vlaneseq
    %v2542 = vshrl.u32 %v2541, 7
    %v2543 = vsub.s32 %v2540, %v2542
    %v2544 = vrot.slane %v1430, %v2543
    %vm2545 = vcmask 261312
    %v2546 = vsel %vm2545, %v2544, %v2539
    %v2547 = vlaneseq
    %v2548 = vshrl.u32 %v2547, 7
    %v2549 = vsub.s32 %v2521, %v2548
    %v2550 = vrot.slane %v1433, %v2549
    %v2551 = vlaneseq
    %v2552 = vshrl.u32 %v2551, 7
    %v2553 = vsub.s32 %v2526, %v2552
    %v2554 = vrot.slane %v1436, %v2553
    %v2555 = vsel %vm2531, %v2554, %v2550
    %v2556 = vlaneseq
    %v2557 = vshrl.u32 %v2556, 7
    %v2558 = vsub.s32 %v2533, %v2557
    %v2559 = vrot.slane %v1439, %v2558
    %v2560 = vsel %vm2538, %v2559, %v2555
    %v2561 = vlaneseq
    %v2562 = vshrl.u32 %v2561, 7
    %v2563 = vsub.s32 %v2540, %v2562
    %v2564 = vrot.slane %v1442, %v2563
    %v2565 = vsel %vm2545, %v2564, %v2560
    %v2566 = vlaneseq
    %v2567 = vshrl.u32 %v2566, 7
    %v2568 = vsub.s32 %v2521, %v2567
    %v2569 = vrot.slane %v1445, %v2568
    %v2570 = vlaneseq
    %v2571 = vshrl.u32 %v2570, 7
    %v2572 = vsub.s32 %v2526, %v2571
    %v2573 = vrot.slane %v1448, %v2572
    %v2574 = vsel %vm2531, %v2573, %v2569
    %v2575 = vlaneseq
    %v2576 = vshrl.u32 %v2575, 7
    %v2577 = vsub.s32 %v2533, %v2576
    %v2578 = vrot.slane %v1451, %v2577
    %v2579 = vsel %vm2538, %v2578, %v2574
    %v2580 = vlaneseq
    %v2581 = vshrl.u32 %v2580, 7
    %v2582 = vsub.s32 %v2540, %v2581
    %v2583 = vrot.slane %v1454, %v2582
    %v2584 = vsel %vm2545, %v2583, %v2579
    %v2585 = vlaneseq
    %v2586 = vshrl.u32 %v2585, 7
    %v2587 = vsub.s32 %v2521, %v2586
    %v2588 = vrot.slane %v1457, %v2587
    %v2589 = vlaneseq
    %v2590 = vshrl.u32 %v2589, 7
    %v2591 = vsub.s32 %v2526, %v2590
    %v2592 = vrot.slane %v1460, %v2591
    %v2593 = vsel %vm2531, %v2592, %v2588
    %v2594 = vlaneseq
    %v2595 = vshrl.u32 %v2594, 7
    %v2596 = vsub.s32 %v2533, %v2595
    %v2597 = vrot.slane %v1463, %v2596
    %v2598 = vsel %vm2538, %v2597, %v2593
    %v2599 = vlaneseq
    %v2600 = vshrl.u32 %v2599, 7
    %v2601 = vsub.s32 %v2540, %v2600
    %v2602 = vrot.slane %v1466, %v2601
    %v2603 = vsel %vm2545, %v2602, %v2598
    %v2604 = vlaneseq
    %v2605 = vshrl.u32 %v2604, 7
    %v2606 = vsub.s32 %v2521, %v2605
    %v2607 = vrot.slane %v1469, %v2606
    %v2608 = vlaneseq
    %v2609 = vshrl.u32 %v2608, 7
    %v2610 = vsub.s32 %v2526, %v2609
    %v2611 = vrot.slane %v1472, %v2610
    %v2612 = vsel %vm2531, %v2611, %v2607
    %v2613 = vlaneseq
    %v2614 = vshrl.u32 %v2613, 7
    %v2615 = vsub.s32 %v2533, %v2614
    %v2616 = vrot.slane %v1475, %v2615
    %v2617 = vsel %vm2538, %v2616, %v2612
    %v2618 = vlaneseq
    %v2619 = vshrl.u32 %v2618, 7
    %v2620 = vsub.s32 %v2540, %v2619
    %v2621 = vrot.slane %v1478, %v2620
    %v2622 = vsel %vm2545, %v2621, %v2617
    %v2623 = vlaneseq
    %v2624 = vshrl.u32 %v2623, 7
    %v2625 = vsub.s32 %v2521, %v2624
    %v2626 = vrot.slane %v1481, %v2625
    %v2627 = vlaneseq
    %v2628 = vshrl.u32 %v2627, 7
    %v2629 = vsub.s32 %v2526, %v2628
    %v2630 = vrot.slane %v1484, %v2629
    %v2631 = vsel %vm2531, %v2630, %v2626
    %v2632 = vlaneseq
    %v2633 = vshrl.u32 %v2632, 7
    %v2634 = vsub.s32 %v2533, %v2633
    %v2635 = vrot.slane %v1487, %v2634
    %v2636 = vsel %vm2538, %v2635, %v2631
    %v2637 = vlaneseq
    %v2638 = vshrl.u32 %v2637, 7
    %v2639 = vsub.s32 %v2540, %v2638
    %v2640 = vrot.slane %v1490, %v2639
    %v2641 = vsel %vm2545, %v2640, %v2636
    %v2642 = vlaneseq
    %v2643 = vshrl.u32 %v2642, 7
    %v2644 = vsub.s32 %v2521, %v2643
    %v2645 = vrot.slane %v1493, %v2644
    %v2646 = vlaneseq
    %v2647 = vshrl.u32 %v2646, 7
    %v2648 = vsub.s32 %v2526, %v2647
    %v2649 = vrot.slane %v1496, %v2648
    %v2650 = vsel %vm2531, %v2649, %v2645
    %v2651 = vlaneseq
    %v2652 = vshrl.u32 %v2651, 7
    %v2653 = vsub.s32 %v2533, %v2652
    %v2654 = vrot.slane %v1499, %v2653
    %v2655 = vsel %vm2538, %v2654, %v2650
    %v2656 = vlaneseq
    %v2657 = vshrl.u32 %v2656, 7
    %v2658 = vsub.s32 %v2540, %v2657
    %v2659 = vrot.slane %v1502, %v2658
    %v2660 = vsel %vm2545, %v2659, %v2655
    %v2661 = vlaneseq
    %v2662 = vshrl.u32 %v2661, 7
    %v2663 = vsub.s32 %v2521, %v2662
    %v2664 = vrot.slane %v1505, %v2663
    %v2665 = vlaneseq
    %v2666 = vshrl.u32 %v2665, 7
    %v2667 = vsub.s32 %v2526, %v2666
    %v2668 = vrot.slane %v1508, %v2667
    %v2669 = vsel %vm2531, %v2668, %v2664
    %v2670 = vlaneseq
    %v2671 = vshrl.u32 %v2670, 7
    %v2672 = vsub.s32 %v2533, %v2671
    %v2673 = vrot.slane %v1511, %v2672
    %v2674 = vsel %vm2538, %v2673, %v2669
    %v2675 = vlaneseq
    %v2676 = vshrl.u32 %v2675, 7
    %v2677 = vsub.s32 %v2540, %v2676
    %v2678 = vrot.slane %v1514, %v2677
    %v2679 = vsel %vm2545, %v2678, %v2674
    %v2680 = vlaneseq
    %v2681 = vshrl.u32 %v2680, 7
    %v2682 = vsub.s32 %v2521, %v2681
    %v2683 = vrot.slane %v1517, %v2682
    %v2684 = vlaneseq
    %v2685 = vshrl.u32 %v2684, 7
    %v2686 = vsub.s32 %v2526, %v2685
    %v2687 = vrot.slane %v1520, %v2686
    %v2688 = vsel %vm2531, %v2687, %v2683
    %v2689 = vlaneseq
    %v2690 = vshrl.u32 %v2689, 7
    %v2691 = vsub.s32 %v2533, %v2690
    %v2692 = vrot.slane %v1523, %v2691
    %v2693 = vsel %vm2538, %v2692, %v2688
    %v2694 = vlaneseq
    %v2695 = vshrl.u32 %v2694, 7
    %v2696 = vsub.s32 %v2540, %v2695
    %v2697 = vrot.slane %v1526, %v2696
    %v2698 = vsel %vm2545, %v2697, %v2693
    %v2699 = vlaneseq
    %v2700 = vshrl.u32 %v2699, 7
    %v2701 = vsub.s32 %v2521, %v2700
    %v2702 = vrot.slane %v1529, %v2701
    %v2703 = vlaneseq
    %v2704 = vshrl.u32 %v2703, 7
    %v2705 = vsub.s32 %v2526, %v2704
    %v2706 = vrot.slane %v1532, %v2705
    %v2707 = vsel %vm2531, %v2706, %v2702
    %v2708 = vlaneseq
    %v2709 = vshrl.u32 %v2708, 7
    %v2710 = vsub.s32 %v2533, %v2709
    %v2711 = vrot.slane %v1535, %v2710
    %v2712 = vsel %vm2538, %v2711, %v2707
    %v2713 = vlaneseq
    %v2714 = vshrl.u32 %v2713, 7
    %v2715 = vsub.s32 %v2540, %v2714
    %v2716 = vrot.slane %v1538, %v2715
    %v2717 = vsel %vm2545, %v2716, %v2712
    %v2718 = vlaneseq
    %v2719 = vshrl.u32 %v2718, 7
    %v2720 = vsub.s32 %v2521, %v2719
    %v2721 = vrot.slane %v1541, %v2720
    %v2722 = vlaneseq
    %v2723 = vshrl.u32 %v2722, 7
    %v2724 = vsub.s32 %v2526, %v2723
    %v2725 = vrot.slane %v1544, %v2724
    %v2726 = vsel %vm2531, %v2725, %v2721
    %v2727 = vlaneseq
    %v2728 = vshrl.u32 %v2727, 7
    %v2729 = vsub.s32 %v2533, %v2728
    %v2730 = vrot.slane %v1547, %v2729
    %v2731 = vsel %vm2538, %v2730, %v2726
    %v2732 = vlaneseq
    %v2733 = vshrl.u32 %v2732, 7
    %v2734 = vsub.s32 %v2540, %v2733
    %v2735 = vrot.slane %v1550, %v2734
    %v2736 = vsel %vm2545, %v2735, %v2731
    %v2737 = vlaneseq
    %v2738 = vshrl.u32 %v2737, 7
    %v2739 = vsub.s32 %v2521, %v2738
    %v2740 = vrot.slane %v1553, %v2739
    %v2741 = vlaneseq
    %v2742 = vshrl.u32 %v2741, 7
    %v2743 = vsub.s32 %v2526, %v2742
    %v2744 = vrot.slane %v1556, %v2743
    %v2745 = vsel %vm2531, %v2744, %v2740
    %v2746 = vlaneseq
    %v2747 = vshrl.u32 %v2746, 7
    %v2748 = vsub.s32 %v2533, %v2747
    %v2749 = vrot.slane %v1559, %v2748
    %v2750 = vsel %vm2538, %v2749, %v2745
    %v2751 = vlaneseq
    %v2752 = vshrl.u32 %v2751, 7
    %v2753 = vsub.s32 %v2540, %v2752
    %v2754 = vrot.slane %v1562, %v2753
    %v2755 = vsel %vm2545, %v2754, %v2750
    %v2756 = vlaneseq
    %v2757 = vshrl.u32 %v2756, 7
    %v2758 = vsub.s32 %v2521, %v2757
    %v2759 = vrot.slane %v1565, %v2758
    %v2760 = vlaneseq
    %v2761 = vshrl.u32 %v2760, 7
    %v2762 = vsub.s32 %v2526, %v2761
    %v2763 = vrot.slane %v1568, %v2762
    %v2764 = vsel %vm2531, %v2763, %v2759
    %v2765 = vlaneseq
    %v2766 = vshrl.u32 %v2765, 7
    %v2767 = vsub.s32 %v2533, %v2766
    %v2768 = vrot.slane %v1571, %v2767
    %v2769 = vsel %vm2538, %v2768, %v2764
    %v2770 = vlaneseq
    %v2771 = vshrl.u32 %v2770, 7
    %v2772 = vsub.s32 %v2540, %v2771
    %v2773 = vrot.slane %v1574, %v2772
    %v2774 = vsel %vm2545, %v2773, %v2769
    %v2775 = vlaneseq
    %v2776 = vshrl.u32 %v2775, 7
    %v2777 = vsub.s32 %v2521, %v2776
    %v2778 = vrot.slane %v1577, %v2777
    %v2779 = vlaneseq
    %v2780 = vshrl.u32 %v2779, 7
    %v2781 = vsub.s32 %v2526, %v2780
    %v2782 = vrot.slane %v1580, %v2781
    %v2783 = vsel %vm2531, %v2782, %v2778
    %v2784 = vlaneseq
    %v2785 = vshrl.u32 %v2784, 7
    %v2786 = vsub.s32 %v2533, %v2785
    %v2787 = vrot.slane %v1583, %v2786
    %v2788 = vsel %vm2538, %v2787, %v2783
    %v2789 = vlaneseq
    %v2790 = vshrl.u32 %v2789, 7
    %v2791 = vsub.s32 %v2540, %v2790
    %v2792 = vrot.slane %v1586, %v2791
    %v2793 = vsel %vm2545, %v2792, %v2788
    %v2794 = vlaneseq
    %v2795 = vshrl.u32 %v2794, 7
    %v2796 = vsub.s32 %v2521, %v2795
    %v2797 = vrot.slane %v1589, %v2796
    %v2798 = vlaneseq
    %v2799 = vshrl.u32 %v2798, 7
    %v2800 = vsub.s32 %v2526, %v2799
    %v2801 = vrot.slane %v1592, %v2800
    %v2802 = vsel %vm2531, %v2801, %v2797
    %v2803 = vlaneseq
    %v2804 = vshrl.u32 %v2803, 7
    %v2805 = vsub.s32 %v2533, %v2804
    %v2806 = vrot.slane %v1595, %v2805
    %v2807 = vsel %vm2538, %v2806, %v2802
    %v2808 = vlaneseq
    %v2809 = vshrl.u32 %v2808, 7
    %v2810 = vsub.s32 %v2540, %v2809
    %v2811 = vrot.slane %v1598, %v2810
    %v2812 = vsel %vm2545, %v2811, %v2807
    %v2813 = vlaneseq
    %v2814 = vshrl.u32 %v2813, 7
    %v2815 = vsub.s32 %v2521, %v2814
    %v2816 = vrot.slane %v1601, %v2815
    %v2817 = vlaneseq
    %v2818 = vshrl.u32 %v2817, 7
    %v2819 = vsub.s32 %v2526, %v2818
    %v2820 = vrot.slane %v1604, %v2819
    %v2821 = vsel %vm2531, %v2820, %v2816
    %v2822 = vlaneseq
    %v2823 = vshrl.u32 %v2822, 7
    %v2824 = vsub.s32 %v2533, %v2823
    %v2825 = vrot.slane %v1607, %v2824
    %v2826 = vsel %vm2538, %v2825, %v2821
    %v2827 = vlaneseq
    %v2828 = vshrl.u32 %v2827, 7
    %v2829 = vsub.s32 %v2540, %v2828
    %v2830 = vrot.slane %v1610, %v2829
    %v2831 = vsel %vm2545, %v2830, %v2826
    %v2832 = vlaneseq
    %v2833 = vshrl.u32 %v2832, 7
    %v2834 = vsub.s32 %v2521, %v2833
    %v2835 = vrot.slane %v1613, %v2834
    %v2836 = vlaneseq
    %v2837 = vshrl.u32 %v2836, 7
    %v2838 = vsub.s32 %v2526, %v2837
    %v2839 = vrot.slane %v1616, %v2838
    %v2840 = vsel %vm2531, %v2839, %v2835
    %v2841 = vlaneseq
    %v2842 = vshrl.u32 %v2841, 7
    %v2843 = vsub.s32 %v2533, %v2842
    %v2844 = vrot.slane %v1619, %v2843
    %v2845 = vsel %vm2538, %v2844, %v2840
    %v2846 = vlaneseq
    %v2847 = vshrl.u32 %v2846, 7
    %v2848 = vsub.s32 %v2540, %v2847
    %v2849 = vrot.slane %v1622, %v2848
    %v2850 = vsel %vm2545, %v2849, %v2845
    %v2851 = vlaneseq
    %v2852 = vshrl.u32 %v2851, 7
    %v2853 = vsub.s32 %v2521, %v2852
    %v2854 = vrot.slane %v1625, %v2853
    %v2855 = vlaneseq
    %v2856 = vshrl.u32 %v2855, 7
    %v2857 = vsub.s32 %v2526, %v2856
    %v2858 = vrot.slane %v1628, %v2857
    %v2859 = vsel %vm2531, %v2858, %v2854
    %v2860 = vlaneseq
    %v2861 = vshrl.u32 %v2860, 7
    %v2862 = vsub.s32 %v2533, %v2861
    %v2863 = vrot.slane %v1631, %v2862
    %v2864 = vsel %vm2538, %v2863, %v2859
    %v2865 = vlaneseq
    %v2866 = vshrl.u32 %v2865, 7
    %v2867 = vsub.s32 %v2540, %v2866
    %v2868 = vrot.slane %v1634, %v2867
    %v2869 = vsel %vm2545, %v2868, %v2864
    %v2870 = vlaneseq
    %v2871 = vshrl.u32 %v2870, 7
    %v2872 = vsub.s32 %v2521, %v2871
    %v2873 = vrot.slane %v1637, %v2872
    %v2874 = vlaneseq
    %v2875 = vshrl.u32 %v2874, 7
    %v2876 = vsub.s32 %v2526, %v2875
    %v2877 = vrot.slane %v1640, %v2876
    %v2878 = vsel %vm2531, %v2877, %v2873
    %v2879 = vlaneseq
    %v2880 = vshrl.u32 %v2879, 7
    %v2881 = vsub.s32 %v2533, %v2880
    %v2882 = vrot.slane %v1643, %v2881
    %v2883 = vsel %vm2538, %v2882, %v2878
    %v2884 = vlaneseq
    %v2885 = vshrl.u32 %v2884, 7
    %v2886 = vsub.s32 %v2540, %v2885
    %v2887 = vrot.slane %v1646, %v2886
    %v2888 = vsel %vm2545, %v2887, %v2883
    %v2889 = vlaneseq
    %v2890 = vshrl.u32 %v2889, 7
    %v2891 = vsub.s32 %v2521, %v2890
    %v2892 = vrot.slane %v1649, %v2891
    %v2893 = vlaneseq
    %v2894 = vshrl.u32 %v2893, 7
    %v2895 = vsub.s32 %v2526, %v2894
    %v2896 = vrot.slane %v1652, %v2895
    %v2897 = vsel %vm2531, %v2896, %v2892
    %v2898 = vlaneseq
    %v2899 = vshrl.u32 %v2898, 7
    %v2900 = vsub.s32 %v2533, %v2899
    %v2901 = vrot.slane %v1655, %v2900
    %v2902 = vsel %vm2538, %v2901, %v2897
    %v2903 = vlaneseq
    %v2904 = vshrl.u32 %v2903, 7
    %v2905 = vsub.s32 %v2540, %v2904
    %v2906 = vrot.slane %v1658, %v2905
    %v2907 = vsel %vm2545, %v2906, %v2902
    %v2908 = vlaneseq
    %v2909 = vshrl.u32 %v2908, 7
    %v2910 = vsub.s32 %v2521, %v2909
    %v2911 = vrot.slane %v1661, %v2910
    %v2912 = vlaneseq
    %v2913 = vshrl.u32 %v2912, 7
    %v2914 = vsub.s32 %v2526, %v2913
    %v2915 = vrot.slane %v1664, %v2914
    %v2916 = vsel %vm2531, %v2915, %v2911
    %v2917 = vlaneseq
    %v2918 = vshrl.u32 %v2917, 7
    %v2919 = vsub.s32 %v2533, %v2918
    %v2920 = vrot.slane %v1667, %v2919
    %v2921 = vsel %vm2538, %v2920, %v2916
    %v2922 = vlaneseq
    %v2923 = vshrl.u32 %v2922, 7
    %v2924 = vsub.s32 %v2540, %v2923
    %v2925 = vrot.slane %v1670, %v2924
    %v2926 = vsel %vm2545, %v2925, %v2921
    %v2927 = vlaneseq
    %v2928 = vshrl.u32 %v2927, 7
    %v2929 = vsub.s32 %v2521, %v2928
    %v2930 = vrot.slane %v1673, %v2929
    %v2931 = vlaneseq
    %v2932 = vshrl.u32 %v2931, 7
    %v2933 = vsub.s32 %v2526, %v2932
    %v2934 = vrot.slane %v1676, %v2933
    %v2935 = vsel %vm2531, %v2934, %v2930
    %v2936 = vlaneseq
    %v2937 = vshrl.u32 %v2936, 7
    %v2938 = vsub.s32 %v2533, %v2937
    %v2939 = vrot.slane %v1679, %v2938
    %v2940 = vsel %vm2538, %v2939, %v2935
    %v2941 = vlaneseq
    %v2942 = vshrl.u32 %v2941, 7
    %v2943 = vsub.s32 %v2540, %v2942
    %v2944 = vrot.slane %v1682, %v2943
    %v2945 = vsel %vm2545, %v2944, %v2940
    %v2946 = vlaneseq
    %v2947 = vshrl.u32 %v2946, 7
    %v2948 = vsub.s32 %v2521, %v2947
    %v2949 = vrot.slane %v1685, %v2948
    %v2950 = vlaneseq
    %v2951 = vshrl.u32 %v2950, 7
    %v2952 = vsub.s32 %v2526, %v2951
    %v2953 = vrot.slane %v1688, %v2952
    %v2954 = vsel %vm2531, %v2953, %v2949
    %v2955 = vlaneseq
    %v2956 = vshrl.u32 %v2955, 7
    %v2957 = vsub.s32 %v2533, %v2956
    %v2958 = vrot.slane %v1691, %v2957
    %v2959 = vsel %vm2538, %v2958, %v2954
    %v2960 = vlaneseq
    %v2961 = vshrl.u32 %v2960, 7
    %v2962 = vsub.s32 %v2540, %v2961
    %v2963 = vrot.slane %v1694, %v2962
    %v2964 = vsel %vm2545, %v2963, %v2959
    %v2965 = vlaneseq
    %v2966 = vshrl.u32 %v2965, 7
    %v2967 = vsub.s32 %v2521, %v2966
    %v2968 = vrot.slane %v1697, %v2967
    %v2969 = vlaneseq
    %v2970 = vshrl.u32 %v2969, 7
    %v2971 = vsub.s32 %v2526, %v2970
    %v2972 = vrot.slane %v1700, %v2971
    %v2973 = vsel %vm2531, %v2972, %v2968
    %v2974 = vlaneseq
    %v2975 = vshrl.u32 %v2974, 7
    %v2976 = vsub.s32 %v2533, %v2975
    %v2977 = vrot.slane %v1703, %v2976
    %v2978 = vsel %vm2538, %v2977, %v2973
    %v2979 = vlaneseq
    %v2980 = vshrl.u32 %v2979, 7
    %v2981 = vsub.s32 %v2540, %v2980
    %v2982 = vrot.slane %v1706, %v2981
    %v2983 = vsel %vm2545, %v2982, %v2978
    %v2984 = vlaneseq
    %v2985 = vshrl.u32 %v2984, 7
    %v2986 = vsub.s32 %v2521, %v2985
    %v2987 = vrot.slane %v1709, %v2986
    %v2988 = vlaneseq
    %v2989 = vshrl.u32 %v2988, 7
    %v2990 = vsub.s32 %v2526, %v2989
    %v2991 = vrot.slane %v1712, %v2990
    %v2992 = vsel %vm2531, %v2991, %v2987
    %v2993 = vlaneseq
    %v2994 = vshrl.u32 %v2993, 7
    %v2995 = vsub.s32 %v2533, %v2994
    %v2996 = vrot.slane %v1715, %v2995
    %v2997 = vsel %vm2538, %v2996, %v2992
    %v2998 = vlaneseq
    %v2999 = vshrl.u32 %v2998, 7
    %v3000 = vsub.s32 %v2540, %v2999
    %v3001 = vrot.slane %v1718, %v3000
    %v3002 = vsel %vm2545, %v3001, %v2997
    %v3003 = vlaneseq
    %v3004 = vshrl.u32 %v3003, 7
    %v3005 = vsub.s32 %v2521, %v3004
    %v3006 = vrot.slane %v1721, %v3005
    %v3007 = vlaneseq
    %v3008 = vshrl.u32 %v3007, 7
    %v3009 = vsub.s32 %v2526, %v3008
    %v3010 = vrot.slane %v1724, %v3009
    %v3011 = vsel %vm2531, %v3010, %v3006
    %v3012 = vlaneseq
    %v3013 = vshrl.u32 %v3012, 7
    %v3014 = vsub.s32 %v2533, %v3013
    %v3015 = vrot.slane %v1727, %v3014
    %v3016 = vsel %vm2538, %v3015, %v3011
    %v3017 = vlaneseq
    %v3018 = vshrl.u32 %v3017, 7
    %v3019 = vsub.s32 %v2540, %v3018
    %v3020 = vrot.slane %v1730, %v3019
    %v3021 = vsel %vm2545, %v3020, %v3016
    %v3022 = vlaneseq
    %v3023 = vshrl.u32 %v3022, 7
    %v3024 = vsub.s32 %v2521, %v3023
    %v3025 = vrot.slane %v1733, %v3024
    %v3026 = vlaneseq
    %v3027 = vshrl.u32 %v3026, 7
    %v3028 = vsub.s32 %v2526, %v3027
    %v3029 = vrot.slane %v1736, %v3028
    %v3030 = vsel %vm2531, %v3029, %v3025
    %v3031 = vlaneseq
    %v3032 = vshrl.u32 %v3031, 7
    %v3033 = vsub.s32 %v2533, %v3032
    %v3034 = vrot.slane %v1739, %v3033
    %v3035 = vsel %vm2538, %v3034, %v3030
    %v3036 = vlaneseq
    %v3037 = vshrl.u32 %v3036, 7
    %v3038 = vsub.s32 %v2540, %v3037
    %v3039 = vrot.slane %v1742, %v3038
    %v3040 = vsel %vm2545, %v3039, %v3035
    %v3041 = vlaneseq
    %v3042 = vshrl.u32 %v3041, 7
    %v3043 = vsub.s32 %v2521, %v3042
    %v3044 = vrot.slane %v1745, %v3043
    %v3045 = vlaneseq
    %v3046 = vshrl.u32 %v3045, 7
    %v3047 = vsub.s32 %v2526, %v3046
    %v3048 = vrot.slane %v1748, %v3047
    %v3049 = vsel %vm2531, %v3048, %v3044
    %v3050 = vlaneseq
    %v3051 = vshrl.u32 %v3050, 7
    %v3052 = vsub.s32 %v2533, %v3051
    %v3053 = vrot.slane %v1751, %v3052
    %v3054 = vsel %vm2538, %v3053, %v3049
    %v3055 = vlaneseq
    %v3056 = vshrl.u32 %v3055, 7
    %v3057 = vsub.s32 %v2540, %v3056
    %v3058 = vrot.slane %v1754, %v3057
    %v3059 = vsel %vm2545, %v3058, %v3054
    %v3060 = vlaneseq
    %v3061 = vshrl.u32 %v3060, 7
    %v3062 = vsub.s32 %v2521, %v3061
    %v3063 = vrot.slane %v1757, %v3062
    %v3064 = vlaneseq
    %v3065 = vshrl.u32 %v3064, 7
    %v3066 = vsub.s32 %v2526, %v3065
    %v3067 = vrot.slane %v1760, %v3066
    %v3068 = vsel %vm2531, %v3067, %v3063
    %v3069 = vlaneseq
    %v3070 = vshrl.u32 %v3069, 7
    %v3071 = vsub.s32 %v2533, %v3070
    %v3072 = vrot.slane %v1763, %v3071
    %v3073 = vsel %vm2538, %v3072, %v3068
    %v3074 = vlaneseq
    %v3075 = vshrl.u32 %v3074, 7
    %v3076 = vsub.s32 %v2540, %v3075
    %v3077 = vrot.slane %v1766, %v3076
    %v3078 = vsel %vm2545, %v3077, %v3073
    %v3079 = vlaneseq
    %v3080 = vshrl.u32 %v3079, 7
    %v3081 = vsub.s32 %v2521, %v3080
    %v3082 = vrot.slane %v1769, %v3081
    %v3083 = vlaneseq
    %v3084 = vshrl.u32 %v3083, 7
    %v3085 = vsub.s32 %v2526, %v3084
    %v3086 = vrot.slane %v1772, %v3085
    %v3087 = vsel %vm2531, %v3086, %v3082
    %v3088 = vlaneseq
    %v3089 = vshrl.u32 %v3088, 7
    %v3090 = vsub.s32 %v2533, %v3089
    %v3091 = vrot.slane %v1775, %v3090
    %v3092 = vsel %vm2538, %v3091, %v3087
    %v3093 = vlaneseq
    %v3094 = vshrl.u32 %v3093, 7
    %v3095 = vsub.s32 %v2540, %v3094
    %v3096 = vrot.slane %v1778, %v3095
    %v3097 = vsel %vm2545, %v3096, %v3092
    %v3098 = vlaneseq
    %v3099 = vshrl.u32 %v3098, 7
    %v3100 = vsub.s32 %v2521, %v3099
    %v3101 = vrot.slane %v1781, %v3100
    %v3102 = vlaneseq
    %v3103 = vshrl.u32 %v3102, 7
    %v3104 = vsub.s32 %v2526, %v3103
    %v3105 = vrot.slane %v1784, %v3104
    %v3106 = vsel %vm2531, %v3105, %v3101
    %v3107 = vlaneseq
    %v3108 = vshrl.u32 %v3107, 7
    %v3109 = vsub.s32 %v2533, %v3108
    %v3110 = vrot.slane %v1787, %v3109
    %v3111 = vsel %vm2538, %v3110, %v3106
    %v3112 = vlaneseq
    %v3113 = vshrl.u32 %v3112, 7
    %v3114 = vsub.s32 %v2540, %v3113
    %v3115 = vrot.slane %v1790, %v3114
    %v3116 = vsel %vm2545, %v3115, %v3111
    %v3117 = vlaneseq
    %v3118 = vshrl.u32 %v3117, 7
    %v3119 = vsub.s32 %v2521, %v3118
    %v3120 = vrot.slane %v1793, %v3119
    %v3121 = vlaneseq
    %v3122 = vshrl.u32 %v3121, 7
    %v3123 = vsub.s32 %v2526, %v3122
    %v3124 = vrot.slane %v1796, %v3123
    %v3125 = vsel %vm2531, %v3124, %v3120
    %v3126 = vlaneseq
    %v3127 = vshrl.u32 %v3126, 7
    %v3128 = vsub.s32 %v2533, %v3127
    %v3129 = vrot.slane %v1799, %v3128
    %v3130 = vsel %vm2538, %v3129, %v3125
    %v3131 = vlaneseq
    %v3132 = vshrl.u32 %v3131, 7
    %v3133 = vsub.s32 %v2540, %v3132
    %v3134 = vrot.slane %v1802, %v3133
    %v3135 = vsel %vm2545, %v3134, %v3130
    %v3136 = vlaneseq
    %v3137 = vshrl.u32 %v3136, 7
    %v3138 = vsub.s32 %v2521, %v3137
    %v3139 = vrot.slane %v1805, %v3138
    %v3140 = vlaneseq
    %v3141 = vshrl.u32 %v3140, 7
    %v3142 = vsub.s32 %v2526, %v3141
    %v3143 = vrot.slane %v1808, %v3142
    %v3144 = vsel %vm2531, %v3143, %v3139
    %v3145 = vlaneseq
    %v3146 = vshrl.u32 %v3145, 7
    %v3147 = vsub.s32 %v2533, %v3146
    %v3148 = vrot.slane %v1811, %v3147
    %v3149 = vsel %vm2538, %v3148, %v3144
    %v3150 = vlaneseq
    %v3151 = vshrl.u32 %v3150, 7
    %v3152 = vsub.s32 %v2540, %v3151
    %v3153 = vrot.slane %v1814, %v3152
    %v3154 = vsel %vm2545, %v3153, %v3149
    %v3155 = vlaneseq
    %v3156 = vshrl.u32 %v3155, 7
    %v3157 = vsub.s32 %v2521, %v3156
    %v3158 = vrot.slane %v1817, %v3157
    %v3159 = vlaneseq
    %v3160 = vshrl.u32 %v3159, 7
    %v3161 = vsub.s32 %v2526, %v3160
    %v3162 = vrot.slane %v1820, %v3161
    %v3163 = vsel %vm2531, %v3162, %v3158
    %v3164 = vlaneseq
    %v3165 = vshrl.u32 %v3164, 7
    %v3166 = vsub.s32 %v2533, %v3165
    %v3167 = vrot.slane %v1823, %v3166
    %v3168 = vsel %vm2538, %v3167, %v3163
    %v3169 = vlaneseq
    %v3170 = vshrl.u32 %v3169, 7
    %v3171 = vsub.s32 %v2540, %v3170
    %v3172 = vrot.slane %v1826, %v3171
    %v3173 = vsel %vm2545, %v3172, %v3168
    %v3174 = vlaneseq
    %v3175 = vshrl.u32 %v3174, 7
    %v3176 = vsub.s32 %v2521, %v3175
    %v3177 = vrot.slane %v1829, %v3176
    %v3178 = vlaneseq
    %v3179 = vshrl.u32 %v3178, 7
    %v3180 = vsub.s32 %v2526, %v3179
    %v3181 = vrot.slane %v1832, %v3180
    %v3182 = vsel %vm2531, %v3181, %v3177
    %v3183 = vlaneseq
    %v3184 = vshrl.u32 %v3183, 7
    %v3185 = vsub.s32 %v2533, %v3184
    %v3186 = vrot.slane %v1835, %v3185
    %v3187 = vsel %vm2538, %v3186, %v3182
    %v3188 = vlaneseq
    %v3189 = vshrl.u32 %v3188, 7
    %v3190 = vsub.s32 %v2540, %v3189
    %v3191 = vrot.slane %v1838, %v3190
    %v3192 = vsel %vm2545, %v3191, %v3187
    %v3193 = vlaneseq
    %v3194 = vshrl.u32 %v3193, 7
    %v3195 = vsub.s32 %v2521, %v3194
    %v3196 = vrot.slane %v1841, %v3195
    %v3197 = vlaneseq
    %v3198 = vshrl.u32 %v3197, 7
    %v3199 = vsub.s32 %v2526, %v3198
    %v3200 = vrot.slane %v1844, %v3199
    %v3201 = vsel %vm2531, %v3200, %v3196
    %v3202 = vlaneseq
    %v3203 = vshrl.u32 %v3202, 7
    %v3204 = vsub.s32 %v2533, %v3203
    %v3205 = vrot.slane %v1847, %v3204
    %v3206 = vsel %vm2538, %v3205, %v3201
    %v3207 = vlaneseq
    %v3208 = vshrl.u32 %v3207, 7
    %v3209 = vsub.s32 %v2540, %v3208
    %v3210 = vrot.slane %v1850, %v3209
    %v3211 = vsel %vm2545, %v3210, %v3206
    %v3212 = vlaneseq
    %v3213 = vshrl.u32 %v3212, 7
    %v3214 = vsub.s32 %v2521, %v3213
    %v3215 = vrot.slane %v1853, %v3214
    %v3216 = vlaneseq
    %v3217 = vshrl.u32 %v3216, 7
    %v3218 = vsub.s32 %v2526, %v3217
    %v3219 = vrot.slane %v1856, %v3218
    %v3220 = vsel %vm2531, %v3219, %v3215
    %v3221 = vlaneseq
    %v3222 = vshrl.u32 %v3221, 7
    %v3223 = vsub.s32 %v2533, %v3222
    %v3224 = vrot.slane %v1859, %v3223
    %v3225 = vsel %vm2538, %v3224, %v3220
    %v3226 = vlaneseq
    %v3227 = vshrl.u32 %v3226, 7
    %v3228 = vsub.s32 %v2540, %v3227
    %v3229 = vrot.slane %v1862, %v3228
    %v3230 = vsel %vm2545, %v3229, %v3225
    %v3231 = vlaneseq
    %v3232 = vshrl.u32 %v3231, 7
    %v3233 = vsub.s32 %v2521, %v3232
    %v3234 = vrot.slane %v1865, %v3233
    %v3235 = vlaneseq
    %v3236 = vshrl.u32 %v3235, 7
    %v3237 = vsub.s32 %v2526, %v3236
    %v3238 = vrot.slane %v1868, %v3237
    %v3239 = vsel %vm2531, %v3238, %v3234
    %v3240 = vlaneseq
    %v3241 = vshrl.u32 %v3240, 7
    %v3242 = vsub.s32 %v2533, %v3241
    %v3243 = vrot.slane %v1871, %v3242
    %v3244 = vsel %vm2538, %v3243, %v3239
    %v3245 = vlaneseq
    %v3246 = vshrl.u32 %v3245, 7
    %v3247 = vsub.s32 %v2540, %v3246
    %v3248 = vrot.slane %v1874, %v3247
    %v3249 = vsel %vm2545, %v3248, %v3244
    %v3250 = vlaneseq
    %v3251 = vshrl.u32 %v3250, 7
    %v3252 = vsub.s32 %v2521, %v3251
    %v3253 = vrot.slane %v1877, %v3252
    %v3254 = vlaneseq
    %v3255 = vshrl.u32 %v3254, 7
    %v3256 = vsub.s32 %v2526, %v3255
    %v3257 = vrot.slane %v1880, %v3256
    %v3258 = vsel %vm2531, %v3257, %v3253
    %v3259 = vlaneseq
    %v3260 = vshrl.u32 %v3259, 7
    %v3261 = vsub.s32 %v2533, %v3260
    %v3262 = vrot.slane %v1883, %v3261
    %v3263 = vsel %vm2538, %v3262, %v3258
    %v3264 = vlaneseq
    %v3265 = vshrl.u32 %v3264, 7
    %v3266 = vsub.s32 %v2540, %v3265
    %v3267 = vrot.slane %v1886, %v3266
    %v3268 = vsel %vm2545, %v3267, %v3263
    %v3269 = vlaneseq
    %v3270 = vshrl.u32 %v3269, 7
    %v3271 = vsub.s32 %v2521, %v3270
    %v3272 = vrot.slane %v1889, %v3271
    %v3273 = vlaneseq
    %v3274 = vshrl.u32 %v3273, 7
    %v3275 = vsub.s32 %v2526, %v3274
    %v3276 = vrot.slane %v1892, %v3275
    %v3277 = vsel %vm2531, %v3276, %v3272
    %v3278 = vlaneseq
    %v3279 = vshrl.u32 %v3278, 7
    %v3280 = vsub.s32 %v2533, %v3279
    %v3281 = vrot.slane %v1895, %v3280
    %v3282 = vsel %vm2538, %v3281, %v3277
    %v3283 = vlaneseq
    %v3284 = vshrl.u32 %v3283, 7
    %v3285 = vsub.s32 %v2540, %v3284
    %v3286 = vrot.slane %v1898, %v3285
    %v3287 = vsel %vm2545, %v3286, %v3282
    %v3288 = vlaneseq
    %v3289 = vshrl.u32 %v3288, 7
    %v3290 = vsub.s32 %v2521, %v3289
    %v3291 = vrot.slane %v1901, %v3290
    %v3292 = vlaneseq
    %v3293 = vshrl.u32 %v3292, 7
    %v3294 = vsub.s32 %v2526, %v3293
    %v3295 = vrot.slane %v1904, %v3294
    %v3296 = vsel %vm2531, %v3295, %v3291
    %v3297 = vlaneseq
    %v3298 = vshrl.u32 %v3297, 7
    %v3299 = vsub.s32 %v2533, %v3298
    %v3300 = vrot.slane %v1907, %v3299
    %v3301 = vsel %vm2538, %v3300, %v3296
    %v3302 = vlaneseq
    %v3303 = vshrl.u32 %v3302, 7
    %v3304 = vsub.s32 %v2540, %v3303
    %v3305 = vrot.slane %v1910, %v3304
    %v3306 = vsel %vm2545, %v3305, %v3301
    %v3307 = vlaneseq
    %v3308 = vshrl.u32 %v3307, 7
    %v3309 = vsub.s32 %v2521, %v3308
    %v3310 = vrot.slane %v1913, %v3309
    %v3311 = vlaneseq
    %v3312 = vshrl.u32 %v3311, 7
    %v3313 = vsub.s32 %v2526, %v3312
    %v3314 = vrot.slane %v1916, %v3313
    %v3315 = vsel %vm2531, %v3314, %v3310
    %v3316 = vlaneseq
    %v3317 = vshrl.u32 %v3316, 7
    %v3318 = vsub.s32 %v2533, %v3317
    %v3319 = vrot.slane %v1919, %v3318
    %v3320 = vsel %vm2538, %v3319, %v3315
    %v3321 = vlaneseq
    %v3322 = vshrl.u32 %v3321, 7
    %v3323 = vsub.s32 %v2540, %v3322
    %v3324 = vrot.slane %v1922, %v3323
    %v3325 = vsel %vm2545, %v3324, %v3320
    %v3326 = vlaneseq
    %v3327 = vshrl.u32 %v3326, 7
    %v3328 = vsub.s32 %v2521, %v3327
    %v3329 = vrot.slane %v1925, %v3328
    %v3330 = vlaneseq
    %v3331 = vshrl.u32 %v3330, 7
    %v3332 = vsub.s32 %v2526, %v3331
    %v3333 = vrot.slane %v1928, %v3332
    %v3334 = vsel %vm2531, %v3333, %v3329
    %v3335 = vlaneseq
    %v3336 = vshrl.u32 %v3335, 7
    %v3337 = vsub.s32 %v2533, %v3336
    %v3338 = vrot.slane %v1931, %v3337
    %v3339 = vsel %vm2538, %v3338, %v3334
    %v3340 = vlaneseq
    %v3341 = vshrl.u32 %v3340, 7
    %v3342 = vsub.s32 %v2540, %v3341
    %v3343 = vrot.slane %v1934, %v3342
    %v3344 = vsel %vm2545, %v3343, %v3339
    %v3345 = vlaneseq
    %v3346 = vshrl.u32 %v3345, 7
    %v3347 = vsub.s32 %v2521, %v3346
    %v3348 = vrot.slane %v1937, %v3347
    %v3349 = vlaneseq
    %v3350 = vshrl.u32 %v3349, 7
    %v3351 = vsub.s32 %v2526, %v3350
    %v3352 = vrot.slane %v1940, %v3351
    %v3353 = vsel %vm2531, %v3352, %v3348
    %v3354 = vlaneseq
    %v3355 = vshrl.u32 %v3354, 7
    %v3356 = vsub.s32 %v2533, %v3355
    %v3357 = vrot.slane %v1943, %v3356
    %v3358 = vsel %vm2538, %v3357, %v3353
    %v3359 = vlaneseq
    %v3360 = vshrl.u32 %v3359, 7
    %v3361 = vsub.s32 %v2540, %v3360
    %v3362 = vrot.slane %v1946, %v3361
    %v3363 = vsel %vm2545, %v3362, %v3358
    %v3364 = vlaneseq
    %v3365 = vshrl.u32 %v3364, 7
    %v3366 = vsub.s32 %v2521, %v3365
    %v3367 = vrot.slane %v1949, %v3366
    %v3368 = vlaneseq
    %v3369 = vshrl.u32 %v3368, 7
    %v3370 = vsub.s32 %v2526, %v3369
    %v3371 = vrot.slane %v1952, %v3370
    %v3372 = vsel %vm2531, %v3371, %v3367
    %v3373 = vlaneseq
    %v3374 = vshrl.u32 %v3373, 7
    %v3375 = vsub.s32 %v2533, %v3374
    %v3376 = vrot.slane %v1955, %v3375
    %v3377 = vsel %vm2538, %v3376, %v3372
    %v3378 = vlaneseq
    %v3379 = vshrl.u32 %v3378, 7
    %v3380 = vsub.s32 %v2540, %v3379
    %v3381 = vrot.slane %v1958, %v3380
    %v3382 = vsel %vm2545, %v3381, %v3377
    %v3383 = vlaneseq
    %v3384 = vshrl.u32 %v3383, 7
    %v3385 = vsub.s32 %v2521, %v3384
    %v3386 = vrot.slane %v1961, %v3385
    %v3387 = vlaneseq
    %v3388 = vshrl.u32 %v3387, 7
    %v3389 = vsub.s32 %v2526, %v3388
    %v3390 = vrot.slane %v1964, %v3389
    %v3391 = vsel %vm2531, %v3390, %v3386
    %v3392 = vlaneseq
    %v3393 = vshrl.u32 %v3392, 7
    %v3394 = vsub.s32 %v2533, %v3393
    %v3395 = vrot.slane %v1967, %v3394
    %v3396 = vsel %vm2538, %v3395, %v3391
    %v3397 = vlaneseq
    %v3398 = vshrl.u32 %v3397, 7
    %v3399 = vsub.s32 %v2540, %v3398
    %v3400 = vrot.slane %v1970, %v3399
    %v3401 = vsel %vm2545, %v3400, %v3396
    %v3402 = vlaneseq
    %v3403 = vshrl.u32 %v3402, 7
    %v3404 = vsub.s32 %v2521, %v3403
    %v3405 = vrot.slane %v1973, %v3404
    %v3406 = vlaneseq
    %v3407 = vshrl.u32 %v3406, 7
    %v3408 = vsub.s32 %v2526, %v3407
    %v3409 = vrot.slane %v1976, %v3408
    %v3410 = vsel %vm2531, %v3409, %v3405
    %v3411 = vlaneseq
    %v3412 = vshrl.u32 %v3411, 7
    %v3413 = vsub.s32 %v2533, %v3412
    %v3414 = vrot.slane %v1979, %v3413
    %v3415 = vsel %vm2538, %v3414, %v3410
    %v3416 = vlaneseq
    %v3417 = vshrl.u32 %v3416, 7
    %v3418 = vsub.s32 %v2540, %v3417
    %v3419 = vrot.slane %v1982, %v3418
    %v3420 = vsel %vm2545, %v3419, %v3415
    %v3421 = vlaneseq
    %v3422 = vshrl.u32 %v3421, 7
    %v3423 = vsub.s32 %v2521, %v3422
    %v3424 = vrot.slane %v1985, %v3423
    %v3425 = vlaneseq
    %v3426 = vshrl.u32 %v3425, 7
    %v3427 = vsub.s32 %v2526, %v3426
    %v3428 = vrot.slane %v1988, %v3427
    %v3429 = vsel %vm2531, %v3428, %v3424
    %v3430 = vlaneseq
    %v3431 = vshrl.u32 %v3430, 7
    %v3432 = vsub.s32 %v2533, %v3431
    %v3433 = vrot.slane %v1991, %v3432
    %v3434 = vsel %vm2538, %v3433, %v3429
    %v3435 = vlaneseq
    %v3436 = vshrl.u32 %v3435, 7
    %v3437 = vsub.s32 %v2540, %v3436
    %v3438 = vrot.slane %v1994, %v3437
    %v3439 = vsel %vm2545, %v3438, %v3434
    %v3440 = vlaneseq
    %v3441 = vshrl.u32 %v3440, 7
    %v3442 = vsub.s32 %v2521, %v3441
    %v3443 = vrot.slane %v1997, %v3442
    %v3444 = vlaneseq
    %v3445 = vshrl.u32 %v3444, 7
    %v3446 = vsub.s32 %v2526, %v3445
    %v3447 = vrot.slane %v2000, %v3446
    %v3448 = vsel %vm2531, %v3447, %v3443
    %v3449 = vlaneseq
    %v3450 = vshrl.u32 %v3449, 7
    %v3451 = vsub.s32 %v2533, %v3450
    %v3452 = vrot.slane %v2003, %v3451
    %v3453 = vsel %vm2538, %v3452, %v3448
    %v3454 = vlaneseq
    %v3455 = vshrl.u32 %v3454, 7
    %v3456 = vsub.s32 %v2540, %v3455
    %v3457 = vrot.slane %v2006, %v3456
    %v3458 = vsel %vm2545, %v3457, %v3453
    %v3459 = vlaneseq
    %v3460 = vshrl.u32 %v3459, 7
    %v3461 = vsub.s32 %v2521, %v3460
    %v3462 = vrot.slane %v2009, %v3461
    %v3463 = vlaneseq
    %v3464 = vshrl.u32 %v3463, 7
    %v3465 = vsub.s32 %v2526, %v3464
    %v3466 = vrot.slane %v2012, %v3465
    %v3467 = vsel %vm2531, %v3466, %v3462
    %v3468 = vlaneseq
    %v3469 = vshrl.u32 %v3468, 7
    %v3470 = vsub.s32 %v2533, %v3469
    %v3471 = vrot.slane %v2015, %v3470
    %v3472 = vsel %vm2538, %v3471, %v3467
    %v3473 = vlaneseq
    %v3474 = vshrl.u32 %v3473, 7
    %v3475 = vsub.s32 %v2540, %v3474
    %v3476 = vrot.slane %v2018, %v3475
    %v3477 = vsel %vm2545, %v3476, %v3472
    %v3478 = vlaneseq
    %v3479 = vshrl.u32 %v3478, 7
    %v3480 = vsub.s32 %v2521, %v3479
    %v3481 = vrot.slane %v2021, %v3480
    %v3482 = vlaneseq
    %v3483 = vshrl.u32 %v3482, 7
    %v3484 = vsub.s32 %v2526, %v3483
    %v3485 = vrot.slane %v2024, %v3484
    %v3486 = vsel %vm2531, %v3485, %v3481
    %v3487 = vlaneseq
    %v3488 = vshrl.u32 %v3487, 7
    %v3489 = vsub.s32 %v2533, %v3488
    %v3490 = vrot.slane %v2027, %v3489
    %v3491 = vsel %vm2538, %v3490, %v3486
    %v3492 = vlaneseq
    %v3493 = vshrl.u32 %v3492, 7
    %v3494 = vsub.s32 %v2540, %v3493
    %v3495 = vrot.slane %v2030, %v3494
    %v3496 = vsel %vm2545, %v3495, %v3491
    %v3497 = vlaneseq
    %v3498 = vshrl.u32 %v3497, 7
    %v3499 = vsub.s32 %v2521, %v3498
    %v3500 = vrot.slane %v2033, %v3499
    %v3501 = vlaneseq
    %v3502 = vshrl.u32 %v3501, 7
    %v3503 = vsub.s32 %v2526, %v3502
    %v3504 = vrot.slane %v2036, %v3503
    %v3505 = vsel %vm2531, %v3504, %v3500
    %v3506 = vlaneseq
    %v3507 = vshrl.u32 %v3506, 7
    %v3508 = vsub.s32 %v2533, %v3507
    %v3509 = vrot.slane %v2039, %v3508
    %v3510 = vsel %vm2538, %v3509, %v3505
    %v3511 = vlaneseq
    %v3512 = vshrl.u32 %v3511, 7
    %v3513 = vsub.s32 %v2540, %v3512
    %v3514 = vrot.slane %v2042, %v3513
    %v3515 = vsel %vm2545, %v3514, %v3510
    %v3516 = vlaneseq
    %v3517 = vshrl.u32 %v3516, 7
    %v3518 = vsub.s32 %v2521, %v3517
    %v3519 = vrot.slane %v2045, %v3518
    %v3520 = vlaneseq
    %v3521 = vshrl.u32 %v3520, 7
    %v3522 = vsub.s32 %v2526, %v3521
    %v3523 = vrot.slane %v2048, %v3522
    %v3524 = vsel %vm2531, %v3523, %v3519
    %v3525 = vlaneseq
    %v3526 = vshrl.u32 %v3525, 7
    %v3527 = vsub.s32 %v2533, %v3526
    %v3528 = vrot.slane %v2051, %v3527
    %v3529 = vsel %vm2538, %v3528, %v3524
    %v3530 = vlaneseq
    %v3531 = vshrl.u32 %v3530, 7
    %v3532 = vsub.s32 %v2540, %v3531
    %v3533 = vrot.slane %v2054, %v3532
    %v3534 = vsel %vm2545, %v3533, %v3529
    %v3535 = vlaneseq
    %v3536 = vshrl.u32 %v3535, 7
    %v3537 = vsub.s32 %v2521, %v3536
    %v3538 = vrot.slane %v2057, %v3537
    %v3539 = vlaneseq
    %v3540 = vshrl.u32 %v3539, 7
    %v3541 = vsub.s32 %v2526, %v3540
    %v3542 = vrot.slane %v2060, %v3541
    %v3543 = vsel %vm2531, %v3542, %v3538
    %v3544 = vlaneseq
    %v3545 = vshrl.u32 %v3544, 7
    %v3546 = vsub.s32 %v2533, %v3545
    %v3547 = vrot.slane %v2063, %v3546
    %v3548 = vsel %vm2538, %v3547, %v3543
    %v3549 = vlaneseq
    %v3550 = vshrl.u32 %v3549, 7
    %v3551 = vsub.s32 %v2540, %v3550
    %v3552 = vrot.slane %v2066, %v3551
    %v3553 = vsel %vm2545, %v3552, %v3548
    %v3554 = vlaneseq
    %v3555 = vshrl.u32 %v3554, 7
    %v3556 = vsub.s32 %v2521, %v3555
    %v3557 = vrot.slane %v2069, %v3556
    %v3558 = vlaneseq
    %v3559 = vshrl.u32 %v3558, 7
    %v3560 = vsub.s32 %v2526, %v3559
    %v3561 = vrot.slane %v2072, %v3560
    %v3562 = vsel %vm2531, %v3561, %v3557
    %v3563 = vlaneseq
    %v3564 = vshrl.u32 %v3563, 7
    %v3565 = vsub.s32 %v2533, %v3564
    %v3566 = vrot.slane %v2075, %v3565
    %v3567 = vsel %vm2538, %v3566, %v3562
    %v3568 = vlaneseq
    %v3569 = vshrl.u32 %v3568, 7
    %v3570 = vsub.s32 %v2540, %v3569
    %v3571 = vrot.slane %v2078, %v3570
    %v3572 = vsel %vm2545, %v3571, %v3567
    %v3573 = vlaneseq
    %v3574 = vshrl.u32 %v3573, 7
    %v3575 = vsub.s32 %v2521, %v3574
    %v3576 = vrot.slane %v2081, %v3575
    %v3577 = vlaneseq
    %v3578 = vshrl.u32 %v3577, 7
    %v3579 = vsub.s32 %v2526, %v3578
    %v3580 = vrot.slane %v2084, %v3579
    %v3581 = vsel %vm2531, %v3580, %v3576
    %v3582 = vlaneseq
    %v3583 = vshrl.u32 %v3582, 7
    %v3584 = vsub.s32 %v2533, %v3583
    %v3585 = vrot.slane %v2087, %v3584
    %v3586 = vsel %vm2538, %v3585, %v3581
    %v3587 = vlaneseq
    %v3588 = vshrl.u32 %v3587, 7
    %v3589 = vsub.s32 %v2540, %v3588
    %v3590 = vrot.slane %v2090, %v3589
    %v3591 = vsel %vm2545, %v3590, %v3586
    %v3592 = vlaneseq
    %v3593 = vshrl.u32 %v3592, 7
    %v3594 = vsub.s32 %v2521, %v3593
    %v3595 = vrot.slane %v2093, %v3594
    %v3596 = vlaneseq
    %v3597 = vshrl.u32 %v3596, 7
    %v3598 = vsub.s32 %v2526, %v3597
    %v3599 = vrot.slane %v2096, %v3598
    %v3600 = vsel %vm2531, %v3599, %v3595
    %v3601 = vlaneseq
    %v3602 = vshrl.u32 %v3601, 7
    %v3603 = vsub.s32 %v2533, %v3602
    %v3604 = vrot.slane %v2099, %v3603
    %v3605 = vsel %vm2538, %v3604, %v3600
    %v3606 = vlaneseq
    %v3607 = vshrl.u32 %v3606, 7
    %v3608 = vsub.s32 %v2540, %v3607
    %v3609 = vrot.slane %v2102, %v3608
    %v3610 = vsel %vm2545, %v3609, %v3605
    %v3611 = vlaneseq
    %v3612 = vshrl.u32 %v3611, 7
    %v3613 = vsub.s32 %v2521, %v3612
    %v3614 = vrot.slane %v2105, %v3613
    %v3615 = vlaneseq
    %v3616 = vshrl.u32 %v3615, 7
    %v3617 = vsub.s32 %v2526, %v3616
    %v3618 = vrot.slane %v2108, %v3617
    %v3619 = vsel %vm2531, %v3618, %v3614
    %v3620 = vlaneseq
    %v3621 = vshrl.u32 %v3620, 7
    %v3622 = vsub.s32 %v2533, %v3621
    %v3623 = vrot.slane %v2111, %v3622
    %v3624 = vsel %vm2538, %v3623, %v3619
    %v3625 = vlaneseq
    %v3626 = vshrl.u32 %v3625, 7
    %v3627 = vsub.s32 %v2540, %v3626
    %v3628 = vrot.slane %v2114, %v3627
    %v3629 = vsel %vm2545, %v3628, %v3624
    %v3630 = vlaneseq
    %v3631 = vshrl.u32 %v3630, 7
    %v3632 = vsub.s32 %v2521, %v3631
    %v3633 = vrot.slane %v2117, %v3632
    %v3634 = vlaneseq
    %v3635 = vshrl.u32 %v3634, 7
    %v3636 = vsub.s32 %v2526, %v3635
    %v3637 = vrot.slane %v2120, %v3636
    %v3638 = vsel %vm2531, %v3637, %v3633
    %v3639 = vlaneseq
    %v3640 = vshrl.u32 %v3639, 7
    %v3641 = vsub.s32 %v2533, %v3640
    %v3642 = vrot.slane %v2123, %v3641
    %v3643 = vsel %vm2538, %v3642, %v3638
    %v3644 = vlaneseq
    %v3645 = vshrl.u32 %v3644, 7
    %v3646 = vsub.s32 %v2540, %v3645
    %v3647 = vrot.slane %v2126, %v3646
    %v3648 = vsel %vm2545, %v3647, %v3643
    %v3649 = vlaneseq
    %v3650 = vshrl.u32 %v3649, 7
    %v3651 = vsub.s32 %v2521, %v3650
    %v3652 = vrot.slane %v2129, %v3651
    %v3653 = vlaneseq
    %v3654 = vshrl.u32 %v3653, 7
    %v3655 = vsub.s32 %v2526, %v3654
    %v3656 = vrot.slane %v2132, %v3655
    %v3657 = vsel %vm2531, %v3656, %v3652
    %v3658 = vlaneseq
    %v3659 = vshrl.u32 %v3658, 7
    %v3660 = vsub.s32 %v2533, %v3659
    %v3661 = vrot.slane %v2135, %v3660
    %v3662 = vsel %vm2538, %v3661, %v3657
    %v3663 = vlaneseq
    %v3664 = vshrl.u32 %v3663, 7
    %v3665 = vsub.s32 %v2540, %v3664
    %v3666 = vrot.slane %v2138, %v3665
    %v3667 = vsel %vm2545, %v3666, %v3662
    %v3668 = vlaneseq
    %v3669 = vshrl.u32 %v3668, 7
    %v3670 = vsub.s32 %v2521, %v3669
    %v3671 = vrot.slane %v2141, %v3670
    %v3672 = vlaneseq
    %v3673 = vshrl.u32 %v3672, 7
    %v3674 = vsub.s32 %v2526, %v3673
    %v3675 = vrot.slane %v2144, %v3674
    %v3676 = vsel %vm2531, %v3675, %v3671
    %v3677 = vlaneseq
    %v3678 = vshrl.u32 %v3677, 7
    %v3679 = vsub.s32 %v2533, %v3678
    %v3680 = vrot.slane %v2147, %v3679
    %v3681 = vsel %vm2538, %v3680, %v3676
    %v3682 = vlaneseq
    %v3683 = vshrl.u32 %v3682, 7
    %v3684 = vsub.s32 %v2540, %v3683
    %v3685 = vrot.slane %v2150, %v3684
    %v3686 = vsel %vm2545, %v3685, %v3681
    %v3687 = vlaneseq
    %v3688 = vshrl.u32 %v3687, 7
    %v3689 = vsub.s32 %v2521, %v3688
    %v3690 = vrot.slane %v2153, %v3689
    %v3691 = vlaneseq
    %v3692 = vshrl.u32 %v3691, 7
    %v3693 = vsub.s32 %v2526, %v3692
    %v3694 = vrot.slane %v2156, %v3693
    %v3695 = vsel %vm2531, %v3694, %v3690
    %v3696 = vlaneseq
    %v3697 = vshrl.u32 %v3696, 7
    %v3698 = vsub.s32 %v2533, %v3697
    %v3699 = vrot.slane %v2159, %v3698
    %v3700 = vsel %vm2538, %v3699, %v3695
    %v3701 = vlaneseq
    %v3702 = vshrl.u32 %v3701, 7
    %v3703 = vsub.s32 %v2540, %v3702
    %v3704 = vrot.slane %v2162, %v3703
    %v3705 = vsel %vm2545, %v3704, %v3700
    %v3706 = vlaneseq
    %v3707 = vshrl.u32 %v3706, 7
    %v3708 = vsub.s32 %v2521, %v3707
    %v3709 = vrot.slane %v2165, %v3708
    %v3710 = vlaneseq
    %v3711 = vshrl.u32 %v3710, 7
    %v3712 = vsub.s32 %v2526, %v3711
    %v3713 = vrot.slane %v2168, %v3712
    %v3714 = vsel %vm2531, %v3713, %v3709
    %v3715 = vlaneseq
    %v3716 = vshrl.u32 %v3715, 7
    %v3717 = vsub.s32 %v2533, %v3716
    %v3718 = vrot.slane %v2171, %v3717
    %v3719 = vsel %vm2538, %v3718, %v3714
    %v3720 = vlaneseq
    %v3721 = vshrl.u32 %v3720, 7
    %v3722 = vsub.s32 %v2540, %v3721
    %v3723 = vrot.slane %v2174, %v3722
    %v3724 = vsel %vm2545, %v3723, %v3719
    %v3725 = vlaneseq
    %v3726 = vshrl.u32 %v3725, 7
    %v3727 = vsub.s32 %v2521, %v3726
    %v3728 = vrot.slane %v2177, %v3727
    %v3729 = vlaneseq
    %v3730 = vshrl.u32 %v3729, 7
    %v3731 = vsub.s32 %v2526, %v3730
    %v3732 = vrot.slane %v2180, %v3731
    %v3733 = vsel %vm2531, %v3732, %v3728
    %v3734 = vlaneseq
    %v3735 = vshrl.u32 %v3734, 7
    %v3736 = vsub.s32 %v2533, %v3735
    %v3737 = vrot.slane %v2183, %v3736
    %v3738 = vsel %vm2538, %v3737, %v3733
    %v3739 = vlaneseq
    %v3740 = vshrl.u32 %v3739, 7
    %v3741 = vsub.s32 %v2540, %v3740
    %v3742 = vrot.slane %v2186, %v3741
    %v3743 = vsel %vm2545, %v3742, %v3738
    %vm3744 = vcmask 1041409
    %v3745 = vsel %vm3744, %v2565, %v2546
    %vm3746 = vcmask 1042434
    %v3747 = vsel %vm3746, %v2584, %v3745
    %vm3748 = vcmask 1043459
    %v3749 = vsel %vm3748, %v2603, %v3747
    %vm3750 = vcmask 1044484
    %v3751 = vsel %vm3750, %v2622, %v3749
    %vm3752 = vcmask 1045509
    %v3753 = vsel %vm3752, %v2641, %v3751
    %vm3754 = vcmask 1046534
    %v3755 = vsel %vm3754, %v2660, %v3753
    %vm3756 = vcmask 1047559
    %v3757 = vsel %vm3756, %v2679, %v3755
    %v3758 = vsel %vm3744, %v2717, %v2698
    %v3759 = vsel %vm3746, %v2736, %v3758
    %v3760 = vsel %vm3748, %v2755, %v3759
    %v3761 = vsel %vm3750, %v2774, %v3760
    %v3762 = vsel %vm3752, %v2793, %v3761
    %v3763 = vsel %vm3754, %v2812, %v3762
    %v3764 = vsel %vm3756, %v2831, %v3763
    %v3765 = vsel %vm3744, %v2869, %v2850
    %v3766 = vsel %vm3746, %v2888, %v3765
    %v3767 = vsel %vm3748, %v2907, %v3766
    %v3768 = vsel %vm3750, %v2926, %v3767
    %v3769 = vsel %vm3752, %v2945, %v3768
    %v3770 = vsel %vm3754, %v2964, %v3769
    %v3771 = vsel %vm3756, %v2983, %v3770
    %v3772 = vsel %vm3744, %v3021, %v3002
    %v3773 = vsel %vm3746, %v3040, %v3772
    %v3774 = vsel %vm3748, %v3059, %v3773
    %v3775 = vsel %vm3750, %v3078, %v3774
    %v3776 = vsel %vm3752, %v3097, %v3775
    %v3777 = vsel %vm3754, %v3116, %v3776
    %v3778 = vsel %vm3756, %v3135, %v3777
    %v3779 = vsel %vm3744, %v3173, %v3154
    %v3780 = vsel %vm3746, %v3192, %v3779
    %v3781 = vsel %vm3748, %v3211, %v3780
    %v3782 = vsel %vm3750, %v3230, %v3781
    %v3783 = vsel %vm3752, %v3249, %v3782
    %v3784 = vsel %vm3754, %v3268, %v3783
    %v3785 = vsel %vm3756, %v3287, %v3784
    %v3786 = vsel %vm3744, %v3325, %v3306
    %v3787 = vsel %vm3746, %v3344, %v3786
    %v3788 = vsel %vm3748, %v3363, %v3787
    %v3789 = vsel %vm3750, %v3382, %v3788
    %v3790 = vsel %vm3752, %v3401, %v3789
    %v3791 = vsel %vm3754, %v3420, %v3790
    %v3792 = vsel %vm3756, %v3439, %v3791
    %v3793 = vsel %vm3744, %v3477, %v3458
    %v3794 = vsel %vm3746, %v3496, %v3793
    %v3795 = vsel %vm3748, %v3515, %v3794
    %v3796 = vsel %vm3750, %v3534, %v3795
    %v3797 = vsel %vm3752, %v3553, %v3796
    %v3798 = vsel %vm3754, %v3572, %v3797
    %v3799 = vsel %vm3756, %v3591, %v3798
    %v3800 = vsel %vm3744, %v3629, %v3610
    %v3801 = vsel %vm3746, %v3648, %v3800
    %v3802 = vsel %vm3748, %v3667, %v3801
    %v3803 = vsel %vm3750, %v3686, %v3802
    %v3804 = vsel %vm3752, %v3705, %v3803
    %v3805 = vsel %vm3754, %v3724, %v3804
    %v3806 = vsel %vm3756, %v3743, %v3805
    %vm3815 = vcmask 523264
    %v3817 = vsel %vm3815, %v2187, 0
    %3819 = vmatprep.subr.mxu0 0.0
    %3820 = vmatpush1.msra.mxu0 0.0
    %3821 = vmatprep.subr.mxu0 0.0
    %3822 = vmatpush1.msra.mxu0 0.0
    %3823 = vmatprep.subr.mxu0 0.0
    %3824 = vmatpush1.msra.mxu0 0.0
    %3825 = vmatprep.subr.mxu0 0.0
    %3826 = vmatpush1.msra.mxu0 0.0
    %3827 = vmatprep.subr.mxu0 0.0
    %3828 = vmatpush1.msra.mxu0 0.0
    %3829 = vmatprep.subr.mxu0 0.0
    %3830 = vmatpush1.msra.mxu0 0.0
    %3831 = vmatprep.subr.mxu0 0.0
    %3832 = vmatpush1.msra.mxu0 0.0
    %3833 = vmatprep.subr.mxu0 0.0
    %3834 = vmatpush1.msra.mxu0 0.0
    %3835 = vmatprep.subr.mxu0 0.0
    %3836 = vmatpush1.msra.mxu0 %v3806
    %3837 = vmatprep.subr.mxu0 0.0
    %3838 = vmatpush1.msra.mxu0 %v3799
    %3839 = vmatprep.subr.mxu0 0.0
    %3840 = vmatpush1.msra.mxu0 %v3792
    %3841 = vmatprep.subr.mxu0 0.0
    %3842 = vmatpush1.msra.mxu0 %v3785
    %3843 = vmatprep.subr.mxu0 0.0
    %3844 = vmatpush1.msra.mxu0 %v3778
    %3845 = vmatprep.subr.mxu0 0.0
    %3846 = vmatpush1.msra.mxu0 %v3771
    %3847 = vmatprep.subr.mxu0 0.0
    %3848 = vmatpush1.msra.mxu0 %v3764
    %3849 = vmatprep.subr.mxu0 0.0
    %3850 = vmatpush1.msra.mxu0 %v3757
    %3851 = vmatprep.subr.mxu0 0.0
    %3852 = vmatpush2.msra.mxu0 0.0
    %3853 = vmatprep.subr.mxu0 0.0
    %3854 = vmatpush2.msra.mxu0 0.0
    %3855 = vmatprep.subr.mxu0 0.0
    %3856 = vmatpush2.msra.mxu0 0.0
    %3857 = vmatprep.subr.mxu0 0.0
    %3858 = vmatpush2.msra.mxu0 0.0
    %3859 = vmatprep.subr.mxu0 0.0
    %3860 = vmatpush2.msra.mxu0 0.0
    %3861 = vmatprep.subr.mxu0 0.0
    %3862 = vmatpush2.msra.mxu0 0.0
    %3863 = vmatprep.subr.mxu0 0.0
    %3864 = vmatpush2.msra.mxu0 0.0
    %3865 = vmatprep.subr.mxu0 0.0
    %3866 = vmatpush2.msra.mxu0 0.0
    %3867 = vmatprep.subr.mxu0 0.0
    %3868 = vmatpush2.msra.mxu0 0.0
    %3869 = vmatprep.subr.mxu0 0.0
    %3870 = vmatpush2.msra.mxu0 0.0
    %3871 = vmatprep.subr.mxu0 0.0
    %3872 = vmatpush2.msra.mxu0 0.0
    %3873 = vmatprep.subr.mxu0 0.0
    %3874 = vmatpush2.msra.mxu0 0.0
    %3875 = vmatprep.subr.mxu0 0.0
    %3876 = vmatpush2.msra.mxu0 0.0
    %3877 = vmatprep.subr.mxu0 0.0
    %3878 = vmatpush2.msra.mxu0 0.0
    %3879 = vmatprep.subr.mxu0 0.0
    %3880 = vmatpush2.msra.mxu0 0.0
    %3881 = vmatprep.subr.mxu0 0.0
    %3882 = vmatpush2.msra.mxu0 0.0
    %3883 = vmatprep.mubr.f32.mxu0 0.0
    %3884 = vmatmul.mubr.f32.gmra.mxu0 %v3817
    %v3885 = vpop.f32.mrf.mxu0
    %v3886 = vadd.f32 %v2261, %v3885
    %v3887 = vpop.f32.mrf.mxu0
    %3888 = vdwg.mxu0
    %v3889 = vsel %vm1418, %v3886, 0.0
    %v3890 = vrot.slane %v3889, 4
    %v3891 = vadd.f32 %v3889, %v3890
    %v3892 = vrot.slane %v3891, 2
    %v3893 = vadd.f32 %v3891, %v3892
    %v3894 = vrot.slane %v3893, 1
    %v3895 = vadd.f32 %v3893, %v3894
    %v3896 = vrcp.pop 8.0
    %v3897 = vmul.f32 %v3895, %v3896
    %v3898 = vld [vmem:[%s7] sm:$0xff]
    %v3899 = vld [vmem:[%s7 + $0x8] sm:$0xff]
    %v3900 = vld [vmem:[%s7 + $0x10] sm:$0xff]
    %v3901 = vld [vmem:[%s7 + $0x18] sm:$0xff]
    %v3902 = vld [vmem:[%s8] sm:$0x1]
    %v3904 = vsel %vm1418, %v3897, 0
    %3906 = vmatprep.subr.mxu0 0.0
    %3907 = vmatpush1.msra.mxu0 0.0
    %3908 = vmatprep.subr.mxu0 0.0
    %3909 = vmatpush1.msra.mxu0 0.0
    %3910 = vmatprep.subr.mxu0 0.0
    %3911 = vmatpush1.msra.mxu0 0.0
    %3912 = vmatprep.subr.mxu0 0.0
    %3913 = vmatpush1.msra.mxu0 0.0
    %3914 = vmatprep.subr.mxu0 0.0
    %3915 = vmatpush1.msra.mxu0 0.0
    %3916 = vmatprep.subr.mxu0 0.0
    %3917 = vmatpush1.msra.mxu0 0.0
    %3918 = vmatprep.subr.mxu0 0.0
    %3919 = vmatpush1.msra.mxu0 0.0
    %3920 = vmatprep.subr.mxu0 0.0
    %3921 = vmatpush1.msra.mxu0 0.0
    %3922 = vmatprep.subr.mxu0 0.0
    %3923 = vmatpush1.msra.mxu0 0.0
    %3924 = vmatprep.subr.mxu0 0.0
    %3925 = vmatpush1.msra.mxu0 0.0
    %3926 = vmatprep.subr.mxu0 0.0
    %3927 = vmatpush1.msra.mxu0 0.0
    %3928 = vmatprep.subr.mxu0 0.0
    %3929 = vmatpush1.msra.mxu0 0.0
    %3930 = vmatprep.subr.mxu0 0.0
    %3931 = vmatpush1.msra.mxu0 %v3901
    %3932 = vmatprep.subr.mxu0 0.0
    %3933 = vmatpush1.msra.mxu0 %v3900
    %3934 = vmatprep.subr.mxu0 0.0
    %3935 = vmatpush1.msra.mxu0 %v3899
    %3936 = vmatprep.subr.mxu0 0.0
    %3937 = vmatpush1.msra.mxu0 %v3898
    %3938 = vmatprep.subr.mxu0 0.0
    %3939 = vmatpush2.msra.mxu0 0.0
    %3940 = vmatprep.subr.mxu0 0.0
    %3941 = vmatpush2.msra.mxu0 0.0
    %3942 = vmatprep.subr.mxu0 0.0
    %3943 = vmatpush2.msra.mxu0 0.0
    %3944 = vmatprep.subr.mxu0 0.0
    %3945 = vmatpush2.msra.mxu0 0.0
    %3946 = vmatprep.subr.mxu0 0.0
    %3947 = vmatpush2.msra.mxu0 0.0
    %3948 = vmatprep.subr.mxu0 0.0
    %3949 = vmatpush2.msra.mxu0 0.0
    %3950 = vmatprep.subr.mxu0 0.0
    %3951 = vmatpush2.msra.mxu0 0.0
    %3952 = vmatprep.subr.mxu0 0.0
    %3953 = vmatpush2.msra.mxu0 0.0
    %3954 = vmatprep.subr.mxu0 0.0
    %3955 = vmatpush2.msra.mxu0 0.0
    %3956 = vmatprep.subr.mxu0 0.0
    %3957 = vmatpush2.msra.mxu0 0.0
    %3958 = vmatprep.subr.mxu0 0.0
    %3959 = vmatpush2.msra.mxu0 0.0
    %3960 = vmatprep.subr.mxu0 0.0
    %3961 = vmatpush2.msra.mxu0 0.0
    %3962 = vmatprep.subr.mxu0 0.0
    %3963 = vmatpush2.msra.mxu0 0.0
    %3964 = vmatprep.subr.mxu0 0.0
    %3965 = vmatpush2.msra.mxu0 0.0
    %3966 = vmatprep.subr.mxu0 0.0
    %3967 = vmatpush2.msra.mxu0 0.0
    %3968 = vmatprep.subr.mxu0 0.0
    %3969 = vmatpush2.msra.mxu0 0.0
    %3970 = vmatprep.mubr.f32.mxu0 0.0
    %3971 = vmatmul.mubr.f32.gmra.mxu0 %v3904
    %v3972 = vpop.f32.mrf.mxu0
    %v3973 = vadd.f32 %v3902, %v3972
    %v3974 = vpop.f32.mrf.mxu0
    %3975 = vdwg.mxu0
    %v3976 = vmax.f32 %v3973, 0.0
    %v3977 = vld [vmem:[%s9] sm:$0xff]
    %v3978 = vld [vmem:[%s9 + $0x8] sm:$0xff]
    %v3979 = vld [vmem:[%s9 + $0x10] sm:$0xff]
    %v3980 = vld [vmem:[%s9 + $0x18] sm:$0xff]
    %v3981 = vld [vmem:[#allocation2] sm:$0x1]
    %v3983 = vsel %vm1418, %v3976, 0
    %3985 = vmatprep.subr.mxu0 0.0
    %3986 = vmatpush1.msra.mxu0 0.0
    %3987 = vmatprep.subr.mxu0 0.0
    %3988 = vmatpush1.msra.mxu0 0.0
    %3989 = vmatprep.subr.mxu0 0.0
    %3990 = vmatpush1.msra.mxu0 0.0
    %3991 = vmatprep.subr.mxu0 0.0
    %3992 = vmatpush1.msra.mxu0 0.0
    %3993 = vmatprep.subr.mxu0 0.0
    %3994 = vmatpush1.msra.mxu0 0.0
    %3995 = vmatprep.subr.mxu0 0.0
    %3996 = vmatpush1.msra.mxu0 0.0
    %3997 = vmatprep.subr.mxu0 0.0
    %3998 = vmatpush1.msra.mxu0 0.0
    %3999 = vmatprep.subr.mxu0 0.0
    %4000 = vmatpush1.msra.mxu0 0.0
    %4001 = vmatprep.subr.mxu0 0.0
    %4002 = vmatpush1.msra.mxu0 0.0
    %4003 = vmatprep.subr.mxu0 0.0
    %4004 = vmatpush1.msra.mxu0 0.0
    %4005 = vmatprep.subr.mxu0 0.0
    %4006 = vmatpush1.msra.mxu0 0.0
    %4007 = vmatprep.subr.mxu0 0.0
    %4008 = vmatpush1.msra.mxu0 0.0
    %4009 = vmatprep.subr.mxu0 0.0
    %4010 = vmatpush1.msra.mxu0 %v3980
    %4011 = vmatprep.subr.mxu0 0.0
    %4012 = vmatpush1.msra.mxu0 %v3979
    %4013 = vmatprep.subr.mxu0 0.0
    %4014 = vmatpush1.msra.mxu0 %v3978
    %4015 = vmatprep.subr.mxu0 0.0
    %4016 = vmatpush1.msra.mxu0 %v3977
    %4017 = vmatprep.subr.mxu0 0.0
    %4018 = vmatpush2.msra.mxu0 0.0
    %4019 = vmatprep.subr.mxu0 0.0
    %4020 = vmatpush2.msra.mxu0 0.0
    %4021 = vmatprep.subr.mxu0 0.0
    %4022 = vmatpush2.msra.mxu0 0.0
    %4023 = vmatprep.subr.mxu0 0.0
    %4024 = vmatpush2.msra.mxu0 0.0
    %4025 = vmatprep.subr.mxu0 0.0
    %4026 = vmatpush2.msra.mxu0 0.0
    %4027 = vmatprep.subr.mxu0 0.0
    %4028 = vmatpush2.msra.mxu0 0.0
    %4029 = vmatprep.subr.mxu0 0.0
    %4030 = vmatpush2.msra.mxu0 0.0
    %4031 = vmatprep.subr.mxu0 0.0
    %4032 = vmatpush2.msra.mxu0 0.0
    %4033 = vmatprep.subr.mxu0 0.0
    %4034 = vmatpush2.msra.mxu0 0.0
    %4035 = vmatprep.subr.mxu0 0.0
    %4036 = vmatpush2.msra.mxu0 0.0
    %4037 = vmatprep.subr.mxu0 0.0
    %4038 = vmatpush2.msra.mxu0 0.0
    %4039 = vmatprep.subr.mxu0 0.0
    %4040 = vmatpush2.msra.mxu0 0.0
    %4041 = vmatprep.subr.mxu0 0.0
    %4042 = vmatpush2.msra.mxu0 0.0
    %4043 = vmatprep.subr.mxu0 0.0
    %4044 = vmatpush2.msra.mxu0 0.0
    %4045 = vmatprep.subr.mxu0 0.0
    %4046 = vmatpush2.msra.mxu0 0.0
    %4047 = vmatprep.subr.mxu0 0.0
    %4048 = vmatpush2.msra.mxu0 0.0
    %4049 = vmatprep.mubr.f32.mxu0 0.0
    %4050 = vmatmul.mubr.f32.gmra.mxu0 %v3983
    %v4051 = vpop.f32.mrf.mxu0
    %v4052 = vadd.f32 %v3981, %v4051
    %v4053 = vpop.f32.mrf.mxu0
    %4054 = vdwg.mxu0
    %vm4055 = vcmask 0
    %4056 = vst.msk [vmem:[#allocation3] sm:$0x1] %vm4055, %v4052
    // Predicated region
    $region46: #{se3_transformer_forward.7} parent=1 // pred_check
      _
    $region47: #{se3_transformer_forward.7} parent=1 // pred_check_branch
      %4058 = sbr.rel (0) target = $region49
    $region48: #{se3_transformer_forward.7} parent=1 // pred_region
      %s4060 = ssub.s32 16, 16
      %4061 = vsyncadd [#allocation4], %s4060
      %s4063 = sshll.u32 [#allocation3], 4
      %s4064 = int_to_ptr.vmem [resolvable:$true] %s4063
      %4066 = dma.vmem_to_hbm [thread:$0]  %s4064, 16, %s11, [#allocation4]
    $region49: #{se3_transformer_forward.7} parent=1 // pred_fallthru
      _
    // Predicated region
    $region50: #{se3_transformer_forward.7} parent=1 // pred_check
      _
    $region51: #{se3_transformer_forward.7} parent=1 // pred_check_branch
      %4068 = sbr.rel (0) target = $region53
    $region52: #{se3_transformer_forward.7} parent=1 // pred_region
      %4069 = dma.done [#allocation4], 16
    $region53: #{se3_transformer_forward.7} parent=1 // pred_fallthru
      _
    %4070 = vsyncpa [#allocation4], 1

</llo_original>
